<compile_context>
chip_gen: v6e
topology: v6e:2x2x1
jax: 0.10.0
libtpu: 0.0.40
codegen_flags: <defaults>
</compile_context>

<pallas_src>
import functools

import jax
import jax.numpy as jnp
import numpy as np
from jax.experimental import pallas as pl
from jax.experimental.pallas import tpu as pltpu

BN_EPS = 1e-5
_LANES = 128


def _round_up(a, b):
    return ((a + b - 1) // b) * b


def _cdiv(a, b):
    return (a + b - 1) // b


@functools.lru_cache(maxsize=None)
def _vmem_limit_bytes():
    """64 MiB scoped VMEM on v5e/v6e (128 MiB physical), conservative 32 MiB elsewhere."""
    try:
        kind = jax.devices()[0].device_kind.lower()
    except Exception:  # pragma: no cover - CPU / interpret fallback
        return 32 * 1024 * 1024
    if "v5" in kind or "v6" in kind:
        return 64 * 1024 * 1024
    return 32 * 1024 * 1024


# -----------------------------------------------------------------------------
# Pallas kernels
# -----------------------------------------------------------------------------
def _conv_kernel(p_ref, w_ref, y_ref, *stats_refs, valid_rows, tile_rows):
    """One M-tile of the conv-as-matmul (lane-packed).

    p_ref : (tile_r, f*K)    bf16  packed im2col patches (f original rows / packed row)
    w_ref : (f*K, f*Cout)    bf16  block-diagonal weight kron(I_f, W) -> lane-dense output
    y_ref : (tile_r, f*Cout) bf16 (f32 when no BN follows)  pre-BN conv output
    stats_refs (only when BN follows): per-tile partial sums for BatchNorm,
      computed from the f32 accumulator with the invalid tail rows masked out:
      sum_ref, sq_ref : (8, f*Cout) f32 (row-broadcast, row 0 is the payload)
    """
    y = jnp.dot(p_ref[...], w_ref[...], preferred_element_type=jnp.float32)
    y_ref[...] = y.astype(y_ref.dtype)
    if stats_refs:
        sum_ref, sq_ref = stats_refs
        base = pl.program_id(0) * tile_rows
        ridx = base + jax.lax.broadcasted_iota(jnp.int32, y.shape, 0)
        ym = jnp.where(ridx < valid_rows, y, 0.0)     # mask garbage tail rows (NaN-safe)
        s = jnp.sum(ym, axis=0, keepdims=True)
        sq = jnp.sum(ym * ym, axis=0, keepdims=True)
        sum_ref[...] = jnp.broadcast_to(s, sum_ref.shape)
        sq_ref[...] = jnp.broadcast_to(sq, sq_ref.shape)


def _bn_apply_kernel(*refs, residual, relu):
    """Tiled elementwise BN affine (precomputed scale/shift) + residual + ReLU (bf16 out)."""
    it = iter(refs)
    y_ref = next(it)                        # (tile_r, f*Cout) bf16
    scale_ref = next(it)                    # (1, f*Cout)      f32
    shift_ref = next(it)                    # (1, f*Cout)      f32
    r_ref = next(it) if residual else None  # (tile_r, f*Cout) bf16
    o_ref = next(it)                        # (tile_r, f*Cout) bf16
    y = y_ref[...].astype(jnp.float32) * scale_ref[...] + shift_ref[...]
    if residual:
        y = y + r_ref[...].astype(jnp.float32)
    if relu:
        y = jnp.maximum(y, 0.0)
    o_ref[...] = y.astype(o_ref.dtype)


def _maxpool_kernel(x_ref, o_ref):
    # x_ref: (tile, taps, g*C) -> max over the pooling-window (taps) axis, 128-lane wide.
    o_ref[...] = jnp.max(x_ref[...], axis=1)


# -----------------------------------------------------------------------------
# Weight preparation (eager, outside the jitted forward)
# -----------------------------------------------------------------------------
def _pack_conv_weight(w, lanes=_LANES):
    """torch-layout (Cout,Cin,3,3,3) -> {w2d (K,Cout), wblk (f*K, f*Cout)} in bf16."""
    Cout, Cin = int(w.shape[0]), int(w.shape[1])
    K = Cin * 27
    w2d = jnp.transpose(w, (2, 3, 4, 1, 0)).reshape(K, Cout)
    f = lanes // Cout if (lanes % Cout == 0) else 1
    wblk = jnp.kron(jnp.eye(f, dtype=w2d.dtype), w2d) if f > 1 else w2d
    return dict(w2d=w2d.astype(jnp.bfloat16), wblk=wblk.astype(jnp.bfloat16))


def prepare_params(params):
    """Precompute packed weights once (kron is NOT re-materialized per forward)."""
    def prep_block(p):
        return dict(w1=_pack_conv_weight(p["w1"]), g1=p["g1"], b1=p["b1"],
                    w2=_pack_conv_weight(p["w2"]), g2=p["g2"], b2=p["b2"],
                    w3=_pack_conv_weight(p["w3"]), g3=p["g3"], b3=p["b3"])
    return dict(block1=prep_block(params["block1"]),
                block2=prep_block(params["block2"]),
                conv_w=_pack_conv_weight(params["conv_w"]))


# -----------------------------------------------------------------------------
# Wrappers (padding / im2col / packing reshapes in plain JAX, compute in Pallas)
# -----------------------------------------------------------------------------
def _extract_patches(x, ksize, pad):
    """im2col: x (N,D,H,W,C) -> patches (N*Do*Ho*Wo, kd*kh*kw*C), stride 1."""
    N, D, H, W, C = x.shape
    kd, kh, kw = ksize
    pd, ph, pw = pad
    xp = jnp.pad(x, ((0, 0), (pd, pd), (ph, ph), (pw, pw), (0, 0)))
    Do, Ho, Wo = D + 2 * pd - kd + 1, H + 2 * ph - kh + 1, W + 2 * pw - kw + 1
    taps = []
    for a in range(kd):
        for b in range(kh):
            for c in range(kw):
                taps.append(xp[:, a:a + Do, b:b + Ho, c:c + Wo, :])
    pat = jnp.stack(taps, axis=-2)                          # (N,Do,Ho,Wo,27,C)
    return pat.reshape(N * Do * Ho * Wo, kd * kh * kw * C), (N, Do, Ho, Wo)


def conv3d_fused(x, wp, gamma=None, beta=None, residual=None, relu=False, padding=1):
    """3x3x3 conv (stride 1, no bias) with optional fused BN / residual / ReLU.

    x: (N,D,H,W,Cin) channels-last (any float dtype, cast to bf16 for the matmul).
    wp: prepared weight dict from _pack_conv_weight."""
    K, Cout = wp["w2d"].shape
    patches, (N, Do, Ho, Wo) = _extract_patches(
        x.astype(jnp.bfloat16), (3, 3, 3), (padding,) * 3)
    M = N * Do * Ho * Wo

    # Lane-dense packing: f original rows per packed row -> 128-lane-wide output.
    f = wp["wblk"].shape[1] // Cout
    if f > 1 and M % f != 0:
        f = 1                                                # tiny / ragged fallback
    w_mat = wp["wblk"] if f > 1 else wp["w2d"]
    cpack, kpack = f * Cout, f * K
    rows = M // f
    p_packed = patches.reshape(rows, kpack)                  # free row-major reshape

    # --- tile sizing: big tiles (<=512 rows, mult of 16), even count for v7x ---
    if rows >= 16:
        n_tiles = max(2, _cdiv(rows, 512))
        if n_tiles % 2:
            n_tiles += 1
        tile_r = _round_up(_cdiv(rows, n_tiles), 16)
        max_tile = max(16, (4 * 1024 * 1024 // (kpack * 2)) // 16 * 16)  # ~4MiB LHS cap
        tile_r = min(tile_r, max_tile)
        n_tiles = _cdiv(rows, tile_r)
    else:
        tile_r, n_tiles = rows, 1                            # full-extent single block
    rows_pad = n_tiles * tile_r                              # outputs sized to whole blocks

    bn = gamma is not None
    has_res = residual is not None
    assert bn or (not has_res and not relu)
    cparams = pltpu.CompilerParams(
        dimension_semantics=("parallel",), vmem_limit_bytes=_vmem_limit_bytes())

    # ---- pass A: tiled matmul (+ per-tile masked BN partial sums) -------------
    y_dtype = jnp.bfloat16 if bn else jnp.float32
    y_spec = pl.BlockSpec((tile_r, cpack), lambda i: (i, 0))
    y_shape = jax.ShapeDtypeStruct((rows_pad, cpack), y_dtype)
    if bn:
        stat_spec = pl.BlockSpec((8, cpack), lambda i: (i, 0))
        stat_shape = jax.ShapeDtypeStruct((n_tiles * 8, cpack), jnp.float32)
        out_specs = [y_spec, stat_spec, stat_spec]
        out_shape = [y_shape, stat_shape, stat_shape]
    else:
        out_specs, out_shape = y_spec, y_shape

    cost_a = pl.CostEstimate(
        flops=2 * rows_pad * kpack * cpack,
        transcendentals=0,
        bytes_accessed=rows * kpack * 2 + kpack * cpack * 2
        + rows_pad * cpack * (2 if bn else 4)
        + (2 * n_tiles * 8 * cpack * 4 if bn else 0))

    results = pl.pallas_call(
        functools.partial(_conv_kernel, valid_rows=rows, tile_rows=tile_r),
        grid=(n_tiles,),
        in_specs=[pl.BlockSpec((tile_r, kpack), lambda i: (i, 0)),
                  pl.BlockSpec((kpack, cpack), lambda i: (0, 0))],
        out_specs=out_specs,
        out_shape=out_shape,
        compiler_params=cparams,
        cost_estimate=cost_a,
    )(p_packed, w_mat)

    if not bn:
        out = results.reshape(rows_pad * f, Cout)[:M]
        return out.reshape(N, Do, Ho, Wo, Cout)

    y_packed, psum, psq = results

    # ---- tiny XLA glue: fold partial sums -> per-channel BN scale/shift -------
    col_sum = psum.reshape(n_tiles, 8, cpack)[:, 0, :].sum(axis=0)
    col_sq = psq.reshape(n_tiles, 8, cpack)[:, 0, :].sum(axis=0)
    ch_sum = col_sum.reshape(f, Cout).sum(axis=0)
    ch_sq = col_sq.reshape(f, Cout).sum(axis=0)
    mean = ch_sum / M
    var = ch_sq / M - mean * mean                            # biased var (training mode)
    inv = jax.lax.rsqrt(var + BN_EPS)
    scale_c = gamma.astype(jnp.float32) * inv
    shift_c = beta.astype(jnp.float32) - mean * scale_c
    scale = jnp.tile(scale_c, f).reshape(1, cpack)           # matches group-major packing
    shift = jnp.tile(shift_c, f).reshape(1, cpack)

    # ---- pass B: tiled BN-affine + residual + ReLU (bf16 streaming) -----------
    args = [y_packed, scale, shift]
    in_specs = [pl.BlockSpec((tile_r, cpack), lambda i: (i, 0)),
                pl.BlockSpec((1, cpack), lambda i: (0, 0)),
                pl.BlockSpec((1, cpack), lambda i: (0, 0))]
    if has_res:
        r = residual.astype(jnp.bfloat16).reshape(rows, cpack)   # no padding copy
        args.append(r)
        in_specs.append(pl.BlockSpec((tile_r, cpack), lambda i: (i, 0)))

    cost_b = pl.CostEstimate(
        flops=4 * rows_pad * cpack,
        transcendentals=0,
        bytes_accessed=(2 + int(has_res)) * rows_pad * cpack * 2 + 2 * cpack * 4)

    out = pl.pallas_call(
        functools.partial(_bn_apply_kernel, residual=has_res, relu=relu),
        grid=(n_tiles,),
        in_specs=in_specs,
        out_specs=pl.BlockSpec((tile_r, cpack), lambda i: (i, 0)),
        out_shape=jax.ShapeDtypeStruct((rows_pad, cpack), jnp.bfloat16),
        compiler_params=cparams,
        cost_estimate=cost_b,
    )(*args)

    out = out.reshape(rows_pad * f, Cout)[:M]
    return out.reshape(N, Do, Ho, Wo, Cout)


def maxpool3d(x, ksize, stride, pad):
    """MaxPool3d (floor mode, -inf padding), lane-dense (g windows packed to 128 lanes)."""
    assert ksize == stride
    N, D, H, W, C = x.shape
    kd, kh, kw = ksize
    pd, ph, pw = pad
    xp = jnp.pad(x, ((0, 0), (pd, pd), (ph, ph), (pw, pw), (0, 0)),
                 constant_values=-jnp.inf)
    Do = (D + 2 * pd - kd) // kd + 1
    Ho = (H + 2 * ph - kh) // kh + 1
    Wo = (W + 2 * pw - kw) // kw + 1
    xp = xp[:, :Do * kd, :Ho * kh, :Wo * kw, :]
    taps = kd * kh * kw
    # TODO(synk): this window gather/transpose is still an XLA HBM round trip.
    xr = xp.reshape(N, Do, kd, Ho, kh, Wo, kw, C)
    xr = xr.transpose(0, 1, 3, 5, 2, 4, 6, 7).reshape(N * Do * Ho * Wo, taps, C)
    m = N * Do * Ho * Wo

    g = _LANES // C if (_LANES % C == 0) else 1              # windows packed per row
    rows = _cdiv(m, g)
    if rows > 8:
        tile = min(512, _round_up(_cdiv(rows, 2), 8))        # >=2 tiles for v7x dual-TC
    else:
        tile = 8
    n_tiles = _cdiv(rows, tile)
    rows_pad = n_tiles * tile
    m_pad = rows_pad * g

    xr = jnp.pad(xr, ((0, m_pad - m), (0, 0), (0, 0)), constant_values=-jnp.inf)
    xr = xr.reshape(rows_pad, g, taps, C).transpose(0, 2, 1, 3).reshape(rows_pad, taps, g * C)

    isz = x.dtype.itemsize
    out = pl.pallas_call(
        _maxpool_kernel,
        grid=(n_tiles,),
        in_specs=[pl.BlockSpec((tile, taps, g * C), lambda i: (i, 0, 0))],
        out_specs=pl.BlockSpec((tile, g * C), lambda i: (i, 0)),
        out_shape=jax.ShapeDtypeStruct((rows_pad, g * C), x.dtype),
        compiler_params=pltpu.CompilerParams(
            dimension_semantics=("parallel",), vmem_limit_bytes=_vmem_limit_bytes()),
        cost_estimate=pl.CostEstimate(
            flops=rows_pad * taps * g * C, transcendentals=0,
            bytes_accessed=rows_pad * (taps + 1) * g * C * isz),
    )(xr)
    return out.reshape(m_pad, C)[:m].reshape(N, Do, Ho, Wo, C)


# -----------------------------------------------------------------------------
# Model forward (mirrors D_Res_3d_CNN.forward)
# -----------------------------------------------------------------------------
def residual_block_fwd(x, p):
    x1 = conv3d_fused(x, p["w1"], p["g1"], p["b1"], relu=True)
    x2 = conv3d_fused(x1, p["w2"], p["g2"], p["b2"], relu=True)
    # conv3 + BN fused with the skip connection (x1 + x3) and the final ReLU.
    return conv3d_fused(x2, p["w3"], p["g3"], p["b3"], residual=x1, relu=True)


def d_res_3d_cnn_forward(x, pp):
    """x: (N, D, H, W) float32 — the torch input before `x.unsqueeze(1)`."""
    x = x[..., None]                                        # unsqueeze(1) -> NDHWC, C=1
    x = residual_block_fwd(x, pp["block1"])
    x = maxpool3d(x, (4, 2, 2), (4, 2, 2), (0, 1, 1))
    x = residual_block_fwd(x, pp["block2"])
    x = maxpool3d(x, (4, 2, 2), (4, 2, 2), (2, 1, 1))
    x = conv3d_fused(x, pp["conv_w"], padding=0, relu=False)
    x = jnp.transpose(x.astype(jnp.float32), (0, 4, 1, 2, 3))   # back to NCDHW for flatten
    return x.reshape(x.shape[0], -1)


def init_params(key, in_channel, c1, c2):
    """Deterministic synthetic parameters matching the PyTorch module's shapes."""
    def conv_w(k, cout, cin):
        fan_in = cin * 27
        return jax.random.normal(k, (cout, cin, 3, 3, 3), jnp.float32) / np.sqrt(fan_in)

    def bn_p(k, c):
        k1, k2 = jax.random.split(k)
        return (1.0 + 0.1 * jax.random.normal(k1, (c,), jnp.float32),
                0.1 * jax.random.normal(k2, (c,), jnp.float32))

    def block(k, cin, cout):
        ks = jax.random.split(k, 6)
        g1, b1 = bn_p(ks[3], cout)
        g2, b2 = bn_p(ks[4], cout)
        g3, b3 = bn_p(ks[5], cout)
        return dict(w1=conv_w(ks[0], cout, cin), g1=g1, b1=b1,
                    w2=conv_w(ks[1], cout, cout), g2=g2, b2=b2,
                    w3=conv_w(ks[2], cout, cout), g3=g3, b3=b3)

    k1, k2, k3 = jax.random.split(key, 3)
    return dict(block1=block(k1, in_channel, c1),
                block2=block(k2, c1, c2),
                conv_w=conv_w(k3, 32, c2))


# -----------------------------------------------------------------------------
# Pure-JAX (XLA) reference of the PyTorch forward, used only for verification.
# -----------------------------------------------------------------------------
def _reference_forward(x, params):
    def conv3d(x, w, padding):
        return jax.lax.conv_general_dilated(
            x, w, (1, 1, 1), [(padding, padding)] * 3,
            dimension_numbers=("NCDHW", "OIDHW", "NCDHW"))

    def bn(x, gamma, beta):
        mean = jnp.mean(x, axis=(0, 2, 3, 4), keepdims=True)
        var = jnp.mean(jnp.square(x - mean), axis=(0, 2, 3, 4), keepdims=True)
        xh = (x - mean) * jax.lax.rsqrt(var + BN_EPS)
        return xh * gamma.reshape(1, -1, 1, 1, 1) + beta.reshape(1, -1, 1, 1, 1)

    def block(x, p):
        x1 = jax.nn.relu(bn(conv3d(x, p["w1"], 1), p["g1"], p["b1"]))
        x2 = jax.nn.relu(bn(conv3d(x1, p["w2"], 1), p["g2"], p["b2"]))
        x3 = bn(conv3d(x2, p["w3"], 1), p["g3"], p["b3"])
        return jax.nn.relu(x1 + x3)

    def pool(x, k, s, p):
        return jax.lax.reduce_window(
            x, -jnp.inf, jax.lax.max, (1, 1) + k, (1, 1) + s,
            [(0, 0), (0, 0), (p[0], p[0]), (p[1], p[1]), (p[2], p[2])])

    x = x[:, None]
    x = block(x, params["block1"])
    x = pool(x, (4, 2, 2), (4, 2, 2), (0, 1, 1))
    x = block(x, params["block2"])
    x = pool(x, (4, 2, 2), (4, 2, 2), (2, 1, 1))
    x = conv3d(x, params["conv_w"], 0)
    return x.reshape(x.shape[0], -1)


if __name__ == "__main__":
    key = jax.random.PRNGKey(0)
    kp, kx = jax.random.split(key)

    # D_Res_3d_CNN(in_channel=1, out_channel1=4, out_channel2=8)
    # Small input (N=2, D=32, H=9, W=9) -> final feature map (2,32,1,1,1) -> (2, 32).
    params = init_params(kp, in_channel=1, c1=4, c2=8)
    packed = prepare_params(params)         # eager: kron weights built once, outside jit
    x = jax.random.normal(kx, (2, 32, 9, 9), jnp.float32)

    out = jax.jit(d_res_3d_cnn_forward)(x, packed)
    out = jax.block_until_ready(out)

    ref = jax.jit(_reference_forward)(x, params)
    ref = jax.block_until_ready(ref)

    err = float(jnp.max(jnp.abs(out - ref)))
    ref_scale = float(jnp.max(jnp.abs(ref)))
    assert out.shape == (2, 32), out.shape
    # bf16 matmul operands / intermediates (f32 accumulation + BN math) -> scaled tolerance.
    assert err <= 0.05 * ref_scale + 0.05, f"max abs diff {err} (ref max {ref_scale})"
    print("KERNEL_OK")
</pallas_src>

<mosaic_0001>
module attributes {stable_mosaic.version = 11 : i64} {
  func.func @_conv_kernel(%arg0: i32, %arg1: memref<96x864xbf16, #tpu.memory_space<vmem>>, %arg2: memref<864x128xbf16, #tpu.memory_space<vmem>>, %arg3: memref<96x128xbf16, #tpu.memory_space<vmem>>, %arg4: memref<8x128xf32, #tpu.memory_space<vmem>>, %arg5: memref<8x128xf32, #tpu.memory_space<vmem>>) attributes {dimension_semantics = [#tpu.dimension_semantics<parallel>], iteration_bounds = array<i64: 2>, scalar_prefetch = 0 : i64, scratch_operands = 0 : i64, tpu.core_type = #tpu.core_type<tc>, window_params = [{transform_indices = @transform_0, window_bounds = array<i64: 96, 864>}, {pipeline_mode = #tpu.pipeline_mode<synchronous>, transform_indices = @transform_1, window_bounds = array<i64: 864, 128>}, {transform_indices = @transform_2, window_bounds = array<i64: 96, 128>}, {transform_indices = @transform_3, window_bounds = array<i64: 8, 128>}, {transform_indices = @transform_4, window_bounds = array<i64: 8, 128>}]} {
    %c0 = arith.constant 0 : index
    %c0_0 = arith.constant 0 : index
    %0 = vector.load %arg1[%c0, %c0_0] : memref<96x864xbf16, #tpu.memory_space<vmem>>, vector<96x864xbf16>
    %c0_1 = arith.constant 0 : index
    %c0_2 = arith.constant 0 : index
    %1 = vector.load %arg2[%c0_1, %c0_2] : memref<864x128xbf16, #tpu.memory_space<vmem>>, vector<864x128xbf16>
    %cst = arith.constant dense<0.000000e+00> : vector<96x128xf32>
    %2 = tpu.matmul %0, %1, %cst {dimension_numbers = #tpu.dot_dimension_numbers<[1], [0], [0], [1], [0, 0, 1, 1], [], []>} : vector<96x864xbf16>, vector<864x128xbf16>, vector<96x128xf32> -> vector<96x128xf32>
    %3 = arith.truncf %2 : vector<96x128xf32> to vector<96x128xbf16>
    %c0_3 = arith.constant 0 : index
    %c0_4 = arith.constant 0 : index
    %4 = vector.load %arg3[%c0_3, %c0_4] : memref<96x128xbf16, #tpu.memory_space<vmem>>, vector<96x128xbf16>
    tpu.vector_store %arg3[%c0_3, %c0_4], %3 {strides = array<i32>} : memref<96x128xbf16, #tpu.memory_space<vmem>>, vector<96x128xbf16>,
    %c96_i32 = arith.constant 96 : i32
    %5 = arith.muli %arg0, %c96_i32 : i32
    %6 = tpu.iota {dimensions = array<i32: 0>} : vector<96x128xi32>
    %7 = vector.broadcast %5 : i32 to vector<96x128xi32>
    %8 = arith.addi %7, %6 : vector<96x128xi32>
    %c162_i32 = arith.constant 162 : i32
    %9 = vector.broadcast %c162_i32 : i32 to vector<96x128xi32>
    %10 = arith.cmpi slt, %8, %9 : vector<96x128xi32>
    %cst_5 = arith.constant 0.000000e+00 : f32
    %11 = vector.broadcast %cst_5 : f32 to vector<96x128xf32>
    %12 = arith.select %10, %2, %11 : vector<96x128xi1>, vector<96x128xf32>
    %cst_6 = arith.constant dense<0.000000e+00> : vector<128xf32>
    %13 = vector.multi_reduction <add>, %12, %cst_6 [0] : vector<96x128xf32> to vector<128xf32>
    %14 = vector.shape_cast %13 : vector<128xf32> to vector<1x128xf32>
    %15 = arith.mulf %12, %12 : vector<96x128xf32>
    %cst_7 = arith.constant dense<0.000000e+00> : vector<128xf32>
    %16 = vector.multi_reduction <add>, %15, %cst_7 [0] : vector<96x128xf32> to vector<128xf32>
    %17 = vector.shape_cast %16 : vector<128xf32> to vector<1x128xf32>
    %18 = vector.shape_cast %14 : vector<1x128xf32> to vector<1x128xf32>
    %19 = vector.broadcast %18 : vector<1x128xf32> to vector<8x128xf32>
    %c0_8 = arith.constant 0 : index
    %c0_9 = arith.constant 0 : index
    %20 = vector.load %arg4[%c0_8, %c0_9] : memref<8x128xf32, #tpu.memory_space<vmem>>, vector<8x128xf32>
    tpu.vector_store %arg4[%c0_8, %c0_9], %19 {strides = array<i32>} : memref<8x128xf32, #tpu.memory_space<vmem>>, vector<8x128xf32>,
    %21 = vector.shape_cast %17 : vector<1x128xf32> to vector<1x128xf32>
    %22 = vector.broadcast %21 : vector<1x128xf32> to vector<8x128xf32>
    %c0_10 = arith.constant 0 : index
    %c0_11 = arith.constant 0 : index
    %23 = vector.load %arg5[%c0_10, %c0_11] : memref<8x128xf32, #tpu.memory_space<vmem>>, vector<8x128xf32>
    tpu.vector_store %arg5[%c0_10, %c0_11], %22 {strides = array<i32>} : memref<8x128xf32, #tpu.memory_space<vmem>>, vector<8x128xf32>,
    return
  }
  func.func @transform_0(%arg0: i32) -> (i32, i32) {
    %c0_i32 = arith.constant 0 : i32
    %c0_i32_0 = arith.constant 0 : i32
    return %arg0, %c0_i32 : i32, i32
  }
  func.func @transform_1(%arg0: i32) -> (i32, i32) {
    %c0_i32 = arith.constant 0 : i32
    %c0_i32_0 = arith.constant 0 : i32
    %c0_i32_1 = arith.constant 0 : i32
    return %c0_i32, %c0_i32_0 : i32, i32
  }
  func.func @transform_2(%arg0: i32) -> (i32, i32) {
    %c0_i32 = arith.constant 0 : i32
    %c0_i32_0 = arith.constant 0 : i32
    return %arg0, %c0_i32 : i32, i32
  }
  func.func @transform_3(%arg0: i32) -> (i32, i32) {
    %c0_i32 = arith.constant 0 : i32
    %c0_i32_0 = arith.constant 0 : i32
    return %arg0, %c0_i32 : i32, i32
  }
  func.func @transform_4(%arg0: i32) -> (i32, i32) {
    %c0_i32 = arith.constant 0 : i32
    %c0_i32_0 = arith.constant 0 : i32
    return %arg0, %c0_i32 : i32, i32
  }
}

module attributes {stable_mosaic.version = 11 : i64} {
  func.func @_bn_apply_kernel(%arg0: i32, %arg1: memref<96x128xbf16, #tpu.memory_space<vmem>>, %arg2: memref<1x128xf32, #tpu.memory_space<vmem>>, %arg3: memref<1x128xf32, #tpu.memory_space<vmem>>, %arg4: memref<96x128xbf16, #tpu.memory_space<vmem>>) attributes {dimension_semantics = [#tpu.dimension_semantics<parallel>], iteration_bounds = array<i64: 2>, scalar_prefetch = 0 : i64, scratch_operands = 0 : i64, tpu.core_type = #tpu.core_type<tc>, window_params = [{transform_indices = @transform_0, window_bounds = array<i64: 96, 128>}, {pipeline_mode = #tpu.pipeline_mode<synchronous>, transform_indices = @transform_1, window_bounds = array<i64: 1, 128>}, {pipeline_mode = #tpu.pipeline_mode<synchronous>, transform_indices = @transform_2, window_bounds = array<i64: 1, 128>}, {transform_indices = @transform_3, window_bounds = array<i64: 96, 128>}]} {
    %c0 = arith.constant 0 : index
    %c0_0 = arith.constant 0 : index
    %0 = vector.load %arg1[%c0, %c0_0] : memref<96x128xbf16, #tpu.memory_space<vmem>>, vector<96x128xbf16>
    %1 = arith.extf %0 : vector<96x128xbf16> to vector<96x128xf32>
    %c0_1 = arith.constant 0 : index
    %c0_2 = arith.constant 0 : index
    %2 = vector.load %arg2[%c0_1, %c0_2] : memref<1x128xf32, #tpu.memory_space<vmem>>, vector<1x128xf32>
    %3 = vector.broadcast %2 : vector<1x128xf32> to vector<96x128xf32>
    %4 = arith.mulf %1, %3 : vector<96x128xf32>
    %c0_3 = arith.constant 0 : index
    %c0_4 = arith.constant 0 : index
    %5 = vector.load %arg3[%c0_3, %c0_4] : memref<1x128xf32, #tpu.memory_space<vmem>>, vector<1x128xf32>
    %6 = vector.broadcast %5 : vector<1x128xf32> to vector<96x128xf32>
    %7 = arith.addf %4, %6 : vector<96x128xf32>
    %cst = arith.constant 0.000000e+00 : f32
    %8 = vector.broadcast %cst : f32 to vector<96x128xf32>
    %9 = arith.maximumf %7, %8 : vector<96x128xf32>
    %10 = arith.truncf %9 : vector<96x128xf32> to vector<96x128xbf16>
    %c0_5 = arith.constant 0 : index
    %c0_6 = arith.constant 0 : index
    %11 = vector.load %arg4[%c0_5, %c0_6] : memref<96x128xbf16, #tpu.memory_space<vmem>>, vector<96x128xbf16>
    tpu.vector_store %arg4[%c0_5, %c0_6], %10 {strides = array<i32>} : memref<96x128xbf16, #tpu.memory_space<vmem>>, vector<96x128xbf16>,
    return
  }
  func.func @transform_0(%arg0: i32) -> (i32, i32) {
    %c0_i32 = arith.constant 0 : i32
    %c0_i32_0 = arith.constant 0 : i32
    return %arg0, %c0_i32 : i32, i32
  }
  func.func @transform_1(%arg0: i32) -> (i32, i32) {
    %c0_i32 = arith.constant 0 : i32
    %c0_i32_0 = arith.constant 0 : i32
    %c0_i32_1 = arith.constant 0 : i32
    return %c0_i32, %c0_i32_0 : i32, i32
  }
  func.func @transform_2(%arg0: i32) -> (i32, i32) {
    %c0_i32 = arith.constant 0 : i32
    %c0_i32_0 = arith.constant 0 : i32
    %c0_i32_1 = arith.constant 0 : i32
    return %c0_i32, %c0_i32_0 : i32, i32
  }
  func.func @transform_3(%arg0: i32) -> (i32, i32) {
    %c0_i32 = arith.constant 0 : i32
    %c0_i32_0 = arith.constant 0 : i32
    return %arg0, %c0_i32 : i32, i32
  }
}

module attributes {stable_mosaic.version = 11 : i64} {
  func.func @_conv_kernel(%arg0: i32, %arg1: memref<96x3456xbf16, #tpu.memory_space<vmem>>, %arg2: memref<3456x128xbf16, #tpu.memory_space<vmem>>, %arg3: memref<96x128xbf16, #tpu.memory_space<vmem>>, %arg4: memref<8x128xf32, #tpu.memory_space<vmem>>, %arg5: memref<8x128xf32, #tpu.memory_space<vmem>>) attributes {dimension_semantics = [#tpu.dimension_semantics<parallel>], iteration_bounds = array<i64: 2>, scalar_prefetch = 0 : i64, scratch_operands = 0 : i64, tpu.core_type = #tpu.core_type<tc>, window_params = [{transform_indices = @transform_0, window_bounds = array<i64: 96, 3456>}, {pipeline_mode = #tpu.pipeline_mode<synchronous>, transform_indices = @transform_1, window_bounds = array<i64: 3456, 128>}, {transform_indices = @transform_2, window_bounds = array<i64: 96, 128>}, {transform_indices = @transform_3, window_bounds = array<i64: 8, 128>}, {transform_indices = @transform_4, window_bounds = array<i64: 8, 128>}]} {
    %c0 = arith.constant 0 : index
    %c0_0 = arith.constant 0 : index
    %0 = vector.load %arg1[%c0, %c0_0] : memref<96x3456xbf16, #tpu.memory_space<vmem>>, vector<96x3456xbf16>
    %c0_1 = arith.constant 0 : index
    %c0_2 = arith.constant 0 : index
    %1 = vector.load %arg2[%c0_1, %c0_2] : memref<3456x128xbf16, #tpu.memory_space<vmem>>, vector<3456x128xbf16>
    %cst = arith.constant dense<0.000000e+00> : vector<96x128xf32>
    %2 = tpu.matmul %0, %1, %cst {dimension_numbers = #tpu.dot_dimension_numbers<[1], [0], [0], [1], [0, 0, 1, 1], [], []>} : vector<96x3456xbf16>, vector<3456x128xbf16>, vector<96x128xf32> -> vector<96x128xf32>
    %3 = arith.truncf %2 : vector<96x128xf32> to vector<96x128xbf16>
    %c0_3 = arith.constant 0 : index
    %c0_4 = arith.constant 0 : index
    %4 = vector.load %arg3[%c0_3, %c0_4] : memref<96x128xbf16, #tpu.memory_space<vmem>>, vector<96x128xbf16>
    tpu.vector_store %arg3[%c0_3, %c0_4], %3 {strides = array<i32>} : memref<96x128xbf16, #tpu.memory_space<vmem>>, vector<96x128xbf16>,
    %c96_i32 = arith.constant 96 : i32
    %5 = arith.muli %arg0, %c96_i32 : i32
    %6 = tpu.iota {dimensions = array<i32: 0>} : vector<96x128xi32>
    %7 = vector.broadcast %5 : i32 to vector<96x128xi32>
    %8 = arith.addi %7, %6 : vector<96x128xi32>
    %c162_i32 = arith.constant 162 : i32
    %9 = vector.broadcast %c162_i32 : i32 to vector<96x128xi32>
    %10 = arith.cmpi slt, %8, %9 : vector<96x128xi32>
    %cst_5 = arith.constant 0.000000e+00 : f32
    %11 = vector.broadcast %cst_5 : f32 to vector<96x128xf32>
    %12 = arith.select %10, %2, %11 : vector<96x128xi1>, vector<96x128xf32>
    %cst_6 = arith.constant dense<0.000000e+00> : vector<128xf32>
    %13 = vector.multi_reduction <add>, %12, %cst_6 [0] : vector<96x128xf32> to vector<128xf32>
    %14 = vector.shape_cast %13 : vector<128xf32> to vector<1x128xf32>
    %15 = arith.mulf %12, %12 : vector<96x128xf32>
    %cst_7 = arith.constant dense<0.000000e+00> : vector<128xf32>
    %16 = vector.multi_reduction <add>, %15, %cst_7 [0] : vector<96x128xf32> to vector<128xf32>
    %17 = vector.shape_cast %16 : vector<128xf32> to vector<1x128xf32>
    %18 = vector.shape_cast %14 : vector<1x128xf32> to vector<1x128xf32>
    %19 = vector.broadcast %18 : vector<1x128xf32> to vector<8x128xf32>
    %c0_8 = arith.constant 0 : index
    %c0_9 = arith.constant 0 : index
    %20 = vector.load %arg4[%c0_8, %c0_9] : memref<8x128xf32, #tpu.memory_space<vmem>>, vector<8x128xf32>
    tpu.vector_store %arg4[%c0_8, %c0_9], %19 {strides = array<i32>} : memref<8x128xf32, #tpu.memory_space<vmem>>, vector<8x128xf32>,
    %21 = vector.shape_cast %17 : vector<1x128xf32> to vector<1x128xf32>
    %22 = vector.broadcast %21 : vector<1x128xf32> to vector<8x128xf32>
    %c0_10 = arith.constant 0 : index
    %c0_11 = arith.constant 0 : index
    %23 = vector.load %arg5[%c0_10, %c0_11] : memref<8x128xf32, #tpu.memory_space<vmem>>, vector<8x128xf32>
    tpu.vector_store %arg5[%c0_10, %c0_11], %22 {strides = array<i32>} : memref<8x128xf32, #tpu.memory_space<vmem>>, vector<8x128xf32>,
    return
  }
  func.func @transform_0(%arg0: i32) -> (i32, i32) {
    %c0_i32 = arith.constant 0 : i32
    %c0_i32_0 = arith.constant 0 : i32
    return %arg0, %c0_i32 : i32, i32
  }
  func.func @transform_1(%arg0: i32) -> (i32, i32) {
    %c0_i32 = arith.constant 0 : i32
    %c0_i32_0 = arith.constant 0 : i32
    %c0_i32_1 = arith.constant 0 : i32
    return %c0_i32, %c0_i32_0 : i32, i32
  }
  func.func @transform_2(%arg0: i32) -> (i32, i32) {
    %c0_i32 = arith.constant 0 : i32
    %c0_i32_0 = arith.constant 0 : i32
    return %arg0, %c0_i32 : i32, i32
  }
  func.func @transform_3(%arg0: i32) -> (i32, i32) {
    %c0_i32 = arith.constant 0 : i32
    %c0_i32_0 = arith.constant 0 : i32
    return %arg0, %c0_i32 : i32, i32
  }
  func.func @transform_4(%arg0: i32) -> (i32, i32) {
    %c0_i32 = arith.constant 0 : i32
    %c0_i32_0 = arith.constant 0 : i32
    return %arg0, %c0_i32 : i32, i32
  }
}

module attributes {stable_mosaic.version = 11 : i64} {
  func.func @_bn_apply_kernel(%arg0: i32, %arg1: memref<96x128xbf16, #tpu.memory_space<vmem>>, %arg2: memref<1x128xf32, #tpu.memory_space<vmem>>, %arg3: memref<1x128xf32, #tpu.memory_space<vmem>>, %arg4: memref<96x128xbf16, #tpu.memory_space<vmem>>, %arg5: memref<96x128xbf16, #tpu.memory_space<vmem>>) attributes {dimension_semantics = [#tpu.dimension_semantics<parallel>], iteration_bounds = array<i64: 2>, scalar_prefetch = 0 : i64, scratch_operands = 0 : i64, tpu.core_type = #tpu.core_type<tc>, window_params = [{transform_indices = @transform_0, window_bounds = array<i64: 96, 128>}, {pipeline_mode = #tpu.pipeline_mode<synchronous>, transform_indices = @transform_1, window_bounds = array<i64: 1, 128>}, {pipeline_mode = #tpu.pipeline_mode<synchronous>, transform_indices = @transform_2, window_bounds = array<i64: 1, 128>}, {transform_indices = @transform_3, window_bounds = array<i64: 96, 128>}, {transform_indices = @transform_4, window_bounds = array<i64: 96, 128>}]} {
    %c0 = arith.constant 0 : index
    %c0_0 = arith.constant 0 : index
    %0 = vector.load %arg1[%c0, %c0_0] : memref<96x128xbf16, #tpu.memory_space<vmem>>, vector<96x128xbf16>
    %1 = arith.extf %0 : vector<96x128xbf16> to vector<96x128xf32>
    %c0_1 = arith.constant 0 : index
    %c0_2 = arith.constant 0 : index
    %2 = vector.load %arg2[%c0_1, %c0_2] : memref<1x128xf32, #tpu.memory_space<vmem>>, vector<1x128xf32>
    %3 = vector.broadcast %2 : vector<1x128xf32> to vector<96x128xf32>
    %4 = arith.mulf %1, %3 : vector<96x128xf32>
    %c0_3 = arith.constant 0 : index
    %c0_4 = arith.constant 0 : index
    %5 = vector.load %arg3[%c0_3, %c0_4] : memref<1x128xf32, #tpu.memory_space<vmem>>, vector<1x128xf32>
    %6 = vector.broadcast %5 : vector<1x128xf32> to vector<96x128xf32>
    %7 = arith.addf %4, %6 : vector<96x128xf32>
    %c0_5 = arith.constant 0 : index
    %c0_6 = arith.constant 0 : index
    %8 = vector.load %arg4[%c0_5, %c0_6] : memref<96x128xbf16, #tpu.memory_space<vmem>>, vector<96x128xbf16>
    %9 = arith.extf %8 : vector<96x128xbf16> to vector<96x128xf32>
    %10 = arith.addf %7, %9 : vector<96x128xf32>
    %cst = arith.constant 0.000000e+00 : f32
    %11 = vector.broadcast %cst : f32 to vector<96x128xf32>
    %12 = arith.maximumf %10, %11 : vector<96x128xf32>
    %13 = arith.truncf %12 : vector<96x128xf32> to vector<96x128xbf16>
    %c0_7 = arith.constant 0 : index
    %c0_8 = arith.constant 0 : index
    %14 = vector.load %arg5[%c0_7, %c0_8] : memref<96x128xbf16, #tpu.memory_space<vmem>>, vector<96x128xbf16>
    tpu.vector_store %arg5[%c0_7, %c0_8], %13 {strides = array<i32>} : memref<96x128xbf16, #tpu.memory_space<vmem>>, vector<96x128xbf16>,
    return
  }
  func.func @transform_0(%arg0: i32) -> (i32, i32) {
    %c0_i32 = arith.constant 0 : i32
    %c0_i32_0 = arith.constant 0 : i32
    return %arg0, %c0_i32 : i32, i32
  }
  func.func @transform_1(%arg0: i32) -> (i32, i32) {
    %c0_i32 = arith.constant 0 : i32
    %c0_i32_0 = arith.constant 0 : i32
    %c0_i32_1 = arith.constant 0 : i32
    return %c0_i32, %c0_i32_0 : i32, i32
  }
  func.func @transform_2(%arg0: i32) -> (i32, i32) {
    %c0_i32 = arith.constant 0 : i32
    %c0_i32_0 = arith.constant 0 : i32
    %c0_i32_1 = arith.constant 0 : i32
    return %c0_i32, %c0_i32_0 : i32, i32
  }
  func.func @transform_3(%arg0: i32) -> (i32, i32) {
    %c0_i32 = arith.constant 0 : i32
    %c0_i32_0 = arith.constant 0 : i32
    return %arg0, %c0_i32 : i32, i32
  }
  func.func @transform_4(%arg0: i32) -> (i32, i32) {
    %c0_i32 = arith.constant 0 : i32
    %c0_i32_0 = arith.constant 0 : i32
    return %arg0, %c0_i32 : i32, i32
  }
}

module attributes {stable_mosaic.version = 11 : i64} {
  func.func @_maxpool_kernel(%arg0: i32, %arg1: memref<8x16x128xbf16, #tpu.memory_space<vmem>>, %arg2: memref<8x128xbf16, #tpu.memory_space<vmem>>) attributes {dimension_semantics = [#tpu.dimension_semantics<parallel>], iteration_bounds = array<i64: 2>, scalar_prefetch = 0 : i64, scratch_operands = 0 : i64, tpu.core_type = #tpu.core_type<tc>, window_params = [{transform_indices = @transform_0, window_bounds = array<i64: 8, 16, 128>}, {transform_indices = @transform_1, window_bounds = array<i64: 8, 128>}]} {
    %c0 = arith.constant 0 : index
    %c0_0 = arith.constant 0 : index
    %c0_1 = arith.constant 0 : index
    %0 = vector.load %arg1[%c0, %c0_0, %c0_1] : memref<8x16x128xbf16, #tpu.memory_space<vmem>>, vector<8x16x128xbf16>
    %cst = arith.constant dense<0xFF80> : vector<8x128xbf16>
    %1 = vector.multi_reduction <maximumf>, %0, %cst [1] : vector<8x16x128xbf16> to vector<8x128xbf16>
    %c0_2 = arith.constant 0 : index
    %c0_3 = arith.constant 0 : index
    %2 = vector.load %arg2[%c0_2, %c0_3] : memref<8x128xbf16, #tpu.memory_space<vmem>>, vector<8x128xbf16>
    tpu.vector_store %arg2[%c0_2, %c0_3], %1 {strides = array<i32>} : memref<8x128xbf16, #tpu.memory_space<vmem>>, vector<8x128xbf16>,
    return
  }
  func.func @transform_0(%arg0: i32) -> (i32, i32, i32) {
    %c0_i32 = arith.constant 0 : i32
    %c0_i32_0 = arith.constant 0 : i32
    %c0_i32_1 = arith.constant 0 : i32
    return %arg0, %c0_i32, %c0_i32_0 : i32, i32, i32
  }
  func.func @transform_1(%arg0: i32) -> (i32, i32) {
    %c0_i32 = arith.constant 0 : i32
    %c0_i32_0 = arith.constant 0 : i32
    return %arg0, %c0_i32 : i32, i32
  }
}

module attributes {stable_mosaic.version = 11 : i64} {
  func.func @_conv_kernel(%arg0: i32, %arg1: memref<16x1728xbf16, #tpu.memory_space<vmem>>, %arg2: memref<1728x128xbf16, #tpu.memory_space<vmem>>, %arg3: memref<16x128xbf16, #tpu.memory_space<vmem>>, %arg4: memref<8x128xf32, #tpu.memory_space<vmem>>, %arg5: memref<8x128xf32, #tpu.memory_space<vmem>>) attributes {dimension_semantics = [#tpu.dimension_semantics<parallel>], iteration_bounds = array<i64: 2>, scalar_prefetch = 0 : i64, scratch_operands = 0 : i64, tpu.core_type = #tpu.core_type<tc>, window_params = [{transform_indices = @transform_0, window_bounds = array<i64: 16, 1728>}, {pipeline_mode = #tpu.pipeline_mode<synchronous>, transform_indices = @transform_1, window_bounds = array<i64: 1728, 128>}, {transform_indices = @transform_2, window_bounds = array<i64: 16, 128>}, {transform_indices = @transform_3, window_bounds = array<i64: 8, 128>}, {transform_indices = @transform_4, window_bounds = array<i64: 8, 128>}]} {
    %c0 = arith.constant 0 : index
    %c0_0 = arith.constant 0 : index
    %0 = vector.load %arg1[%c0, %c0_0] : memref<16x1728xbf16, #tpu.memory_space<vmem>>, vector<16x1728xbf16>
    %c0_1 = arith.constant 0 : index
    %c0_2 = arith.constant 0 : index
    %1 = vector.load %arg2[%c0_1, %c0_2] : memref<1728x128xbf16, #tpu.memory_space<vmem>>, vector<1728x128xbf16>
    %cst = arith.constant dense<0.000000e+00> : vector<16x128xf32>
    %2 = tpu.matmul %0, %1, %cst {dimension_numbers = #tpu.dot_dimension_numbers<[1], [0], [0], [1], [0, 0, 1, 1], [], []>} : vector<16x1728xbf16>, vector<1728x128xbf16>, vector<16x128xf32> -> vector<16x128xf32>
    %3 = arith.truncf %2 : vector<16x128xf32> to vector<16x128xbf16>
    %c0_3 = arith.constant 0 : index
    %c0_4 = arith.constant 0 : index
    %4 = vector.load %arg3[%c0_3, %c0_4] : memref<16x128xbf16, #tpu.memory_space<vmem>>, vector<16x128xbf16>
    tpu.vector_store %arg3[%c0_3, %c0_4], %3 {strides = array<i32>} : memref<16x128xbf16, #tpu.memory_space<vmem>>, vector<16x128xbf16>,
    %c16_i32 = arith.constant 16 : i32
    %5 = arith.muli %arg0, %c16_i32 : i32
    %6 = tpu.iota {dimensions = array<i32: 0>} : vector<16x128xi32>
    %7 = vector.broadcast %5 : i32 to vector<16x128xi32>
    %8 = arith.addi %7, %6 : vector<16x128xi32>
    %c25_i32 = arith.constant 25 : i32
    %9 = vector.broadcast %c25_i32 : i32 to vector<16x128xi32>
    %10 = arith.cmpi slt, %8, %9 : vector<16x128xi32>
    %cst_5 = arith.constant 0.000000e+00 : f32
    %11 = vector.broadcast %cst_5 : f32 to vector<16x128xf32>
    %12 = arith.select %10, %2, %11 : vector<16x128xi1>, vector<16x128xf32>
    %cst_6 = arith.constant dense<0.000000e+00> : vector<128xf32>
    %13 = vector.multi_reduction <add>, %12, %cst_6 [0] : vector<16x128xf32> to vector<128xf32>
    %14 = vector.shape_cast %13 : vector<128xf32> to vector<1x128xf32>
    %15 = arith.mulf %12, %12 : vector<16x128xf32>
    %cst_7 = arith.constant dense<0.000000e+00> : vector<128xf32>
    %16 = vector.multi_reduction <add>, %15, %cst_7 [0] : vector<16x128xf32> to vector<128xf32>
    %17 = vector.shape_cast %16 : vector<128xf32> to vector<1x128xf32>
    %18 = vector.shape_cast %14 : vector<1x128xf32> to vector<1x128xf32>
    %19 = vector.broadcast %18 : vector<1x128xf32> to vector<8x128xf32>
    %c0_8 = arith.constant 0 : index
    %c0_9 = arith.constant 0 : index
    %20 = vector.load %arg4[%c0_8, %c0_9] : memref<8x128xf32, #tpu.memory_space<vmem>>, vector<8x128xf32>
    tpu.vector_store %arg4[%c0_8, %c0_9], %19 {strides = array<i32>} : memref<8x128xf32, #tpu.memory_space<vmem>>, vector<8x128xf32>,
    %21 = vector.shape_cast %17 : vector<1x128xf32> to vector<1x128xf32>
    %22 = vector.broadcast %21 : vector<1x128xf32> to vector<8x128xf32>
    %c0_10 = arith.constant 0 : index
    %c0_11 = arith.constant 0 : index
    %23 = vector.load %arg5[%c0_10, %c0_11] : memref<8x128xf32, #tpu.memory_space<vmem>>, vector<8x128xf32>
    tpu.vector_store %arg5[%c0_10, %c0_11], %22 {strides = array<i32>} : memref<8x128xf32, #tpu.memory_space<vmem>>, vector<8x128xf32>,
    return
  }
  func.func @transform_0(%arg0: i32) -> (i32, i32) {
    %c0_i32 = arith.constant 0 : i32
    %c0_i32_0 = arith.constant 0 : i32
    return %arg0, %c0_i32 : i32, i32
  }
  func.func @transform_1(%arg0: i32) -> (i32, i32) {
    %c0_i32 = arith.constant 0 : i32
    %c0_i32_0 = arith.constant 0 : i32
    %c0_i32_1 = arith.constant 0 : i32
    return %c0_i32, %c0_i32_0 : i32, i32
  }
  func.func @transform_2(%arg0: i32) -> (i32, i32) {
    %c0_i32 = arith.constant 0 : i32
    %c0_i32_0 = arith.constant 0 : i32
    return %arg0, %c0_i32 : i32, i32
  }
  func.func @transform_3(%arg0: i32) -> (i32, i32) {
    %c0_i32 = arith.constant 0 : i32
    %c0_i32_0 = arith.constant 0 : i32
    return %arg0, %c0_i32 : i32, i32
  }
  func.func @transform_4(%arg0: i32) -> (i32, i32) {
    %c0_i32 = arith.constant 0 : i32
    %c0_i32_0 = arith.constant 0 : i32
    return %arg0, %c0_i32 : i32, i32
  }
}

module attributes {stable_mosaic.version = 11 : i64} {
  func.func @_bn_apply_kernel(%arg0: i32, %arg1: memref<16x128xbf16, #tpu.memory_space<vmem>>, %arg2: memref<1x128xf32, #tpu.memory_space<vmem>>, %arg3: memref<1x128xf32, #tpu.memory_space<vmem>>, %arg4: memref<16x128xbf16, #tpu.memory_space<vmem>>) attributes {dimension_semantics = [#tpu.dimension_semantics<parallel>], iteration_bounds = array<i64: 2>, scalar_prefetch = 0 : i64, scratch_operands = 0 : i64, tpu.core_type = #tpu.core_type<tc>, window_params = [{transform_indices = @transform_0, window_bounds = array<i64: 16, 128>}, {pipeline_mode = #tpu.pipeline_mode<synchronous>, transform_indices = @transform_1, window_bounds = array<i64: 1, 128>}, {pipeline_mode = #tpu.pipeline_mode<synchronous>, transform_indices = @transform_2, window_bounds = array<i64: 1, 128>}, {transform_indices = @transform_3, window_bounds = array<i64: 16, 128>}]} {
    %c0 = arith.constant 0 : index
    %c0_0 = arith.constant 0 : index
    %0 = vector.load %arg1[%c0, %c0_0] : memref<16x128xbf16, #tpu.memory_space<vmem>>, vector<16x128xbf16>
    %1 = arith.extf %0 : vector<16x128xbf16> to vector<16x128xf32>
    %c0_1 = arith.constant 0 : index
    %c0_2 = arith.constant 0 : index
    %2 = vector.load %arg2[%c0_1, %c0_2] : memref<1x128xf32, #tpu.memory_space<vmem>>, vector<1x128xf32>
    %3 = vector.broadcast %2 : vector<1x128xf32> to vector<16x128xf32>
    %4 = arith.mulf %1, %3 : vector<16x128xf32>
    %c0_3 = arith.constant 0 : index
    %c0_4 = arith.constant 0 : index
    %5 = vector.load %arg3[%c0_3, %c0_4] : memref<1x128xf32, #tpu.memory_space<vmem>>, vector<1x128xf32>
    %6 = vector.broadcast %5 : vector<1x128xf32> to vector<16x128xf32>
    %7 = arith.addf %4, %6 : vector<16x128xf32>
    %cst = arith.constant 0.000000e+00 : f32
    %8 = vector.broadcast %cst : f32 to vector<16x128xf32>
    %9 = arith.maximumf %7, %8 : vector<16x128xf32>
    %10 = arith.truncf %9 : vector<16x128xf32> to vector<16x128xbf16>
    %c0_5 = arith.constant 0 : index
    %c0_6 = arith.constant 0 : index
    %11 = vector.load %arg4[%c0_5, %c0_6] : memref<16x128xbf16, #tpu.memory_space<vmem>>, vector<16x128xbf16>
    tpu.vector_store %arg4[%c0_5, %c0_6], %10 {strides = array<i32>} : memref<16x128xbf16, #tpu.memory_space<vmem>>, vector<16x128xbf16>,
    return
  }
  func.func @transform_0(%arg0: i32) -> (i32, i32) {
    %c0_i32 = arith.constant 0 : i32
    %c0_i32_0 = arith.constant 0 : i32
    return %arg0, %c0_i32 : i32, i32
  }
  func.func @transform_1(%arg0: i32) -> (i32, i32) {
    %c0_i32 = arith.constant 0 : i32
    %c0_i32_0 = arith.constant 0 : i32
    %c0_i32_1 = arith.constant 0 : i32
    return %c0_i32, %c0_i32_0 : i32, i32
  }
  func.func @transform_2(%arg0: i32) -> (i32, i32) {
    %c0_i32 = arith.constant 0 : i32
    %c0_i32_0 = arith.constant 0 : i32
    %c0_i32_1 = arith.constant 0 : i32
    return %c0_i32, %c0_i32_0 : i32, i32
  }
  func.func @transform_3(%arg0: i32) -> (i32, i32) {
    %c0_i32 = arith.constant 0 : i32
    %c0_i32_0 = arith.constant 0 : i32
    return %arg0, %c0_i32 : i32, i32
  }
}

module attributes {stable_mosaic.version = 11 : i64} {
  func.func @_conv_kernel(%arg0: i32, %arg1: memref<16x3456xbf16, #tpu.memory_space<vmem>>, %arg2: memref<3456x128xbf16, #tpu.memory_space<vmem>>, %arg3: memref<16x128xbf16, #tpu.memory_space<vmem>>, %arg4: memref<8x128xf32, #tpu.memory_space<vmem>>, %arg5: memref<8x128xf32, #tpu.memory_space<vmem>>) attributes {dimension_semantics = [#tpu.dimension_semantics<parallel>], iteration_bounds = array<i64: 2>, scalar_prefetch = 0 : i64, scratch_operands = 0 : i64, tpu.core_type = #tpu.core_type<tc>, window_params = [{transform_indices = @transform_0, window_bounds = array<i64: 16, 3456>}, {pipeline_mode = #tpu.pipeline_mode<synchronous>, transform_indices = @transform_1, window_bounds = array<i64: 3456, 128>}, {transform_indices = @transform_2, window_bounds = array<i64: 16, 128>}, {transform_indices = @transform_3, window_bounds = array<i64: 8, 128>}, {transform_indices = @transform_4, window_bounds = array<i64: 8, 128>}]} {
    %c0 = arith.constant 0 : index
    %c0_0 = arith.constant 0 : index
    %0 = vector.load %arg1[%c0, %c0_0] : memref<16x3456xbf16, #tpu.memory_space<vmem>>, vector<16x3456xbf16>
    %c0_1 = arith.constant 0 : index
    %c0_2 = arith.constant 0 : index
    %1 = vector.load %arg2[%c0_1, %c0_2] : memref<3456x128xbf16, #tpu.memory_space<vmem>>, vector<3456x128xbf16>
    %cst = arith.constant dense<0.000000e+00> : vector<16x128xf32>
    %2 = tpu.matmul %0, %1, %cst {dimension_numbers = #tpu.dot_dimension_numbers<[1], [0], [0], [1], [0, 0, 1, 1], [], []>} : vector<16x3456xbf16>, vector<3456x128xbf16>, vector<16x128xf32> -> vector<16x128xf32>
    %3 = arith.truncf %2 : vector<16x128xf32> to vector<16x128xbf16>
    %c0_3 = arith.constant 0 : index
    %c0_4 = arith.constant 0 : index
    %4 = vector.load %arg3[%c0_3, %c0_4] : memref<16x128xbf16, #tpu.memory_space<vmem>>, vector<16x128xbf16>
    tpu.vector_store %arg3[%c0_3, %c0_4], %3 {strides = array<i32>} : memref<16x128xbf16, #tpu.memory_space<vmem>>, vector<16x128xbf16>,
    %c16_i32 = arith.constant 16 : i32
    %5 = arith.muli %arg0, %c16_i32 : i32
    %6 = tpu.iota {dimensions = array<i32: 0>} : vector<16x128xi32>
    %7 = vector.broadcast %5 : i32 to vector<16x128xi32>
    %8 = arith.addi %7, %6 : vector<16x128xi32>
    %c25_i32 = arith.constant 25 : i32
    %9 = vector.broadcast %c25_i32 : i32 to vector<16x128xi32>
    %10 = arith.cmpi slt, %8, %9 : vector<16x128xi32>
    %cst_5 = arith.constant 0.000000e+00 : f32
    %11 = vector.broadcast %cst_5 : f32 to vector<16x128xf32>
    %12 = arith.select %10, %2, %11 : vector<16x128xi1>, vector<16x128xf32>
    %cst_6 = arith.constant dense<0.000000e+00> : vector<128xf32>
    %13 = vector.multi_reduction <add>, %12, %cst_6 [0] : vector<16x128xf32> to vector<128xf32>
    %14 = vector.shape_cast %13 : vector<128xf32> to vector<1x128xf32>
    %15 = arith.mulf %12, %12 : vector<16x128xf32>
    %cst_7 = arith.constant dense<0.000000e+00> : vector<128xf32>
    %16 = vector.multi_reduction <add>, %15, %cst_7 [0] : vector<16x128xf32> to vector<128xf32>
    %17 = vector.shape_cast %16 : vector<128xf32> to vector<1x128xf32>
    %18 = vector.shape_cast %14 : vector<1x128xf32> to vector<1x128xf32>
    %19 = vector.broadcast %18 : vector<1x128xf32> to vector<8x128xf32>
    %c0_8 = arith.constant 0 : index
    %c0_9 = arith.constant 0 : index
    %20 = vector.load %arg4[%c0_8, %c0_9] : memref<8x128xf32, #tpu.memory_space<vmem>>, vector<8x128xf32>
    tpu.vector_store %arg4[%c0_8, %c0_9], %19 {strides = array<i32>} : memref<8x128xf32, #tpu.memory_space<vmem>>, vector<8x128xf32>,
    %21 = vector.shape_cast %17 : vector<1x128xf32> to vector<1x128xf32>
    %22 = vector.broadcast %21 : vector<1x128xf32> to vector<8x128xf32>
    %c0_10 = arith.constant 0 : index
    %c0_11 = arith.constant 0 : index
    %23 = vector.load %arg5[%c0_10, %c0_11] : memref<8x128xf32, #tpu.memory_space<vmem>>, vector<8x128xf32>
    tpu.vector_store %arg5[%c0_10, %c0_11], %22 {strides = array<i32>} : memref<8x128xf32, #tpu.memory_space<vmem>>, vector<8x128xf32>,
    return
  }
  func.func @transform_0(%arg0: i32) -> (i32, i32) {
    %c0_i32 = arith.constant 0 : i32
    %c0_i32_0 = arith.constant 0 : i32
    return %arg0, %c0_i32 : i32, i32
  }
  func.func @transform_1(%arg0: i32) -> (i32, i32) {
    %c0_i32 = arith.constant 0 : i32
    %c0_i32_0 = arith.constant 0 : i32
    %c0_i32_1 = arith.constant 0 : i32
    return %c0_i32, %c0_i32_0 : i32, i32
  }
  func.func @transform_2(%arg0: i32) -> (i32, i32) {
    %c0_i32 = arith.constant 0 : i32
    %c0_i32_0 = arith.constant 0 : i32
    return %arg0, %c0_i32 : i32, i32
  }
  func.func @transform_3(%arg0: i32) -> (i32, i32) {
    %c0_i32 = arith.constant 0 : i32
    %c0_i32_0 = arith.constant 0 : i32
    return %arg0, %c0_i32 : i32, i32
  }
  func.func @transform_4(%arg0: i32) -> (i32, i32) {
    %c0_i32 = arith.constant 0 : i32
    %c0_i32_0 = arith.constant 0 : i32
    return %arg0, %c0_i32 : i32, i32
  }
}

module attributes {stable_mosaic.version = 11 : i64} {
  func.func @_bn_apply_kernel(%arg0: i32, %arg1: memref<16x128xbf16, #tpu.memory_space<vmem>>, %arg2: memref<1x128xf32, #tpu.memory_space<vmem>>, %arg3: memref<1x128xf32, #tpu.memory_space<vmem>>, %arg4: memref<16x128xbf16, #tpu.memory_space<vmem>>, %arg5: memref<16x128xbf16, #tpu.memory_space<vmem>>) attributes {dimension_semantics = [#tpu.dimension_semantics<parallel>], iteration_bounds = array<i64: 2>, scalar_prefetch = 0 : i64, scratch_operands = 0 : i64, tpu.core_type = #tpu.core_type<tc>, window_params = [{transform_indices = @transform_0, window_bounds = array<i64: 16, 128>}, {pipeline_mode = #tpu.pipeline_mode<synchronous>, transform_indices = @transform_1, window_bounds = array<i64: 1, 128>}, {pipeline_mode = #tpu.pipeline_mode<synchronous>, transform_indices = @transform_2, window_bounds = array<i64: 1, 128>}, {transform_indices = @transform_3, window_bounds = array<i64: 16, 128>}, {transform_indices = @transform_4, window_bounds = array<i64: 16, 128>}]} {
    %c0 = arith.constant 0 : index
    %c0_0 = arith.constant 0 : index
    %0 = vector.load %arg1[%c0, %c0_0] : memref<16x128xbf16, #tpu.memory_space<vmem>>, vector<16x128xbf16>
    %1 = arith.extf %0 : vector<16x128xbf16> to vector<16x128xf32>
    %c0_1 = arith.constant 0 : index
    %c0_2 = arith.constant 0 : index
    %2 = vector.load %arg2[%c0_1, %c0_2] : memref<1x128xf32, #tpu.memory_space<vmem>>, vector<1x128xf32>
    %3 = vector.broadcast %2 : vector<1x128xf32> to vector<16x128xf32>
    %4 = arith.mulf %1, %3 : vector<16x128xf32>
    %c0_3 = arith.constant 0 : index
    %c0_4 = arith.constant 0 : index
    %5 = vector.load %arg3[%c0_3, %c0_4] : memref<1x128xf32, #tpu.memory_space<vmem>>, vector<1x128xf32>
    %6 = vector.broadcast %5 : vector<1x128xf32> to vector<16x128xf32>
    %7 = arith.addf %4, %6 : vector<16x128xf32>
    %c0_5 = arith.constant 0 : index
    %c0_6 = arith.constant 0 : index
    %8 = vector.load %arg4[%c0_5, %c0_6] : memref<16x128xbf16, #tpu.memory_space<vmem>>, vector<16x128xbf16>
    %9 = arith.extf %8 : vector<16x128xbf16> to vector<16x128xf32>
    %10 = arith.addf %7, %9 : vector<16x128xf32>
    %cst = arith.constant 0.000000e+00 : f32
    %11 = vector.broadcast %cst : f32 to vector<16x128xf32>
    %12 = arith.maximumf %10, %11 : vector<16x128xf32>
    %13 = arith.truncf %12 : vector<16x128xf32> to vector<16x128xbf16>
    %c0_7 = arith.constant 0 : index
    %c0_8 = arith.constant 0 : index
    %14 = vector.load %arg5[%c0_7, %c0_8] : memref<16x128xbf16, #tpu.memory_space<vmem>>, vector<16x128xbf16>
    tpu.vector_store %arg5[%c0_7, %c0_8], %13 {strides = array<i32>} : memref<16x128xbf16, #tpu.memory_space<vmem>>, vector<16x128xbf16>,
    return
  }
  func.func @transform_0(%arg0: i32) -> (i32, i32) {
    %c0_i32 = arith.constant 0 : i32
    %c0_i32_0 = arith.constant 0 : i32
    return %arg0, %c0_i32 : i32, i32
  }
  func.func @transform_1(%arg0: i32) -> (i32, i32) {
    %c0_i32 = arith.constant 0 : i32
    %c0_i32_0 = arith.constant 0 : i32
    %c0_i32_1 = arith.constant 0 : i32
    return %c0_i32, %c0_i32_0 : i32, i32
  }
  func.func @transform_2(%arg0: i32) -> (i32, i32) {
    %c0_i32 = arith.constant 0 : i32
    %c0_i32_0 = arith.constant 0 : i32
    %c0_i32_1 = arith.constant 0 : i32
    return %c0_i32, %c0_i32_0 : i32, i32
  }
  func.func @transform_3(%arg0: i32) -> (i32, i32) {
    %c0_i32 = arith.constant 0 : i32
    %c0_i32_0 = arith.constant 0 : i32
    return %arg0, %c0_i32 : i32, i32
  }
  func.func @transform_4(%arg0: i32) -> (i32, i32) {
    %c0_i32 = arith.constant 0 : i32
    %c0_i32_0 = arith.constant 0 : i32
    return %arg0, %c0_i32 : i32, i32
  }
}

module attributes {stable_mosaic.version = 11 : i64} {
  func.func @_maxpool_kernel(%arg0: i32, %arg1: memref<8x16x128xbf16, #tpu.memory_space<vmem>>, %arg2: memref<8x128xbf16, #tpu.memory_space<vmem>>) attributes {dimension_semantics = [#tpu.dimension_semantics<parallel>], iteration_bounds = array<i64: 1>, scalar_prefetch = 0 : i64, scratch_operands = 0 : i64, tpu.core_type = #tpu.core_type<tc>, window_params = [{transform_indices = @transform_0, window_bounds = array<i64: 8, 16, 128>}, {transform_indices = @transform_1, window_bounds = array<i64: 8, 128>}]} {
    %c0 = arith.constant 0 : index
    %c0_0 = arith.constant 0 : index
    %c0_1 = arith.constant 0 : index
    %0 = vector.load %arg1[%c0, %c0_0, %c0_1] : memref<8x16x128xbf16, #tpu.memory_space<vmem>>, vector<8x16x128xbf16>
    %cst = arith.constant dense<0xFF80> : vector<8x128xbf16>
    %1 = vector.multi_reduction <maximumf>, %0, %cst [1] : vector<8x16x128xbf16> to vector<8x128xbf16>
    %c0_2 = arith.constant 0 : index
    %c0_3 = arith.constant 0 : index
    %2 = vector.load %arg2[%c0_2, %c0_3] : memref<8x128xbf16, #tpu.memory_space<vmem>>, vector<8x128xbf16>
    tpu.vector_store %arg2[%c0_2, %c0_3], %1 {strides = array<i32>} : memref<8x128xbf16, #tpu.memory_space<vmem>>, vector<8x128xbf16>,
    return
  }
  func.func @transform_0(%arg0: i32) -> (i32, i32, i32) {
    %c0_i32 = arith.constant 0 : i32
    %c0_i32_0 = arith.constant 0 : i32
    %c0_i32_1 = arith.constant 0 : i32
    return %arg0, %c0_i32, %c0_i32_0 : i32, i32, i32
  }
  func.func @transform_1(%arg0: i32) -> (i32, i32) {
    %c0_i32 = arith.constant 0 : i32
    %c0_i32_0 = arith.constant 0 : i32
    return %arg0, %c0_i32 : i32, i32
  }
}

module attributes {stable_mosaic.version = 11 : i64} {
  func.func @_conv_kernel(%arg0: i32, %arg1: memref<2x216xbf16, #tpu.memory_space<vmem>>, %arg2: memref<216x32xbf16, #tpu.memory_space<vmem>>, %arg3: memref<2x32xf32, #tpu.memory_space<vmem>>) attributes {dimension_semantics = [#tpu.dimension_semantics<parallel>], iteration_bounds = array<i64: 1>, scalar_prefetch = 0 : i64, scratch_operands = 0 : i64, tpu.core_type = #tpu.core_type<tc>, window_params = [{transform_indices = @transform_0, window_bounds = array<i64: 2, 216>}, {pipeline_mode = #tpu.pipeline_mode<synchronous>, transform_indices = @transform_1, window_bounds = array<i64: 216, 32>}, {transform_indices = @transform_2, window_bounds = array<i64: 2, 32>}]} {
    %c0 = arith.constant 0 : index
    %c0_0 = arith.constant 0 : index
    %0 = vector.load %arg1[%c0, %c0_0] : memref<2x216xbf16, #tpu.memory_space<vmem>>, vector<2x216xbf16>
    %c0_1 = arith.constant 0 : index
    %c0_2 = arith.constant 0 : index
    %1 = vector.load %arg2[%c0_1, %c0_2] : memref<216x32xbf16, #tpu.memory_space<vmem>>, vector<216x32xbf16>
    %cst = arith.constant dense<0.000000e+00> : vector<2x32xf32>
    %2 = tpu.matmul %0, %1, %cst {dimension_numbers = #tpu.dot_dimension_numbers<[1], [0], [0], [1], [0, 0, 1, 1], [], []>} : vector<2x216xbf16>, vector<216x32xbf16>, vector<2x32xf32> -> vector<2x32xf32>
    %c0_3 = arith.constant 0 : index
    %c0_4 = arith.constant 0 : index
    %3 = vector.load %arg3[%c0_3, %c0_4] : memref<2x32xf32, #tpu.memory_space<vmem>>, vector<2x32xf32>
    tpu.vector_store %arg3[%c0_3, %c0_4], %2 {strides = array<i32>} : memref<2x32xf32, #tpu.memory_space<vmem>>, vector<2x32xf32>,
    return
  }
  func.func @transform_0(%arg0: i32) -> (i32, i32) {
    %c0_i32 = arith.constant 0 : i32
    %c0_i32_0 = arith.constant 0 : i32
    return %arg0, %c0_i32 : i32, i32
  }
  func.func @transform_1(%arg0: i32) -> (i32, i32) {
    %c0_i32 = arith.constant 0 : i32
    %c0_i32_0 = arith.constant 0 : i32
    %c0_i32_1 = arith.constant 0 : i32
    return %c0_i32, %c0_i32_0 : i32, i32
  }
  func.func @transform_2(%arg0: i32) -> (i32, i32) {
    %c0_i32 = arith.constant 0 : i32
    %c0_i32_0 = arith.constant 0 : i32
    return %arg0, %c0_i32 : i32, i32
  }
}

</mosaic_0001>

<llo_original>
// kernel: tile.63
$region0: #{tile.63}
  #allocation0 [shape = 's32[1]{0}', space=sflag, size = 0x4, scoped, tag = 'scoped memory for tile.63']
  %s0 = inlined_call_operand.vmem [shape: f32[4], index: 0, kind: input, shape index: {}]
  %s1 = inlined_call_operand.vmem [shape: f32[32,4], index: 1, kind: output, shape index: {}]
  // Predicated region
  $region2: #{tile.63} parent=0 // pred_check
    _
  $region3: #{tile.63} parent=0 // pred_check_branch
    %3 = sbr.rel (0) target = $region5
  $region4: #{tile.63} parent=0 // pred_region
    _
  $region5: #{tile.63} parent=0 // pred_fallthru
    _
  %v4 = vld [vmem:[%s0] ss:$0 sm:$0xff]
  %5 = vst [vmem:[%s1] sm:$0xff] %v4
  %s6 = scalar_lea.vmem %s1, 8
  %7 = vst [vmem:[%s6] sm:$0xff] %v4
  %s8 = scalar_lea.vmem %s1, 16
  %9 = vst [vmem:[%s8] sm:$0xff] %v4
  %s10 = scalar_lea.vmem %s1, 24
  %11 = vst [vmem:[%s10] sm:$0xff] %v4

// kernel: tile.64
$region0: #{tile.64}
  %s0 = inlined_call_operand.vmem [shape: f32[32,4], index: 0, kind: input, shape index: {}]
  %s1 = inlined_call_operand.vmem [shape: f32[1,128], index: 1, kind: output, shape index: {}]
  $region1: #{tile.64} parent=0
    #allocation0 [shape = 'u8[4096]{0}', space=vmem, size = 0x1000, scoped, tag = 'scoped mem for output reshape']
    %v2 = vld [vmem:[%s0] sm:$0x1]
    %vm3 = vcmask 31744
    %4 = vst.msk [vmem:[#allocation0] sm:$0x1] %vm3, %v2
    %s5 = scalar_lea.vmem %s0, 31
    %v6 = vld [vmem:[%s5] sm:$0x1]
    %7 = vrot.lane.b32.xlu0 %v6, 124
    %v8 = vpop.permute.xlu0 %7
    %vm9 = vcmask 1048544
    %10 = vst.msk [vmem:[#allocation0] sm:$0x1] %vm9, %v8
    %s11 = scalar_lea.vmem %s0, 30
    %v12 = vld [vmem:[%s11] sm:$0x1]
    %13 = vrot.lane.b32.xlu0 %v12, 120
    %v14 = vpop.permute.xlu0 %13
    %vm15 = vcmask 1015744
    %16 = vst.msk [vmem:[#allocation0] sm:$0x1] %vm15, %v14
    %s17 = scalar_lea.vmem %s0, 29
    %v18 = vld [vmem:[%s17] sm:$0x1]
    %19 = vrot.lane.b32.xlu0 %v18, 116
    %v20 = vpop.permute.xlu0 %19
    %vm21 = vcmask 982944
    %22 = vst.msk [vmem:[#allocation0] sm:$0x1] %vm21, %v20
    %s23 = scalar_lea.vmem %s0, 28
    %v24 = vld [vmem:[%s23] sm:$0x1]
    %25 = vrot.lane.b32.xlu0 %v24, 112
    %v26 = vpop.permute.xlu0 %25
    %vm27 = vcmask 950144
    %28 = vst.msk [vmem:[#allocation0] sm:$0x1] %vm27, %v26
    %s29 = scalar_lea.vmem %s0, 27
    %v30 = vld [vmem:[%s29] sm:$0x1]
    %31 = vrot.lane.b32.xlu0 %v30, 108
    %v32 = vpop.permute.xlu0 %31
    %vm33 = vcmask 917344
    %34 = vst.msk [vmem:[#allocation0] sm:$0x1] %vm33, %v32
    %s35 = scalar_lea.vmem %s0, 26
    %v36 = vld [vmem:[%s35] sm:$0x1]
    %37 = vrot.lane.b32.xlu0 %v36, 104
    %v38 = vpop.permute.xlu0 %37
    %vm39 = vcmask 884544
    %40 = vst.msk [vmem:[#allocation0] sm:$0x1] %vm39, %v38
    %s41 = scalar_lea.vmem %s0, 25
    %v42 = vld [vmem:[%s41] sm:$0x1]
    %43 = vrot.lane.b32.xlu0 %v42, 100
    %v44 = vpop.permute.xlu0 %43
    %vm45 = vcmask 851744
    %46 = vst.msk [vmem:[#allocation0] sm:$0x1] %vm45, %v44
    %s47 = scalar_lea.vmem %s0, 24
    %v48 = vld [vmem:[%s47] sm:$0x1]
    %49 = vrot.lane.b32.xlu0 %v48, 96
    %v50 = vpop.permute.xlu0 %49
    %vm51 = vcmask 818944
    %52 = vst.msk [vmem:[#allocation0] sm:$0x1] %vm51, %v50
    %s53 = scalar_lea.vmem %s0, 23
    %v54 = vld [vmem:[%s53] sm:$0x1]
    %55 = vrot.lane.b32.xlu0 %v54, 92
    %v56 = vpop.permute.xlu0 %55
    %vm57 = vcmask 786144
    %58 = vst.msk [vmem:[#allocation0] sm:$0x1] %vm57, %v56
    %s59 = scalar_lea.vmem %s0, 22
    %v60 = vld [vmem:[%s59] sm:$0x1]
    %61 = vrot.lane.b32.xlu0 %v60, 88
    %v62 = vpop.permute.xlu0 %61
    %vm63 = vcmask 753344
    %64 = vst.msk [vmem:[#allocation0] sm:$0x1] %vm63, %v62
    %s65 = scalar_lea.vmem %s0, 21
    %v66 = vld [vmem:[%s65] sm:$0x1]
    %67 = vrot.lane.b32.xlu0 %v66, 84
    %v68 = vpop.permute.xlu0 %67
    %vm69 = vcmask 720544
    %70 = vst.msk [vmem:[#allocation0] sm:$0x1] %vm69, %v68
    %s71 = scalar_lea.vmem %s0, 20
    %v72 = vld [vmem:[%s71] sm:$0x1]
    %73 = vrot.lane.b32.xlu0 %v72, 80
    %v74 = vpop.permute.xlu0 %73
    %vm75 = vcmask 687744
    %76 = vst.msk [vmem:[#allocation0] sm:$0x1] %vm75, %v74
    %s77 = scalar_lea.vmem %s0, 19
    %v78 = vld [vmem:[%s77] sm:$0x1]
    %79 = vrot.lane.b32.xlu0 %v78, 76
    %v80 = vpop.permute.xlu0 %79
    %vm81 = vcmask 654944
    %82 = vst.msk [vmem:[#allocation0] sm:$0x1] %vm81, %v80
    %s83 = scalar_lea.vmem %s0, 18
    %v84 = vld [vmem:[%s83] sm:$0x1]
    %85 = vrot.lane.b32.xlu0 %v84, 72
    %v86 = vpop.permute.xlu0 %85
    %vm87 = vcmask 622144
    %88 = vst.msk [vmem:[#allocation0] sm:$0x1] %vm87, %v86
    %s89 = scalar_lea.vmem %s0, 17
    %v90 = vld [vmem:[%s89] sm:$0x1]
    %91 = vrot.lane.b32.xlu0 %v90, 68
    %v92 = vpop.permute.xlu0 %91
    %vm93 = vcmask 589344
    %94 = vst.msk [vmem:[#allocation0] sm:$0x1] %vm93, %v92
    %s95 = scalar_lea.vmem %s0, 16
    %v96 = vld [vmem:[%s95] sm:$0x1]
    %97 = vrot.lane.b32.xlu0 %v96, 64
    %v98 = vpop.permute.xlu0 %97
    %vm99 = vcmask 556544
    %100 = vst.msk [vmem:[#allocation0] sm:$0x1] %vm99, %v98
    %s101 = scalar_lea.vmem %s0, 15
    %v102 = vld [vmem:[%s101] sm:$0x1]
    %103 = vrot.lane.b32.xlu0 %v102, 60
    %v104 = vpop.permute.xlu0 %103
    %vm105 = vcmask 523744
    %106 = vst.msk [vmem:[#allocation0] sm:$0x1] %vm105, %v104
    %s107 = scalar_lea.vmem %s0, 14
    %v108 = vld [vmem:[%s107] sm:$0x1]
    %109 = vrot.lane.b32.xlu0 %v108, 56
    %v110 = vpop.permute.xlu0 %109
    %vm111 = vcmask 490944
    %112 = vst.msk [vmem:[#allocation0] sm:$0x1] %vm111, %v110
    %s113 = scalar_lea.vmem %s0, 13
    %v114 = vld [vmem:[%s113] sm:$0x1]
    %115 = vrot.lane.b32.xlu0 %v114, 52
    %v116 = vpop.permute.xlu0 %115
    %vm117 = vcmask 458144
    %118 = vst.msk [vmem:[#allocation0] sm:$0x1] %vm117, %v116
    %s119 = scalar_lea.vmem %s0, 12
    %v120 = vld [vmem:[%s119] sm:$0x1]
    %121 = vrot.lane.b32.xlu0 %v120, 48
    %v122 = vpop.permute.xlu0 %121
    %vm123 = vcmask 425344
    %124 = vst.msk [vmem:[#allocation0] sm:$0x1] %vm123, %v122
    %s125 = scalar_lea.vmem %s0, 11
    %v126 = vld [vmem:[%s125] sm:$0x1]
    %127 = vrot.lane.b32.xlu0 %v126, 44
    %v128 = vpop.permute.xlu0 %127
    %vm129 = vcmask 392544
    %130 = vst.msk [vmem:[#allocation0] sm:$0x1] %vm129, %v128
    %s131 = scalar_lea.vmem %s0, 10
    %v132 = vld [vmem:[%s131] sm:$0x1]
    %133 = vrot.lane.b32.xlu0 %v132, 40
    %v134 = vpop.permute.xlu0 %133
    %vm135 = vcmask 359744
    %136 = vst.msk [vmem:[#allocation0] sm:$0x1] %vm135, %v134
    %s137 = scalar_lea.vmem %s0, 9
    %v138 = vld [vmem:[%s137] sm:$0x1]
    %139 = vrot.lane.b32.xlu0 %v138, 36
    %v140 = vpop.permute.xlu0 %139
    %vm141 = vcmask 326944
    %142 = vst.msk [vmem:[#allocation0] sm:$0x1] %vm141, %v140
    %s143 = scalar_lea.vmem %s0, 8
    %v144 = vld [vmem:[%s143] sm:$0x1]
    %145 = vrot.lane.b32.xlu0 %v144, 32
    %v146 = vpop.permute.xlu0 %145
    %vm147 = vcmask 294144
    %148 = vst.msk [vmem:[#allocation0] sm:$0x1] %vm147, %v146
    %s149 = scalar_lea.vmem %s0, 7
    %v150 = vld [vmem:[%s149] sm:$0x1]
    %151 = vrot.lane.b32.xlu0 %v150, 28
    %v152 = vpop.permute.xlu0 %151
    %vm153 = vcmask 261344
    %154 = vst.msk [vmem:[#allocation0] sm:$0x1] %vm153, %v152
    %s155 = scalar_lea.vmem %s0, 6
    %v156 = vld [vmem:[%s155] sm:$0x1]
    %157 = vrot.lane.b32.xlu0 %v156, 24
    %v158 = vpop.permute.xlu0 %157
    %vm159 = vcmask 228544
    %160 = vst.msk [vmem:[#allocation0] sm:$0x1] %vm159, %v158
    %s161 = scalar_lea.vmem %s0, 5
    %v162 = vld [vmem:[%s161] sm:$0x1]
    %163 = vrot.lane.b32.xlu0 %v162, 20
    %v164 = vpop.permute.xlu0 %163
    %vm165 = vcmask 195744
    %166 = vst.msk [vmem:[#allocation0] sm:$0x1] %vm165, %v164
    %s167 = scalar_lea.vmem %s0, 4
    %v168 = vld [vmem:[%s167] sm:$0x1]
    %169 = vrot.lane.b32.xlu0 %v168, 16
    %v170 = vpop.permute.xlu0 %169
    %vm171 = vcmask 162944
    %172 = vst.msk [vmem:[#allocation0] sm:$0x1] %vm171, %v170
    %s173 = scalar_lea.vmem %s0, 3
    %v174 = vld [vmem:[%s173] sm:$0x1]
    %175 = vrot.lane.b32.xlu0 %v174, 12
    %v176 = vpop.permute.xlu0 %175
    %vm177 = vcmask 130144
    %178 = vst.msk [vmem:[#allocation0] sm:$0x1] %vm177, %v176
    %s179 = scalar_lea.vmem %s0, 2
    %v180 = vld [vmem:[%s179] sm:$0x1]
    %181 = vrot.lane.b32.xlu0 %v180, 8
    %v182 = vpop.permute.xlu0 %181
    %vm183 = vcmask 97344
    %184 = vst.msk [vmem:[#allocation0] sm:$0x1] %vm183, %v182
    %s185 = scalar_lea.vmem %s0, 1
    %v186 = vld [vmem:[%s185] sm:$0x1]
    %187 = vrot.lane.b32.xlu0 %v186, 4
    %v188 = vpop.permute.xlu0 %187
    %vm189 = vcmask 64544
    %190 = vst.msk [vmem:[#allocation0] sm:$0x1] %vm189, %v188
    %s192 = sshll.u32 1, 1
    %s193 = ssub.s32 %s192, 1
    %v195 = vld [vmem:[#allocation0] sm:%s193]
    %s196 = sshll.u32 1, 1
    %s197 = ssub.s32 %s196, 1
    %198 = vst [vmem:[%s1] sm:%s197] %v195

// kernel: d_res_3d_cnn_forward.16
$region0: #{d_res_3d_cnn_forward.16}
  #allocation0 [shape = 'u32[]', space=smem, size = 0x4, offset = 0x4, fixed_abs, tag = 'smem constant byte address 0x4 - core index']
  #allocation1 [shape = 'u32[144,128]{1,0:T(1,128)}', space=vmem, size = 0x12000, scoped, tag = 'internal scratch']
  %s0 = inlined_call_operand.vmem [shape: bf16[192,128], index: 0, kind: input, shape index: {}]
  %s1 = inlined_call_operand.vmem [shape: f32[1,128], index: 1, kind: input, shape index: {}]
  %s2 = inlined_call_operand.vmem [shape: f32[1,128], index: 2, kind: input, shape index: {}]
  %s3 = inlined_call_operand.vmem [shape: bf16[192,128], index: 3, kind: output, shape index: {}]
  %s4 = sld [smem:[#allocation0]]
  $region45: #{d_res_3d_cnn_forward.16} parent=0
    _
  %s6 = ssub.s32 1, %s4
  %s7 = scalar_select 0, %s6, %s4
  loop: start=0, step=1, limit=4
  $region2: #{d_res_3d_cnn_forward.16} parent=0 // loop_pre_header
    _
  $region3: #{d_res_3d_cnn_forward.16} parent=0 // loop_header
    %s9 = sphi 0, %s13
    %p10 = scmp.ge.s32.totalorder %s9, 4
    %s19 = sphi 0, %s21
    %s22 = sphi 0, %s19
    %s23 = sphi 0, %s22
    %s39 = sphi 0, %s23
    %s43 = sphi 0, %s43
    %s45 = sphi 0, %s43
    %s46 = sphi 0, %s45
    %s60 = sphi 0, %s46
    %s64 = sphi 0, %s64
    %s66 = sphi 0, %s64
    %s67 = sphi 0, %s66
    %s81 = sphi 0, %s67
    %s87 = sphi 0, %s89
    %s90 = sphi 0, %s87
    %s91 = sphi 0, %s90
    %s107 = sphi 0, %s91
  $region4: #{d_res_3d_cnn_forward.16} parent=0 // loop_header_branch
    %12 = sbr.rel (%p10) target = $region8
  $region5: #{d_res_3d_cnn_forward.16} parent=0 // loop_body
    %s14 = ssub.s32 %s9, 1
    %s15 = ssub.s32 %s9, 2
    %s16 = sadd.s32 %s9, 1
    %s17 = ssub.s32 %s9, %s16
    %p18 = scmp.eq.s32.totalorder %s17, 0
    %s20 = sadd.s32 %s19, 1
    %s21 = scalar_select %p18, %s19, %s20
    %p24 = pneg %p18
    %p25 = scmp.eq.s32.totalorder %s9, 1
    %p26 = por %p24, %p25
    %p27 = scmp.ne.s32.totalorder %s19, %s22
    %p28 = scmp.eq.s32.totalorder %s9, 0
    %p29 = por %p27, %p28
    %p30 = scmp.ne.s32.totalorder %s19, %s22
    %p31 = scmp.eq.s32.totalorder %s14, 1
    %p32 = por %p30, %p31
    %p33 = scmp.ne.s32.totalorder %s22, %s23
    %p34 = scmp.eq.s32.totalorder %s14, 0
    %p35 = por %p33, %p34
    %p36 = scmp.ne.s32.totalorder %s22, %s23
    %p37 = scmp.eq.s32.totalorder %s15, 1
    %p38 = por %p36, %p37
    %p40 = scmp.ne.s32.totalorder %s23, %s39
    %p41 = scmp.eq.s32.totalorder %s15, 0
    %p42 = por %p40, %p41
    %s44 = sadd.s32 %s43, 1
    %p47 = scmp.eq.s32.totalorder %s9, 1
    %p48 = scmp.ne.s32.totalorder %s43, %s45
    %p49 = scmp.eq.s32.totalorder %s9, 0
    %p50 = por %p48, %p49
    %p51 = scmp.ne.s32.totalorder %s43, %s45
    %p52 = scmp.eq.s32.totalorder %s14, 1
    %p53 = por %p51, %p52
    %p54 = scmp.ne.s32.totalorder %s45, %s46
    %p55 = scmp.eq.s32.totalorder %s14, 0
    %p56 = por %p54, %p55
    %p57 = scmp.ne.s32.totalorder %s45, %s46
    %p58 = scmp.eq.s32.totalorder %s15, 1
    %p59 = por %p57, %p58
    %p61 = scmp.ne.s32.totalorder %s46, %s60
    %p62 = scmp.eq.s32.totalorder %s15, 0
    %p63 = por %p61, %p62
    %s65 = sadd.s32 %s64, 1
    %p68 = scmp.eq.s32.totalorder %s9, 1
    %p69 = scmp.ne.s32.totalorder %s64, %s66
    %p70 = scmp.eq.s32.totalorder %s9, 0
    %p71 = por %p69, %p70
    %p72 = scmp.ne.s32.totalorder %s64, %s66
    %p73 = scmp.eq.s32.totalorder %s14, 1
    %p74 = por %p72, %p73
    %p75 = scmp.ne.s32.totalorder %s66, %s67
    %p76 = scmp.eq.s32.totalorder %s14, 0
    %p77 = por %p75, %p76
    %p78 = scmp.ne.s32.totalorder %s66, %s67
    %p79 = scmp.eq.s32.totalorder %s15, 1
    %p80 = por %p78, %p79
    %p82 = scmp.ne.s32.totalorder %s67, %s81
    %p83 = scmp.eq.s32.totalorder %s15, 0
    %p84 = por %p82, %p83
    %s85 = ssub.s32 %s9, %s16
    %p86 = scmp.eq.s32.totalorder %s85, 0
    %s88 = sadd.s32 %s87, 1
    %s89 = scalar_select %p86, %s87, %s88
    %p92 = pneg %p86
    %p93 = scmp.eq.s32.totalorder %s9, 1
    %p94 = por %p92, %p93
    %p95 = scmp.ne.s32.totalorder %s87, %s90
    %p96 = scmp.eq.s32.totalorder %s9, 0
    %p97 = por %p95, %p96
    %p98 = scmp.ne.s32.totalorder %s87, %s90
    %p99 = scmp.eq.s32.totalorder %s14, 1
    %p100 = por %p98, %p99
    %p101 = scmp.ne.s32.totalorder %s90, %s91
    %p102 = scmp.eq.s32.totalorder %s14, 0
    %p103 = por %p101, %p102
    %p104 = scmp.ne.s32.totalorder %s90, %s91
    %p105 = scmp.eq.s32.totalorder %s15, 1
    %p106 = por %p104, %p105
    %p108 = scmp.ne.s32.totalorder %s91, %s107
    %p109 = scmp.eq.s32.totalorder %s15, 0
    %p110 = por %p108, %p109
    %p111 = scmp.le.s32.totalorder 1, %s9
    %p112 = scmp.lt.s32.totalorder %s9, 3
    %p113 = pnand %p111, %p112
    %p114 = pneg %p113
    // Predicated region
    $region9: #{d_res_3d_cnn_forward.16} parent=5 // pred_check
      _
    $region10: #{d_res_3d_cnn_forward.16} parent=5 // pred_check_branch
      %116 = sbr.rel (%p113) target = $region12
    $region11: #{d_res_3d_cnn_forward.16} parent=5 // pred_region
      %s117 = ssub.s32 %s9, 1
      // Predicated region
      $region13: #{d_res_3d_cnn_forward.16} parent=11 // pred_check
        %p118 = pneg %p56
      $region14: #{d_res_3d_cnn_forward.16} parent=11 // pred_check_branch
        %120 = sbr.rel (%p118) target = $region16
      $region15: #{d_res_3d_cnn_forward.16} parent=11 // pred_region
        _
      $region16: #{d_res_3d_cnn_forward.16} parent=11 // pred_fallthru
        _
      // Predicated region
      $region17: #{d_res_3d_cnn_forward.16} parent=11 // pred_check
        %p121 = pneg %p77
      $region18: #{d_res_3d_cnn_forward.16} parent=11 // pred_check_branch
        %123 = sbr.rel (%p121) target = $region20
      $region19: #{d_res_3d_cnn_forward.16} parent=11 // pred_region
        _
      $region20: #{d_res_3d_cnn_forward.16} parent=11 // pred_fallthru
        _
    $region12: #{d_res_3d_cnn_forward.16} parent=5 // pred_fallthru
      _
    %p124 = scmp.lt.s32.totalorder %s9, 2
    // Predicated region
    $region21: #{d_res_3d_cnn_forward.16} parent=5 // pred_check
      %p125 = pneg %p124
    $region22: #{d_res_3d_cnn_forward.16} parent=5 // pred_check_branch
      %127 = sbr.rel (%p125) target = $region24
    $region23: #{d_res_3d_cnn_forward.16} parent=5 // pred_region
      // Predicated region
      $region25: #{d_res_3d_cnn_forward.16} parent=23 // pred_check
        %p128 = pneg %p29
      $region26: #{d_res_3d_cnn_forward.16} parent=23 // pred_check_branch
        %130 = sbr.rel (%p128) target = $region28
      $region27: #{d_res_3d_cnn_forward.16} parent=23 // pred_region
        %s131 = smul.u32 12, %s9
        %p132 = scmp.lt.s32.totalorder %s131, 23
        %s133 = scalar_select %p132, %s131, 23
        %s134 = smul.addr %s133, 4
        %s135 = scalar_lea.vmem %s0, %s134
        %s136 = smul.u32 12, %s9
      $region28: #{d_res_3d_cnn_forward.16} parent=23 // pred_fallthru
        _
    $region24: #{d_res_3d_cnn_forward.16} parent=5 // pred_fallthru
      _
    %p137 = scmp.le.s32.totalorder 1, %s9
    %p138 = scmp.lt.s32.totalorder %s9, 3
    %p139 = pnand %p137, %p138
    %p140 = pneg %p139
    // Predicated region
    $region29: #{d_res_3d_cnn_forward.16} parent=5 // pred_check
      _
    $region30: #{d_res_3d_cnn_forward.16} parent=5 // pred_check_branch
      %142 = sbr.rel (%p139) target = $region32
    $region31: #{d_res_3d_cnn_forward.16} parent=5 // pred_region
      %s143 = ssub.s32 %s9, 1
      %s144 = smul.u32 12, %s14
      %p145 = scmp.lt.s32.totalorder %s144, 23
      %s146 = scalar_select %p145, %s144, 23
      %s147 = smul.addr %s146, 4
      %s148 = scalar_lea.vmem %s0, %s147
      %p149 = pneg %p35
      %p150 = pneg %p32
      %p151 = pneg %p56
      %p152 = pneg %p53
      %p153 = pneg %p77
      %p154 = pneg %p74
      %p155 = pneg %p103
      %p156 = pneg %p100
      %s157 = smul.u32 12, %s14
      %p158 = scmp.lt.s32.totalorder %s157, 23
      %s159 = scalar_select %p158, %s157, 23
      %s160 = smul.addr %s159, 4
      %s161 = scalar_lea.vmem %s3, %s160
      %s162 = smul.u32 12, %s14
      %p163 = scmp.lt.s32.totalorder %s162, 23
      %s164 = scalar_select %p163, %s162, 23
      %s165 = smul.addr %s164, 4
      %s166 = scalar_lea.vmem %s0, %s165
      %s167 = smul.u32 12, %s14
      %s168 = smul.u32 12, %s14
      %p169 = scmp.lt.s32.totalorder %s168, 23
      %s170 = scalar_select %p169, %s168, 23
      %s171 = smul.addr %s170, 4
      %s172 = scalar_lea.vmem %s3, %s171
      %s173 = smul.u32 12, %s14
      %v174 = vld [vmem:[%s166] sm:$0xf]
      %v175 = vld [vmem:[%s166 + $0x4] sm:$0xf]
      %v176 = vld [vmem:[%s166 + $0x8] sm:$0xf]
      %v177 = vld [vmem:[%s166 + $0xc] sm:$0xf]
      %v178 = vld [vmem:[%s166 + $0x10] sm:$0xf]
      %v179 = vld [vmem:[%s166 + $0x14] sm:$0xf]
      %v180 = vld [vmem:[%s166 + $0x18] sm:$0xf]
      %v181 = vld [vmem:[%s166 + $0x1c] sm:$0xf]
      %v182 = vld [vmem:[%s166 + $0x20] sm:$0xf]
      %v183 = vld [vmem:[%s166 + $0x24] sm:$0xf]
      %v184 = vld [vmem:[%s166 + $0x28] sm:$0xf]
      %v185 = vld [vmem:[%s166 + $0x2c] sm:$0xf]
      %v186 = vunpack.c.l.bf16 %v174
      %v187 = vunpack.c.l.bf16 %v175
      %v188 = vunpack.c.l.bf16 %v176
      %v189 = vunpack.c.l.bf16 %v177
      %v190 = vunpack.c.l.bf16 %v178
      %v191 = vunpack.c.l.bf16 %v179
      %v192 = vunpack.c.l.bf16 %v180
      %v193 = vunpack.c.l.bf16 %v181
      %v194 = vunpack.c.l.bf16 %v182
      %v195 = vunpack.c.l.bf16 %v183
      %v196 = vunpack.c.l.bf16 %v184
      %v197 = vunpack.c.l.bf16 %v185
      %v198 = vld [vmem:[%s1] sm:$0x1]
      %v200 = vlaneseq
      %v201 = vshrl.u32 %v200, 7
      %v202 = vsub.s32 0, %v201
      %v203 = vrot.slane %v198, %v202
      %v205 = vmul.f32 %v186, %v203
      %v206 = vmul.f32 %v187, %v203
      %v207 = vmul.f32 %v188, %v203
      %v208 = vmul.f32 %v189, %v203
      %v209 = vmul.f32 %v190, %v203
      %v210 = vmul.f32 %v191, %v203
      %v211 = vmul.f32 %v192, %v203
      %v212 = vmul.f32 %v193, %v203
      %v213 = vmul.f32 %v194, %v203
      %v214 = vmul.f32 %v195, %v203
      %v215 = vmul.f32 %v196, %v203
      %v216 = vmul.f32 %v197, %v203
      %v217 = vld [vmem:[%s2] sm:$0x1]
      %v219 = vlaneseq
      %v220 = vshrl.u32 %v219, 7
      %v221 = vsub.s32 0, %v220
      %v222 = vrot.slane %v217, %v221
      %v224 = vadd.f32 %v205, %v222
      %v225 = vadd.f32 %v206, %v222
      %v226 = vadd.f32 %v207, %v222
      %v227 = vadd.f32 %v208, %v222
      %v228 = vadd.f32 %v209, %v222
      %v229 = vadd.f32 %v210, %v222
      %v230 = vadd.f32 %v211, %v222
      %v231 = vadd.f32 %v212, %v222
      %v232 = vadd.f32 %v213, %v222
      %v233 = vadd.f32 %v214, %v222
      %v234 = vadd.f32 %v215, %v222
      %v235 = vadd.f32 %v216, %v222
      %v236 = vmax.f32 %v224, 0.0
      %v237 = vmax.f32 %v225, 0.0
      %v238 = vmax.f32 %v226, 0.0
      %v239 = vmax.f32 %v227, 0.0
      %v240 = vmax.f32 %v228, 0.0
      %v241 = vmax.f32 %v229, 0.0
      %v242 = vmax.f32 %v230, 0.0
      %v243 = vmax.f32 %v231, 0.0
      %v244 = vmax.f32 %v232, 0.0
      %v245 = vmax.f32 %v233, 0.0
      %v246 = vmax.f32 %v234, 0.0
      %v247 = vmax.f32 %v235, 0.0
      %v248 = vpack.c.bf16 %v237, %v236
      %v249 = vpack.c.bf16 %v239, %v238
      %v250 = vpack.c.bf16 %v241, %v240
      %v251 = vpack.c.bf16 %v243, %v242
      %v252 = vpack.c.bf16 %v245, %v244
      %v253 = vpack.c.bf16 %v247, %v246
      %v260 = vunpack.c.l.b16 %v248
      %v261 = vunpack.c.h.b16 %v248
      %v262 = vunpack.c.l.b16 %v249
      %v263 = vunpack.c.h.b16 %v249
      %v264 = vunpack.c.l.b16 %v250
      %v265 = vunpack.c.h.b16 %v250
      %v266 = vunpack.c.l.b16 %v251
      %v267 = vunpack.c.h.b16 %v251
      %v268 = vunpack.c.l.b16 %v252
      %v269 = vunpack.c.h.b16 %v252
      %v270 = vunpack.c.l.b16 %v253
      %v271 = vunpack.c.h.b16 %v253
      %v272 = vpack.c.b16 %v260, %v260
      %v273 = vpack.c.b16 %v261, %v261
      %v274 = vpack.c.b16 %v262, %v262
      %v275 = vpack.c.b16 %v263, %v263
      %v276 = vpack.c.b16 %v264, %v264
      %v277 = vpack.c.b16 %v265, %v265
      %v278 = vpack.c.b16 %v266, %v266
      %v279 = vpack.c.b16 %v267, %v267
      %v280 = vpack.c.b16 %v268, %v268
      %v281 = vpack.c.b16 %v269, %v269
      %v282 = vpack.c.b16 %v270, %v270
      %v283 = vpack.c.b16 %v271, %v271
      %296 = vst [vmem:[%s172] sm:$0xf] %v272
      %297 = vst [vmem:[%s172 + $0x4] sm:$0xf] %v273
      %298 = vst [vmem:[%s172 + $0x8] sm:$0xf] %v274
      %299 = vst [vmem:[%s172 + $0xc] sm:$0xf] %v275
      %300 = vst [vmem:[%s172 + $0x10] sm:$0xf] %v276
      %301 = vst [vmem:[%s172 + $0x14] sm:$0xf] %v277
      %302 = vst [vmem:[%s172 + $0x18] sm:$0xf] %v278
      %303 = vst [vmem:[%s172 + $0x1c] sm:$0xf] %v279
      %304 = vst [vmem:[%s172 + $0x20] sm:$0xf] %v280
      %305 = vst [vmem:[%s172 + $0x24] sm:$0xf] %v281
      %306 = vst [vmem:[%s172 + $0x28] sm:$0xf] %v282
      %307 = vst [vmem:[%s172 + $0x2c] sm:$0xf] %v283
      %s308 = smul.u32 12, %s14
      %p309 = scmp.lt.s32.totalorder %s308, 23
      %s310 = scalar_select %p309, %s308, 23
      %s311 = smul.addr %s310, 4
      %s312 = scalar_lea.vmem %s3, %s311
      // Predicated region
      $region33: #{d_res_3d_cnn_forward.16} parent=31 // pred_check
        %p313 = pneg %p100
      $region34: #{d_res_3d_cnn_forward.16} parent=31 // pred_check_branch
        %315 = sbr.rel (%p313) target = $region36
      $region35: #{d_res_3d_cnn_forward.16} parent=31 // pred_region
        %s316 = smul.u32 12, %s14
      $region36: #{d_res_3d_cnn_forward.16} parent=31 // pred_fallthru
        _
    $region32: #{d_res_3d_cnn_forward.16} parent=5 // pred_fallthru
      _
    %p317 = scmp.le.s32.totalorder 2, %s9
    // Predicated region
    $region37: #{d_res_3d_cnn_forward.16} parent=5 // pred_check
      %p318 = pneg %p317
    $region38: #{d_res_3d_cnn_forward.16} parent=5 // pred_check_branch
      %320 = sbr.rel (%p318) target = $region40
    $region39: #{d_res_3d_cnn_forward.16} parent=5 // pred_region
      %s321 = ssub.s32 %s9, 2
      // Predicated region
      $region41: #{d_res_3d_cnn_forward.16} parent=39 // pred_check
        %p322 = pneg %p106
      $region42: #{d_res_3d_cnn_forward.16} parent=39 // pred_check_branch
        %324 = sbr.rel (%p322) target = $region44
      $region43: #{d_res_3d_cnn_forward.16} parent=39 // pred_region
        %s325 = smul.u32 12, %s15
        %p326 = scmp.lt.s32.totalorder %s325, 23
        %s327 = scalar_select %p326, %s325, 23
        %s328 = smul.addr %s327, 4
        %s329 = scalar_lea.vmem %s3, %s328
      $region44: #{d_res_3d_cnn_forward.16} parent=39 // pred_fallthru
        _
    $region40: #{d_res_3d_cnn_forward.16} parent=5 // pred_fallthru
      _
  $region6: #{d_res_3d_cnn_forward.16} parent=0 // loop_footer
    %s13 = sadd.s32 1, %s9
  $region7: #{d_res_3d_cnn_forward.16} parent=0 // loop_footer_branch
    %8 = sbr.rel target = $region3
  $region8: #{d_res_3d_cnn_forward.16} parent=0 // loop_exit
    _

// kernel: d_res_3d_cnn_forward.15
$region0: #{d_res_3d_cnn_forward.15}
  #allocation0 [shape = 'u32[]', space=smem, size = 0x4, offset = 0x4, fixed_abs, tag = 'smem constant byte address 0x4 - core index']
  #allocation1 [shape = 'u32[144,128]{1,0:T(1,128)}', space=vmem, size = 0x12000, scoped, tag = 'internal scratch']
  %s0 = inlined_call_operand.vmem [shape: bf16[162,864], index: 0, kind: input, shape index: {}]
  %s1 = inlined_call_operand.vmem [shape: bf16[864,128], index: 1, kind: input, shape index: {}]
  %s2 = inlined_call_operand.vmem [shape: bf16[192,128], index: 2, kind: output, shape index: {0}]
  %s3 = inlined_call_operand.vmem [shape: f32[16,128], index: 3, kind: output, shape index: {1}]
  %s4 = inlined_call_operand.vmem [shape: f32[16,128], index: 4, kind: output, shape index: {2}]
  %5 = xla_tuple %s2, %s3, %s4
  %s6 = sld [smem:[#allocation0]]
  $region57: #{d_res_3d_cnn_forward.15} parent=0
    _
  %s8 = ssub.s32 1, %s6
  %s9 = scalar_select 0, %s8, %s6
  loop: start=0, step=1, limit=4
  $region2: #{d_res_3d_cnn_forward.15} parent=0 // loop_pre_header
    _
  $region3: #{d_res_3d_cnn_forward.15} parent=0 // loop_header
    %s11 = sphi 0, %s15
    %p12 = scmp.ge.s32.totalorder %s11, 4
    %s21 = sphi 0, %s23
    %s24 = sphi 0, %s21
    %s25 = sphi 0, %s24
    %s41 = sphi 0, %s25
    %s45 = sphi 0, %s45
    %s47 = sphi 0, %s45
    %s48 = sphi 0, %s47
    %s62 = sphi 0, %s48
    %s68 = sphi 0, %s70
    %s71 = sphi 0, %s68
    %s72 = sphi 0, %s71
    %s88 = sphi 0, %s72
    %s94 = sphi 0, %s96
    %s97 = sphi 0, %s94
    %s98 = sphi 0, %s97
    %s114 = sphi 0, %s98
    %s120 = sphi 0, %s122
    %s123 = sphi 0, %s120
    %s124 = sphi 0, %s123
    %s140 = sphi 0, %s124
  $region4: #{d_res_3d_cnn_forward.15} parent=0 // loop_header_branch
    %14 = sbr.rel (%p12) target = $region8
  $region5: #{d_res_3d_cnn_forward.15} parent=0 // loop_body
    %s16 = ssub.s32 %s11, 1
    %s17 = ssub.s32 %s11, 2
    %s18 = sadd.s32 %s11, 1
    %s19 = ssub.s32 %s11, %s18
    %p20 = scmp.eq.s32.totalorder %s19, 0
    %s22 = sadd.s32 %s21, 1
    %s23 = scalar_select %p20, %s21, %s22
    %p26 = pneg %p20
    %p27 = scmp.eq.s32.totalorder %s11, 1
    %p28 = por %p26, %p27
    %p29 = scmp.ne.s32.totalorder %s21, %s24
    %p30 = scmp.eq.s32.totalorder %s11, 0
    %p31 = por %p29, %p30
    %p32 = scmp.ne.s32.totalorder %s21, %s24
    %p33 = scmp.eq.s32.totalorder %s16, 1
    %p34 = por %p32, %p33
    %p35 = scmp.ne.s32.totalorder %s24, %s25
    %p36 = scmp.eq.s32.totalorder %s16, 0
    %p37 = por %p35, %p36
    %p38 = scmp.ne.s32.totalorder %s24, %s25
    %p39 = scmp.eq.s32.totalorder %s17, 1
    %p40 = por %p38, %p39
    %p42 = scmp.ne.s32.totalorder %s25, %s41
    %p43 = scmp.eq.s32.totalorder %s17, 0
    %p44 = por %p42, %p43
    %s46 = sadd.s32 %s45, 1
    %p49 = scmp.eq.s32.totalorder %s11, 1
    %p50 = scmp.ne.s32.totalorder %s45, %s47
    %p51 = scmp.eq.s32.totalorder %s11, 0
    %p52 = por %p50, %p51
    %p53 = scmp.ne.s32.totalorder %s45, %s47
    %p54 = scmp.eq.s32.totalorder %s16, 1
    %p55 = por %p53, %p54
    %p56 = scmp.ne.s32.totalorder %s47, %s48
    %p57 = scmp.eq.s32.totalorder %s16, 0
    %p58 = por %p56, %p57
    %p59 = scmp.ne.s32.totalorder %s47, %s48
    %p60 = scmp.eq.s32.totalorder %s17, 1
    %p61 = por %p59, %p60
    %p63 = scmp.ne.s32.totalorder %s48, %s62
    %p64 = scmp.eq.s32.totalorder %s17, 0
    %p65 = por %p63, %p64
    %s66 = ssub.s32 %s11, %s18
    %p67 = scmp.eq.s32.totalorder %s66, 0
    %s69 = sadd.s32 %s68, 1
    %s70 = scalar_select %p67, %s68, %s69
    %p73 = pneg %p67
    %p74 = scmp.eq.s32.totalorder %s11, 1
    %p75 = por %p73, %p74
    %p76 = scmp.ne.s32.totalorder %s68, %s71
    %p77 = scmp.eq.s32.totalorder %s11, 0
    %p78 = por %p76, %p77
    %p79 = scmp.ne.s32.totalorder %s68, %s71
    %p80 = scmp.eq.s32.totalorder %s16, 1
    %p81 = por %p79, %p80
    %p82 = scmp.ne.s32.totalorder %s71, %s72
    %p83 = scmp.eq.s32.totalorder %s16, 0
    %p84 = por %p82, %p83
    %p85 = scmp.ne.s32.totalorder %s71, %s72
    %p86 = scmp.eq.s32.totalorder %s17, 1
    %p87 = por %p85, %p86
    %p89 = scmp.ne.s32.totalorder %s72, %s88
    %p90 = scmp.eq.s32.totalorder %s17, 0
    %p91 = por %p89, %p90
    %s92 = ssub.s32 %s11, %s18
    %p93 = scmp.eq.s32.totalorder %s92, 0
    %s95 = sadd.s32 %s94, 1
    %s96 = scalar_select %p93, %s94, %s95
    %p99 = pneg %p93
    %p100 = scmp.eq.s32.totalorder %s11, 1
    %p101 = por %p99, %p100
    %p102 = scmp.ne.s32.totalorder %s94, %s97
    %p103 = scmp.eq.s32.totalorder %s11, 0
    %p104 = por %p102, %p103
    %p105 = scmp.ne.s32.totalorder %s94, %s97
    %p106 = scmp.eq.s32.totalorder %s16, 1
    %p107 = por %p105, %p106
    %p108 = scmp.ne.s32.totalorder %s97, %s98
    %p109 = scmp.eq.s32.totalorder %s16, 0
    %p110 = por %p108, %p109
    %p111 = scmp.ne.s32.totalorder %s97, %s98
    %p112 = scmp.eq.s32.totalorder %s17, 1
    %p113 = por %p111, %p112
    %p115 = scmp.ne.s32.totalorder %s98, %s114
    %p116 = scmp.eq.s32.totalorder %s17, 0
    %p117 = por %p115, %p116
    %s118 = ssub.s32 %s11, %s18
    %p119 = scmp.eq.s32.totalorder %s118, 0
    %s121 = sadd.s32 %s120, 1
    %s122 = scalar_select %p119, %s120, %s121
    %p125 = pneg %p119
    %p126 = scmp.eq.s32.totalorder %s11, 1
    %p127 = por %p125, %p126
    %p128 = scmp.ne.s32.totalorder %s120, %s123
    %p129 = scmp.eq.s32.totalorder %s11, 0
    %p130 = por %p128, %p129
    %p131 = scmp.ne.s32.totalorder %s120, %s123
    %p132 = scmp.eq.s32.totalorder %s16, 1
    %p133 = por %p131, %p132
    %p134 = scmp.ne.s32.totalorder %s123, %s124
    %p135 = scmp.eq.s32.totalorder %s16, 0
    %p136 = por %p134, %p135
    %p137 = scmp.ne.s32.totalorder %s123, %s124
    %p138 = scmp.eq.s32.totalorder %s17, 1
    %p139 = por %p137, %p138
    %p141 = scmp.ne.s32.totalorder %s124, %s140
    %p142 = scmp.eq.s32.totalorder %s17, 0
    %p143 = por %p141, %p142
    %p144 = scmp.le.s32.totalorder 1, %s11
    %p145 = scmp.lt.s32.totalorder %s11, 3
    %p146 = pnand %p144, %p145
    %p147 = pneg %p146
    // Predicated region
    $region9: #{d_res_3d_cnn_forward.15} parent=5 // pred_check
      _
    $region10: #{d_res_3d_cnn_forward.15} parent=5 // pred_check_branch
      %149 = sbr.rel (%p146) target = $region12
    $region11: #{d_res_3d_cnn_forward.15} parent=5 // pred_region
      %s150 = ssub.s32 %s11, 1
      // Predicated region
      $region13: #{d_res_3d_cnn_forward.15} parent=11 // pred_check
        %p151 = pneg %p58
      $region14: #{d_res_3d_cnn_forward.15} parent=11 // pred_check_branch
        %153 = sbr.rel (%p151) target = $region16
      $region15: #{d_res_3d_cnn_forward.15} parent=11 // pred_region
        _
      $region16: #{d_res_3d_cnn_forward.15} parent=11 // pred_fallthru
        _
    $region12: #{d_res_3d_cnn_forward.15} parent=5 // pred_fallthru
      _
    %p154 = scmp.lt.s32.totalorder %s11, 2
    // Predicated region
    $region17: #{d_res_3d_cnn_forward.15} parent=5 // pred_check
      %p155 = pneg %p154
    $region18: #{d_res_3d_cnn_forward.15} parent=5 // pred_check_branch
      %157 = sbr.rel (%p155) target = $region20
    $region19: #{d_res_3d_cnn_forward.15} parent=5 // pred_region
      // Predicated region
      $region21: #{d_res_3d_cnn_forward.15} parent=19 // pred_check
        %p158 = pneg %p31
      $region22: #{d_res_3d_cnn_forward.15} parent=19 // pred_check_branch
        %160 = sbr.rel (%p158) target = $region24
      $region23: #{d_res_3d_cnn_forward.15} parent=19 // pred_region
        %s161 = smul.u32 12, %s11
        %s162 = ssub.s32 21, %s161
        %p163 = scmp.lt.s32.totalorder %s162, 12
        %s164 = scalar_select %p163, %s162, 12
        %s165 = smul.u32 64, %s164
        %s166 = smul.u32 %s165, 7
        %p167 = scmp.lt.s32.totalorder %s161, 20
        %s168 = scalar_select %p167, %s161, 20
        %s169 = smul.addr %s168, 7
        %s170 = smul.addr %s169, 4
        %s171 = scalar_lea.vmem %s0, %s170
        %s172 = smul.u32 12, %s11
        %s173 = ssub.s32 21, %s172
        %p174 = scmp.lt.s32.totalorder %s173, 12
        %s175 = scalar_select %p174, %s173, 12
        %s176 = smul.u32 64, %s175
        %s177 = smul.u32 %s176, 7
      $region24: #{d_res_3d_cnn_forward.15} parent=19 // pred_fallthru
        _
    $region20: #{d_res_3d_cnn_forward.15} parent=5 // pred_fallthru
      _
    %p178 = scmp.le.s32.totalorder 1, %s11
    %p179 = scmp.lt.s32.totalorder %s11, 3
    %p180 = pnand %p178, %p179
    %p181 = pneg %p180
    // Predicated region
    $region25: #{d_res_3d_cnn_forward.15} parent=5 // pred_check
      _
    $region26: #{d_res_3d_cnn_forward.15} parent=5 // pred_check_branch
      %183 = sbr.rel (%p180) target = $region28
    $region27: #{d_res_3d_cnn_forward.15} parent=5 // pred_region
      %s184 = ssub.s32 %s11, 1
      %s185 = smul.u32 12, %s16
      %s186 = ssub.s32 21, %s185
      %p187 = scmp.lt.s32.totalorder %s186, 12
      %s188 = scalar_select %p187, %s186, 12
      %s189 = smul.u32 64, %s188
      %s190 = smul.u32 %s189, 7
      %p191 = scmp.lt.s32.totalorder %s185, 20
      %s192 = scalar_select %p191, %s185, 20
      %s193 = smul.addr %s192, 7
      %s194 = smul.addr %s193, 4
      %s195 = scalar_lea.vmem %s0, %s194
      %p196 = pneg %p37
      %p197 = pneg %p34
      %p198 = pneg %p58
      %p199 = pneg %p55
      %p200 = pneg %p84
      %p201 = pneg %p81
      %s202 = smul.u32 12, %s16
      %p203 = scmp.lt.s32.totalorder %s202, 23
      %s204 = scalar_select %p203, %s202, 23
      %s205 = smul.addr %s204, 4
      %s206 = scalar_lea.vmem %s2, %s205
      %p207 = pneg %p110
      %p208 = pneg %p107
      %p209 = scmp.lt.s32.totalorder %s16, 1
      %s210 = scalar_select %p209, %s16, 1
      %s211 = smul.addr %s210, 8
      %s212 = scalar_lea.vmem %s3, %s211
      %p213 = pneg %p136
      %p214 = pneg %p133
      %p215 = scmp.lt.s32.totalorder %s16, 1
      %s216 = scalar_select %p215, %s16, 1
      %s217 = smul.addr %s216, 8
      %s218 = scalar_lea.vmem %s4, %s217
      %s219 = smul.u32 12, %s16
      %s220 = ssub.s32 21, %s219
      %p221 = scmp.lt.s32.totalorder %s220, 12
      %s222 = scalar_select %p221, %s220, 12
      %s223 = smul.u32 64, %s222
      %s224 = smul.u32 %s223, 7
      %p225 = scmp.lt.s32.totalorder %s219, 20
      %s226 = scalar_select %p225, %s219, 20
      %s227 = smul.addr %s226, 7
      %s228 = smul.addr %s227, 4
      %s229 = scalar_lea.vmem %s0, %s228
      %s230 = smul.u32 12, %s16
      %s231 = ssub.s32 21, %s230
      %p232 = scmp.lt.s32.totalorder %s231, 12
      %s233 = scalar_select %p232, %s231, 12
      %s234 = smul.u32 64, %s233
      %s235 = smul.u32 %s234, 7
      %s236 = smul.u32 12, %s16
      %p237 = scmp.lt.s32.totalorder %s236, 23
      %s238 = scalar_select %p237, %s236, 23
      %s239 = smul.addr %s238, 4
      %s240 = scalar_lea.vmem %s2, %s239
      %s241 = smul.u32 12, %s16
      %p242 = scmp.lt.s32.totalorder %s16, 1
      %s243 = scalar_select %p242, %s16, 1
      %s244 = smul.addr %s243, 8
      %s245 = scalar_lea.vmem %s3, %s244
      %p246 = scmp.lt.s32.totalorder %s16, 1
      %s247 = scalar_select %p246, %s16, 1
      %s248 = smul.addr %s247, 8
      %s249 = scalar_lea.vmem %s4, %s248
      %v251 = vld [vmem:[%s229] sm:$0xff]
      %v252 = vld [vmem:[%s229 + $0x8] sm:$0xff]
      %v253 = vld [vmem:[%s229 + $0x10] sm:$0xff]
      %v254 = vld [vmem:[%s229 + $0x18] sm:$0xf]
      %v255 = vld [vmem:[%s229 + $0x1c] sm:$0xff]
      %v256 = vld [vmem:[%s229 + $0x24] sm:$0xff]
      %v257 = vld [vmem:[%s229 + $0x2c] sm:$0xff]
      %v258 = vld [vmem:[%s229 + $0x34] sm:$0xf]
      %v259 = vld [vmem:[%s229 + $0x38] sm:$0xff]
      %v260 = vld [vmem:[%s229 + $0x40] sm:$0xff]
      %v261 = vld [vmem:[%s229 + $0x48] sm:$0xff]
      %v262 = vld [vmem:[%s229 + $0x50] sm:$0xf]
      %v263 = vld [vmem:[%s229 + $0x54] sm:$0xff]
      %v264 = vld [vmem:[%s229 + $0x5c] sm:$0xff]
      %v265 = vld [vmem:[%s229 + $0x64] sm:$0xff]
      %v266 = vld [vmem:[%s229 + $0x6c] sm:$0xf]
      %v267 = vld [vmem:[%s229 + $0x70] sm:$0xff]
      %v268 = vld [vmem:[%s229 + $0x78] sm:$0xff]
      %v269 = vld [vmem:[%s229 + $0x80] sm:$0xff]
      %v270 = vld [vmem:[%s229 + $0x88] sm:$0xf]
      %v271 = vld [vmem:[%s229 + $0x8c] sm:$0xff]
      %v272 = vld [vmem:[%s229 + $0x94] sm:$0xff]
      %v273 = vld [vmem:[%s229 + $0x9c] sm:$0xff]
      %v274 = vld [vmem:[%s229 + $0xa4] sm:$0xf]
      %v275 = vld [vmem:[%s229 + $0xa8] sm:$0xff]
      %v276 = vld [vmem:[%s229 + $0xb0] sm:$0xff]
      %v277 = vld [vmem:[%s229 + $0xb8] sm:$0xff]
      %v278 = vld [vmem:[%s229 + $0xc0] sm:$0xf]
      %v279 = vld [vmem:[%s229 + $0xc4] sm:$0xff]
      %v280 = vld [vmem:[%s229 + $0xcc] sm:$0xff]
      %v281 = vld [vmem:[%s229 + $0xd4] sm:$0xff]
      %v282 = vld [vmem:[%s229 + $0xdc] sm:$0xf]
      %v283 = vld [vmem:[%s229 + $0xe0] sm:$0xff]
      %v284 = vld [vmem:[%s229 + $0xe8] sm:$0xff]
      %v285 = vld [vmem:[%s229 + $0xf0] sm:$0xff]
      %v286 = vld [vmem:[%s229 + $0xf8] sm:$0xf]
      %v287 = vld [vmem:[%s229 + $0xfc] sm:$0xff]
      %v288 = vld [vmem:[%s229 + $0x104] sm:$0xff]
      %v289 = vld [vmem:[%s229 + $0x10c] sm:$0xff]
      %v290 = vld [vmem:[%s229 + $0x114] sm:$0xf]
      %v291 = vld [vmem:[%s229 + $0x118] sm:$0xff]
      %v292 = vld [vmem:[%s229 + $0x120] sm:$0xff]
      %v293 = vld [vmem:[%s229 + $0x128] sm:$0xff]
      %v294 = vld [vmem:[%s229 + $0x130] sm:$0xf]
      %v295 = vld [vmem:[%s229 + $0x134] sm:$0xff]
      %v296 = vld [vmem:[%s229 + $0x13c] sm:$0xff]
      %v297 = vld [vmem:[%s229 + $0x144] sm:$0xff]
      %v298 = vld [vmem:[%s229 + $0x14c] sm:$0xf]
      %v299 = vld [vmem:[%s1] sm:$0xf]
      %v300 = vld [vmem:[%s1 + $0x4] sm:$0xf]
      %v301 = vld [vmem:[%s1 + $0x8] sm:$0xf]
      %v302 = vld [vmem:[%s1 + $0xc] sm:$0xf]
      %v303 = vld [vmem:[%s1 + $0x10] sm:$0xf]
      %v304 = vld [vmem:[%s1 + $0x14] sm:$0xf]
      %v305 = vld [vmem:[%s1 + $0x18] sm:$0xf]
      %v306 = vld [vmem:[%s1 + $0x1c] sm:$0xf]
      %v307 = vld [vmem:[%s1 + $0x20] sm:$0xf]
      %v308 = vld [vmem:[%s1 + $0x24] sm:$0xf]
      %v309 = vld [vmem:[%s1 + $0x28] sm:$0xf]
      %v310 = vld [vmem:[%s1 + $0x2c] sm:$0xf]
      %v311 = vld [vmem:[%s1 + $0x30] sm:$0xf]
      %v312 = vld [vmem:[%s1 + $0x34] sm:$0xf]
      %v313 = vld [vmem:[%s1 + $0x38] sm:$0xf]
      %v314 = vld [vmem:[%s1 + $0x3c] sm:$0xf]
      %v315 = vld [vmem:[%s1 + $0x40] sm:$0xf]
      %v316 = vld [vmem:[%s1 + $0x44] sm:$0xf]
      %v317 = vld [vmem:[%s1 + $0x48] sm:$0xf]
      %v318 = vld [vmem:[%s1 + $0x4c] sm:$0xf]
      %v319 = vld [vmem:[%s1 + $0x50] sm:$0xf]
      %v320 = vld [vmem:[%s1 + $0x54] sm:$0xf]
      %v321 = vld [vmem:[%s1 + $0x58] sm:$0xf]
      %v322 = vld [vmem:[%s1 + $0x5c] sm:$0xf]
      %v323 = vld [vmem:[%s1 + $0x60] sm:$0xf]
      %v324 = vld [vmem:[%s1 + $0x64] sm:$0xf]
      %v325 = vld [vmem:[%s1 + $0x68] sm:$0xf]
      %v326 = vld [vmem:[%s1 + $0x6c] sm:$0xf]
      %v327 = vld [vmem:[%s1 + $0x70] sm:$0xf]
      %v328 = vld [vmem:[%s1 + $0x74] sm:$0xf]
      %v329 = vld [vmem:[%s1 + $0x78] sm:$0xf]
      %v330 = vld [vmem:[%s1 + $0x7c] sm:$0xf]
      %v331 = vld [vmem:[%s1 + $0x80] sm:$0xf]
      %v332 = vld [vmem:[%s1 + $0x84] sm:$0xf]
      %v333 = vld [vmem:[%s1 + $0x88] sm:$0xf]
      %v334 = vld [vmem:[%s1 + $0x8c] sm:$0xf]
      %v335 = vld [vmem:[%s1 + $0x90] sm:$0xf]
      %v336 = vld [vmem:[%s1 + $0x94] sm:$0xf]
      %v337 = vld [vmem:[%s1 + $0x98] sm:$0xf]
      %v338 = vld [vmem:[%s1 + $0x9c] sm:$0xf]
      %v339 = vld [vmem:[%s1 + $0xa0] sm:$0xf]
      %v340 = vld [vmem:[%s1 + $0xa4] sm:$0xf]
      %v341 = vld [vmem:[%s1 + $0xa8] sm:$0xf]
      %v342 = vld [vmem:[%s1 + $0xac] sm:$0xf]
      %v343 = vld [vmem:[%s1 + $0xb0] sm:$0xf]
      %v344 = vld [vmem:[%s1 + $0xb4] sm:$0xf]
      %v345 = vld [vmem:[%s1 + $0xb8] sm:$0xf]
      %v346 = vld [vmem:[%s1 + $0xbc] sm:$0xf]
      %v347 = vld [vmem:[%s1 + $0xc0] sm:$0xf]
      %v348 = vld [vmem:[%s1 + $0xc4] sm:$0xf]
      %v349 = vld [vmem:[%s1 + $0xc8] sm:$0xf]
      %v350 = vld [vmem:[%s1 + $0xcc] sm:$0xf]
      %v351 = vld [vmem:[%s1 + $0xd0] sm:$0xf]
      %v352 = vld [vmem:[%s1 + $0xd4] sm:$0xf]
      %v353 = vld [vmem:[%s1 + $0xd8] sm:$0xf]
      %v354 = vld [vmem:[%s1 + $0xdc] sm:$0xf]
      %v355 = vld [vmem:[%s1 + $0xe0] sm:$0xf]
      %v356 = vld [vmem:[%s1 + $0xe4] sm:$0xf]
      %v357 = vld [vmem:[%s1 + $0xe8] sm:$0xf]
      %v358 = vld [vmem:[%s1 + $0xec] sm:$0xf]
      %v359 = vld [vmem:[%s1 + $0xf0] sm:$0xf]
      %v360 = vld [vmem:[%s1 + $0xf4] sm:$0xf]
      %v361 = vld [vmem:[%s1 + $0xf8] sm:$0xf]
      %v362 = vld [vmem:[%s1 + $0xfc] sm:$0xf]
      %v363 = vld [vmem:[%s1 + $0x100] sm:$0xf]
      %v364 = vld [vmem:[%s1 + $0x104] sm:$0xf]
      %v365 = vld [vmem:[%s1 + $0x108] sm:$0xf]
      %v366 = vld [vmem:[%s1 + $0x10c] sm:$0xf]
      %v367 = vld [vmem:[%s1 + $0x110] sm:$0xf]
      %v368 = vld [vmem:[%s1 + $0x114] sm:$0xf]
      %v369 = vld [vmem:[%s1 + $0x118] sm:$0xf]
      %v370 = vld [vmem:[%s1 + $0x11c] sm:$0xf]
      %v371 = vld [vmem:[%s1 + $0x120] sm:$0xf]
      %v372 = vld [vmem:[%s1 + $0x124] sm:$0xf]
      %v373 = vld [vmem:[%s1 + $0x128] sm:$0xf]
      %v374 = vld [vmem:[%s1 + $0x12c] sm:$0xf]
      %v375 = vld [vmem:[%s1 + $0x130] sm:$0xf]
      %v376 = vld [vmem:[%s1 + $0x134] sm:$0xf]
      %v377 = vld [vmem:[%s1 + $0x138] sm:$0xf]
      %v378 = vld [vmem:[%s1 + $0x13c] sm:$0xf]
      %v379 = vld [vmem:[%s1 + $0x140] sm:$0xf]
      %v380 = vld [vmem:[%s1 + $0x144] sm:$0xf]
      %v381 = vld [vmem:[%s1 + $0x148] sm:$0xf]
      %v382 = vld [vmem:[%s1 + $0x14c] sm:$0xf]
      %v383 = vld [vmem:[%s1 + $0x150] sm:$0xf]
      %v384 = vld [vmem:[%s1 + $0x154] sm:$0xf]
      %v385 = vld [vmem:[%s1 + $0x158] sm:$0xf]
      %v386 = vld [vmem:[%s1 + $0x15c] sm:$0xf]
      %v387 = vld [vmem:[%s1 + $0x160] sm:$0xf]
      %v388 = vld [vmem:[%s1 + $0x164] sm:$0xf]
      %v389 = vld [vmem:[%s1 + $0x168] sm:$0xf]
      %v390 = vld [vmem:[%s1 + $0x16c] sm:$0xf]
      %v391 = vld [vmem:[%s1 + $0x170] sm:$0xf]
      %v392 = vld [vmem:[%s1 + $0x174] sm:$0xf]
      %v393 = vld [vmem:[%s1 + $0x178] sm:$0xf]
      %v394 = vld [vmem:[%s1 + $0x17c] sm:$0xf]
      %v395 = vld [vmem:[%s1 + $0x180] sm:$0xf]
      %v396 = vld [vmem:[%s1 + $0x184] sm:$0xf]
      %v397 = vld [vmem:[%s1 + $0x188] sm:$0xf]
      %v398 = vld [vmem:[%s1 + $0x18c] sm:$0xf]
      %v399 = vld [vmem:[%s1 + $0x190] sm:$0xf]
      %v400 = vld [vmem:[%s1 + $0x194] sm:$0xf]
      %v401 = vld [vmem:[%s1 + $0x198] sm:$0xf]
      %v402 = vld [vmem:[%s1 + $0x19c] sm:$0xf]
      %v403 = vld [vmem:[%s1 + $0x1a0] sm:$0xf]
      %v404 = vld [vmem:[%s1 + $0x1a4] sm:$0xf]
      %v405 = vld [vmem:[%s1 + $0x1a8] sm:$0xf]
      %v406 = vld [vmem:[%s1 + $0x1ac] sm:$0xf]
      %v455 = vunpack.c.l.b16 %v251
      %v456 = vunpack.c.h.b16 %v251
      %v457 = vunpack.c.l.b16 %v252
      %v458 = vunpack.c.h.b16 %v252
      %v459 = vunpack.c.l.b16 %v253
      %v460 = vunpack.c.h.b16 %v253
      %v461 = vunpack.c.l.b16 %v254
      %v462 = vunpack.c.l.b16 %v255
      %v463 = vunpack.c.h.b16 %v255
      %v464 = vunpack.c.l.b16 %v256
      %v465 = vunpack.c.h.b16 %v256
      %v466 = vunpack.c.l.b16 %v257
      %v467 = vunpack.c.h.b16 %v257
      %v468 = vunpack.c.l.b16 %v258
      %v469 = vunpack.c.l.b16 %v259
      %v470 = vunpack.c.h.b16 %v259
      %v471 = vunpack.c.l.b16 %v260
      %v472 = vunpack.c.h.b16 %v260
      %v473 = vunpack.c.l.b16 %v261
      %v474 = vunpack.c.h.b16 %v261
      %v475 = vunpack.c.l.b16 %v262
      %v476 = vunpack.c.l.b16 %v263
      %v477 = vunpack.c.h.b16 %v263
      %v478 = vunpack.c.l.b16 %v264
      %v479 = vunpack.c.h.b16 %v264
      %v480 = vunpack.c.l.b16 %v265
      %v481 = vunpack.c.h.b16 %v265
      %v482 = vunpack.c.l.b16 %v266
      %v483 = vunpack.c.l.b16 %v267
      %v484 = vunpack.c.h.b16 %v267
      %v485 = vunpack.c.l.b16 %v268
      %v486 = vunpack.c.h.b16 %v268
      %v487 = vunpack.c.l.b16 %v269
      %v488 = vunpack.c.h.b16 %v269
      %v489 = vunpack.c.l.b16 %v270
      %v490 = vunpack.c.l.b16 %v271
      %v491 = vunpack.c.h.b16 %v271
      %v492 = vunpack.c.l.b16 %v272
      %v493 = vunpack.c.h.b16 %v272
      %v494 = vunpack.c.l.b16 %v273
      %v495 = vunpack.c.h.b16 %v273
      %v496 = vunpack.c.l.b16 %v274
      %v497 = vunpack.c.l.b16 %v275
      %v498 = vunpack.c.h.b16 %v275
      %v499 = vunpack.c.l.b16 %v276
      %v500 = vunpack.c.h.b16 %v276
      %v501 = vunpack.c.l.b16 %v277
      %v502 = vunpack.c.h.b16 %v277
      %v503 = vunpack.c.l.b16 %v278
      %v504 = vunpack.c.l.b16 %v279
      %v505 = vunpack.c.h.b16 %v279
      %v506 = vunpack.c.l.b16 %v280
      %v507 = vunpack.c.h.b16 %v280
      %v508 = vunpack.c.l.b16 %v281
      %v509 = vunpack.c.h.b16 %v281
      %v510 = vunpack.c.l.b16 %v282
      %v511 = vunpack.c.l.b16 %v283
      %v512 = vunpack.c.h.b16 %v283
      %v513 = vunpack.c.l.b16 %v284
      %v514 = vunpack.c.h.b16 %v284
      %v515 = vunpack.c.l.b16 %v285
      %v516 = vunpack.c.h.b16 %v285
      %v517 = vunpack.c.l.b16 %v286
      %v518 = vunpack.c.l.b16 %v287
      %v519 = vunpack.c.h.b16 %v287
      %v520 = vunpack.c.l.b16 %v288
      %v521 = vunpack.c.h.b16 %v288
      %v522 = vunpack.c.l.b16 %v289
      %v523 = vunpack.c.h.b16 %v289
      %v524 = vunpack.c.l.b16 %v290
      %v525 = vunpack.c.l.b16 %v291
      %v526 = vunpack.c.h.b16 %v291
      %v527 = vunpack.c.l.b16 %v292
      %v528 = vunpack.c.h.b16 %v292
      %v529 = vunpack.c.l.b16 %v293
      %v530 = vunpack.c.h.b16 %v293
      %v531 = vunpack.c.l.b16 %v294
      %v532 = vunpack.c.l.b16 %v295
      %v533 = vunpack.c.h.b16 %v295
      %v534 = vunpack.c.l.b16 %v296
      %v535 = vunpack.c.h.b16 %v296
      %v536 = vunpack.c.l.b16 %v297
      %v537 = vunpack.c.h.b16 %v297
      %v538 = vunpack.c.l.b16 %v298
      %v539 = vpack.c.b16 %v462, %v455
      %v540 = vpack.c.b16 %v463, %v456
      %v541 = vpack.c.b16 %v464, %v457
      %v542 = vpack.c.b16 %v465, %v458
      %v543 = vpack.c.b16 %v466, %v459
      %v544 = vpack.c.b16 %v467, %v460
      %v545 = vpack.c.b16 %v468, %v461
      %v546 = vpack.c.b16 %v476, %v469
      %v547 = vpack.c.b16 %v477, %v470
      %v548 = vpack.c.b16 %v478, %v471
      %v549 = vpack.c.b16 %v479, %v472
      %v550 = vpack.c.b16 %v480, %v473
      %v551 = vpack.c.b16 %v481, %v474
      %v552 = vpack.c.b16 %v482, %v475
      %v553 = vpack.c.b16 %v490, %v483
      %v554 = vpack.c.b16 %v491, %v484
      %v555 = vpack.c.b16 %v492, %v485
      %v556 = vpack.c.b16 %v493, %v486
      %v557 = vpack.c.b16 %v494, %v487
      %v558 = vpack.c.b16 %v495, %v488
      %v559 = vpack.c.b16 %v496, %v489
      %v560 = vpack.c.b16 %v504, %v497
      %v561 = vpack.c.b16 %v505, %v498
      %v562 = vpack.c.b16 %v506, %v499
      %v563 = vpack.c.b16 %v507, %v500
      %v564 = vpack.c.b16 %v508, %v501
      %v565 = vpack.c.b16 %v509, %v502
      %v566 = vpack.c.b16 %v510, %v503
      %v567 = vpack.c.b16 %v518, %v511
      %v568 = vpack.c.b16 %v519, %v512
      %v569 = vpack.c.b16 %v520, %v513
      %v570 = vpack.c.b16 %v521, %v514
      %v571 = vpack.c.b16 %v522, %v515
      %v572 = vpack.c.b16 %v523, %v516
      %v573 = vpack.c.b16 %v524, %v517
      %v574 = vpack.c.b16 %v532, %v525
      %v575 = vpack.c.b16 %v533, %v526
      %v576 = vpack.c.b16 %v534, %v527
      %v577 = vpack.c.b16 %v535, %v528
      %v578 = vpack.c.b16 %v536, %v529
      %v579 = vpack.c.b16 %v537, %v530
      %v580 = vpack.c.b16 %v538, %v531
      %v725 = vunpack.c.l.b16 %v299
      %v726 = vunpack.c.l.b16 %v300
      %v727 = vunpack.c.l.b16 %v301
      %v728 = vunpack.c.l.b16 %v302
      %v729 = vunpack.c.l.b16 %v303
      %v730 = vunpack.c.l.b16 %v304
      %v731 = vunpack.c.l.b16 %v305
      %v732 = vunpack.c.l.b16 %v306
      %v733 = vunpack.c.l.b16 %v307
      %v734 = vunpack.c.l.b16 %v308
      %v735 = vunpack.c.l.b16 %v309
      %v736 = vunpack.c.l.b16 %v310
      %v737 = vunpack.c.l.b16 %v311
      %v738 = vunpack.c.l.b16 %v312
      %v739 = vunpack.c.l.b16 %v313
      %v740 = vunpack.c.l.b16 %v314
      %v741 = vunpack.c.l.b16 %v315
      %v742 = vunpack.c.l.b16 %v316
      %v743 = vunpack.c.l.b16 %v317
      %v744 = vunpack.c.l.b16 %v318
      %v745 = vunpack.c.l.b16 %v319
      %v746 = vunpack.c.l.b16 %v320
      %v747 = vunpack.c.l.b16 %v321
      %v748 = vunpack.c.l.b16 %v322
      %v749 = vunpack.c.l.b16 %v323
      %v750 = vunpack.c.l.b16 %v324
      %v751 = vunpack.c.l.b16 %v325
      %v752 = vunpack.c.l.b16 %v326
      %v753 = vunpack.c.l.b16 %v327
      %v754 = vunpack.c.l.b16 %v328
      %v755 = vunpack.c.l.b16 %v329
      %v756 = vunpack.c.l.b16 %v330
      %v757 = vunpack.c.l.b16 %v331
      %v758 = vunpack.c.l.b16 %v332
      %v759 = vunpack.c.l.b16 %v333
      %v760 = vunpack.c.l.b16 %v334
      %v761 = vunpack.c.l.b16 %v335
      %v762 = vunpack.c.l.b16 %v336
      %v763 = vunpack.c.l.b16 %v337
      %v764 = vunpack.c.l.b16 %v338
      %v765 = vunpack.c.l.b16 %v339
      %v766 = vunpack.c.l.b16 %v340
      %v767 = vunpack.c.l.b16 %v341
      %v768 = vunpack.c.l.b16 %v342
      %v769 = vunpack.c.l.b16 %v343
      %v770 = vunpack.c.l.b16 %v344
      %v771 = vunpack.c.l.b16 %v345
      %v772 = vunpack.c.l.b16 %v346
      %v773 = vunpack.c.l.b16 %v347
      %v774 = vunpack.c.l.b16 %v348
      %v775 = vunpack.c.l.b16 %v349
      %v776 = vunpack.c.l.b16 %v350
      %v777 = vunpack.c.l.b16 %v351
      %v778 = vunpack.c.l.b16 %v352
      %v779 = vunpack.c.l.b16 %v353
      %v780 = vunpack.c.l.b16 %v354
      %v781 = vunpack.c.l.b16 %v355
      %v782 = vunpack.c.l.b16 %v356
      %v783 = vunpack.c.l.b16 %v357
      %v784 = vunpack.c.l.b16 %v358
      %v785 = vunpack.c.l.b16 %v359
      %v786 = vunpack.c.l.b16 %v360
      %v787 = vunpack.c.l.b16 %v361
      %v788 = vunpack.c.l.b16 %v362
      %v789 = vunpack.c.l.b16 %v363
      %v790 = vunpack.c.l.b16 %v364
      %v791 = vunpack.c.l.b16 %v365
      %v792 = vunpack.c.l.b16 %v366
      %v793 = vunpack.c.l.b16 %v367
      %v794 = vunpack.c.l.b16 %v368
      %v795 = vunpack.c.l.b16 %v369
      %v796 = vunpack.c.l.b16 %v370
      %v797 = vunpack.c.l.b16 %v371
      %v798 = vunpack.c.l.b16 %v372
      %v799 = vunpack.c.l.b16 %v373
      %v800 = vunpack.c.l.b16 %v374
      %v801 = vunpack.c.l.b16 %v375
      %v802 = vunpack.c.l.b16 %v376
      %v803 = vunpack.c.l.b16 %v377
      %v804 = vunpack.c.l.b16 %v378
      %v805 = vunpack.c.l.b16 %v379
      %v806 = vunpack.c.l.b16 %v380
      %v807 = vunpack.c.l.b16 %v381
      %v808 = vunpack.c.l.b16 %v382
      %v809 = vunpack.c.l.b16 %v383
      %v810 = vunpack.c.l.b16 %v384
      %v811 = vunpack.c.l.b16 %v385
      %v812 = vunpack.c.l.b16 %v386
      %v813 = vunpack.c.l.b16 %v387
      %v814 = vunpack.c.l.b16 %v388
      %v815 = vunpack.c.l.b16 %v389
      %v816 = vunpack.c.l.b16 %v390
      %v817 = vunpack.c.l.b16 %v391
      %v818 = vunpack.c.l.b16 %v392
      %v819 = vunpack.c.l.b16 %v393
      %v820 = vunpack.c.l.b16 %v394
      %v821 = vunpack.c.l.b16 %v395
      %v822 = vunpack.c.l.b16 %v396
      %v823 = vunpack.c.l.b16 %v397
      %v824 = vunpack.c.l.b16 %v398
      %v825 = vunpack.c.l.b16 %v399
      %v826 = vunpack.c.l.b16 %v400
      %v827 = vunpack.c.l.b16 %v401
      %v828 = vunpack.c.l.b16 %v402
      %v829 = vunpack.c.l.b16 %v403
      %v830 = vunpack.c.l.b16 %v404
      %v831 = vunpack.c.l.b16 %v405
      %v832 = vunpack.c.l.b16 %v406
      %v833 = vpack.c.b16 %v726, %v725
      %v834 = vpack.c.b16 %v728, %v727
      %v835 = vpack.c.b16 %v730, %v729
      %v836 = vpack.c.b16 %v732, %v731
      %v837 = vpack.c.b16 %v734, %v733
      %v838 = vpack.c.b16 %v736, %v735
      %v839 = vpack.c.b16 %v738, %v737
      %v840 = vpack.c.b16 %v740, %v739
      %v841 = vpack.c.b16 %v742, %v741
      %v842 = vpack.c.b16 %v744, %v743
      %v843 = vpack.c.b16 %v746, %v745
      %v844 = vpack.c.b16 %v748, %v747
      %v845 = vpack.c.b16 %v750, %v749
      %v846 = vpack.c.b16 %v752, %v751
      %v847 = vpack.c.b16 %v754, %v753
      %v848 = vpack.c.b16 %v756, %v755
      %v849 = vpack.c.b16 %v758, %v757
      %v850 = vpack.c.b16 %v760, %v759
      %v851 = vpack.c.b16 %v762, %v761
      %v852 = vpack.c.b16 %v764, %v763
      %v853 = vpack.c.b16 %v766, %v765
      %v854 = vpack.c.b16 %v768, %v767
      %v855 = vpack.c.b16 %v770, %v769
      %v856 = vpack.c.b16 %v772, %v771
      %v857 = vpack.c.b16 %v774, %v773
      %v858 = vpack.c.b16 %v776, %v775
      %v859 = vpack.c.b16 %v778, %v777
      %v860 = vpack.c.b16 %v780, %v779
      %v861 = vpack.c.b16 %v782, %v781
      %v862 = vpack.c.b16 %v784, %v783
      %v863 = vpack.c.b16 %v786, %v785
      %v864 = vpack.c.b16 %v788, %v787
      %v865 = vpack.c.b16 %v790, %v789
      %v866 = vpack.c.b16 %v792, %v791
      %v867 = vpack.c.b16 %v794, %v793
      %v868 = vpack.c.b16 %v796, %v795
      %v869 = vpack.c.b16 %v798, %v797
      %v870 = vpack.c.b16 %v800, %v799
      %v871 = vpack.c.b16 %v802, %v801
      %v872 = vpack.c.b16 %v804, %v803
      %v873 = vpack.c.b16 %v806, %v805
      %v874 = vpack.c.b16 %v808, %v807
      %v875 = vpack.c.b16 %v810, %v809
      %v876 = vpack.c.b16 %v812, %v811
      %v877 = vpack.c.b16 %v814, %v813
      %v878 = vpack.c.b16 %v816, %v815
      %v879 = vpack.c.b16 %v818, %v817
      %v880 = vpack.c.b16 %v820, %v819
      %v881 = vpack.c.b16 %v822, %v821
      %v882 = vpack.c.b16 %v824, %v823
      %v883 = vpack.c.b16 %v826, %v825
      %v884 = vpack.c.b16 %v828, %v827
      %v885 = vpack.c.b16 %v830, %v829
      %v886 = vpack.c.b16 %v832, %v831
      %vm941 = vcmask 785408
      %v943 = vsel %vm941, %v545, 0
      %v946 = vsel %vm941, %v552, 0
      %v949 = vsel %vm941, %v559, 0
      %v952 = vsel %vm941, %v566, 0
      %v955 = vsel %vm941, %v573, 0
      %v958 = vsel %vm941, %v580, 0
      %960 = vmatprep.subr.bf16.mxu0 0
      %961 = vmatpush1.bf16.msra.mxu0 %v840
      %962 = vmatprep.subr.bf16.mxu0 0
      %963 = vmatpush1.bf16.msra.mxu0 %v839
      %964 = vmatprep.subr.bf16.mxu0 0
      %965 = vmatpush1.bf16.msra.mxu0 %v838
      %966 = vmatprep.subr.bf16.mxu0 0
      %967 = vmatpush1.bf16.msra.mxu0 %v837
      %968 = vmatprep.subr.bf16.mxu0 0
      %969 = vmatpush1.bf16.msra.mxu0 %v836
      %970 = vmatprep.subr.bf16.mxu0 0
      %971 = vmatpush1.bf16.msra.mxu0 %v835
      %972 = vmatprep.subr.bf16.mxu0 0
      %973 = vmatpush1.bf16.msra.mxu0 %v834
      %974 = vmatprep.subr.bf16.mxu0 0
      %975 = vmatpush1.bf16.msra.mxu0 %v833
      %976 = vmatprep.subr.bf16.mxu0 0
      %977 = vmatpush2.bf16.msra.mxu0 %v848
      %978 = vmatprep.subr.bf16.mxu0 0
      %979 = vmatpush2.bf16.msra.mxu0 %v847
      %980 = vmatprep.subr.bf16.mxu0 0
      %981 = vmatpush2.bf16.msra.mxu0 %v846
      %982 = vmatprep.subr.bf16.mxu0 0
      %983 = vmatpush2.bf16.msra.mxu0 %v845
      %984 = vmatprep.subr.bf16.mxu0 0
      %985 = vmatpush2.bf16.msra.mxu0 %v844
      %986 = vmatprep.subr.bf16.mxu0 0
      %987 = vmatpush2.bf16.msra.mxu0 %v843
      %988 = vmatprep.subr.bf16.mxu0 0
      %989 = vmatpush2.bf16.msra.mxu0 %v842
      %990 = vmatprep.subr.bf16.mxu0 0
      %991 = vmatpush2.bf16.msra.mxu0 %v841
      %992 = vmatprep.mubr.bf16.mxu0 %v540
      %993 = vmatmul.mubr.bf16.gmra.mxu0 %v539
      %v994 = vpop.f32.mrf.mxu0
      %v995 = vadd.f32 0.0, %v994
      %v996 = vpop.f32.mrf.mxu0
      %v997 = vpop.f32.mrf.mxu0
      %v998 = vadd.f32 0.0, %v997
      %v999 = vpop.f32.mrf.mxu0
      %1000 = vmatprep.mubr.bf16.mxu0 %v547
      %1001 = vmatmul.mubr.bf16.gmra.mxu0 %v546
      %v1002 = vpop.f32.mrf.mxu0
      %v1003 = vadd.f32 0.0, %v1002
      %v1004 = vpop.f32.mrf.mxu0
      %v1005 = vpop.f32.mrf.mxu0
      %v1006 = vadd.f32 0.0, %v1005
      %v1007 = vpop.f32.mrf.mxu0
      %1008 = vmatprep.mubr.bf16.mxu0 %v554
      %1009 = vmatmul.mubr.bf16.gmra.mxu0 %v553
      %v1010 = vpop.f32.mrf.mxu0
      %v1011 = vadd.f32 0.0, %v1010
      %v1012 = vpop.f32.mrf.mxu0
      %v1013 = vpop.f32.mrf.mxu0
      %v1014 = vadd.f32 0.0, %v1013
      %v1015 = vpop.f32.mrf.mxu0
      %1016 = vmatprep.mubr.bf16.mxu0 %v561
      %1017 = vmatmul.mubr.bf16.gmra.mxu0 %v560
      %v1018 = vpop.f32.mrf.mxu0
      %v1019 = vadd.f32 0.0, %v1018
      %v1020 = vpop.f32.mrf.mxu0
      %v1021 = vpop.f32.mrf.mxu0
      %v1022 = vadd.f32 0.0, %v1021
      %v1023 = vpop.f32.mrf.mxu0
      %1024 = vmatprep.mubr.bf16.mxu0 %v568
      %1025 = vmatmul.mubr.bf16.gmra.mxu0 %v567
      %v1026 = vpop.f32.mrf.mxu0
      %v1027 = vadd.f32 0.0, %v1026
      %v1028 = vpop.f32.mrf.mxu0
      %v1029 = vpop.f32.mrf.mxu0
      %v1030 = vadd.f32 0.0, %v1029
      %v1031 = vpop.f32.mrf.mxu0
      %1032 = vmatprep.mubr.bf16.mxu0 %v575
      %1033 = vmatmul.mubr.bf16.gmra.mxu0 %v574
      %v1034 = vpop.f32.mrf.mxu0
      %v1035 = vadd.f32 0.0, %v1034
      %v1036 = vpop.f32.mrf.mxu0
      %v1037 = vpop.f32.mrf.mxu0
      %v1038 = vadd.f32 0.0, %v1037
      %v1039 = vpop.f32.mrf.mxu0
      %1040 = vdwg.mxu0
      %1041 = vmatprep.subr.bf16.mxu0 0
      %1042 = vmatpush1.bf16.msra.mxu0 %v856
      %1043 = vmatprep.subr.bf16.mxu0 0
      %1044 = vmatpush1.bf16.msra.mxu0 %v855
      %1045 = vmatprep.subr.bf16.mxu0 0
      %1046 = vmatpush1.bf16.msra.mxu0 %v854
      %1047 = vmatprep.subr.bf16.mxu0 0
      %1048 = vmatpush1.bf16.msra.mxu0 %v853
      %1049 = vmatprep.subr.bf16.mxu0 0
      %1050 = vmatpush1.bf16.msra.mxu0 %v852
      %1051 = vmatprep.subr.bf16.mxu0 0
      %1052 = vmatpush1.bf16.msra.mxu0 %v851
      %1053 = vmatprep.subr.bf16.mxu0 0
      %1054 = vmatpush1.bf16.msra.mxu0 %v850
      %1055 = vmatprep.subr.bf16.mxu0 0
      %1056 = vmatpush1.bf16.msra.mxu0 %v849
      %1057 = vmatprep.subr.bf16.mxu0 0
      %1058 = vmatpush2.bf16.msra.mxu0 %v864
      %1059 = vmatprep.subr.bf16.mxu0 0
      %1060 = vmatpush2.bf16.msra.mxu0 %v863
      %1061 = vmatprep.subr.bf16.mxu0 0
      %1062 = vmatpush2.bf16.msra.mxu0 %v862
      %1063 = vmatprep.subr.bf16.mxu0 0
      %1064 = vmatpush2.bf16.msra.mxu0 %v861
      %1065 = vmatprep.subr.bf16.mxu0 0
      %1066 = vmatpush2.bf16.msra.mxu0 %v860
      %1067 = vmatprep.subr.bf16.mxu0 0
      %1068 = vmatpush2.bf16.msra.mxu0 %v859
      %1069 = vmatprep.subr.bf16.mxu0 0
      %1070 = vmatpush2.bf16.msra.mxu0 %v858
      %1071 = vmatprep.subr.bf16.mxu0 0
      %1072 = vmatpush2.bf16.msra.mxu0 %v857
      %1073 = vmatprep.mubr.bf16.mxu0 %v542
      %1074 = vmatmul.mubr.bf16.gmra.mxu0 %v541
      %v1075 = vpop.f32.mrf.mxu0
      %v1076 = vadd.f32 %v995, %v1075
      %v1077 = vpop.f32.mrf.mxu0
      %v1078 = vpop.f32.mrf.mxu0
      %v1079 = vadd.f32 %v998, %v1078
      %v1080 = vpop.f32.mrf.mxu0
      %1081 = vmatprep.mubr.bf16.mxu0 %v549
      %1082 = vmatmul.mubr.bf16.gmra.mxu0 %v548
      %v1083 = vpop.f32.mrf.mxu0
      %v1084 = vadd.f32 %v1003, %v1083
      %v1085 = vpop.f32.mrf.mxu0
      %v1086 = vpop.f32.mrf.mxu0
      %v1087 = vadd.f32 %v1006, %v1086
      %v1088 = vpop.f32.mrf.mxu0
      %1089 = vmatprep.mubr.bf16.mxu0 %v556
      %1090 = vmatmul.mubr.bf16.gmra.mxu0 %v555
      %v1091 = vpop.f32.mrf.mxu0
      %v1092 = vadd.f32 %v1011, %v1091
      %v1093 = vpop.f32.mrf.mxu0
      %v1094 = vpop.f32.mrf.mxu0
      %v1095 = vadd.f32 %v1014, %v1094
      %v1096 = vpop.f32.mrf.mxu0
      %1097 = vmatprep.mubr.bf16.mxu0 %v563
      %1098 = vmatmul.mubr.bf16.gmra.mxu0 %v562
      %v1099 = vpop.f32.mrf.mxu0
      %v1100 = vadd.f32 %v1019, %v1099
      %v1101 = vpop.f32.mrf.mxu0
      %v1102 = vpop.f32.mrf.mxu0
      %v1103 = vadd.f32 %v1022, %v1102
      %v1104 = vpop.f32.mrf.mxu0
      %1105 = vmatprep.mubr.bf16.mxu0 %v570
      %1106 = vmatmul.mubr.bf16.gmra.mxu0 %v569
      %v1107 = vpop.f32.mrf.mxu0
      %v1108 = vadd.f32 %v1027, %v1107
      %v1109 = vpop.f32.mrf.mxu0
      %v1110 = vpop.f32.mrf.mxu0
      %v1111 = vadd.f32 %v1030, %v1110
      %v1112 = vpop.f32.mrf.mxu0
      %1113 = vmatprep.mubr.bf16.mxu0 %v577
      %1114 = vmatmul.mubr.bf16.gmra.mxu0 %v576
      %v1115 = vpop.f32.mrf.mxu0
      %v1116 = vadd.f32 %v1035, %v1115
      %v1117 = vpop.f32.mrf.mxu0
      %v1118 = vpop.f32.mrf.mxu0
      %v1119 = vadd.f32 %v1038, %v1118
      %v1120 = vpop.f32.mrf.mxu0
      %1121 = vdwg.mxu0
      %1122 = vmatprep.subr.bf16.mxu0 0
      %1123 = vmatpush1.bf16.msra.mxu0 %v872
      %1124 = vmatprep.subr.bf16.mxu0 0
      %1125 = vmatpush1.bf16.msra.mxu0 %v871
      %1126 = vmatprep.subr.bf16.mxu0 0
      %1127 = vmatpush1.bf16.msra.mxu0 %v870
      %1128 = vmatprep.subr.bf16.mxu0 0
      %1129 = vmatpush1.bf16.msra.mxu0 %v869
      %1130 = vmatprep.subr.bf16.mxu0 0
      %1131 = vmatpush1.bf16.msra.mxu0 %v868
      %1132 = vmatprep.subr.bf16.mxu0 0
      %1133 = vmatpush1.bf16.msra.mxu0 %v867
      %1134 = vmatprep.subr.bf16.mxu0 0
      %1135 = vmatpush1.bf16.msra.mxu0 %v866
      %1136 = vmatprep.subr.bf16.mxu0 0
      %1137 = vmatpush1.bf16.msra.mxu0 %v865
      %1138 = vmatprep.subr.bf16.mxu0 0
      %1139 = vmatpush2.bf16.msra.mxu0 %v880
      %1140 = vmatprep.subr.bf16.mxu0 0
      %1141 = vmatpush2.bf16.msra.mxu0 %v879
      %1142 = vmatprep.subr.bf16.mxu0 0
      %1143 = vmatpush2.bf16.msra.mxu0 %v878
      %1144 = vmatprep.subr.bf16.mxu0 0
      %1145 = vmatpush2.bf16.msra.mxu0 %v877
      %1146 = vmatprep.subr.bf16.mxu0 0
      %1147 = vmatpush2.bf16.msra.mxu0 %v876
      %1148 = vmatprep.subr.bf16.mxu0 0
      %1149 = vmatpush2.bf16.msra.mxu0 %v875
      %1150 = vmatprep.subr.bf16.mxu0 0
      %1151 = vmatpush2.bf16.msra.mxu0 %v874
      %1152 = vmatprep.subr.bf16.mxu0 0
      %1153 = vmatpush2.bf16.msra.mxu0 %v873
      %1154 = vmatprep.mubr.bf16.mxu0 %v544
      %1155 = vmatmul.mubr.bf16.gmra.mxu0 %v543
      %v1156 = vpop.f32.mrf.mxu0
      %v1157 = vadd.f32 %v1076, %v1156
      %v1158 = vpop.f32.mrf.mxu0
      %v1159 = vpop.f32.mrf.mxu0
      %v1160 = vadd.f32 %v1079, %v1159
      %v1161 = vpop.f32.mrf.mxu0
      %1162 = vmatprep.mubr.bf16.mxu0 %v551
      %1163 = vmatmul.mubr.bf16.gmra.mxu0 %v550
      %v1164 = vpop.f32.mrf.mxu0
      %v1165 = vadd.f32 %v1084, %v1164
      %v1166 = vpop.f32.mrf.mxu0
      %v1167 = vpop.f32.mrf.mxu0
      %v1168 = vadd.f32 %v1087, %v1167
      %v1169 = vpop.f32.mrf.mxu0
      %1170 = vmatprep.mubr.bf16.mxu0 %v558
      %1171 = vmatmul.mubr.bf16.gmra.mxu0 %v557
      %v1172 = vpop.f32.mrf.mxu0
      %v1173 = vadd.f32 %v1092, %v1172
      %v1174 = vpop.f32.mrf.mxu0
      %v1175 = vpop.f32.mrf.mxu0
      %v1176 = vadd.f32 %v1095, %v1175
      %v1177 = vpop.f32.mrf.mxu0
      %1178 = vmatprep.mubr.bf16.mxu0 %v565
      %1179 = vmatmul.mubr.bf16.gmra.mxu0 %v564
      %v1180 = vpop.f32.mrf.mxu0
      %v1181 = vadd.f32 %v1100, %v1180
      %v1182 = vpop.f32.mrf.mxu0
      %v1183 = vpop.f32.mrf.mxu0
      %v1184 = vadd.f32 %v1103, %v1183
      %v1185 = vpop.f32.mrf.mxu0
      %1186 = vmatprep.mubr.bf16.mxu0 %v572
      %1187 = vmatmul.mubr.bf16.gmra.mxu0 %v571
      %v1188 = vpop.f32.mrf.mxu0
      %v1189 = vadd.f32 %v1108, %v1188
      %v1190 = vpop.f32.mrf.mxu0
      %v1191 = vpop.f32.mrf.mxu0
      %v1192 = vadd.f32 %v1111, %v1191
      %v1193 = vpop.f32.mrf.mxu0
      %1194 = vmatprep.mubr.bf16.mxu0 %v579
      %1195 = vmatmul.mubr.bf16.gmra.mxu0 %v578
      %v1196 = vpop.f32.mrf.mxu0
      %v1197 = vadd.f32 %v1116, %v1196
      %v1198 = vpop.f32.mrf.mxu0
      %v1199 = vpop.f32.mrf.mxu0
      %v1200 = vadd.f32 %v1119, %v1199
      %v1201 = vpop.f32.mrf.mxu0
      %1202 = vdwg.mxu0
      %1203 = vmatprep.subr.bf16.mxu0 0
      %1204 = vmatpush1.bf16.msra.mxu0 0
      %1205 = vmatprep.subr.bf16.mxu0 0
      %1206 = vmatpush1.bf16.msra.mxu0 0
      %1207 = vmatprep.subr.bf16.mxu0 0
      %1208 = vmatpush1.bf16.msra.mxu0 %v886
      %1209 = vmatprep.subr.bf16.mxu0 0
      %1210 = vmatpush1.bf16.msra.mxu0 %v885
      %1211 = vmatprep.subr.bf16.mxu0 0
      %1212 = vmatpush1.bf16.msra.mxu0 %v884
      %1213 = vmatprep.subr.bf16.mxu0 0
      %1214 = vmatpush1.bf16.msra.mxu0 %v883
      %1215 = vmatprep.subr.bf16.mxu0 0
      %1216 = vmatpush1.bf16.msra.mxu0 %v882
      %1217 = vmatprep.subr.bf16.mxu0 0
      %1218 = vmatpush1.bf16.msra.mxu0 %v881
      %1219 = vmatprep.subr.bf16.mxu0 0
      %1220 = vmatpush2.bf16.msra.mxu0 0
      %1221 = vmatprep.subr.bf16.mxu0 0
      %1222 = vmatpush2.bf16.msra.mxu0 0
      %1223 = vmatprep.subr.bf16.mxu0 0
      %1224 = vmatpush2.bf16.msra.mxu0 0
      %1225 = vmatprep.subr.bf16.mxu0 0
      %1226 = vmatpush2.bf16.msra.mxu0 0
      %1227 = vmatprep.subr.bf16.mxu0 0
      %1228 = vmatpush2.bf16.msra.mxu0 0
      %1229 = vmatprep.subr.bf16.mxu0 0
      %1230 = vmatpush2.bf16.msra.mxu0 0
      %1231 = vmatprep.subr.bf16.mxu0 0
      %1232 = vmatpush2.bf16.msra.mxu0 0
      %1233 = vmatprep.subr.bf16.mxu0 0
      %1234 = vmatpush2.bf16.msra.mxu0 0
      %1235 = vmatprep.mubr.bf16.mxu0 0
      %1236 = vmatmul.mubr.bf16.gmra.mxu0 %v943
      %v1237 = vpop.f32.mrf.mxu0
      %v1238 = vadd.f32 %v1157, %v1237
      %v1239 = vpop.f32.mrf.mxu0
      %v1240 = vpop.f32.mrf.mxu0
      %v1241 = vadd.f32 %v1160, %v1240
      %v1242 = vpop.f32.mrf.mxu0
      %1243 = vmatprep.mubr.bf16.mxu0 0
      %1244 = vmatmul.mubr.bf16.gmra.mxu0 %v946
      %v1245 = vpop.f32.mrf.mxu0
      %v1246 = vadd.f32 %v1165, %v1245
      %v1247 = vpop.f32.mrf.mxu0
      %v1248 = vpop.f32.mrf.mxu0
      %v1249 = vadd.f32 %v1168, %v1248
      %v1250 = vpop.f32.mrf.mxu0
      %1251 = vmatprep.mubr.bf16.mxu0 0
      %1252 = vmatmul.mubr.bf16.gmra.mxu0 %v949
      %v1253 = vpop.f32.mrf.mxu0
      %v1254 = vadd.f32 %v1173, %v1253
      %v1255 = vpop.f32.mrf.mxu0
      %v1256 = vpop.f32.mrf.mxu0
      %v1257 = vadd.f32 %v1176, %v1256
      %v1258 = vpop.f32.mrf.mxu0
      %1259 = vmatprep.mubr.bf16.mxu0 0
      %1260 = vmatmul.mubr.bf16.gmra.mxu0 %v952
      %v1261 = vpop.f32.mrf.mxu0
      %v1262 = vadd.f32 %v1181, %v1261
      %v1263 = vpop.f32.mrf.mxu0
      %v1264 = vpop.f32.mrf.mxu0
      %v1265 = vadd.f32 %v1184, %v1264
      %v1266 = vpop.f32.mrf.mxu0
      %1267 = vmatprep.mubr.bf16.mxu0 0
      %1268 = vmatmul.mubr.bf16.gmra.mxu0 %v955
      %v1269 = vpop.f32.mrf.mxu0
      %v1270 = vadd.f32 %v1189, %v1269
      %v1271 = vpop.f32.mrf.mxu0
      %v1272 = vpop.f32.mrf.mxu0
      %v1273 = vadd.f32 %v1192, %v1272
      %v1274 = vpop.f32.mrf.mxu0
      %1275 = vmatprep.mubr.bf16.mxu0 0
      %1276 = vmatmul.mubr.bf16.gmra.mxu0 %v958
      %v1277 = vpop.f32.mrf.mxu0
      %v1278 = vadd.f32 %v1197, %v1277
      %v1279 = vpop.f32.mrf.mxu0
      %v1280 = vpop.f32.mrf.mxu0
      %v1281 = vadd.f32 %v1200, %v1280
      %v1282 = vpop.f32.mrf.mxu0
      %1283 = vdwg.mxu0
      %v1284 = vpack.c.bf16 %v1241, %v1238
      %v1285 = vpack.c.bf16 %v1249, %v1246
      %v1286 = vpack.c.bf16 %v1257, %v1254
      %v1287 = vpack.c.bf16 %v1265, %v1262
      %v1288 = vpack.c.bf16 %v1273, %v1270
      %v1289 = vpack.c.bf16 %v1281, %v1278
      %v1296 = vunpack.c.l.b16 %v1284
      %v1297 = vunpack.c.h.b16 %v1284
      %v1298 = vunpack.c.l.b16 %v1285
      %v1299 = vunpack.c.h.b16 %v1285
      %v1300 = vunpack.c.l.b16 %v1286
      %v1301 = vunpack.c.h.b16 %v1286
      %v1302 = vunpack.c.l.b16 %v1287
      %v1303 = vunpack.c.h.b16 %v1287
      %v1304 = vunpack.c.l.b16 %v1288
      %v1305 = vunpack.c.h.b16 %v1288
      %v1306 = vunpack.c.l.b16 %v1289
      %v1307 = vunpack.c.h.b16 %v1289
      %v1308 = vpack.c.b16 %v1296, %v1296
      %v1309 = vpack.c.b16 %v1297, %v1297
      %v1310 = vpack.c.b16 %v1298, %v1298
      %v1311 = vpack.c.b16 %v1299, %v1299
      %v1312 = vpack.c.b16 %v1300, %v1300
      %v1313 = vpack.c.b16 %v1301, %v1301
      %v1314 = vpack.c.b16 %v1302, %v1302
      %v1315 = vpack.c.b16 %v1303, %v1303
      %v1316 = vpack.c.b16 %v1304, %v1304
      %v1317 = vpack.c.b16 %v1305, %v1305
      %v1318 = vpack.c.b16 %v1306, %v1306
      %v1319 = vpack.c.b16 %v1307, %v1307
      %1332 = vst [vmem:[%s240] sm:$0xf] %v1308
      %1333 = vst [vmem:[%s240 + $0x4] sm:$0xf] %v1309
      %1334 = vst [vmem:[%s240 + $0x8] sm:$0xf] %v1310
      %1335 = vst [vmem:[%s240 + $0xc] sm:$0xf] %v1311
      %1336 = vst [vmem:[%s240 + $0x10] sm:$0xf] %v1312
      %1337 = vst [vmem:[%s240 + $0x14] sm:$0xf] %v1313
      %1338 = vst [vmem:[%s240 + $0x18] sm:$0xf] %v1314
      %1339 = vst [vmem:[%s240 + $0x1c] sm:$0xf] %v1315
      %1340 = vst [vmem:[%s240 + $0x20] sm:$0xf] %v1316
      %1341 = vst [vmem:[%s240 + $0x24] sm:$0xf] %v1317
      %1342 = vst [vmem:[%s240 + $0x28] sm:$0xf] %v1318
      %1343 = vst [vmem:[%s240 + $0x2c] sm:$0xf] %v1319
      %s1344 = smul.u32 %s16, 96
      %v1345 = vlaneseq
      %v1346 = vshrl.u32 %v1345, 7
      %v1347 = vadd.s32 %v1346, 8
      %v1348 = vadd.s32 %v1346, 16
      %v1349 = vadd.s32 %v1346, 24
      %v1350 = vadd.s32 %v1346, 32
      %v1351 = vadd.s32 %v1346, 40
      %v1352 = vadd.s32 %v1346, 48
      %v1353 = vadd.s32 %v1346, 56
      %v1354 = vadd.s32 %v1346, 64
      %v1355 = vadd.s32 %v1346, 72
      %v1356 = vadd.s32 %v1346, 80
      %v1357 = vadd.s32 %v1346, 88
      %v1358 = vstv %s1344
      %v1359 = vadd.s32 %v1358, %v1346
      %v1360 = vadd.s32 %v1358, %v1347
      %v1361 = vadd.s32 %v1358, %v1348
      %v1362 = vadd.s32 %v1358, %v1349
      %v1363 = vadd.s32 %v1358, %v1350
      %v1364 = vadd.s32 %v1358, %v1351
      %v1365 = vadd.s32 %v1358, %v1352
      %v1366 = vadd.s32 %v1358, %v1353
      %v1367 = vadd.s32 %v1358, %v1354
      %v1368 = vadd.s32 %v1358, %v1355
      %v1369 = vadd.s32 %v1358, %v1356
      %v1370 = vadd.s32 %v1358, %v1357
      %vm1371 = vcmp.lt.s32.totalorder %v1359, 162
      %vm1372 = vcmp.lt.s32.totalorder %v1360, 162
      %vm1373 = vcmp.lt.s32.totalorder %v1361, 162
      %vm1374 = vcmp.lt.s32.totalorder %v1362, 162
      %vm1375 = vcmp.lt.s32.totalorder %v1363, 162
      %vm1376 = vcmp.lt.s32.totalorder %v1364, 162
      %vm1377 = vcmp.lt.s32.totalorder %v1365, 162
      %vm1378 = vcmp.lt.s32.totalorder %v1366, 162
      %vm1379 = vcmp.lt.s32.totalorder %v1367, 162
      %vm1380 = vcmp.lt.s32.totalorder %v1368, 162
      %vm1381 = vcmp.lt.s32.totalorder %v1369, 162
      %vm1382 = vcmp.lt.s32.totalorder %v1370, 162
      %v1383 = vsel %vm1371, %v1238, 0.0
      %v1384 = vsel %vm1372, %v1241, 0.0
      %v1385 = vsel %vm1373, %v1246, 0.0
      %v1386 = vsel %vm1374, %v1249, 0.0
      %v1387 = vsel %vm1375, %v1254, 0.0
      %v1388 = vsel %vm1376, %v1257, 0.0
      %v1389 = vsel %vm1377, %v1262, 0.0
      %v1390 = vsel %vm1378, %v1265, 0.0
      %v1391 = vsel %vm1379, %v1270, 0.0
      %v1392 = vsel %vm1380, %v1273, 0.0
      %v1393 = vsel %vm1381, %v1278, 0.0
      %v1394 = vsel %vm1382, %v1281, 0.0
      %v1395 = vadd.f32 %v1383, %v1384
      %v1396 = vadd.f32 %v1395, %v1385
      %v1397 = vadd.f32 %v1396, %v1386
      %v1398 = vadd.f32 %v1397, %v1387
      %v1399 = vadd.f32 %v1398, %v1388
      %v1400 = vadd.f32 %v1399, %v1389
      %v1401 = vadd.f32 %v1400, %v1390
      %v1402 = vadd.f32 %v1401, %v1391
      %v1403 = vadd.f32 %v1402, %v1392
      %v1404 = vadd.f32 %v1403, %v1393
      %v1405 = vadd.f32 %v1404, %v1394
      %v1406 = vrot.slane %v1405, 4
      %v1407 = vadd.f32 %v1405, %v1406
      %v1408 = vrot.slane %v1407, 2
      %v1409 = vadd.f32 %v1407, %v1408
      %v1410 = vrot.slane %v1409, 1
      %v1411 = vadd.f32 %v1409, %v1410
      %v1412 = vmul.f32 %v1383, %v1383
      %v1413 = vmul.f32 %v1384, %v1384
      %v1414 = vmul.f32 %v1385, %v1385
      %v1415 = vmul.f32 %v1386, %v1386
      %v1416 = vmul.f32 %v1387, %v1387
      %v1417 = vmul.f32 %v1388, %v1388
      %v1418 = vmul.f32 %v1389, %v1389
      %v1419 = vmul.f32 %v1390, %v1390
      %v1420 = vmul.f32 %v1391, %v1391
      %v1421 = vmul.f32 %v1392, %v1392
      %v1422 = vmul.f32 %v1393, %v1393
      %v1423 = vmul.f32 %v1394, %v1394
      %v1424 = vadd.f32 %v1412, %v1413
      %v1425 = vadd.f32 %v1424, %v1414
      %v1426 = vadd.f32 %v1425, %v1415
      %v1427 = vadd.f32 %v1426, %v1416
      %v1428 = vadd.f32 %v1427, %v1417
      %v1429 = vadd.f32 %v1428, %v1418
      %v1430 = vadd.f32 %v1429, %v1419
      %v1431 = vadd.f32 %v1430, %v1420
      %v1432 = vadd.f32 %v1431, %v1421
      %v1433 = vadd.f32 %v1432, %v1422
      %v1434 = vadd.f32 %v1433, %v1423
      %v1435 = vrot.slane %v1434, 4
      %v1436 = vadd.f32 %v1434, %v1435
      %v1437 = vrot.slane %v1436, 2
      %v1438 = vadd.f32 %v1436, %v1437
      %v1439 = vrot.slane %v1438, 1
      %v1440 = vadd.f32 %v1438, %v1439
      %1441 = vst [vmem:[%s245] sm:$0xff] %v1411
      %1442 = vst [vmem:[%s249] sm:$0xff] %v1440
      %s1443 = smul.u32 12, %s16
      %p1444 = scmp.lt.s32.totalorder %s1443, 23
      %s1445 = scalar_select %p1444, %s1443, 23
      %s1446 = smul.addr %s1445, 4
      %s1447 = scalar_lea.vmem %s2, %s1446
      %p1448 = scmp.lt.s32.totalorder %s16, 1
      %s1449 = scalar_select %p1448, %s16, 1
      %s1450 = smul.addr %s1449, 8
      %s1451 = scalar_lea.vmem %s3, %s1450
      %p1452 = scmp.lt.s32.totalorder %s16, 1
      %s1453 = scalar_select %p1452, %s16, 1
      %s1454 = smul.addr %s1453, 8
      %s1455 = scalar_lea.vmem %s4, %s1454
      // Predicated region
      $region29: #{d_res_3d_cnn_forward.15} parent=27 // pred_check
        %p1456 = pneg %p81
      $region30: #{d_res_3d_cnn_forward.15} parent=27 // pred_check_branch
        %1458 = sbr.rel (%p1456) target = $region32
      $region31: #{d_res_3d_cnn_forward.15} parent=27 // pred_region
        %s1459 = smul.u32 12, %s16
      $region32: #{d_res_3d_cnn_forward.15} parent=27 // pred_fallthru
        _
      // Predicated region
      $region33: #{d_res_3d_cnn_forward.15} parent=27 // pred_check
        %p1460 = pneg %p107
      $region34: #{d_res_3d_cnn_forward.15} parent=27 // pred_check_branch
        %1462 = sbr.rel (%p1460) target = $region36
      $region35: #{d_res_3d_cnn_forward.15} parent=27 // pred_region
        _
      $region36: #{d_res_3d_cnn_forward.15} parent=27 // pred_fallthru
        _
      // Predicated region
      $region37: #{d_res_3d_cnn_forward.15} parent=27 // pred_check
        %p1463 = pneg %p133
      $region38: #{d_res_3d_cnn_forward.15} parent=27 // pred_check_branch
        %1465 = sbr.rel (%p1463) target = $region40
      $region39: #{d_res_3d_cnn_forward.15} parent=27 // pred_region
        _
      $region40: #{d_res_3d_cnn_forward.15} parent=27 // pred_fallthru
        _
    $region28: #{d_res_3d_cnn_forward.15} parent=5 // pred_fallthru
      _
    %p1466 = scmp.le.s32.totalorder 2, %s11
    // Predicated region
    $region41: #{d_res_3d_cnn_forward.15} parent=5 // pred_check
      %p1467 = pneg %p1466
    $region42: #{d_res_3d_cnn_forward.15} parent=5 // pred_check_branch
      %1469 = sbr.rel (%p1467) target = $region44
    $region43: #{d_res_3d_cnn_forward.15} parent=5 // pred_region
      %s1470 = ssub.s32 %s11, 2
      // Predicated region
      $region45: #{d_res_3d_cnn_forward.15} parent=43 // pred_check
        %p1471 = pneg %p87
      $region46: #{d_res_3d_cnn_forward.15} parent=43 // pred_check_branch
        %1473 = sbr.rel (%p1471) target = $region48
      $region47: #{d_res_3d_cnn_forward.15} parent=43 // pred_region
        %s1474 = smul.u32 12, %s17
        %p1475 = scmp.lt.s32.totalorder %s1474, 23
        %s1476 = scalar_select %p1475, %s1474, 23
        %s1477 = smul.addr %s1476, 4
        %s1478 = scalar_lea.vmem %s2, %s1477
      $region48: #{d_res_3d_cnn_forward.15} parent=43 // pred_fallthru
        _
      // Predicated region
      $region49: #{d_res_3d_cnn_forward.15} parent=43 // pred_check
        %p1479 = pneg %p113
      $region50: #{d_res_3d_cnn_forward.15} parent=43 // pred_check_branch
        %1481 = sbr.rel (%p1479) target = $region52
      $region51: #{d_res_3d_cnn_forward.15} parent=43 // pred_region
        %p1482 = scmp.lt.s32.totalorder %s17, 1
        %s1483 = scalar_select %p1482, %s17, 1
        %s1484 = smul.addr %s1483, 8
        %s1485 = scalar_lea.vmem %s3, %s1484
      $region52: #{d_res_3d_cnn_forward.15} parent=43 // pred_fallthru
        _
      // Predicated region
      $region53: #{d_res_3d_cnn_forward.15} parent=43 // pred_check
        %p1486 = pneg %p139
      $region54: #{d_res_3d_cnn_forward.15} parent=43 // pred_check_branch
        %1488 = sbr.rel (%p1486) target = $region56
      $region55: #{d_res_3d_cnn_forward.15} parent=43 // pred_region
        %p1489 = scmp.lt.s32.totalorder %s17, 1
        %s1490 = scalar_select %p1489, %s17, 1
        %s1491 = smul.addr %s1490, 8
        %s1492 = scalar_lea.vmem %s4, %s1491
      $region56: #{d_res_3d_cnn_forward.15} parent=43 // pred_fallthru
        _
    $region44: #{d_res_3d_cnn_forward.15} parent=5 // pred_fallthru
      _
  $region6: #{d_res_3d_cnn_forward.15} parent=0 // loop_footer
    %s15 = sadd.s32 1, %s11
  $region7: #{d_res_3d_cnn_forward.15} parent=0 // loop_footer_branch
    %10 = sbr.rel target = $region3
  $region8: #{d_res_3d_cnn_forward.15} parent=0 // loop_exit
    _

// kernel: d_res_3d_cnn_forward.20
$region0: #{d_res_3d_cnn_forward.20}
  #allocation0 [shape = 'u32[]', space=smem, size = 0x4, offset = 0x4, fixed_abs, tag = 'smem constant byte address 0x4 - core index']
  #allocation1 [shape = 'u32[144,128]{1,0:T(1,128)}', space=vmem, size = 0x12000, scoped, tag = 'internal scratch']
  %s0 = inlined_call_operand.vmem [shape: bf16[192,128], index: 0, kind: input, shape index: {}]
  %s1 = inlined_call_operand.vmem [shape: f32[1,128], index: 1, kind: input, shape index: {}]
  %s2 = inlined_call_operand.vmem [shape: f32[1,128], index: 2, kind: input, shape index: {}]
  %s3 = inlined_call_operand.vmem [shape: bf16[162,128], index: 3, kind: input, shape index: {}]
  %s4 = inlined_call_operand.vmem [shape: bf16[192,128], index: 4, kind: output, shape index: {}]
  %s5 = sld [smem:[#allocation0]]
  $region49: #{d_res_3d_cnn_forward.20} parent=0
    _
  %s7 = ssub.s32 1, %s5
  %s8 = scalar_select 0, %s7, %s5
  loop: start=0, step=1, limit=4
  $region2: #{d_res_3d_cnn_forward.20} parent=0 // loop_pre_header
    _
  $region3: #{d_res_3d_cnn_forward.20} parent=0 // loop_header
    %s10 = sphi 0, %s14
    %p11 = scmp.ge.s32.totalorder %s10, 4
    %s20 = sphi 0, %s22
    %s23 = sphi 0, %s20
    %s24 = sphi 0, %s23
    %s40 = sphi 0, %s24
    %s44 = sphi 0, %s44
    %s46 = sphi 0, %s44
    %s47 = sphi 0, %s46
    %s61 = sphi 0, %s47
    %s65 = sphi 0, %s65
    %s67 = sphi 0, %s65
    %s68 = sphi 0, %s67
    %s82 = sphi 0, %s68
    %s88 = sphi 0, %s90
    %s91 = sphi 0, %s88
    %s92 = sphi 0, %s91
    %s108 = sphi 0, %s92
    %s114 = sphi 0, %s116
    %s117 = sphi 0, %s114
    %s118 = sphi 0, %s117
    %s134 = sphi 0, %s118
  $region4: #{d_res_3d_cnn_forward.20} parent=0 // loop_header_branch
    %13 = sbr.rel (%p11) target = $region8
  $region5: #{d_res_3d_cnn_forward.20} parent=0 // loop_body
    %s15 = ssub.s32 %s10, 1
    %s16 = ssub.s32 %s10, 2
    %s17 = sadd.s32 %s10, 1
    %s18 = ssub.s32 %s10, %s17
    %p19 = scmp.eq.s32.totalorder %s18, 0
    %s21 = sadd.s32 %s20, 1
    %s22 = scalar_select %p19, %s20, %s21
    %p25 = pneg %p19
    %p26 = scmp.eq.s32.totalorder %s10, 1
    %p27 = por %p25, %p26
    %p28 = scmp.ne.s32.totalorder %s20, %s23
    %p29 = scmp.eq.s32.totalorder %s10, 0
    %p30 = por %p28, %p29
    %p31 = scmp.ne.s32.totalorder %s20, %s23
    %p32 = scmp.eq.s32.totalorder %s15, 1
    %p33 = por %p31, %p32
    %p34 = scmp.ne.s32.totalorder %s23, %s24
    %p35 = scmp.eq.s32.totalorder %s15, 0
    %p36 = por %p34, %p35
    %p37 = scmp.ne.s32.totalorder %s23, %s24
    %p38 = scmp.eq.s32.totalorder %s16, 1
    %p39 = por %p37, %p38
    %p41 = scmp.ne.s32.totalorder %s24, %s40
    %p42 = scmp.eq.s32.totalorder %s16, 0
    %p43 = por %p41, %p42
    %s45 = sadd.s32 %s44, 1
    %p48 = scmp.eq.s32.totalorder %s10, 1
    %p49 = scmp.ne.s32.totalorder %s44, %s46
    %p50 = scmp.eq.s32.totalorder %s10, 0
    %p51 = por %p49, %p50
    %p52 = scmp.ne.s32.totalorder %s44, %s46
    %p53 = scmp.eq.s32.totalorder %s15, 1
    %p54 = por %p52, %p53
    %p55 = scmp.ne.s32.totalorder %s46, %s47
    %p56 = scmp.eq.s32.totalorder %s15, 0
    %p57 = por %p55, %p56
    %p58 = scmp.ne.s32.totalorder %s46, %s47
    %p59 = scmp.eq.s32.totalorder %s16, 1
    %p60 = por %p58, %p59
    %p62 = scmp.ne.s32.totalorder %s47, %s61
    %p63 = scmp.eq.s32.totalorder %s16, 0
    %p64 = por %p62, %p63
    %s66 = sadd.s32 %s65, 1
    %p69 = scmp.eq.s32.totalorder %s10, 1
    %p70 = scmp.ne.s32.totalorder %s65, %s67
    %p71 = scmp.eq.s32.totalorder %s10, 0
    %p72 = por %p70, %p71
    %p73 = scmp.ne.s32.totalorder %s65, %s67
    %p74 = scmp.eq.s32.totalorder %s15, 1
    %p75 = por %p73, %p74
    %p76 = scmp.ne.s32.totalorder %s67, %s68
    %p77 = scmp.eq.s32.totalorder %s15, 0
    %p78 = por %p76, %p77
    %p79 = scmp.ne.s32.totalorder %s67, %s68
    %p80 = scmp.eq.s32.totalorder %s16, 1
    %p81 = por %p79, %p80
    %p83 = scmp.ne.s32.totalorder %s68, %s82
    %p84 = scmp.eq.s32.totalorder %s16, 0
    %p85 = por %p83, %p84
    %s86 = ssub.s32 %s10, %s17
    %p87 = scmp.eq.s32.totalorder %s86, 0
    %s89 = sadd.s32 %s88, 1
    %s90 = scalar_select %p87, %s88, %s89
    %p93 = pneg %p87
    %p94 = scmp.eq.s32.totalorder %s10, 1
    %p95 = por %p93, %p94
    %p96 = scmp.ne.s32.totalorder %s88, %s91
    %p97 = scmp.eq.s32.totalorder %s10, 0
    %p98 = por %p96, %p97
    %p99 = scmp.ne.s32.totalorder %s88, %s91
    %p100 = scmp.eq.s32.totalorder %s15, 1
    %p101 = por %p99, %p100
    %p102 = scmp.ne.s32.totalorder %s91, %s92
    %p103 = scmp.eq.s32.totalorder %s15, 0
    %p104 = por %p102, %p103
    %p105 = scmp.ne.s32.totalorder %s91, %s92
    %p106 = scmp.eq.s32.totalorder %s16, 1
    %p107 = por %p105, %p106
    %p109 = scmp.ne.s32.totalorder %s92, %s108
    %p110 = scmp.eq.s32.totalorder %s16, 0
    %p111 = por %p109, %p110
    %s112 = ssub.s32 %s10, %s17
    %p113 = scmp.eq.s32.totalorder %s112, 0
    %s115 = sadd.s32 %s114, 1
    %s116 = scalar_select %p113, %s114, %s115
    %p119 = pneg %p113
    %p120 = scmp.eq.s32.totalorder %s10, 1
    %p121 = por %p119, %p120
    %p122 = scmp.ne.s32.totalorder %s114, %s117
    %p123 = scmp.eq.s32.totalorder %s10, 0
    %p124 = por %p122, %p123
    %p125 = scmp.ne.s32.totalorder %s114, %s117
    %p126 = scmp.eq.s32.totalorder %s15, 1
    %p127 = por %p125, %p126
    %p128 = scmp.ne.s32.totalorder %s117, %s118
    %p129 = scmp.eq.s32.totalorder %s15, 0
    %p130 = por %p128, %p129
    %p131 = scmp.ne.s32.totalorder %s117, %s118
    %p132 = scmp.eq.s32.totalorder %s16, 1
    %p133 = por %p131, %p132
    %p135 = scmp.ne.s32.totalorder %s118, %s134
    %p136 = scmp.eq.s32.totalorder %s16, 0
    %p137 = por %p135, %p136
    %p138 = scmp.le.s32.totalorder 1, %s10
    %p139 = scmp.lt.s32.totalorder %s10, 3
    %p140 = pnand %p138, %p139
    %p141 = pneg %p140
    // Predicated region
    $region9: #{d_res_3d_cnn_forward.20} parent=5 // pred_check
      _
    $region10: #{d_res_3d_cnn_forward.20} parent=5 // pred_check_branch
      %143 = sbr.rel (%p140) target = $region12
    $region11: #{d_res_3d_cnn_forward.20} parent=5 // pred_region
      %s144 = ssub.s32 %s10, 1
      // Predicated region
      $region13: #{d_res_3d_cnn_forward.20} parent=11 // pred_check
        %p145 = pneg %p57
      $region14: #{d_res_3d_cnn_forward.20} parent=11 // pred_check_branch
        %147 = sbr.rel (%p145) target = $region16
      $region15: #{d_res_3d_cnn_forward.20} parent=11 // pred_region
        _
      $region16: #{d_res_3d_cnn_forward.20} parent=11 // pred_fallthru
        _
      // Predicated region
      $region17: #{d_res_3d_cnn_forward.20} parent=11 // pred_check
        %p148 = pneg %p78
      $region18: #{d_res_3d_cnn_forward.20} parent=11 // pred_check_branch
        %150 = sbr.rel (%p148) target = $region20
      $region19: #{d_res_3d_cnn_forward.20} parent=11 // pred_region
        _
      $region20: #{d_res_3d_cnn_forward.20} parent=11 // pred_fallthru
        _
    $region12: #{d_res_3d_cnn_forward.20} parent=5 // pred_fallthru
      _
    %p151 = scmp.lt.s32.totalorder %s10, 2
    // Predicated region
    $region21: #{d_res_3d_cnn_forward.20} parent=5 // pred_check
      %p152 = pneg %p151
    $region22: #{d_res_3d_cnn_forward.20} parent=5 // pred_check_branch
      %154 = sbr.rel (%p152) target = $region24
    $region23: #{d_res_3d_cnn_forward.20} parent=5 // pred_region
      // Predicated region
      $region25: #{d_res_3d_cnn_forward.20} parent=23 // pred_check
        %p155 = pneg %p30
      $region26: #{d_res_3d_cnn_forward.20} parent=23 // pred_check_branch
        %157 = sbr.rel (%p155) target = $region28
      $region27: #{d_res_3d_cnn_forward.20} parent=23 // pred_region
        %s158 = smul.u32 12, %s10
        %p159 = scmp.lt.s32.totalorder %s158, 23
        %s160 = scalar_select %p159, %s158, 23
        %s161 = smul.addr %s160, 4
        %s162 = scalar_lea.vmem %s0, %s161
        %s163 = smul.u32 12, %s10
      $region28: #{d_res_3d_cnn_forward.20} parent=23 // pred_fallthru
        _
      // Predicated region
      $region29: #{d_res_3d_cnn_forward.20} parent=23 // pred_check
        %p164 = pneg %p98
      $region30: #{d_res_3d_cnn_forward.20} parent=23 // pred_check_branch
        %166 = sbr.rel (%p164) target = $region32
      $region31: #{d_res_3d_cnn_forward.20} parent=23 // pred_region
        %s167 = smul.u32 12, %s10
        %s168 = ssub.s32 21, %s167
        %p169 = scmp.lt.s32.totalorder %s168, 12
        %s170 = scalar_select %p169, %s168, 12
        %s171 = smul.u32 64, %s170
        %p172 = scmp.lt.s32.totalorder %s167, 20
        %s173 = scalar_select %p172, %s167, 20
        %s174 = smul.addr %s173, 4
        %s175 = scalar_lea.vmem %s3, %s174
        %s176 = smul.u32 12, %s10
        %s177 = ssub.s32 21, %s176
        %p178 = scmp.lt.s32.totalorder %s177, 12
        %s179 = scalar_select %p178, %s177, 12
        %s180 = smul.u32 64, %s179
      $region32: #{d_res_3d_cnn_forward.20} parent=23 // pred_fallthru
        _
    $region24: #{d_res_3d_cnn_forward.20} parent=5 // pred_fallthru
      _
    %p181 = scmp.le.s32.totalorder 1, %s10
    %p182 = scmp.lt.s32.totalorder %s10, 3
    %p183 = pnand %p181, %p182
    %p184 = pneg %p183
    // Predicated region
    $region33: #{d_res_3d_cnn_forward.20} parent=5 // pred_check
      _
    $region34: #{d_res_3d_cnn_forward.20} parent=5 // pred_check_branch
      %186 = sbr.rel (%p183) target = $region36
    $region35: #{d_res_3d_cnn_forward.20} parent=5 // pred_region
      %s187 = ssub.s32 %s10, 1
      %s188 = smul.u32 12, %s15
      %p189 = scmp.lt.s32.totalorder %s188, 23
      %s190 = scalar_select %p189, %s188, 23
      %s191 = smul.addr %s190, 4
      %s192 = scalar_lea.vmem %s0, %s191
      %p193 = pneg %p36
      %p194 = pneg %p33
      %p195 = pneg %p57
      %p196 = pneg %p54
      %p197 = pneg %p78
      %p198 = pneg %p75
      %s199 = smul.u32 12, %s15
      %s200 = ssub.s32 21, %s199
      %p201 = scmp.lt.s32.totalorder %s200, 12
      %s202 = scalar_select %p201, %s200, 12
      %s203 = smul.u32 64, %s202
      %p204 = scmp.lt.s32.totalorder %s199, 20
      %s205 = scalar_select %p204, %s199, 20
      %s206 = smul.addr %s205, 4
      %s207 = scalar_lea.vmem %s3, %s206
      %p208 = pneg %p104
      %p209 = pneg %p101
      %p210 = pneg %p130
      %p211 = pneg %p127
      %s212 = smul.u32 12, %s15
      %p213 = scmp.lt.s32.totalorder %s212, 23
      %s214 = scalar_select %p213, %s212, 23
      %s215 = smul.addr %s214, 4
      %s216 = scalar_lea.vmem %s4, %s215
      %s217 = smul.u32 12, %s15
      %p218 = scmp.lt.s32.totalorder %s217, 23
      %s219 = scalar_select %p218, %s217, 23
      %s220 = smul.addr %s219, 4
      %s221 = scalar_lea.vmem %s0, %s220
      %s222 = smul.u32 12, %s15
      %s223 = smul.u32 12, %s15
      %s224 = ssub.s32 21, %s223
      %p225 = scmp.lt.s32.totalorder %s224, 12
      %s226 = scalar_select %p225, %s224, 12
      %s227 = smul.u32 64, %s226
      %p228 = scmp.lt.s32.totalorder %s223, 20
      %s229 = scalar_select %p228, %s223, 20
      %s230 = smul.addr %s229, 4
      %s231 = scalar_lea.vmem %s3, %s230
      %s232 = smul.u32 12, %s15
      %s233 = ssub.s32 21, %s232
      %p234 = scmp.lt.s32.totalorder %s233, 12
      %s235 = scalar_select %p234, %s233, 12
      %s236 = smul.u32 64, %s235
      %s237 = smul.u32 12, %s15
      %p238 = scmp.lt.s32.totalorder %s237, 23
      %s239 = scalar_select %p238, %s237, 23
      %s240 = smul.addr %s239, 4
      %s241 = scalar_lea.vmem %s4, %s240
      %s242 = smul.u32 12, %s15
      %v243 = vld [vmem:[%s221] sm:$0xf]
      %v244 = vld [vmem:[%s221 + $0x4] sm:$0xf]
      %v245 = vld [vmem:[%s221 + $0x8] sm:$0xf]
      %v246 = vld [vmem:[%s221 + $0xc] sm:$0xf]
      %v247 = vld [vmem:[%s221 + $0x10] sm:$0xf]
      %v248 = vld [vmem:[%s221 + $0x14] sm:$0xf]
      %v249 = vld [vmem:[%s221 + $0x18] sm:$0xf]
      %v250 = vld [vmem:[%s221 + $0x1c] sm:$0xf]
      %v251 = vld [vmem:[%s221 + $0x20] sm:$0xf]
      %v252 = vld [vmem:[%s221 + $0x24] sm:$0xf]
      %v253 = vld [vmem:[%s221 + $0x28] sm:$0xf]
      %v254 = vld [vmem:[%s221 + $0x2c] sm:$0xf]
      %v255 = vunpack.c.l.bf16 %v243
      %v256 = vunpack.c.l.bf16 %v244
      %v257 = vunpack.c.l.bf16 %v245
      %v258 = vunpack.c.l.bf16 %v246
      %v259 = vunpack.c.l.bf16 %v247
      %v260 = vunpack.c.l.bf16 %v248
      %v261 = vunpack.c.l.bf16 %v249
      %v262 = vunpack.c.l.bf16 %v250
      %v263 = vunpack.c.l.bf16 %v251
      %v264 = vunpack.c.l.bf16 %v252
      %v265 = vunpack.c.l.bf16 %v253
      %v266 = vunpack.c.l.bf16 %v254
      %v267 = vld [vmem:[%s1] sm:$0x1]
      %v269 = vlaneseq
      %v270 = vshrl.u32 %v269, 7
      %v271 = vsub.s32 0, %v270
      %v272 = vrot.slane %v267, %v271
      %v274 = vmul.f32 %v255, %v272
      %v275 = vmul.f32 %v256, %v272
      %v276 = vmul.f32 %v257, %v272
      %v277 = vmul.f32 %v258, %v272
      %v278 = vmul.f32 %v259, %v272
      %v279 = vmul.f32 %v260, %v272
      %v280 = vmul.f32 %v261, %v272
      %v281 = vmul.f32 %v262, %v272
      %v282 = vmul.f32 %v263, %v272
      %v283 = vmul.f32 %v264, %v272
      %v284 = vmul.f32 %v265, %v272
      %v285 = vmul.f32 %v266, %v272
      %v286 = vld [vmem:[%s2] sm:$0x1]
      %v288 = vlaneseq
      %v289 = vshrl.u32 %v288, 7
      %v290 = vsub.s32 0, %v289
      %v291 = vrot.slane %v286, %v290
      %v293 = vadd.f32 %v274, %v291
      %v294 = vadd.f32 %v275, %v291
      %v295 = vadd.f32 %v276, %v291
      %v296 = vadd.f32 %v277, %v291
      %v297 = vadd.f32 %v278, %v291
      %v298 = vadd.f32 %v279, %v291
      %v299 = vadd.f32 %v280, %v291
      %v300 = vadd.f32 %v281, %v291
      %v301 = vadd.f32 %v282, %v291
      %v302 = vadd.f32 %v283, %v291
      %v303 = vadd.f32 %v284, %v291
      %v304 = vadd.f32 %v285, %v291
      %v305 = vld [vmem:[%s231] sm:$0xf]
      %v306 = vld [vmem:[%s231 + $0x4] sm:$0xf]
      %v307 = vld [vmem:[%s231 + $0x8] sm:$0xf]
      %v308 = vld [vmem:[%s231 + $0xc] sm:$0xf]
      %v309 = vld [vmem:[%s231 + $0x10] sm:$0xf]
      %v310 = vld [vmem:[%s231 + $0x14] sm:$0xf]
      %v311 = vld [vmem:[%s231 + $0x18] sm:$0xf]
      %v312 = vld [vmem:[%s231 + $0x1c] sm:$0xf]
      %v313 = vld [vmem:[%s231 + $0x20] sm:$0xf]
      %v314 = vld [vmem:[%s231 + $0x24] sm:$0xf]
      %v315 = vld [vmem:[%s231 + $0x28] sm:$0xf]
      %v316 = vld [vmem:[%s231 + $0x2c] sm:$0xf]
      %v317 = vunpack.c.l.bf16 %v305
      %v318 = vunpack.c.l.bf16 %v306
      %v319 = vunpack.c.l.bf16 %v307
      %v320 = vunpack.c.l.bf16 %v308
      %v321 = vunpack.c.l.bf16 %v309
      %v322 = vunpack.c.l.bf16 %v310
      %v323 = vunpack.c.l.bf16 %v311
      %v324 = vunpack.c.l.bf16 %v312
      %v325 = vunpack.c.l.bf16 %v313
      %v326 = vunpack.c.l.bf16 %v314
      %v327 = vunpack.c.l.bf16 %v315
      %v328 = vunpack.c.l.bf16 %v316
      %v329 = vadd.f32 %v293, %v317
      %v330 = vadd.f32 %v294, %v318
      %v331 = vadd.f32 %v295, %v319
      %v332 = vadd.f32 %v296, %v320
      %v333 = vadd.f32 %v297, %v321
      %v334 = vadd.f32 %v298, %v322
      %v335 = vadd.f32 %v299, %v323
      %v336 = vadd.f32 %v300, %v324
      %v337 = vadd.f32 %v301, %v325
      %v338 = vadd.f32 %v302, %v326
      %v339 = vadd.f32 %v303, %v327
      %v340 = vadd.f32 %v304, %v328
      %v341 = vmax.f32 %v329, 0.0
      %v342 = vmax.f32 %v330, 0.0
      %v343 = vmax.f32 %v331, 0.0
      %v344 = vmax.f32 %v332, 0.0
      %v345 = vmax.f32 %v333, 0.0
      %v346 = vmax.f32 %v334, 0.0
      %v347 = vmax.f32 %v335, 0.0
      %v348 = vmax.f32 %v336, 0.0
      %v349 = vmax.f32 %v337, 0.0
      %v350 = vmax.f32 %v338, 0.0
      %v351 = vmax.f32 %v339, 0.0
      %v352 = vmax.f32 %v340, 0.0
      %v353 = vpack.c.bf16 %v342, %v341
      %v354 = vpack.c.bf16 %v344, %v343
      %v355 = vpack.c.bf16 %v346, %v345
      %v356 = vpack.c.bf16 %v348, %v347
      %v357 = vpack.c.bf16 %v350, %v349
      %v358 = vpack.c.bf16 %v352, %v351
      %v365 = vunpack.c.l.b16 %v353
      %v366 = vunpack.c.h.b16 %v353
      %v367 = vunpack.c.l.b16 %v354
      %v368 = vunpack.c.h.b16 %v354
      %v369 = vunpack.c.l.b16 %v355
      %v370 = vunpack.c.h.b16 %v355
      %v371 = vunpack.c.l.b16 %v356
      %v372 = vunpack.c.h.b16 %v356
      %v373 = vunpack.c.l.b16 %v357
      %v374 = vunpack.c.h.b16 %v357
      %v375 = vunpack.c.l.b16 %v358
      %v376 = vunpack.c.h.b16 %v358
      %v377 = vpack.c.b16 %v365, %v365
      %v378 = vpack.c.b16 %v366, %v366
      %v379 = vpack.c.b16 %v367, %v367
      %v380 = vpack.c.b16 %v368, %v368
      %v381 = vpack.c.b16 %v369, %v369
      %v382 = vpack.c.b16 %v370, %v370
      %v383 = vpack.c.b16 %v371, %v371
      %v384 = vpack.c.b16 %v372, %v372
      %v385 = vpack.c.b16 %v373, %v373
      %v386 = vpack.c.b16 %v374, %v374
      %v387 = vpack.c.b16 %v375, %v375
      %v388 = vpack.c.b16 %v376, %v376
      %401 = vst [vmem:[%s241] sm:$0xf] %v377
      %402 = vst [vmem:[%s241 + $0x4] sm:$0xf] %v378
      %403 = vst [vmem:[%s241 + $0x8] sm:$0xf] %v379
      %404 = vst [vmem:[%s241 + $0xc] sm:$0xf] %v380
      %405 = vst [vmem:[%s241 + $0x10] sm:$0xf] %v381
      %406 = vst [vmem:[%s241 + $0x14] sm:$0xf] %v382
      %407 = vst [vmem:[%s241 + $0x18] sm:$0xf] %v383
      %408 = vst [vmem:[%s241 + $0x1c] sm:$0xf] %v384
      %409 = vst [vmem:[%s241 + $0x20] sm:$0xf] %v385
      %410 = vst [vmem:[%s241 + $0x24] sm:$0xf] %v386
      %411 = vst [vmem:[%s241 + $0x28] sm:$0xf] %v387
      %412 = vst [vmem:[%s241 + $0x2c] sm:$0xf] %v388
      %s413 = smul.u32 12, %s15
      %p414 = scmp.lt.s32.totalorder %s413, 23
      %s415 = scalar_select %p414, %s413, 23
      %s416 = smul.addr %s415, 4
      %s417 = scalar_lea.vmem %s4, %s416
      // Predicated region
      $region37: #{d_res_3d_cnn_forward.20} parent=35 // pred_check
        %p418 = pneg %p127
      $region38: #{d_res_3d_cnn_forward.20} parent=35 // pred_check_branch
        %420 = sbr.rel (%p418) target = $region40
      $region39: #{d_res_3d_cnn_forward.20} parent=35 // pred_region
        %s421 = smul.u32 12, %s15
      $region40: #{d_res_3d_cnn_forward.20} parent=35 // pred_fallthru
        _
    $region36: #{d_res_3d_cnn_forward.20} parent=5 // pred_fallthru
      _
    %p422 = scmp.le.s32.totalorder 2, %s10
    // Predicated region
    $region41: #{d_res_3d_cnn_forward.20} parent=5 // pred_check
      %p423 = pneg %p422
    $region42: #{d_res_3d_cnn_forward.20} parent=5 // pred_check_branch
      %425 = sbr.rel (%p423) target = $region44
    $region43: #{d_res_3d_cnn_forward.20} parent=5 // pred_region
      %s426 = ssub.s32 %s10, 2
      // Predicated region
      $region45: #{d_res_3d_cnn_forward.20} parent=43 // pred_check
        %p427 = pneg %p133
      $region46: #{d_res_3d_cnn_forward.20} parent=43 // pred_check_branch
        %429 = sbr.rel (%p427) target = $region48
      $region47: #{d_res_3d_cnn_forward.20} parent=43 // pred_region
        %s430 = smul.u32 12, %s16
        %p431 = scmp.lt.s32.totalorder %s430, 23
        %s432 = scalar_select %p431, %s430, 23
        %s433 = smul.addr %s432, 4
        %s434 = scalar_lea.vmem %s4, %s433
      $region48: #{d_res_3d_cnn_forward.20} parent=43 // pred_fallthru
        _
    $region44: #{d_res_3d_cnn_forward.20} parent=5 // pred_fallthru
      _
  $region6: #{d_res_3d_cnn_forward.20} parent=0 // loop_footer
    %s14 = sadd.s32 1, %s10
  $region7: #{d_res_3d_cnn_forward.20} parent=0 // loop_footer_branch
    %9 = sbr.rel target = $region3
  $region8: #{d_res_3d_cnn_forward.20} parent=0 // loop_exit
    _

// kernel: d_res_3d_cnn_forward.17
$region0: #{d_res_3d_cnn_forward.17}
  #allocation0 [shape = 'u32[]', space=smem, size = 0x4, offset = 0x4, fixed_abs, tag = 'smem constant byte address 0x4 - core index']
  #allocation1 [shape = 'u32[144,128]{1,0:T(1,128)}', space=vmem, size = 0x12000, scoped, tag = 'internal scratch']
  %s0 = inlined_call_operand.vmem [shape: bf16[162,3456], index: 0, kind: input, shape index: {}]
  %s1 = inlined_call_operand.vmem [shape: bf16[3456,128], index: 1, kind: input, shape index: {}]
  %s2 = inlined_call_operand.vmem [shape: bf16[192,128], index: 2, kind: output, shape index: {0}]
  %s3 = inlined_call_operand.vmem [shape: f32[16,128], index: 3, kind: output, shape index: {1}]
  %s4 = inlined_call_operand.vmem [shape: f32[16,128], index: 4, kind: output, shape index: {2}]
  %5 = xla_tuple %s2, %s3, %s4
  %s6 = sld [smem:[#allocation0]]
  $region57: #{d_res_3d_cnn_forward.17} parent=0
    _
  %s8 = ssub.s32 1, %s6
  %s9 = scalar_select 0, %s8, %s6
  loop: start=0, step=1, limit=4
  $region2: #{d_res_3d_cnn_forward.17} parent=0 // loop_pre_header
    _
  $region3: #{d_res_3d_cnn_forward.17} parent=0 // loop_header
    %s11 = sphi 0, %s15
    %p12 = scmp.ge.s32.totalorder %s11, 4
    %s21 = sphi 0, %s23
    %s24 = sphi 0, %s21
    %s25 = sphi 0, %s24
    %s41 = sphi 0, %s25
    %s45 = sphi 0, %s45
    %s47 = sphi 0, %s45
    %s48 = sphi 0, %s47
    %s62 = sphi 0, %s48
    %s68 = sphi 0, %s70
    %s71 = sphi 0, %s68
    %s72 = sphi 0, %s71
    %s88 = sphi 0, %s72
    %s94 = sphi 0, %s96
    %s97 = sphi 0, %s94
    %s98 = sphi 0, %s97
    %s114 = sphi 0, %s98
    %s120 = sphi 0, %s122
    %s123 = sphi 0, %s120
    %s124 = sphi 0, %s123
    %s140 = sphi 0, %s124
  $region4: #{d_res_3d_cnn_forward.17} parent=0 // loop_header_branch
    %14 = sbr.rel (%p12) target = $region8
  $region5: #{d_res_3d_cnn_forward.17} parent=0 // loop_body
    %s16 = ssub.s32 %s11, 1
    %s17 = ssub.s32 %s11, 2
    %s18 = sadd.s32 %s11, 1
    %s19 = ssub.s32 %s11, %s18
    %p20 = scmp.eq.s32.totalorder %s19, 0
    %s22 = sadd.s32 %s21, 1
    %s23 = scalar_select %p20, %s21, %s22
    %p26 = pneg %p20
    %p27 = scmp.eq.s32.totalorder %s11, 1
    %p28 = por %p26, %p27
    %p29 = scmp.ne.s32.totalorder %s21, %s24
    %p30 = scmp.eq.s32.totalorder %s11, 0
    %p31 = por %p29, %p30
    %p32 = scmp.ne.s32.totalorder %s21, %s24
    %p33 = scmp.eq.s32.totalorder %s16, 1
    %p34 = por %p32, %p33
    %p35 = scmp.ne.s32.totalorder %s24, %s25
    %p36 = scmp.eq.s32.totalorder %s16, 0
    %p37 = por %p35, %p36
    %p38 = scmp.ne.s32.totalorder %s24, %s25
    %p39 = scmp.eq.s32.totalorder %s17, 1
    %p40 = por %p38, %p39
    %p42 = scmp.ne.s32.totalorder %s25, %s41
    %p43 = scmp.eq.s32.totalorder %s17, 0
    %p44 = por %p42, %p43
    %s46 = sadd.s32 %s45, 1
    %p49 = scmp.eq.s32.totalorder %s11, 1
    %p50 = scmp.ne.s32.totalorder %s45, %s47
    %p51 = scmp.eq.s32.totalorder %s11, 0
    %p52 = por %p50, %p51
    %p53 = scmp.ne.s32.totalorder %s45, %s47
    %p54 = scmp.eq.s32.totalorder %s16, 1
    %p55 = por %p53, %p54
    %p56 = scmp.ne.s32.totalorder %s47, %s48
    %p57 = scmp.eq.s32.totalorder %s16, 0
    %p58 = por %p56, %p57
    %p59 = scmp.ne.s32.totalorder %s47, %s48
    %p60 = scmp.eq.s32.totalorder %s17, 1
    %p61 = por %p59, %p60
    %p63 = scmp.ne.s32.totalorder %s48, %s62
    %p64 = scmp.eq.s32.totalorder %s17, 0
    %p65 = por %p63, %p64
    %s66 = ssub.s32 %s11, %s18
    %p67 = scmp.eq.s32.totalorder %s66, 0
    %s69 = sadd.s32 %s68, 1
    %s70 = scalar_select %p67, %s68, %s69
    %p73 = pneg %p67
    %p74 = scmp.eq.s32.totalorder %s11, 1
    %p75 = por %p73, %p74
    %p76 = scmp.ne.s32.totalorder %s68, %s71
    %p77 = scmp.eq.s32.totalorder %s11, 0
    %p78 = por %p76, %p77
    %p79 = scmp.ne.s32.totalorder %s68, %s71
    %p80 = scmp.eq.s32.totalorder %s16, 1
    %p81 = por %p79, %p80
    %p82 = scmp.ne.s32.totalorder %s71, %s72
    %p83 = scmp.eq.s32.totalorder %s16, 0
    %p84 = por %p82, %p83
    %p85 = scmp.ne.s32.totalorder %s71, %s72
    %p86 = scmp.eq.s32.totalorder %s17, 1
    %p87 = por %p85, %p86
    %p89 = scmp.ne.s32.totalorder %s72, %s88
    %p90 = scmp.eq.s32.totalorder %s17, 0
    %p91 = por %p89, %p90
    %s92 = ssub.s32 %s11, %s18
    %p93 = scmp.eq.s32.totalorder %s92, 0
    %s95 = sadd.s32 %s94, 1
    %s96 = scalar_select %p93, %s94, %s95
    %p99 = pneg %p93
    %p100 = scmp.eq.s32.totalorder %s11, 1
    %p101 = por %p99, %p100
    %p102 = scmp.ne.s32.totalorder %s94, %s97
    %p103 = scmp.eq.s32.totalorder %s11, 0
    %p104 = por %p102, %p103
    %p105 = scmp.ne.s32.totalorder %s94, %s97
    %p106 = scmp.eq.s32.totalorder %s16, 1
    %p107 = por %p105, %p106
    %p108 = scmp.ne.s32.totalorder %s97, %s98
    %p109 = scmp.eq.s32.totalorder %s16, 0
    %p110 = por %p108, %p109
    %p111 = scmp.ne.s32.totalorder %s97, %s98
    %p112 = scmp.eq.s32.totalorder %s17, 1
    %p113 = por %p111, %p112
    %p115 = scmp.ne.s32.totalorder %s98, %s114
    %p116 = scmp.eq.s32.totalorder %s17, 0
    %p117 = por %p115, %p116
    %s118 = ssub.s32 %s11, %s18
    %p119 = scmp.eq.s32.totalorder %s118, 0
    %s121 = sadd.s32 %s120, 1
    %s122 = scalar_select %p119, %s120, %s121
    %p125 = pneg %p119
    %p126 = scmp.eq.s32.totalorder %s11, 1
    %p127 = por %p125, %p126
    %p128 = scmp.ne.s32.totalorder %s120, %s123
    %p129 = scmp.eq.s32.totalorder %s11, 0
    %p130 = por %p128, %p129
    %p131 = scmp.ne.s32.totalorder %s120, %s123
    %p132 = scmp.eq.s32.totalorder %s16, 1
    %p133 = por %p131, %p132
    %p134 = scmp.ne.s32.totalorder %s123, %s124
    %p135 = scmp.eq.s32.totalorder %s16, 0
    %p136 = por %p134, %p135
    %p137 = scmp.ne.s32.totalorder %s123, %s124
    %p138 = scmp.eq.s32.totalorder %s17, 1
    %p139 = por %p137, %p138
    %p141 = scmp.ne.s32.totalorder %s124, %s140
    %p142 = scmp.eq.s32.totalorder %s17, 0
    %p143 = por %p141, %p142
    %p144 = scmp.le.s32.totalorder 1, %s11
    %p145 = scmp.lt.s32.totalorder %s11, 3
    %p146 = pnand %p144, %p145
    %p147 = pneg %p146
    // Predicated region
    $region9: #{d_res_3d_cnn_forward.17} parent=5 // pred_check
      _
    $region10: #{d_res_3d_cnn_forward.17} parent=5 // pred_check_branch
      %149 = sbr.rel (%p146) target = $region12
    $region11: #{d_res_3d_cnn_forward.17} parent=5 // pred_region
      %s150 = ssub.s32 %s11, 1
      // Predicated region
      $region13: #{d_res_3d_cnn_forward.17} parent=11 // pred_check
        %p151 = pneg %p58
      $region14: #{d_res_3d_cnn_forward.17} parent=11 // pred_check_branch
        %153 = sbr.rel (%p151) target = $region16
      $region15: #{d_res_3d_cnn_forward.17} parent=11 // pred_region
        _
      $region16: #{d_res_3d_cnn_forward.17} parent=11 // pred_fallthru
        _
    $region12: #{d_res_3d_cnn_forward.17} parent=5 // pred_fallthru
      _
    %p154 = scmp.lt.s32.totalorder %s11, 2
    // Predicated region
    $region17: #{d_res_3d_cnn_forward.17} parent=5 // pred_check
      %p155 = pneg %p154
    $region18: #{d_res_3d_cnn_forward.17} parent=5 // pred_check_branch
      %157 = sbr.rel (%p155) target = $region20
    $region19: #{d_res_3d_cnn_forward.17} parent=5 // pred_region
      // Predicated region
      $region21: #{d_res_3d_cnn_forward.17} parent=19 // pred_check
        %p158 = pneg %p31
      $region22: #{d_res_3d_cnn_forward.17} parent=19 // pred_check_branch
        %160 = sbr.rel (%p158) target = $region24
      $region23: #{d_res_3d_cnn_forward.17} parent=19 // pred_region
        %s161 = smul.u32 12, %s11
        %s162 = ssub.s32 21, %s161
        %p163 = scmp.lt.s32.totalorder %s162, 12
        %s164 = scalar_select %p163, %s162, 12
        %s165 = smul.u32 64, %s164
        %s166 = smul.u32 %s165, 27
        %p167 = scmp.lt.s32.totalorder %s161, 20
        %s168 = scalar_select %p167, %s161, 20
        %s169 = smul.addr %s168, 27
        %s170 = smul.addr %s169, 4
        %s171 = scalar_lea.vmem %s0, %s170
        %s172 = smul.u32 12, %s11
        %s173 = ssub.s32 21, %s172
        %p174 = scmp.lt.s32.totalorder %s173, 12
        %s175 = scalar_select %p174, %s173, 12
        %s176 = smul.u32 64, %s175
        %s177 = smul.u32 %s176, 27
      $region24: #{d_res_3d_cnn_forward.17} parent=19 // pred_fallthru
        _
    $region20: #{d_res_3d_cnn_forward.17} parent=5 // pred_fallthru
      _
    %p178 = scmp.le.s32.totalorder 1, %s11
    %p179 = scmp.lt.s32.totalorder %s11, 3
    %p180 = pnand %p178, %p179
    %p181 = pneg %p180
    // Predicated region
    $region25: #{d_res_3d_cnn_forward.17} parent=5 // pred_check
      _
    $region26: #{d_res_3d_cnn_forward.17} parent=5 // pred_check_branch
      %183 = sbr.rel (%p180) target = $region28
    $region27: #{d_res_3d_cnn_forward.17} parent=5 // pred_region
      %s184 = ssub.s32 %s11, 1
      %s185 = smul.u32 12, %s16
      %s186 = ssub.s32 21, %s185
      %p187 = scmp.lt.s32.totalorder %s186, 12
      %s188 = scalar_select %p187, %s186, 12
      %s189 = smul.u32 64, %s188
      %s190 = smul.u32 %s189, 27
      %p191 = scmp.lt.s32.totalorder %s185, 20
      %s192 = scalar_select %p191, %s185, 20
      %s193 = smul.addr %s192, 27
      %s194 = smul.addr %s193, 4
      %s195 = scalar_lea.vmem %s0, %s194
      %p196 = pneg %p37
      %p197 = pneg %p34
      %p198 = pneg %p58
      %p199 = pneg %p55
      %p200 = pneg %p84
      %p201 = pneg %p81
      %s202 = smul.u32 12, %s16
      %p203 = scmp.lt.s32.totalorder %s202, 23
      %s204 = scalar_select %p203, %s202, 23
      %s205 = smul.addr %s204, 4
      %s206 = scalar_lea.vmem %s2, %s205
      %p207 = pneg %p110
      %p208 = pneg %p107
      %p209 = scmp.lt.s32.totalorder %s16, 1
      %s210 = scalar_select %p209, %s16, 1
      %s211 = smul.addr %s210, 8
      %s212 = scalar_lea.vmem %s3, %s211
      %p213 = pneg %p136
      %p214 = pneg %p133
      %p215 = scmp.lt.s32.totalorder %s16, 1
      %s216 = scalar_select %p215, %s16, 1
      %s217 = smul.addr %s216, 8
      %s218 = scalar_lea.vmem %s4, %s217
      %s219 = smul.u32 12, %s16
      %s220 = ssub.s32 21, %s219
      %p221 = scmp.lt.s32.totalorder %s220, 12
      %s222 = scalar_select %p221, %s220, 12
      %s223 = smul.u32 64, %s222
      %s224 = smul.u32 %s223, 27
      %p225 = scmp.lt.s32.totalorder %s219, 20
      %s226 = scalar_select %p225, %s219, 20
      %s227 = smul.addr %s226, 27
      %s228 = smul.addr %s227, 4
      %s229 = scalar_lea.vmem %s0, %s228
      %s230 = smul.u32 12, %s16
      %s231 = ssub.s32 21, %s230
      %p232 = scmp.lt.s32.totalorder %s231, 12
      %s233 = scalar_select %p232, %s231, 12
      %s234 = smul.u32 64, %s233
      %s235 = smul.u32 %s234, 27
      %s236 = smul.u32 12, %s16
      %p237 = scmp.lt.s32.totalorder %s236, 23
      %s238 = scalar_select %p237, %s236, 23
      %s239 = smul.addr %s238, 4
      %s240 = scalar_lea.vmem %s2, %s239
      %s241 = smul.u32 12, %s16
      %p242 = scmp.lt.s32.totalorder %s16, 1
      %s243 = scalar_select %p242, %s16, 1
      %s244 = smul.addr %s243, 8
      %s245 = scalar_lea.vmem %s3, %s244
      %p246 = scmp.lt.s32.totalorder %s16, 1
      %s247 = scalar_select %p246, %s16, 1
      %s248 = smul.addr %s247, 8
      %s249 = scalar_lea.vmem %s4, %s248
      %v251 = vld [vmem:[%s229] sm:$0xff]
      %v252 = vld [vmem:[%s229 + $0x8] sm:$0xff]
      %v253 = vld [vmem:[%s229 + $0x10] sm:$0xff]
      %v254 = vld [vmem:[%s229 + $0x18] sm:$0xff]
      %v255 = vld [vmem:[%s229 + $0x20] sm:$0xff]
      %v256 = vld [vmem:[%s229 + $0x28] sm:$0xff]
      %v257 = vld [vmem:[%s229 + $0x30] sm:$0xff]
      %v258 = vld [vmem:[%s229 + $0x38] sm:$0xff]
      %v259 = vld [vmem:[%s229 + $0x40] sm:$0xff]
      %v260 = vld [vmem:[%s229 + $0x48] sm:$0xff]
      %v261 = vld [vmem:[%s229 + $0x50] sm:$0xff]
      %v262 = vld [vmem:[%s229 + $0x58] sm:$0xff]
      %v263 = vld [vmem:[%s229 + $0x60] sm:$0xff]
      %v264 = vld [vmem:[%s229 + $0x68] sm:$0xf]
      %v265 = vld [vmem:[%s229 + $0x6c] sm:$0xff]
      %v266 = vld [vmem:[%s229 + $0x74] sm:$0xff]
      %v267 = vld [vmem:[%s229 + $0x7c] sm:$0xff]
      %v268 = vld [vmem:[%s229 + $0x84] sm:$0xff]
      %v269 = vld [vmem:[%s229 + $0x8c] sm:$0xff]
      %v270 = vld [vmem:[%s229 + $0x94] sm:$0xff]
      %v271 = vld [vmem:[%s229 + $0x9c] sm:$0xff]
      %v272 = vld [vmem:[%s229 + $0xa4] sm:$0xff]
      %v273 = vld [vmem:[%s229 + $0xac] sm:$0xff]
      %v274 = vld [vmem:[%s229 + $0xb4] sm:$0xff]
      %v275 = vld [vmem:[%s229 + $0xbc] sm:$0xff]
      %v276 = vld [vmem:[%s229 + $0xc4] sm:$0xff]
      %v277 = vld [vmem:[%s229 + $0xcc] sm:$0xff]
      %v278 = vld [vmem:[%s229 + $0xd4] sm:$0xf]
      %v279 = vld [vmem:[%s229 + $0xd8] sm:$0xff]
      %v280 = vld [vmem:[%s229 + $0xe0] sm:$0xff]
      %v281 = vld [vmem:[%s229 + $0xe8] sm:$0xff]
      %v282 = vld [vmem:[%s229 + $0xf0] sm:$0xff]
      %v283 = vld [vmem:[%s229 + $0xf8] sm:$0xff]
      %v284 = vld [vmem:[%s229 + $0x100] sm:$0xff]
      %v285 = vld [vmem:[%s229 + $0x108] sm:$0xff]
      %v286 = vld [vmem:[%s229 + $0x110] sm:$0xff]
      %v287 = vld [vmem:[%s229 + $0x118] sm:$0xff]
      %v288 = vld [vmem:[%s229 + $0x120] sm:$0xff]
      %v289 = vld [vmem:[%s229 + $0x128] sm:$0xff]
      %v290 = vld [vmem:[%s229 + $0x130] sm:$0xff]
      %v291 = vld [vmem:[%s229 + $0x138] sm:$0xff]
      %v292 = vld [vmem:[%s229 + $0x140] sm:$0xf]
      %v293 = vld [vmem:[%s229 + $0x144] sm:$0xff]
      %v294 = vld [vmem:[%s229 + $0x14c] sm:$0xff]
      %v295 = vld [vmem:[%s229 + $0x154] sm:$0xff]
      %v296 = vld [vmem:[%s229 + $0x15c] sm:$0xff]
      %v297 = vld [vmem:[%s229 + $0x164] sm:$0xff]
      %v298 = vld [vmem:[%s229 + $0x16c] sm:$0xff]
      %v299 = vld [vmem:[%s229 + $0x174] sm:$0xff]
      %v300 = vld [vmem:[%s229 + $0x17c] sm:$0xff]
      %v301 = vld [vmem:[%s229 + $0x184] sm:$0xff]
      %v302 = vld [vmem:[%s229 + $0x18c] sm:$0xff]
      %v303 = vld [vmem:[%s229 + $0x194] sm:$0xff]
      %v304 = vld [vmem:[%s229 + $0x19c] sm:$0xff]
      %v305 = vld [vmem:[%s229 + $0x1a4] sm:$0xff]
      %v306 = vld [vmem:[%s229 + $0x1ac] sm:$0xf]
      %v307 = vld [vmem:[%s229 + $0x1b0] sm:$0xff]
      %v308 = vld [vmem:[%s229 + $0x1b8] sm:$0xff]
      %v309 = vld [vmem:[%s229 + $0x1c0] sm:$0xff]
      %v310 = vld [vmem:[%s229 + $0x1c8] sm:$0xff]
      %v311 = vld [vmem:[%s229 + $0x1d0] sm:$0xff]
      %v312 = vld [vmem:[%s229 + $0x1d8] sm:$0xff]
      %v313 = vld [vmem:[%s229 + $0x1e0] sm:$0xff]
      %v314 = vld [vmem:[%s229 + $0x1e8] sm:$0xff]
      %v315 = vld [vmem:[%s229 + $0x1f0] sm:$0xff]
      %v316 = vld [vmem:[%s229 + $0x1f8] sm:$0xff]
      %v317 = vld [vmem:[%s229 + $0x200] sm:$0xff]
      %v318 = vld [vmem:[%s229 + $0x208] sm:$0xff]
      %v319 = vld [vmem:[%s229 + $0x210] sm:$0xff]
      %v320 = vld [vmem:[%s229 + $0x218] sm:$0xf]
      %v321 = vld [vmem:[%s229 + $0x21c] sm:$0xff]
      %v322 = vld [vmem:[%s229 + $0x224] sm:$0xff]
      %v323 = vld [vmem:[%s229 + $0x22c] sm:$0xff]
      %v324 = vld [vmem:[%s229 + $0x234] sm:$0xff]
      %v325 = vld [vmem:[%s229 + $0x23c] sm:$0xff]
      %v326 = vld [vmem:[%s229 + $0x244] sm:$0xff]
      %v327 = vld [vmem:[%s229 + $0x24c] sm:$0xff]
      %v328 = vld [vmem:[%s229 + $0x254] sm:$0xff]
      %v329 = vld [vmem:[%s229 + $0x25c] sm:$0xff]
      %v330 = vld [vmem:[%s229 + $0x264] sm:$0xff]
      %v331 = vld [vmem:[%s229 + $0x26c] sm:$0xff]
      %v332 = vld [vmem:[%s229 + $0x274] sm:$0xff]
      %v333 = vld [vmem:[%s229 + $0x27c] sm:$0xff]
      %v334 = vld [vmem:[%s229 + $0x284] sm:$0xf]
      %v335 = vld [vmem:[%s229 + $0x288] sm:$0xff]
      %v336 = vld [vmem:[%s229 + $0x290] sm:$0xff]
      %v337 = vld [vmem:[%s229 + $0x298] sm:$0xff]
      %v338 = vld [vmem:[%s229 + $0x2a0] sm:$0xff]
      %v339 = vld [vmem:[%s229 + $0x2a8] sm:$0xff]
      %v340 = vld [vmem:[%s229 + $0x2b0] sm:$0xff]
      %v341 = vld [vmem:[%s229 + $0x2b8] sm:$0xff]
      %v342 = vld [vmem:[%s229 + $0x2c0] sm:$0xff]
      %v343 = vld [vmem:[%s229 + $0x2c8] sm:$0xff]
      %v344 = vld [vmem:[%s229 + $0x2d0] sm:$0xff]
      %v345 = vld [vmem:[%s229 + $0x2d8] sm:$0xff]
      %v346 = vld [vmem:[%s229 + $0x2e0] sm:$0xff]
      %v347 = vld [vmem:[%s229 + $0x2e8] sm:$0xff]
      %v348 = vld [vmem:[%s229 + $0x2f0] sm:$0xf]
      %v349 = vld [vmem:[%s229 + $0x2f4] sm:$0xff]
      %v350 = vld [vmem:[%s229 + $0x2fc] sm:$0xff]
      %v351 = vld [vmem:[%s229 + $0x304] sm:$0xff]
      %v352 = vld [vmem:[%s229 + $0x30c] sm:$0xff]
      %v353 = vld [vmem:[%s229 + $0x314] sm:$0xff]
      %v354 = vld [vmem:[%s229 + $0x31c] sm:$0xff]
      %v355 = vld [vmem:[%s229 + $0x324] sm:$0xff]
      %v356 = vld [vmem:[%s229 + $0x32c] sm:$0xff]
      %v357 = vld [vmem:[%s229 + $0x334] sm:$0xff]
      %v358 = vld [vmem:[%s229 + $0x33c] sm:$0xff]
      %v359 = vld [vmem:[%s229 + $0x344] sm:$0xff]
      %v360 = vld [vmem:[%s229 + $0x34c] sm:$0xff]
      %v361 = vld [vmem:[%s229 + $0x354] sm:$0xff]
      %v362 = vld [vmem:[%s229 + $0x35c] sm:$0xf]
      %v363 = vld [vmem:[%s229 + $0x360] sm:$0xff]
      %v364 = vld [vmem:[%s229 + $0x368] sm:$0xff]
      %v365 = vld [vmem:[%s229 + $0x370] sm:$0xff]
      %v366 = vld [vmem:[%s229 + $0x378] sm:$0xff]
      %v367 = vld [vmem:[%s229 + $0x380] sm:$0xff]
      %v368 = vld [vmem:[%s229 + $0x388] sm:$0xff]
      %v369 = vld [vmem:[%s229 + $0x390] sm:$0xff]
      %v370 = vld [vmem:[%s229 + $0x398] sm:$0xff]
      %v371 = vld [vmem:[%s229 + $0x3a0] sm:$0xff]
      %v372 = vld [vmem:[%s229 + $0x3a8] sm:$0xff]
      %v373 = vld [vmem:[%s229 + $0x3b0] sm:$0xff]
      %v374 = vld [vmem:[%s229 + $0x3b8] sm:$0xff]
      %v375 = vld [vmem:[%s229 + $0x3c0] sm:$0xff]
      %v376 = vld [vmem:[%s229 + $0x3c8] sm:$0xf]
      %v377 = vld [vmem:[%s229 + $0x3cc] sm:$0xff]
      %v378 = vld [vmem:[%s229 + $0x3d4] sm:$0xff]
      %v379 = vld [vmem:[%s229 + $0x3dc] sm:$0xff]
      %v380 = vld [vmem:[%s229 + $0x3e4] sm:$0xff]
      %v381 = vld [vmem:[%s229 + $0x3ec] sm:$0xff]
      %v382 = vld [vmem:[%s229 + $0x3f4] sm:$0xff]
      %v383 = vld [vmem:[%s229 + $0x3fc] sm:$0xff]
      %v384 = vld [vmem:[%s229 + $0x404] sm:$0xff]
      %v385 = vld [vmem:[%s229 + $0x40c] sm:$0xff]
      %v386 = vld [vmem:[%s229 + $0x414] sm:$0xff]
      %v387 = vld [vmem:[%s229 + $0x41c] sm:$0xff]
      %v388 = vld [vmem:[%s229 + $0x424] sm:$0xff]
      %v389 = vld [vmem:[%s229 + $0x42c] sm:$0xff]
      %v390 = vld [vmem:[%s229 + $0x434] sm:$0xf]
      %v391 = vld [vmem:[%s229 + $0x438] sm:$0xff]
      %v392 = vld [vmem:[%s229 + $0x440] sm:$0xff]
      %v393 = vld [vmem:[%s229 + $0x448] sm:$0xff]
      %v394 = vld [vmem:[%s229 + $0x450] sm:$0xff]
      %v395 = vld [vmem:[%s229 + $0x458] sm:$0xff]
      %v396 = vld [vmem:[%s229 + $0x460] sm:$0xff]
      %v397 = vld [vmem:[%s229 + $0x468] sm:$0xff]
      %v398 = vld [vmem:[%s229 + $0x470] sm:$0xff]
      %v399 = vld [vmem:[%s229 + $0x478] sm:$0xff]
      %v400 = vld [vmem:[%s229 + $0x480] sm:$0xff]
      %v401 = vld [vmem:[%s229 + $0x488] sm:$0xff]
      %v402 = vld [vmem:[%s229 + $0x490] sm:$0xff]
      %v403 = vld [vmem:[%s229 + $0x498] sm:$0xff]
      %v404 = vld [vmem:[%s229 + $0x4a0] sm:$0xf]
      %v405 = vld [vmem:[%s229 + $0x4a4] sm:$0xff]
      %v406 = vld [vmem:[%s229 + $0x4ac] sm:$0xff]
      %v407 = vld [vmem:[%s229 + $0x4b4] sm:$0xff]
      %v408 = vld [vmem:[%s229 + $0x4bc] sm:$0xff]
      %v409 = vld [vmem:[%s229 + $0x4c4] sm:$0xff]
      %v410 = vld [vmem:[%s229 + $0x4cc] sm:$0xff]
      %v411 = vld [vmem:[%s229 + $0x4d4] sm:$0xff]
      %v412 = vld [vmem:[%s229 + $0x4dc] sm:$0xff]
      %v413 = vld [vmem:[%s229 + $0x4e4] sm:$0xff]
      %v414 = vld [vmem:[%s229 + $0x4ec] sm:$0xff]
      %v415 = vld [vmem:[%s229 + $0x4f4] sm:$0xff]
      %v416 = vld [vmem:[%s229 + $0x4fc] sm:$0xff]
      %v417 = vld [vmem:[%s229 + $0x504] sm:$0xff]
      %v418 = vld [vmem:[%s229 + $0x50c] sm:$0xf]
      %v419 = vld [vmem:[%s1] sm:$0xf]
      %v420 = vld [vmem:[%s1 + $0x4] sm:$0xf]
      %v421 = vld [vmem:[%s1 + $0x8] sm:$0xf]
      %v422 = vld [vmem:[%s1 + $0xc] sm:$0xf]
      %v423 = vld [vmem:[%s1 + $0x10] sm:$0xf]
      %v424 = vld [vmem:[%s1 + $0x14] sm:$0xf]
      %v425 = vld [vmem:[%s1 + $0x18] sm:$0xf]
      %v426 = vld [vmem:[%s1 + $0x1c] sm:$0xf]
      %v427 = vld [vmem:[%s1 + $0x20] sm:$0xf]
      %v428 = vld [vmem:[%s1 + $0x24] sm:$0xf]
      %v429 = vld [vmem:[%s1 + $0x28] sm:$0xf]
      %v430 = vld [vmem:[%s1 + $0x2c] sm:$0xf]
      %v431 = vld [vmem:[%s1 + $0x30] sm:$0xf]
      %v432 = vld [vmem:[%s1 + $0x34] sm:$0xf]
      %v433 = vld [vmem:[%s1 + $0x38] sm:$0xf]
      %v434 = vld [vmem:[%s1 + $0x3c] sm:$0xf]
      %v435 = vld [vmem:[%s1 + $0x40] sm:$0xf]
      %v436 = vld [vmem:[%s1 + $0x44] sm:$0xf]
      %v437 = vld [vmem:[%s1 + $0x48] sm:$0xf]
      %v438 = vld [vmem:[%s1 + $0x4c] sm:$0xf]
      %v439 = vld [vmem:[%s1 + $0x50] sm:$0xf]
      %v440 = vld [vmem:[%s1 + $0x54] sm:$0xf]
      %v441 = vld [vmem:[%s1 + $0x58] sm:$0xf]
      %v442 = vld [vmem:[%s1 + $0x5c] sm:$0xf]
      %v443 = vld [vmem:[%s1 + $0x60] sm:$0xf]
      %v444 = vld [vmem:[%s1 + $0x64] sm:$0xf]
      %v445 = vld [vmem:[%s1 + $0x68] sm:$0xf]
      %v446 = vld [vmem:[%s1 + $0x6c] sm:$0xf]
      %v447 = vld [vmem:[%s1 + $0x70] sm:$0xf]
      %v448 = vld [vmem:[%s1 + $0x74] sm:$0xf]
      %v449 = vld [vmem:[%s1 + $0x78] sm:$0xf]
      %v450 = vld [vmem:[%s1 + $0x7c] sm:$0xf]
      %v451 = vld [vmem:[%s1 + $0x80] sm:$0xf]
      %v452 = vld [vmem:[%s1 + $0x84] sm:$0xf]
      %v453 = vld [vmem:[%s1 + $0x88] sm:$0xf]
      %v454 = vld [vmem:[%s1 + $0x8c] sm:$0xf]
      %v455 = vld [vmem:[%s1 + $0x90] sm:$0xf]
      %v456 = vld [vmem:[%s1 + $0x94] sm:$0xf]
      %v457 = vld [vmem:[%s1 + $0x98] sm:$0xf]
      %v458 = vld [vmem:[%s1 + $0x9c] sm:$0xf]
      %v459 = vld [vmem:[%s1 + $0xa0] sm:$0xf]
      %v460 = vld [vmem:[%s1 + $0xa4] sm:$0xf]
      %v461 = vld [vmem:[%s1 + $0xa8] sm:$0xf]
      %v462 = vld [vmem:[%s1 + $0xac] sm:$0xf]
      %v463 = vld [vmem:[%s1 + $0xb0] sm:$0xf]
      %v464 = vld [vmem:[%s1 + $0xb4] sm:$0xf]
      %v465 = vld [vmem:[%s1 + $0xb8] sm:$0xf]
      %v466 = vld [vmem:[%s1 + $0xbc] sm:$0xf]
      %v467 = vld [vmem:[%s1 + $0xc0] sm:$0xf]
      %v468 = vld [vmem:[%s1 + $0xc4] sm:$0xf]
      %v469 = vld [vmem:[%s1 + $0xc8] sm:$0xf]
      %v470 = vld [vmem:[%s1 + $0xcc] sm:$0xf]
      %v471 = vld [vmem:[%s1 + $0xd0] sm:$0xf]
      %v472 = vld [vmem:[%s1 + $0xd4] sm:$0xf]
      %v473 = vld [vmem:[%s1 + $0xd8] sm:$0xf]
      %v474 = vld [vmem:[%s1 + $0xdc] sm:$0xf]
      %v475 = vld [vmem:[%s1 + $0xe0] sm:$0xf]
      %v476 = vld [vmem:[%s1 + $0xe4] sm:$0xf]
      %v477 = vld [vmem:[%s1 + $0xe8] sm:$0xf]
      %v478 = vld [vmem:[%s1 + $0xec] sm:$0xf]
      %v479 = vld [vmem:[%s1 + $0xf0] sm:$0xf]
      %v480 = vld [vmem:[%s1 + $0xf4] sm:$0xf]
      %v481 = vld [vmem:[%s1 + $0xf8] sm:$0xf]
      %v482 = vld [vmem:[%s1 + $0xfc] sm:$0xf]
      %v483 = vld [vmem:[%s1 + $0x100] sm:$0xf]
      %v484 = vld [vmem:[%s1 + $0x104] sm:$0xf]
      %v485 = vld [vmem:[%s1 + $0x108] sm:$0xf]
      %v486 = vld [vmem:[%s1 + $0x10c] sm:$0xf]
      %v487 = vld [vmem:[%s1 + $0x110] sm:$0xf]
      %v488 = vld [vmem:[%s1 + $0x114] sm:$0xf]
      %v489 = vld [vmem:[%s1 + $0x118] sm:$0xf]
      %v490 = vld [vmem:[%s1 + $0x11c] sm:$0xf]
      %v491 = vld [vmem:[%s1 + $0x120] sm:$0xf]
      %v492 = vld [vmem:[%s1 + $0x124] sm:$0xf]
      %v493 = vld [vmem:[%s1 + $0x128] sm:$0xf]
      %v494 = vld [vmem:[%s1 + $0x12c] sm:$0xf]
      %v495 = vld [vmem:[%s1 + $0x130] sm:$0xf]
      %v496 = vld [vmem:[%s1 + $0x134] sm:$0xf]
      %v497 = vld [vmem:[%s1 + $0x138] sm:$0xf]
      %v498 = vld [vmem:[%s1 + $0x13c] sm:$0xf]
      %v499 = vld [vmem:[%s1 + $0x140] sm:$0xf]
      %v500 = vld [vmem:[%s1 + $0x144] sm:$0xf]
      %v501 = vld [vmem:[%s1 + $0x148] sm:$0xf]
      %v502 = vld [vmem:[%s1 + $0x14c] sm:$0xf]
      %v503 = vld [vmem:[%s1 + $0x150] sm:$0xf]
      %v504 = vld [vmem:[%s1 + $0x154] sm:$0xf]
      %v505 = vld [vmem:[%s1 + $0x158] sm:$0xf]
      %v506 = vld [vmem:[%s1 + $0x15c] sm:$0xf]
      %v507 = vld [vmem:[%s1 + $0x160] sm:$0xf]
      %v508 = vld [vmem:[%s1 + $0x164] sm:$0xf]
      %v509 = vld [vmem:[%s1 + $0x168] sm:$0xf]
      %v510 = vld [vmem:[%s1 + $0x16c] sm:$0xf]
      %v511 = vld [vmem:[%s1 + $0x170] sm:$0xf]
      %v512 = vld [vmem:[%s1 + $0x174] sm:$0xf]
      %v513 = vld [vmem:[%s1 + $0x178] sm:$0xf]
      %v514 = vld [vmem:[%s1 + $0x17c] sm:$0xf]
      %v515 = vld [vmem:[%s1 + $0x180] sm:$0xf]
      %v516 = vld [vmem:[%s1 + $0x184] sm:$0xf]
      %v517 = vld [vmem:[%s1 + $0x188] sm:$0xf]
      %v518 = vld [vmem:[%s1 + $0x18c] sm:$0xf]
      %v519 = vld [vmem:[%s1 + $0x190] sm:$0xf]
      %v520 = vld [vmem:[%s1 + $0x194] sm:$0xf]
      %v521 = vld [vmem:[%s1 + $0x198] sm:$0xf]
      %v522 = vld [vmem:[%s1 + $0x19c] sm:$0xf]
      %v523 = vld [vmem:[%s1 + $0x1a0] sm:$0xf]
      %v524 = vld [vmem:[%s1 + $0x1a4] sm:$0xf]
      %v525 = vld [vmem:[%s1 + $0x1a8] sm:$0xf]
      %v526 = vld [vmem:[%s1 + $0x1ac] sm:$0xf]
      %v527 = vld [vmem:[%s1 + $0x1b0] sm:$0xf]
      %v528 = vld [vmem:[%s1 + $0x1b4] sm:$0xf]
      %v529 = vld [vmem:[%s1 + $0x1b8] sm:$0xf]
      %v530 = vld [vmem:[%s1 + $0x1bc] sm:$0xf]
      %v531 = vld [vmem:[%s1 + $0x1c0] sm:$0xf]
      %v532 = vld [vmem:[%s1 + $0x1c4] sm:$0xf]
      %v533 = vld [vmem:[%s1 + $0x1c8] sm:$0xf]
      %v534 = vld [vmem:[%s1 + $0x1cc] sm:$0xf]
      %v535 = vld [vmem:[%s1 + $0x1d0] sm:$0xf]
      %v536 = vld [vmem:[%s1 + $0x1d4] sm:$0xf]
      %v537 = vld [vmem:[%s1 + $0x1d8] sm:$0xf]
      %v538 = vld [vmem:[%s1 + $0x1dc] sm:$0xf]
      %v539 = vld [vmem:[%s1 + $0x1e0] sm:$0xf]
      %v540 = vld [vmem:[%s1 + $0x1e4] sm:$0xf]
      %v541 = vld [vmem:[%s1 + $0x1e8] sm:$0xf]
      %v542 = vld [vmem:[%s1 + $0x1ec] sm:$0xf]
      %v543 = vld [vmem:[%s1 + $0x1f0] sm:$0xf]
      %v544 = vld [vmem:[%s1 + $0x1f4] sm:$0xf]
      %v545 = vld [vmem:[%s1 + $0x1f8] sm:$0xf]
      %v546 = vld [vmem:[%s1 + $0x1fc] sm:$0xf]
      %v547 = vld [vmem:[%s1 + $0x200] sm:$0xf]
      %v548 = vld [vmem:[%s1 + $0x204] sm:$0xf]
      %v549 = vld [vmem:[%s1 + $0x208] sm:$0xf]
      %v550 = vld [vmem:[%s1 + $0x20c] sm:$0xf]
      %v551 = vld [vmem:[%s1 + $0x210] sm:$0xf]
      %v552 = vld [vmem:[%s1 + $0x214] sm:$0xf]
      %v553 = vld [vmem:[%s1 + $0x218] sm:$0xf]
      %v554 = vld [vmem:[%s1 + $0x21c] sm:$0xf]
      %v555 = vld [vmem:[%s1 + $0x220] sm:$0xf]
      %v556 = vld [vmem:[%s1 + $0x224] sm:$0xf]
      %v557 = vld [vmem:[%s1 + $0x228] sm:$0xf]
      %v558 = vld [vmem:[%s1 + $0x22c] sm:$0xf]
      %v559 = vld [vmem:[%s1 + $0x230] sm:$0xf]
      %v560 = vld [vmem:[%s1 + $0x234] sm:$0xf]
      %v561 = vld [vmem:[%s1 + $0x238] sm:$0xf]
      %v562 = vld [vmem:[%s1 + $0x23c] sm:$0xf]
      %v563 = vld [vmem:[%s1 + $0x240] sm:$0xf]
      %v564 = vld [vmem:[%s1 + $0x244] sm:$0xf]
      %v565 = vld [vmem:[%s1 + $0x248] sm:$0xf]
      %v566 = vld [vmem:[%s1 + $0x24c] sm:$0xf]
      %v567 = vld [vmem:[%s1 + $0x250] sm:$0xf]
      %v568 = vld [vmem:[%s1 + $0x254] sm:$0xf]
      %v569 = vld [vmem:[%s1 + $0x258] sm:$0xf]
      %v570 = vld [vmem:[%s1 + $0x25c] sm:$0xf]
      %v571 = vld [vmem:[%s1 + $0x260] sm:$0xf]
      %v572 = vld [vmem:[%s1 + $0x264] sm:$0xf]
      %v573 = vld [vmem:[%s1 + $0x268] sm:$0xf]
      %v574 = vld [vmem:[%s1 + $0x26c] sm:$0xf]
      %v575 = vld [vmem:[%s1 + $0x270] sm:$0xf]
      %v576 = vld [vmem:[%s1 + $0x274] sm:$0xf]
      %v577 = vld [vmem:[%s1 + $0x278] sm:$0xf]
      %v578 = vld [vmem:[%s1 + $0x27c] sm:$0xf]
      %v579 = vld [vmem:[%s1 + $0x280] sm:$0xf]
      %v580 = vld [vmem:[%s1 + $0x284] sm:$0xf]
      %v581 = vld [vmem:[%s1 + $0x288] sm:$0xf]
      %v582 = vld [vmem:[%s1 + $0x28c] sm:$0xf]
      %v583 = vld [vmem:[%s1 + $0x290] sm:$0xf]
      %v584 = vld [vmem:[%s1 + $0x294] sm:$0xf]
      %v585 = vld [vmem:[%s1 + $0x298] sm:$0xf]
      %v586 = vld [vmem:[%s1 + $0x29c] sm:$0xf]
      %v587 = vld [vmem:[%s1 + $0x2a0] sm:$0xf]
      %v588 = vld [vmem:[%s1 + $0x2a4] sm:$0xf]
      %v589 = vld [vmem:[%s1 + $0x2a8] sm:$0xf]
      %v590 = vld [vmem:[%s1 + $0x2ac] sm:$0xf]
      %v591 = vld [vmem:[%s1 + $0x2b0] sm:$0xf]
      %v592 = vld [vmem:[%s1 + $0x2b4] sm:$0xf]
      %v593 = vld [vmem:[%s1 + $0x2b8] sm:$0xf]
      %v594 = vld [vmem:[%s1 + $0x2bc] sm:$0xf]
      %v595 = vld [vmem:[%s1 + $0x2c0] sm:$0xf]
      %v596 = vld [vmem:[%s1 + $0x2c4] sm:$0xf]
      %v597 = vld [vmem:[%s1 + $0x2c8] sm:$0xf]
      %v598 = vld [vmem:[%s1 + $0x2cc] sm:$0xf]
      %v599 = vld [vmem:[%s1 + $0x2d0] sm:$0xf]
      %v600 = vld [vmem:[%s1 + $0x2d4] sm:$0xf]
      %v601 = vld [vmem:[%s1 + $0x2d8] sm:$0xf]
      %v602 = vld [vmem:[%s1 + $0x2dc] sm:$0xf]
      %v603 = vld [vmem:[%s1 + $0x2e0] sm:$0xf]
      %v604 = vld [vmem:[%s1 + $0x2e4] sm:$0xf]
      %v605 = vld [vmem:[%s1 + $0x2e8] sm:$0xf]
      %v606 = vld [vmem:[%s1 + $0x2ec] sm:$0xf]
      %v607 = vld [vmem:[%s1 + $0x2f0] sm:$0xf]
      %v608 = vld [vmem:[%s1 + $0x2f4] sm:$0xf]
      %v609 = vld [vmem:[%s1 + $0x2f8] sm:$0xf]
      %v610 = vld [vmem:[%s1 + $0x2fc] sm:$0xf]
      %v611 = vld [vmem:[%s1 + $0x300] sm:$0xf]
      %v612 = vld [vmem:[%s1 + $0x304] sm:$0xf]
      %v613 = vld [vmem:[%s1 + $0x308] sm:$0xf]
      %v614 = vld [vmem:[%s1 + $0x30c] sm:$0xf]
      %v615 = vld [vmem:[%s1 + $0x310] sm:$0xf]
      %v616 = vld [vmem:[%s1 + $0x314] sm:$0xf]
      %v617 = vld [vmem:[%s1 + $0x318] sm:$0xf]
      %v618 = vld [vmem:[%s1 + $0x31c] sm:$0xf]
      %v619 = vld [vmem:[%s1 + $0x320] sm:$0xf]
      %v620 = vld [vmem:[%s1 + $0x324] sm:$0xf]
      %v621 = vld [vmem:[%s1 + $0x328] sm:$0xf]
      %v622 = vld [vmem:[%s1 + $0x32c] sm:$0xf]
      %v623 = vld [vmem:[%s1 + $0x330] sm:$0xf]
      %v624 = vld [vmem:[%s1 + $0x334] sm:$0xf]
      %v625 = vld [vmem:[%s1 + $0x338] sm:$0xf]
      %v626 = vld [vmem:[%s1 + $0x33c] sm:$0xf]
      %v627 = vld [vmem:[%s1 + $0x340] sm:$0xf]
      %v628 = vld [vmem:[%s1 + $0x344] sm:$0xf]
      %v629 = vld [vmem:[%s1 + $0x348] sm:$0xf]
      %v630 = vld [vmem:[%s1 + $0x34c] sm:$0xf]
      %v631 = vld [vmem:[%s1 + $0x350] sm:$0xf]
      %v632 = vld [vmem:[%s1 + $0x354] sm:$0xf]
      %v633 = vld [vmem:[%s1 + $0x358] sm:$0xf]
      %v634 = vld [vmem:[%s1 + $0x35c] sm:$0xf]
      %v635 = vld [vmem:[%s1 + $0x360] sm:$0xf]
      %v636 = vld [vmem:[%s1 + $0x364] sm:$0xf]
      %v637 = vld [vmem:[%s1 + $0x368] sm:$0xf]
      %v638 = vld [vmem:[%s1 + $0x36c] sm:$0xf]
      %v639 = vld [vmem:[%s1 + $0x370] sm:$0xf]
      %v640 = vld [vmem:[%s1 + $0x374] sm:$0xf]
      %v641 = vld [vmem:[%s1 + $0x378] sm:$0xf]
      %v642 = vld [vmem:[%s1 + $0x37c] sm:$0xf]
      %v643 = vld [vmem:[%s1 + $0x380] sm:$0xf]
      %v644 = vld [vmem:[%s1 + $0x384] sm:$0xf]
      %v645 = vld [vmem:[%s1 + $0x388] sm:$0xf]
      %v646 = vld [vmem:[%s1 + $0x38c] sm:$0xf]
      %v647 = vld [vmem:[%s1 + $0x390] sm:$0xf]
      %v648 = vld [vmem:[%s1 + $0x394] sm:$0xf]
      %v649 = vld [vmem:[%s1 + $0x398] sm:$0xf]
      %v650 = vld [vmem:[%s1 + $0x39c] sm:$0xf]
      %v651 = vld [vmem:[%s1 + $0x3a0] sm:$0xf]
      %v652 = vld [vmem:[%s1 + $0x3a4] sm:$0xf]
      %v653 = vld [vmem:[%s1 + $0x3a8] sm:$0xf]
      %v654 = vld [vmem:[%s1 + $0x3ac] sm:$0xf]
      %v655 = vld [vmem:[%s1 + $0x3b0] sm:$0xf]
      %v656 = vld [vmem:[%s1 + $0x3b4] sm:$0xf]
      %v657 = vld [vmem:[%s1 + $0x3b8] sm:$0xf]
      %v658 = vld [vmem:[%s1 + $0x3bc] sm:$0xf]
      %v659 = vld [vmem:[%s1 + $0x3c0] sm:$0xf]
      %v660 = vld [vmem:[%s1 + $0x3c4] sm:$0xf]
      %v661 = vld [vmem:[%s1 + $0x3c8] sm:$0xf]
      %v662 = vld [vmem:[%s1 + $0x3cc] sm:$0xf]
      %v663 = vld [vmem:[%s1 + $0x3d0] sm:$0xf]
      %v664 = vld [vmem:[%s1 + $0x3d4] sm:$0xf]
      %v665 = vld [vmem:[%s1 + $0x3d8] sm:$0xf]
      %v666 = vld [vmem:[%s1 + $0x3dc] sm:$0xf]
      %v667 = vld [vmem:[%s1 + $0x3e0] sm:$0xf]
      %v668 = vld [vmem:[%s1 + $0x3e4] sm:$0xf]
      %v669 = vld [vmem:[%s1 + $0x3e8] sm:$0xf]
      %v670 = vld [vmem:[%s1 + $0x3ec] sm:$0xf]
      %v671 = vld [vmem:[%s1 + $0x3f0] sm:$0xf]
      %v672 = vld [vmem:[%s1 + $0x3f4] sm:$0xf]
      %v673 = vld [vmem:[%s1 + $0x3f8] sm:$0xf]
      %v674 = vld [vmem:[%s1 + $0x3fc] sm:$0xf]
      %v675 = vld [vmem:[%s1 + $0x400] sm:$0xf]
      %v676 = vld [vmem:[%s1 + $0x404] sm:$0xf]
      %v677 = vld [vmem:[%s1 + $0x408] sm:$0xf]
      %v678 = vld [vmem:[%s1 + $0x40c] sm:$0xf]
      %v679 = vld [vmem:[%s1 + $0x410] sm:$0xf]
      %v680 = vld [vmem:[%s1 + $0x414] sm:$0xf]
      %v681 = vld [vmem:[%s1 + $0x418] sm:$0xf]
      %v682 = vld [vmem:[%s1 + $0x41c] sm:$0xf]
      %v683 = vld [vmem:[%s1 + $0x420] sm:$0xf]
      %v684 = vld [vmem:[%s1 + $0x424] sm:$0xf]
      %v685 = vld [vmem:[%s1 + $0x428] sm:$0xf]
      %v686 = vld [vmem:[%s1 + $0x42c] sm:$0xf]
      %v687 = vld [vmem:[%s1 + $0x430] sm:$0xf]
      %v688 = vld [vmem:[%s1 + $0x434] sm:$0xf]
      %v689 = vld [vmem:[%s1 + $0x438] sm:$0xf]
      %v690 = vld [vmem:[%s1 + $0x43c] sm:$0xf]
      %v691 = vld [vmem:[%s1 + $0x440] sm:$0xf]
      %v692 = vld [vmem:[%s1 + $0x444] sm:$0xf]
      %v693 = vld [vmem:[%s1 + $0x448] sm:$0xf]
      %v694 = vld [vmem:[%s1 + $0x44c] sm:$0xf]
      %v695 = vld [vmem:[%s1 + $0x450] sm:$0xf]
      %v696 = vld [vmem:[%s1 + $0x454] sm:$0xf]
      %v697 = vld [vmem:[%s1 + $0x458] sm:$0xf]
      %v698 = vld [vmem:[%s1 + $0x45c] sm:$0xf]
      %v699 = vld [vmem:[%s1 + $0x460] sm:$0xf]
      %v700 = vld [vmem:[%s1 + $0x464] sm:$0xf]
      %v701 = vld [vmem:[%s1 + $0x468] sm:$0xf]
      %v702 = vld [vmem:[%s1 + $0x46c] sm:$0xf]
      %v703 = vld [vmem:[%s1 + $0x470] sm:$0xf]
      %v704 = vld [vmem:[%s1 + $0x474] sm:$0xf]
      %v705 = vld [vmem:[%s1 + $0x478] sm:$0xf]
      %v706 = vld [vmem:[%s1 + $0x47c] sm:$0xf]
      %v707 = vld [vmem:[%s1 + $0x480] sm:$0xf]
      %v708 = vld [vmem:[%s1 + $0x484] sm:$0xf]
      %v709 = vld [vmem:[%s1 + $0x488] sm:$0xf]
      %v710 = vld [vmem:[%s1 + $0x48c] sm:$0xf]
      %v711 = vld [vmem:[%s1 + $0x490] sm:$0xf]
      %v712 = vld [vmem:[%s1 + $0x494] sm:$0xf]
      %v713 = vld [vmem:[%s1 + $0x498] sm:$0xf]
      %v714 = vld [vmem:[%s1 + $0x49c] sm:$0xf]
      %v715 = vld [vmem:[%s1 + $0x4a0] sm:$0xf]
      %v716 = vld [vmem:[%s1 + $0x4a4] sm:$0xf]
      %v717 = vld [vmem:[%s1 + $0x4a8] sm:$0xf]
      %v718 = vld [vmem:[%s1 + $0x4ac] sm:$0xf]
      %v719 = vld [vmem:[%s1 + $0x4b0] sm:$0xf]
      %v720 = vld [vmem:[%s1 + $0x4b4] sm:$0xf]
      %v721 = vld [vmem:[%s1 + $0x4b8] sm:$0xf]
      %v722 = vld [vmem:[%s1 + $0x4bc] sm:$0xf]
      %v723 = vld [vmem:[%s1 + $0x4c0] sm:$0xf]
      %v724 = vld [vmem:[%s1 + $0x4c4] sm:$0xf]
      %v725 = vld [vmem:[%s1 + $0x4c8] sm:$0xf]
      %v726 = vld [vmem:[%s1 + $0x4cc] sm:$0xf]
      %v727 = vld [vmem:[%s1 + $0x4d0] sm:$0xf]
      %v728 = vld [vmem:[%s1 + $0x4d4] sm:$0xf]
      %v729 = vld [vmem:[%s1 + $0x4d8] sm:$0xf]
      %v730 = vld [vmem:[%s1 + $0x4dc] sm:$0xf]
      %v731 = vld [vmem:[%s1 + $0x4e0] sm:$0xf]
      %v732 = vld [vmem:[%s1 + $0x4e4] sm:$0xf]
      %v733 = vld [vmem:[%s1 + $0x4e8] sm:$0xf]
      %v734 = vld [vmem:[%s1 + $0x4ec] sm:$0xf]
      %v735 = vld [vmem:[%s1 + $0x4f0] sm:$0xf]
      %v736 = vld [vmem:[%s1 + $0x4f4] sm:$0xf]
      %v737 = vld [vmem:[%s1 + $0x4f8] sm:$0xf]
      %v738 = vld [vmem:[%s1 + $0x4fc] sm:$0xf]
      %v739 = vld [vmem:[%s1 + $0x500] sm:$0xf]
      %v740 = vld [vmem:[%s1 + $0x504] sm:$0xf]
      %v741 = vld [vmem:[%s1 + $0x508] sm:$0xf]
      %v742 = vld [vmem:[%s1 + $0x50c] sm:$0xf]
      %v743 = vld [vmem:[%s1 + $0x510] sm:$0xf]
      %v744 = vld [vmem:[%s1 + $0x514] sm:$0xf]
      %v745 = vld [vmem:[%s1 + $0x518] sm:$0xf]
      %v746 = vld [vmem:[%s1 + $0x51c] sm:$0xf]
      %v747 = vld [vmem:[%s1 + $0x520] sm:$0xf]
      %v748 = vld [vmem:[%s1 + $0x524] sm:$0xf]
      %v749 = vld [vmem:[%s1 + $0x528] sm:$0xf]
      %v750 = vld [vmem:[%s1 + $0x52c] sm:$0xf]
      %v751 = vld [vmem:[%s1 + $0x530] sm:$0xf]
      %v752 = vld [vmem:[%s1 + $0x534] sm:$0xf]
      %v753 = vld [vmem:[%s1 + $0x538] sm:$0xf]
      %v754 = vld [vmem:[%s1 + $0x53c] sm:$0xf]
      %v755 = vld [vmem:[%s1 + $0x540] sm:$0xf]
      %v756 = vld [vmem:[%s1 + $0x544] sm:$0xf]
      %v757 = vld [vmem:[%s1 + $0x548] sm:$0xf]
      %v758 = vld [vmem:[%s1 + $0x54c] sm:$0xf]
      %v759 = vld [vmem:[%s1 + $0x550] sm:$0xf]
      %v760 = vld [vmem:[%s1 + $0x554] sm:$0xf]
      %v761 = vld [vmem:[%s1 + $0x558] sm:$0xf]
      %v762 = vld [vmem:[%s1 + $0x55c] sm:$0xf]
      %v763 = vld [vmem:[%s1 + $0x560] sm:$0xf]
      %v764 = vld [vmem:[%s1 + $0x564] sm:$0xf]
      %v765 = vld [vmem:[%s1 + $0x568] sm:$0xf]
      %v766 = vld [vmem:[%s1 + $0x56c] sm:$0xf]
      %v767 = vld [vmem:[%s1 + $0x570] sm:$0xf]
      %v768 = vld [vmem:[%s1 + $0x574] sm:$0xf]
      %v769 = vld [vmem:[%s1 + $0x578] sm:$0xf]
      %v770 = vld [vmem:[%s1 + $0x57c] sm:$0xf]
      %v771 = vld [vmem:[%s1 + $0x580] sm:$0xf]
      %v772 = vld [vmem:[%s1 + $0x584] sm:$0xf]
      %v773 = vld [vmem:[%s1 + $0x588] sm:$0xf]
      %v774 = vld [vmem:[%s1 + $0x58c] sm:$0xf]
      %v775 = vld [vmem:[%s1 + $0x590] sm:$0xf]
      %v776 = vld [vmem:[%s1 + $0x594] sm:$0xf]
      %v777 = vld [vmem:[%s1 + $0x598] sm:$0xf]
      %v778 = vld [vmem:[%s1 + $0x59c] sm:$0xf]
      %v779 = vld [vmem:[%s1 + $0x5a0] sm:$0xf]
      %v780 = vld [vmem:[%s1 + $0x5a4] sm:$0xf]
      %v781 = vld [vmem:[%s1 + $0x5a8] sm:$0xf]
      %v782 = vld [vmem:[%s1 + $0x5ac] sm:$0xf]
      %v783 = vld [vmem:[%s1 + $0x5b0] sm:$0xf]
      %v784 = vld [vmem:[%s1 + $0x5b4] sm:$0xf]
      %v785 = vld [vmem:[%s1 + $0x5b8] sm:$0xf]
      %v786 = vld [vmem:[%s1 + $0x5bc] sm:$0xf]
      %v787 = vld [vmem:[%s1 + $0x5c0] sm:$0xf]
      %v788 = vld [vmem:[%s1 + $0x5c4] sm:$0xf]
      %v789 = vld [vmem:[%s1 + $0x5c8] sm:$0xf]
      %v790 = vld [vmem:[%s1 + $0x5cc] sm:$0xf]
      %v791 = vld [vmem:[%s1 + $0x5d0] sm:$0xf]
      %v792 = vld [vmem:[%s1 + $0x5d4] sm:$0xf]
      %v793 = vld [vmem:[%s1 + $0x5d8] sm:$0xf]
      %v794 = vld [vmem:[%s1 + $0x5dc] sm:$0xf]
      %v795 = vld [vmem:[%s1 + $0x5e0] sm:$0xf]
      %v796 = vld [vmem:[%s1 + $0x5e4] sm:$0xf]
      %v797 = vld [vmem:[%s1 + $0x5e8] sm:$0xf]
      %v798 = vld [vmem:[%s1 + $0x5ec] sm:$0xf]
      %v799 = vld [vmem:[%s1 + $0x5f0] sm:$0xf]
      %v800 = vld [vmem:[%s1 + $0x5f4] sm:$0xf]
      %v801 = vld [vmem:[%s1 + $0x5f8] sm:$0xf]
      %v802 = vld [vmem:[%s1 + $0x5fc] sm:$0xf]
      %v803 = vld [vmem:[%s1 + $0x600] sm:$0xf]
      %v804 = vld [vmem:[%s1 + $0x604] sm:$0xf]
      %v805 = vld [vmem:[%s1 + $0x608] sm:$0xf]
      %v806 = vld [vmem:[%s1 + $0x60c] sm:$0xf]
      %v807 = vld [vmem:[%s1 + $0x610] sm:$0xf]
      %v808 = vld [vmem:[%s1 + $0x614] sm:$0xf]
      %v809 = vld [vmem:[%s1 + $0x618] sm:$0xf]
      %v810 = vld [vmem:[%s1 + $0x61c] sm:$0xf]
      %v811 = vld [vmem:[%s1 + $0x620] sm:$0xf]
      %v812 = vld [vmem:[%s1 + $0x624] sm:$0xf]
      %v813 = vld [vmem:[%s1 + $0x628] sm:$0xf]
      %v814 = vld [vmem:[%s1 + $0x62c] sm:$0xf]
      %v815 = vld [vmem:[%s1 + $0x630] sm:$0xf]
      %v816 = vld [vmem:[%s1 + $0x634] sm:$0xf]
      %v817 = vld [vmem:[%s1 + $0x638] sm:$0xf]
      %v818 = vld [vmem:[%s1 + $0x63c] sm:$0xf]
      %v819 = vld [vmem:[%s1 + $0x640] sm:$0xf]
      %v820 = vld [vmem:[%s1 + $0x644] sm:$0xf]
      %v821 = vld [vmem:[%s1 + $0x648] sm:$0xf]
      %v822 = vld [vmem:[%s1 + $0x64c] sm:$0xf]
      %v823 = vld [vmem:[%s1 + $0x650] sm:$0xf]
      %v824 = vld [vmem:[%s1 + $0x654] sm:$0xf]
      %v825 = vld [vmem:[%s1 + $0x658] sm:$0xf]
      %v826 = vld [vmem:[%s1 + $0x65c] sm:$0xf]
      %v827 = vld [vmem:[%s1 + $0x660] sm:$0xf]
      %v828 = vld [vmem:[%s1 + $0x664] sm:$0xf]
      %v829 = vld [vmem:[%s1 + $0x668] sm:$0xf]
      %v830 = vld [vmem:[%s1 + $0x66c] sm:$0xf]
      %v831 = vld [vmem:[%s1 + $0x670] sm:$0xf]
      %v832 = vld [vmem:[%s1 + $0x674] sm:$0xf]
      %v833 = vld [vmem:[%s1 + $0x678] sm:$0xf]
      %v834 = vld [vmem:[%s1 + $0x67c] sm:$0xf]
      %v835 = vld [vmem:[%s1 + $0x680] sm:$0xf]
      %v836 = vld [vmem:[%s1 + $0x684] sm:$0xf]
      %v837 = vld [vmem:[%s1 + $0x688] sm:$0xf]
      %v838 = vld [vmem:[%s1 + $0x68c] sm:$0xf]
      %v839 = vld [vmem:[%s1 + $0x690] sm:$0xf]
      %v840 = vld [vmem:[%s1 + $0x694] sm:$0xf]
      %v841 = vld [vmem:[%s1 + $0x698] sm:$0xf]
      %v842 = vld [vmem:[%s1 + $0x69c] sm:$0xf]
      %v843 = vld [vmem:[%s1 + $0x6a0] sm:$0xf]
      %v844 = vld [vmem:[%s1 + $0x6a4] sm:$0xf]
      %v845 = vld [vmem:[%s1 + $0x6a8] sm:$0xf]
      %v846 = vld [vmem:[%s1 + $0x6ac] sm:$0xf]
      %v847 = vld [vmem:[%s1 + $0x6b0] sm:$0xf]
      %v848 = vld [vmem:[%s1 + $0x6b4] sm:$0xf]
      %v849 = vld [vmem:[%s1 + $0x6b8] sm:$0xf]
      %v850 = vld [vmem:[%s1 + $0x6bc] sm:$0xf]
      %v1019 = vunpack.c.l.b16 %v251
      %v1020 = vunpack.c.h.b16 %v251
      %v1021 = vunpack.c.l.b16 %v252
      %v1022 = vunpack.c.h.b16 %v252
      %v1023 = vunpack.c.l.b16 %v253
      %v1024 = vunpack.c.h.b16 %v253
      %v1025 = vunpack.c.l.b16 %v254
      %v1026 = vunpack.c.h.b16 %v254
      %v1027 = vunpack.c.l.b16 %v255
      %v1028 = vunpack.c.h.b16 %v255
      %v1029 = vunpack.c.l.b16 %v256
      %v1030 = vunpack.c.h.b16 %v256
      %v1031 = vunpack.c.l.b16 %v257
      %v1032 = vunpack.c.h.b16 %v257
      %v1033 = vunpack.c.l.b16 %v258
      %v1034 = vunpack.c.h.b16 %v258
      %v1035 = vunpack.c.l.b16 %v259
      %v1036 = vunpack.c.h.b16 %v259
      %v1037 = vunpack.c.l.b16 %v260
      %v1038 = vunpack.c.h.b16 %v260
      %v1039 = vunpack.c.l.b16 %v261
      %v1040 = vunpack.c.h.b16 %v261
      %v1041 = vunpack.c.l.b16 %v262
      %v1042 = vunpack.c.h.b16 %v262
      %v1043 = vunpack.c.l.b16 %v263
      %v1044 = vunpack.c.h.b16 %v263
      %v1045 = vunpack.c.l.b16 %v264
      %v1046 = vunpack.c.l.b16 %v265
      %v1047 = vunpack.c.h.b16 %v265
      %v1048 = vunpack.c.l.b16 %v266
      %v1049 = vunpack.c.h.b16 %v266
      %v1050 = vunpack.c.l.b16 %v267
      %v1051 = vunpack.c.h.b16 %v267
      %v1052 = vunpack.c.l.b16 %v268
      %v1053 = vunpack.c.h.b16 %v268
      %v1054 = vunpack.c.l.b16 %v269
      %v1055 = vunpack.c.h.b16 %v269
      %v1056 = vunpack.c.l.b16 %v270
      %v1057 = vunpack.c.h.b16 %v270
      %v1058 = vunpack.c.l.b16 %v271
      %v1059 = vunpack.c.h.b16 %v271
      %v1060 = vunpack.c.l.b16 %v272
      %v1061 = vunpack.c.h.b16 %v272
      %v1062 = vunpack.c.l.b16 %v273
      %v1063 = vunpack.c.h.b16 %v273
      %v1064 = vunpack.c.l.b16 %v274
      %v1065 = vunpack.c.h.b16 %v274
      %v1066 = vunpack.c.l.b16 %v275
      %v1067 = vunpack.c.h.b16 %v275
      %v1068 = vunpack.c.l.b16 %v276
      %v1069 = vunpack.c.h.b16 %v276
      %v1070 = vunpack.c.l.b16 %v277
      %v1071 = vunpack.c.h.b16 %v277
      %v1072 = vunpack.c.l.b16 %v278
      %v1073 = vunpack.c.l.b16 %v279
      %v1074 = vunpack.c.h.b16 %v279
      %v1075 = vunpack.c.l.b16 %v280
      %v1076 = vunpack.c.h.b16 %v280
      %v1077 = vunpack.c.l.b16 %v281
      %v1078 = vunpack.c.h.b16 %v281
      %v1079 = vunpack.c.l.b16 %v282
      %v1080 = vunpack.c.h.b16 %v282
      %v1081 = vunpack.c.l.b16 %v283
      %v1082 = vunpack.c.h.b16 %v283
      %v1083 = vunpack.c.l.b16 %v284
      %v1084 = vunpack.c.h.b16 %v284
      %v1085 = vunpack.c.l.b16 %v285
      %v1086 = vunpack.c.h.b16 %v285
      %v1087 = vunpack.c.l.b16 %v286
      %v1088 = vunpack.c.h.b16 %v286
      %v1089 = vunpack.c.l.b16 %v287
      %v1090 = vunpack.c.h.b16 %v287
      %v1091 = vunpack.c.l.b16 %v288
      %v1092 = vunpack.c.h.b16 %v288
      %v1093 = vunpack.c.l.b16 %v289
      %v1094 = vunpack.c.h.b16 %v289
      %v1095 = vunpack.c.l.b16 %v290
      %v1096 = vunpack.c.h.b16 %v290
      %v1097 = vunpack.c.l.b16 %v291
      %v1098 = vunpack.c.h.b16 %v291
      %v1099 = vunpack.c.l.b16 %v292
      %v1100 = vunpack.c.l.b16 %v293
      %v1101 = vunpack.c.h.b16 %v293
      %v1102 = vunpack.c.l.b16 %v294
      %v1103 = vunpack.c.h.b16 %v294
      %v1104 = vunpack.c.l.b16 %v295
      %v1105 = vunpack.c.h.b16 %v295
      %v1106 = vunpack.c.l.b16 %v296
      %v1107 = vunpack.c.h.b16 %v296
      %v1108 = vunpack.c.l.b16 %v297
      %v1109 = vunpack.c.h.b16 %v297
      %v1110 = vunpack.c.l.b16 %v298
      %v1111 = vunpack.c.h.b16 %v298
      %v1112 = vunpack.c.l.b16 %v299
      %v1113 = vunpack.c.h.b16 %v299
      %v1114 = vunpack.c.l.b16 %v300
      %v1115 = vunpack.c.h.b16 %v300
      %v1116 = vunpack.c.l.b16 %v301
      %v1117 = vunpack.c.h.b16 %v301
      %v1118 = vunpack.c.l.b16 %v302
      %v1119 = vunpack.c.h.b16 %v302
      %v1120 = vunpack.c.l.b16 %v303
      %v1121 = vunpack.c.h.b16 %v303
      %v1122 = vunpack.c.l.b16 %v304
      %v1123 = vunpack.c.h.b16 %v304
      %v1124 = vunpack.c.l.b16 %v305
      %v1125 = vunpack.c.h.b16 %v305
      %v1126 = vunpack.c.l.b16 %v306
      %v1127 = vunpack.c.l.b16 %v307
      %v1128 = vunpack.c.h.b16 %v307
      %v1129 = vunpack.c.l.b16 %v308
      %v1130 = vunpack.c.h.b16 %v308
      %v1131 = vunpack.c.l.b16 %v309
      %v1132 = vunpack.c.h.b16 %v309
      %v1133 = vunpack.c.l.b16 %v310
      %v1134 = vunpack.c.h.b16 %v310
      %v1135 = vunpack.c.l.b16 %v311
      %v1136 = vunpack.c.h.b16 %v311
      %v1137 = vunpack.c.l.b16 %v312
      %v1138 = vunpack.c.h.b16 %v312
      %v1139 = vunpack.c.l.b16 %v313
      %v1140 = vunpack.c.h.b16 %v313
      %v1141 = vunpack.c.l.b16 %v314
      %v1142 = vunpack.c.h.b16 %v314
      %v1143 = vunpack.c.l.b16 %v315
      %v1144 = vunpack.c.h.b16 %v315
      %v1145 = vunpack.c.l.b16 %v316
      %v1146 = vunpack.c.h.b16 %v316
      %v1147 = vunpack.c.l.b16 %v317
      %v1148 = vunpack.c.h.b16 %v317
      %v1149 = vunpack.c.l.b16 %v318
      %v1150 = vunpack.c.h.b16 %v318
      %v1151 = vunpack.c.l.b16 %v319
      %v1152 = vunpack.c.h.b16 %v319
      %v1153 = vunpack.c.l.b16 %v320
      %v1154 = vunpack.c.l.b16 %v321
      %v1155 = vunpack.c.h.b16 %v321
      %v1156 = vunpack.c.l.b16 %v322
      %v1157 = vunpack.c.h.b16 %v322
      %v1158 = vunpack.c.l.b16 %v323
      %v1159 = vunpack.c.h.b16 %v323
      %v1160 = vunpack.c.l.b16 %v324
      %v1161 = vunpack.c.h.b16 %v324
      %v1162 = vunpack.c.l.b16 %v325
      %v1163 = vunpack.c.h.b16 %v325
      %v1164 = vunpack.c.l.b16 %v326
      %v1165 = vunpack.c.h.b16 %v326
      %v1166 = vunpack.c.l.b16 %v327
      %v1167 = vunpack.c.h.b16 %v327
      %v1168 = vunpack.c.l.b16 %v328
      %v1169 = vunpack.c.h.b16 %v328
      %v1170 = vunpack.c.l.b16 %v329
      %v1171 = vunpack.c.h.b16 %v329
      %v1172 = vunpack.c.l.b16 %v330
      %v1173 = vunpack.c.h.b16 %v330
      %v1174 = vunpack.c.l.b16 %v331
      %v1175 = vunpack.c.h.b16 %v331
      %v1176 = vunpack.c.l.b16 %v332
      %v1177 = vunpack.c.h.b16 %v332
      %v1178 = vunpack.c.l.b16 %v333
      %v1179 = vunpack.c.h.b16 %v333
      %v1180 = vunpack.c.l.b16 %v334
      %v1181 = vunpack.c.l.b16 %v335
      %v1182 = vunpack.c.h.b16 %v335
      %v1183 = vunpack.c.l.b16 %v336
      %v1184 = vunpack.c.h.b16 %v336
      %v1185 = vunpack.c.l.b16 %v337
      %v1186 = vunpack.c.h.b16 %v337
      %v1187 = vunpack.c.l.b16 %v338
      %v1188 = vunpack.c.h.b16 %v338
      %v1189 = vunpack.c.l.b16 %v339
      %v1190 = vunpack.c.h.b16 %v339
      %v1191 = vunpack.c.l.b16 %v340
      %v1192 = vunpack.c.h.b16 %v340
      %v1193 = vunpack.c.l.b16 %v341
      %v1194 = vunpack.c.h.b16 %v341
      %v1195 = vunpack.c.l.b16 %v342
      %v1196 = vunpack.c.h.b16 %v342
      %v1197 = vunpack.c.l.b16 %v343
      %v1198 = vunpack.c.h.b16 %v343
      %v1199 = vunpack.c.l.b16 %v344
      %v1200 = vunpack.c.h.b16 %v344
      %v1201 = vunpack.c.l.b16 %v345
      %v1202 = vunpack.c.h.b16 %v345
      %v1203 = vunpack.c.l.b16 %v346
      %v1204 = vunpack.c.h.b16 %v346
      %v1205 = vunpack.c.l.b16 %v347
      %v1206 = vunpack.c.h.b16 %v347
      %v1207 = vunpack.c.l.b16 %v348
      %v1208 = vunpack.c.l.b16 %v349
      %v1209 = vunpack.c.h.b16 %v349
      %v1210 = vunpack.c.l.b16 %v350
      %v1211 = vunpack.c.h.b16 %v350
      %v1212 = vunpack.c.l.b16 %v351
      %v1213 = vunpack.c.h.b16 %v351
      %v1214 = vunpack.c.l.b16 %v352
      %v1215 = vunpack.c.h.b16 %v352
      %v1216 = vunpack.c.l.b16 %v353
      %v1217 = vunpack.c.h.b16 %v353
      %v1218 = vunpack.c.l.b16 %v354
      %v1219 = vunpack.c.h.b16 %v354
      %v1220 = vunpack.c.l.b16 %v355
      %v1221 = vunpack.c.h.b16 %v355
      %v1222 = vunpack.c.l.b16 %v356
      %v1223 = vunpack.c.h.b16 %v356
      %v1224 = vunpack.c.l.b16 %v357
      %v1225 = vunpack.c.h.b16 %v357
      %v1226 = vunpack.c.l.b16 %v358
      %v1227 = vunpack.c.h.b16 %v358
      %v1228 = vunpack.c.l.b16 %v359
      %v1229 = vunpack.c.h.b16 %v359
      %v1230 = vunpack.c.l.b16 %v360
      %v1231 = vunpack.c.h.b16 %v360
      %v1232 = vunpack.c.l.b16 %v361
      %v1233 = vunpack.c.h.b16 %v361
      %v1234 = vunpack.c.l.b16 %v362
      %v1235 = vunpack.c.l.b16 %v363
      %v1236 = vunpack.c.h.b16 %v363
      %v1237 = vunpack.c.l.b16 %v364
      %v1238 = vunpack.c.h.b16 %v364
      %v1239 = vunpack.c.l.b16 %v365
      %v1240 = vunpack.c.h.b16 %v365
      %v1241 = vunpack.c.l.b16 %v366
      %v1242 = vunpack.c.h.b16 %v366
      %v1243 = vunpack.c.l.b16 %v367
      %v1244 = vunpack.c.h.b16 %v367
      %v1245 = vunpack.c.l.b16 %v368
      %v1246 = vunpack.c.h.b16 %v368
      %v1247 = vunpack.c.l.b16 %v369
      %v1248 = vunpack.c.h.b16 %v369
      %v1249 = vunpack.c.l.b16 %v370
      %v1250 = vunpack.c.h.b16 %v370
      %v1251 = vunpack.c.l.b16 %v371
      %v1252 = vunpack.c.h.b16 %v371
      %v1253 = vunpack.c.l.b16 %v372
      %v1254 = vunpack.c.h.b16 %v372
      %v1255 = vunpack.c.l.b16 %v373
      %v1256 = vunpack.c.h.b16 %v373
      %v1257 = vunpack.c.l.b16 %v374
      %v1258 = vunpack.c.h.b16 %v374
      %v1259 = vunpack.c.l.b16 %v375
      %v1260 = vunpack.c.h.b16 %v375
      %v1261 = vunpack.c.l.b16 %v376
      %v1262 = vunpack.c.l.b16 %v377
      %v1263 = vunpack.c.h.b16 %v377
      %v1264 = vunpack.c.l.b16 %v378
      %v1265 = vunpack.c.h.b16 %v378
      %v1266 = vunpack.c.l.b16 %v379
      %v1267 = vunpack.c.h.b16 %v379
      %v1268 = vunpack.c.l.b16 %v380
      %v1269 = vunpack.c.h.b16 %v380
      %v1270 = vunpack.c.l.b16 %v381
      %v1271 = vunpack.c.h.b16 %v381
      %v1272 = vunpack.c.l.b16 %v382
      %v1273 = vunpack.c.h.b16 %v382
      %v1274 = vunpack.c.l.b16 %v383
      %v1275 = vunpack.c.h.b16 %v383
      %v1276 = vunpack.c.l.b16 %v384
      %v1277 = vunpack.c.h.b16 %v384
      %v1278 = vunpack.c.l.b16 %v385
      %v1279 = vunpack.c.h.b16 %v385
      %v1280 = vunpack.c.l.b16 %v386
      %v1281 = vunpack.c.h.b16 %v386
      %v1282 = vunpack.c.l.b16 %v387
      %v1283 = vunpack.c.h.b16 %v387
      %v1284 = vunpack.c.l.b16 %v388
      %v1285 = vunpack.c.h.b16 %v388
      %v1286 = vunpack.c.l.b16 %v389
      %v1287 = vunpack.c.h.b16 %v389
      %v1288 = vunpack.c.l.b16 %v390
      %v1289 = vunpack.c.l.b16 %v391
      %v1290 = vunpack.c.h.b16 %v391
      %v1291 = vunpack.c.l.b16 %v392
      %v1292 = vunpack.c.h.b16 %v392
      %v1293 = vunpack.c.l.b16 %v393
      %v1294 = vunpack.c.h.b16 %v393
      %v1295 = vunpack.c.l.b16 %v394
      %v1296 = vunpack.c.h.b16 %v394
      %v1297 = vunpack.c.l.b16 %v395
      %v1298 = vunpack.c.h.b16 %v395
      %v1299 = vunpack.c.l.b16 %v396
      %v1300 = vunpack.c.h.b16 %v396
      %v1301 = vunpack.c.l.b16 %v397
      %v1302 = vunpack.c.h.b16 %v397
      %v1303 = vunpack.c.l.b16 %v398
      %v1304 = vunpack.c.h.b16 %v398
      %v1305 = vunpack.c.l.b16 %v399
      %v1306 = vunpack.c.h.b16 %v399
      %v1307 = vunpack.c.l.b16 %v400
      %v1308 = vunpack.c.h.b16 %v400
      %v1309 = vunpack.c.l.b16 %v401
      %v1310 = vunpack.c.h.b16 %v401
      %v1311 = vunpack.c.l.b16 %v402
      %v1312 = vunpack.c.h.b16 %v402
      %v1313 = vunpack.c.l.b16 %v403
      %v1314 = vunpack.c.h.b16 %v403
      %v1315 = vunpack.c.l.b16 %v404
      %v1316 = vunpack.c.l.b16 %v405
      %v1317 = vunpack.c.h.b16 %v405
      %v1318 = vunpack.c.l.b16 %v406
      %v1319 = vunpack.c.h.b16 %v406
      %v1320 = vunpack.c.l.b16 %v407
      %v1321 = vunpack.c.h.b16 %v407
      %v1322 = vunpack.c.l.b16 %v408
      %v1323 = vunpack.c.h.b16 %v408
      %v1324 = vunpack.c.l.b16 %v409
      %v1325 = vunpack.c.h.b16 %v409
      %v1326 = vunpack.c.l.b16 %v410
      %v1327 = vunpack.c.h.b16 %v410
      %v1328 = vunpack.c.l.b16 %v411
      %v1329 = vunpack.c.h.b16 %v411
      %v1330 = vunpack.c.l.b16 %v412
      %v1331 = vunpack.c.h.b16 %v412
      %v1332 = vunpack.c.l.b16 %v413
      %v1333 = vunpack.c.h.b16 %v413
      %v1334 = vunpack.c.l.b16 %v414
      %v1335 = vunpack.c.h.b16 %v414
      %v1336 = vunpack.c.l.b16 %v415
      %v1337 = vunpack.c.h.b16 %v415
      %v1338 = vunpack.c.l.b16 %v416
      %v1339 = vunpack.c.h.b16 %v416
      %v1340 = vunpack.c.l.b16 %v417
      %v1341 = vunpack.c.h.b16 %v417
      %v1342 = vunpack.c.l.b16 %v418
      %v1343 = vpack.c.b16 %v1046, %v1019
      %v1344 = vpack.c.b16 %v1047, %v1020
      %v1345 = vpack.c.b16 %v1048, %v1021
      %v1346 = vpack.c.b16 %v1049, %v1022
      %v1347 = vpack.c.b16 %v1050, %v1023
      %v1348 = vpack.c.b16 %v1051, %v1024
      %v1349 = vpack.c.b16 %v1052, %v1025
      %v1350 = vpack.c.b16 %v1053, %v1026
      %v1351 = vpack.c.b16 %v1054, %v1027
      %v1352 = vpack.c.b16 %v1055, %v1028
      %v1353 = vpack.c.b16 %v1056, %v1029
      %v1354 = vpack.c.b16 %v1057, %v1030
      %v1355 = vpack.c.b16 %v1058, %v1031
      %v1356 = vpack.c.b16 %v1059, %v1032
      %v1357 = vpack.c.b16 %v1060, %v1033
      %v1358 = vpack.c.b16 %v1061, %v1034
      %v1359 = vpack.c.b16 %v1062, %v1035
      %v1360 = vpack.c.b16 %v1063, %v1036
      %v1361 = vpack.c.b16 %v1064, %v1037
      %v1362 = vpack.c.b16 %v1065, %v1038
      %v1363 = vpack.c.b16 %v1066, %v1039
      %v1364 = vpack.c.b16 %v1067, %v1040
      %v1365 = vpack.c.b16 %v1068, %v1041
      %v1366 = vpack.c.b16 %v1069, %v1042
      %v1367 = vpack.c.b16 %v1070, %v1043
      %v1368 = vpack.c.b16 %v1071, %v1044
      %v1369 = vpack.c.b16 %v1072, %v1045
      %v1370 = vpack.c.b16 %v1100, %v1073
      %v1371 = vpack.c.b16 %v1101, %v1074
      %v1372 = vpack.c.b16 %v1102, %v1075
      %v1373 = vpack.c.b16 %v1103, %v1076
      %v1374 = vpack.c.b16 %v1104, %v1077
      %v1375 = vpack.c.b16 %v1105, %v1078
      %v1376 = vpack.c.b16 %v1106, %v1079
      %v1377 = vpack.c.b16 %v1107, %v1080
      %v1378 = vpack.c.b16 %v1108, %v1081
      %v1379 = vpack.c.b16 %v1109, %v1082
      %v1380 = vpack.c.b16 %v1110, %v1083
      %v1381 = vpack.c.b16 %v1111, %v1084
      %v1382 = vpack.c.b16 %v1112, %v1085
      %v1383 = vpack.c.b16 %v1113, %v1086
      %v1384 = vpack.c.b16 %v1114, %v1087
      %v1385 = vpack.c.b16 %v1115, %v1088
      %v1386 = vpack.c.b16 %v1116, %v1089
      %v1387 = vpack.c.b16 %v1117, %v1090
      %v1388 = vpack.c.b16 %v1118, %v1091
      %v1389 = vpack.c.b16 %v1119, %v1092
      %v1390 = vpack.c.b16 %v1120, %v1093
      %v1391 = vpack.c.b16 %v1121, %v1094
      %v1392 = vpack.c.b16 %v1122, %v1095
      %v1393 = vpack.c.b16 %v1123, %v1096
      %v1394 = vpack.c.b16 %v1124, %v1097
      %v1395 = vpack.c.b16 %v1125, %v1098
      %v1396 = vpack.c.b16 %v1126, %v1099
      %v1397 = vpack.c.b16 %v1154, %v1127
      %v1398 = vpack.c.b16 %v1155, %v1128
      %v1399 = vpack.c.b16 %v1156, %v1129
      %v1400 = vpack.c.b16 %v1157, %v1130
      %v1401 = vpack.c.b16 %v1158, %v1131
      %v1402 = vpack.c.b16 %v1159, %v1132
      %v1403 = vpack.c.b16 %v1160, %v1133
      %v1404 = vpack.c.b16 %v1161, %v1134
      %v1405 = vpack.c.b16 %v1162, %v1135
      %v1406 = vpack.c.b16 %v1163, %v1136
      %v1407 = vpack.c.b16 %v1164, %v1137
      %v1408 = vpack.c.b16 %v1165, %v1138
      %v1409 = vpack.c.b16 %v1166, %v1139
      %v1410 = vpack.c.b16 %v1167, %v1140
      %v1411 = vpack.c.b16 %v1168, %v1141
      %v1412 = vpack.c.b16 %v1169, %v1142
      %v1413 = vpack.c.b16 %v1170, %v1143
      %v1414 = vpack.c.b16 %v1171, %v1144
      %v1415 = vpack.c.b16 %v1172, %v1145
      %v1416 = vpack.c.b16 %v1173, %v1146
      %v1417 = vpack.c.b16 %v1174, %v1147
      %v1418 = vpack.c.b16 %v1175, %v1148
      %v1419 = vpack.c.b16 %v1176, %v1149
      %v1420 = vpack.c.b16 %v1177, %v1150
      %v1421 = vpack.c.b16 %v1178, %v1151
      %v1422 = vpack.c.b16 %v1179, %v1152
      %v1423 = vpack.c.b16 %v1180, %v1153
      %v1424 = vpack.c.b16 %v1208, %v1181
      %v1425 = vpack.c.b16 %v1209, %v1182
      %v1426 = vpack.c.b16 %v1210, %v1183
      %v1427 = vpack.c.b16 %v1211, %v1184
      %v1428 = vpack.c.b16 %v1212, %v1185
      %v1429 = vpack.c.b16 %v1213, %v1186
      %v1430 = vpack.c.b16 %v1214, %v1187
      %v1431 = vpack.c.b16 %v1215, %v1188
      %v1432 = vpack.c.b16 %v1216, %v1189
      %v1433 = vpack.c.b16 %v1217, %v1190
      %v1434 = vpack.c.b16 %v1218, %v1191
      %v1435 = vpack.c.b16 %v1219, %v1192
      %v1436 = vpack.c.b16 %v1220, %v1193
      %v1437 = vpack.c.b16 %v1221, %v1194
      %v1438 = vpack.c.b16 %v1222, %v1195
      %v1439 = vpack.c.b16 %v1223, %v1196
      %v1440 = vpack.c.b16 %v1224, %v1197
      %v1441 = vpack.c.b16 %v1225, %v1198
      %v1442 = vpack.c.b16 %v1226, %v1199
      %v1443 = vpack.c.b16 %v1227, %v1200
      %v1444 = vpack.c.b16 %v1228, %v1201
      %v1445 = vpack.c.b16 %v1229, %v1202
      %v1446 = vpack.c.b16 %v1230, %v1203
      %v1447 = vpack.c.b16 %v1231, %v1204
      %v1448 = vpack.c.b16 %v1232, %v1205
      %v1449 = vpack.c.b16 %v1233, %v1206
      %v1450 = vpack.c.b16 %v1234, %v1207
      %v1451 = vpack.c.b16 %v1262, %v1235
      %v1452 = vpack.c.b16 %v1263, %v1236
      %v1453 = vpack.c.b16 %v1264, %v1237
      %v1454 = vpack.c.b16 %v1265, %v1238
      %v1455 = vpack.c.b16 %v1266, %v1239
      %v1456 = vpack.c.b16 %v1267, %v1240
      %v1457 = vpack.c.b16 %v1268, %v1241
      %v1458 = vpack.c.b16 %v1269, %v1242
      %v1459 = vpack.c.b16 %v1270, %v1243
      %v1460 = vpack.c.b16 %v1271, %v1244
      %v1461 = vpack.c.b16 %v1272, %v1245
      %v1462 = vpack.c.b16 %v1273, %v1246
      %v1463 = vpack.c.b16 %v1274, %v1247
      %v1464 = vpack.c.b16 %v1275, %v1248
      %v1465 = vpack.c.b16 %v1276, %v1249
      %v1466 = vpack.c.b16 %v1277, %v1250
      %v1467 = vpack.c.b16 %v1278, %v1251
      %v1468 = vpack.c.b16 %v1279, %v1252
      %v1469 = vpack.c.b16 %v1280, %v1253
      %v1470 = vpack.c.b16 %v1281, %v1254
      %v1471 = vpack.c.b16 %v1282, %v1255
      %v1472 = vpack.c.b16 %v1283, %v1256
      %v1473 = vpack.c.b16 %v1284, %v1257
      %v1474 = vpack.c.b16 %v1285, %v1258
      %v1475 = vpack.c.b16 %v1286, %v1259
      %v1476 = vpack.c.b16 %v1287, %v1260
      %v1477 = vpack.c.b16 %v1288, %v1261
      %v1478 = vpack.c.b16 %v1316, %v1289
      %v1479 = vpack.c.b16 %v1317, %v1290
      %v1480 = vpack.c.b16 %v1318, %v1291
      %v1481 = vpack.c.b16 %v1319, %v1292
      %v1482 = vpack.c.b16 %v1320, %v1293
      %v1483 = vpack.c.b16 %v1321, %v1294
      %v1484 = vpack.c.b16 %v1322, %v1295
      %v1485 = vpack.c.b16 %v1323, %v1296
      %v1486 = vpack.c.b16 %v1324, %v1297
      %v1487 = vpack.c.b16 %v1325, %v1298
      %v1488 = vpack.c.b16 %v1326, %v1299
      %v1489 = vpack.c.b16 %v1327, %v1300
      %v1490 = vpack.c.b16 %v1328, %v1301
      %v1491 = vpack.c.b16 %v1329, %v1302
      %v1492 = vpack.c.b16 %v1330, %v1303
      %v1493 = vpack.c.b16 %v1331, %v1304
      %v1494 = vpack.c.b16 %v1332, %v1305
      %v1495 = vpack.c.b16 %v1333, %v1306
      %v1496 = vpack.c.b16 %v1334, %v1307
      %v1497 = vpack.c.b16 %v1335, %v1308
      %v1498 = vpack.c.b16 %v1336, %v1309
      %v1499 = vpack.c.b16 %v1337, %v1310
      %v1500 = vpack.c.b16 %v1338, %v1311
      %v1501 = vpack.c.b16 %v1339, %v1312
      %v1502 = vpack.c.b16 %v1340, %v1313
      %v1503 = vpack.c.b16 %v1341, %v1314
      %v1504 = vpack.c.b16 %v1342, %v1315
      %v2099 = vunpack.c.l.b16 %v419
      %v2100 = vunpack.c.l.b16 %v420
      %v2101 = vunpack.c.l.b16 %v421
      %v2102 = vunpack.c.l.b16 %v422
      %v2103 = vunpack.c.l.b16 %v423
      %v2104 = vunpack.c.l.b16 %v424
      %v2105 = vunpack.c.l.b16 %v425
      %v2106 = vunpack.c.l.b16 %v426
      %v2107 = vunpack.c.l.b16 %v427
      %v2108 = vunpack.c.l.b16 %v428
      %v2109 = vunpack.c.l.b16 %v429
      %v2110 = vunpack.c.l.b16 %v430
      %v2111 = vunpack.c.l.b16 %v431
      %v2112 = vunpack.c.l.b16 %v432
      %v2113 = vunpack.c.l.b16 %v433
      %v2114 = vunpack.c.l.b16 %v434
      %v2115 = vunpack.c.l.b16 %v435
      %v2116 = vunpack.c.l.b16 %v436
      %v2117 = vunpack.c.l.b16 %v437
      %v2118 = vunpack.c.l.b16 %v438
      %v2119 = vunpack.c.l.b16 %v439
      %v2120 = vunpack.c.l.b16 %v440
      %v2121 = vunpack.c.l.b16 %v441
      %v2122 = vunpack.c.l.b16 %v442
      %v2123 = vunpack.c.l.b16 %v443
      %v2124 = vunpack.c.l.b16 %v444
      %v2125 = vunpack.c.l.b16 %v445
      %v2126 = vunpack.c.l.b16 %v446
      %v2127 = vunpack.c.l.b16 %v447
      %v2128 = vunpack.c.l.b16 %v448
      %v2129 = vunpack.c.l.b16 %v449
      %v2130 = vunpack.c.l.b16 %v450
      %v2131 = vunpack.c.l.b16 %v451
      %v2132 = vunpack.c.l.b16 %v452
      %v2133 = vunpack.c.l.b16 %v453
      %v2134 = vunpack.c.l.b16 %v454
      %v2135 = vunpack.c.l.b16 %v455
      %v2136 = vunpack.c.l.b16 %v456
      %v2137 = vunpack.c.l.b16 %v457
      %v2138 = vunpack.c.l.b16 %v458
      %v2139 = vunpack.c.l.b16 %v459
      %v2140 = vunpack.c.l.b16 %v460
      %v2141 = vunpack.c.l.b16 %v461
      %v2142 = vunpack.c.l.b16 %v462
      %v2143 = vunpack.c.l.b16 %v463
      %v2144 = vunpack.c.l.b16 %v464
      %v2145 = vunpack.c.l.b16 %v465
      %v2146 = vunpack.c.l.b16 %v466
      %v2147 = vunpack.c.l.b16 %v467
      %v2148 = vunpack.c.l.b16 %v468
      %v2149 = vunpack.c.l.b16 %v469
      %v2150 = vunpack.c.l.b16 %v470
      %v2151 = vunpack.c.l.b16 %v471
      %v2152 = vunpack.c.l.b16 %v472
      %v2153 = vunpack.c.l.b16 %v473
      %v2154 = vunpack.c.l.b16 %v474
      %v2155 = vunpack.c.l.b16 %v475
      %v2156 = vunpack.c.l.b16 %v476
      %v2157 = vunpack.c.l.b16 %v477
      %v2158 = vunpack.c.l.b16 %v478
      %v2159 = vunpack.c.l.b16 %v479
      %v2160 = vunpack.c.l.b16 %v480
      %v2161 = vunpack.c.l.b16 %v481
      %v2162 = vunpack.c.l.b16 %v482
      %v2163 = vunpack.c.l.b16 %v483
      %v2164 = vunpack.c.l.b16 %v484
      %v2165 = vunpack.c.l.b16 %v485
      %v2166 = vunpack.c.l.b16 %v486
      %v2167 = vunpack.c.l.b16 %v487
      %v2168 = vunpack.c.l.b16 %v488
      %v2169 = vunpack.c.l.b16 %v489
      %v2170 = vunpack.c.l.b16 %v490
      %v2171 = vunpack.c.l.b16 %v491
      %v2172 = vunpack.c.l.b16 %v492
      %v2173 = vunpack.c.l.b16 %v493
      %v2174 = vunpack.c.l.b16 %v494
      %v2175 = vunpack.c.l.b16 %v495
      %v2176 = vunpack.c.l.b16 %v496
      %v2177 = vunpack.c.l.b16 %v497
      %v2178 = vunpack.c.l.b16 %v498
      %v2179 = vunpack.c.l.b16 %v499
      %v2180 = vunpack.c.l.b16 %v500
      %v2181 = vunpack.c.l.b16 %v501
      %v2182 = vunpack.c.l.b16 %v502
      %v2183 = vunpack.c.l.b16 %v503
      %v2184 = vunpack.c.l.b16 %v504
      %v2185 = vunpack.c.l.b16 %v505
      %v2186 = vunpack.c.l.b16 %v506
      %v2187 = vunpack.c.l.b16 %v507
      %v2188 = vunpack.c.l.b16 %v508
      %v2189 = vunpack.c.l.b16 %v509
      %v2190 = vunpack.c.l.b16 %v510
      %v2191 = vunpack.c.l.b16 %v511
      %v2192 = vunpack.c.l.b16 %v512
      %v2193 = vunpack.c.l.b16 %v513
      %v2194 = vunpack.c.l.b16 %v514
      %v2195 = vunpack.c.l.b16 %v515
      %v2196 = vunpack.c.l.b16 %v516
      %v2197 = vunpack.c.l.b16 %v517
      %v2198 = vunpack.c.l.b16 %v518
      %v2199 = vunpack.c.l.b16 %v519
      %v2200 = vunpack.c.l.b16 %v520
      %v2201 = vunpack.c.l.b16 %v521
      %v2202 = vunpack.c.l.b16 %v522
      %v2203 = vunpack.c.l.b16 %v523
      %v2204 = vunpack.c.l.b16 %v524
      %v2205 = vunpack.c.l.b16 %v525
      %v2206 = vunpack.c.l.b16 %v526
      %v2207 = vunpack.c.l.b16 %v527
      %v2208 = vunpack.c.l.b16 %v528
      %v2209 = vunpack.c.l.b16 %v529
      %v2210 = vunpack.c.l.b16 %v530
      %v2211 = vunpack.c.l.b16 %v531
      %v2212 = vunpack.c.l.b16 %v532
      %v2213 = vunpack.c.l.b16 %v533
      %v2214 = vunpack.c.l.b16 %v534
      %v2215 = vunpack.c.l.b16 %v535
      %v2216 = vunpack.c.l.b16 %v536
      %v2217 = vunpack.c.l.b16 %v537
      %v2218 = vunpack.c.l.b16 %v538
      %v2219 = vunpack.c.l.b16 %v539
      %v2220 = vunpack.c.l.b16 %v540
      %v2221 = vunpack.c.l.b16 %v541
      %v2222 = vunpack.c.l.b16 %v542
      %v2223 = vunpack.c.l.b16 %v543
      %v2224 = vunpack.c.l.b16 %v544
      %v2225 = vunpack.c.l.b16 %v545
      %v2226 = vunpack.c.l.b16 %v546
      %v2227 = vunpack.c.l.b16 %v547
      %v2228 = vunpack.c.l.b16 %v548
      %v2229 = vunpack.c.l.b16 %v549
      %v2230 = vunpack.c.l.b16 %v550
      %v2231 = vunpack.c.l.b16 %v551
      %v2232 = vunpack.c.l.b16 %v552
      %v2233 = vunpack.c.l.b16 %v553
      %v2234 = vunpack.c.l.b16 %v554
      %v2235 = vunpack.c.l.b16 %v555
      %v2236 = vunpack.c.l.b16 %v556
      %v2237 = vunpack.c.l.b16 %v557
      %v2238 = vunpack.c.l.b16 %v558
      %v2239 = vunpack.c.l.b16 %v559
      %v2240 = vunpack.c.l.b16 %v560
      %v2241 = vunpack.c.l.b16 %v561
      %v2242 = vunpack.c.l.b16 %v562
      %v2243 = vunpack.c.l.b16 %v563
      %v2244 = vunpack.c.l.b16 %v564
      %v2245 = vunpack.c.l.b16 %v565
      %v2246 = vunpack.c.l.b16 %v566
      %v2247 = vunpack.c.l.b16 %v567
      %v2248 = vunpack.c.l.b16 %v568
      %v2249 = vunpack.c.l.b16 %v569
      %v2250 = vunpack.c.l.b16 %v570
      %v2251 = vunpack.c.l.b16 %v571
      %v2252 = vunpack.c.l.b16 %v572
      %v2253 = vunpack.c.l.b16 %v573
      %v2254 = vunpack.c.l.b16 %v574
      %v2255 = vunpack.c.l.b16 %v575
      %v2256 = vunpack.c.l.b16 %v576
      %v2257 = vunpack.c.l.b16 %v577
      %v2258 = vunpack.c.l.b16 %v578
      %v2259 = vunpack.c.l.b16 %v579
      %v2260 = vunpack.c.l.b16 %v580
      %v2261 = vunpack.c.l.b16 %v581
      %v2262 = vunpack.c.l.b16 %v582
      %v2263 = vunpack.c.l.b16 %v583
      %v2264 = vunpack.c.l.b16 %v584
      %v2265 = vunpack.c.l.b16 %v585
      %v2266 = vunpack.c.l.b16 %v586
      %v2267 = vunpack.c.l.b16 %v587
      %v2268 = vunpack.c.l.b16 %v588
      %v2269 = vunpack.c.l.b16 %v589
      %v2270 = vunpack.c.l.b16 %v590
      %v2271 = vunpack.c.l.b16 %v591
      %v2272 = vunpack.c.l.b16 %v592
      %v2273 = vunpack.c.l.b16 %v593
      %v2274 = vunpack.c.l.b16 %v594
      %v2275 = vunpack.c.l.b16 %v595
      %v2276 = vunpack.c.l.b16 %v596
      %v2277 = vunpack.c.l.b16 %v597
      %v2278 = vunpack.c.l.b16 %v598
      %v2279 = vunpack.c.l.b16 %v599
      %v2280 = vunpack.c.l.b16 %v600
      %v2281 = vunpack.c.l.b16 %v601
      %v2282 = vunpack.c.l.b16 %v602
      %v2283 = vunpack.c.l.b16 %v603
      %v2284 = vunpack.c.l.b16 %v604
      %v2285 = vunpack.c.l.b16 %v605
      %v2286 = vunpack.c.l.b16 %v606
      %v2287 = vunpack.c.l.b16 %v607
      %v2288 = vunpack.c.l.b16 %v608
      %v2289 = vunpack.c.l.b16 %v609
      %v2290 = vunpack.c.l.b16 %v610
      %v2291 = vunpack.c.l.b16 %v611
      %v2292 = vunpack.c.l.b16 %v612
      %v2293 = vunpack.c.l.b16 %v613
      %v2294 = vunpack.c.l.b16 %v614
      %v2295 = vunpack.c.l.b16 %v615
      %v2296 = vunpack.c.l.b16 %v616
      %v2297 = vunpack.c.l.b16 %v617
      %v2298 = vunpack.c.l.b16 %v618
      %v2299 = vunpack.c.l.b16 %v619
      %v2300 = vunpack.c.l.b16 %v620
      %v2301 = vunpack.c.l.b16 %v621
      %v2302 = vunpack.c.l.b16 %v622
      %v2303 = vunpack.c.l.b16 %v623
      %v2304 = vunpack.c.l.b16 %v624
      %v2305 = vunpack.c.l.b16 %v625
      %v2306 = vunpack.c.l.b16 %v626
      %v2307 = vunpack.c.l.b16 %v627
      %v2308 = vunpack.c.l.b16 %v628
      %v2309 = vunpack.c.l.b16 %v629
      %v2310 = vunpack.c.l.b16 %v630
      %v2311 = vunpack.c.l.b16 %v631
      %v2312 = vunpack.c.l.b16 %v632
      %v2313 = vunpack.c.l.b16 %v633
      %v2314 = vunpack.c.l.b16 %v634
      %v2315 = vunpack.c.l.b16 %v635
      %v2316 = vunpack.c.l.b16 %v636
      %v2317 = vunpack.c.l.b16 %v637
      %v2318 = vunpack.c.l.b16 %v638
      %v2319 = vunpack.c.l.b16 %v639
      %v2320 = vunpack.c.l.b16 %v640
      %v2321 = vunpack.c.l.b16 %v641
      %v2322 = vunpack.c.l.b16 %v642
      %v2323 = vunpack.c.l.b16 %v643
      %v2324 = vunpack.c.l.b16 %v644
      %v2325 = vunpack.c.l.b16 %v645
      %v2326 = vunpack.c.l.b16 %v646
      %v2327 = vunpack.c.l.b16 %v647
      %v2328 = vunpack.c.l.b16 %v648
      %v2329 = vunpack.c.l.b16 %v649
      %v2330 = vunpack.c.l.b16 %v650
      %v2331 = vunpack.c.l.b16 %v651
      %v2332 = vunpack.c.l.b16 %v652
      %v2333 = vunpack.c.l.b16 %v653
      %v2334 = vunpack.c.l.b16 %v654
      %v2335 = vunpack.c.l.b16 %v655
      %v2336 = vunpack.c.l.b16 %v656
      %v2337 = vunpack.c.l.b16 %v657
      %v2338 = vunpack.c.l.b16 %v658
      %v2339 = vunpack.c.l.b16 %v659
      %v2340 = vunpack.c.l.b16 %v660
      %v2341 = vunpack.c.l.b16 %v661
      %v2342 = vunpack.c.l.b16 %v662
      %v2343 = vunpack.c.l.b16 %v663
      %v2344 = vunpack.c.l.b16 %v664
      %v2345 = vunpack.c.l.b16 %v665
      %v2346 = vunpack.c.l.b16 %v666
      %v2347 = vunpack.c.l.b16 %v667
      %v2348 = vunpack.c.l.b16 %v668
      %v2349 = vunpack.c.l.b16 %v669
      %v2350 = vunpack.c.l.b16 %v670
      %v2351 = vunpack.c.l.b16 %v671
      %v2352 = vunpack.c.l.b16 %v672
      %v2353 = vunpack.c.l.b16 %v673
      %v2354 = vunpack.c.l.b16 %v674
      %v2355 = vunpack.c.l.b16 %v675
      %v2356 = vunpack.c.l.b16 %v676
      %v2357 = vunpack.c.l.b16 %v677
      %v2358 = vunpack.c.l.b16 %v678
      %v2359 = vunpack.c.l.b16 %v679
      %v2360 = vunpack.c.l.b16 %v680
      %v2361 = vunpack.c.l.b16 %v681
      %v2362 = vunpack.c.l.b16 %v682
      %v2363 = vunpack.c.l.b16 %v683
      %v2364 = vunpack.c.l.b16 %v684
      %v2365 = vunpack.c.l.b16 %v685
      %v2366 = vunpack.c.l.b16 %v686
      %v2367 = vunpack.c.l.b16 %v687
      %v2368 = vunpack.c.l.b16 %v688
      %v2369 = vunpack.c.l.b16 %v689
      %v2370 = vunpack.c.l.b16 %v690
      %v2371 = vunpack.c.l.b16 %v691
      %v2372 = vunpack.c.l.b16 %v692
      %v2373 = vunpack.c.l.b16 %v693
      %v2374 = vunpack.c.l.b16 %v694
      %v2375 = vunpack.c.l.b16 %v695
      %v2376 = vunpack.c.l.b16 %v696
      %v2377 = vunpack.c.l.b16 %v697
      %v2378 = vunpack.c.l.b16 %v698
      %v2379 = vunpack.c.l.b16 %v699
      %v2380 = vunpack.c.l.b16 %v700
      %v2381 = vunpack.c.l.b16 %v701
      %v2382 = vunpack.c.l.b16 %v702
      %v2383 = vunpack.c.l.b16 %v703
      %v2384 = vunpack.c.l.b16 %v704
      %v2385 = vunpack.c.l.b16 %v705
      %v2386 = vunpack.c.l.b16 %v706
      %v2387 = vunpack.c.l.b16 %v707
      %v2388 = vunpack.c.l.b16 %v708
      %v2389 = vunpack.c.l.b16 %v709
      %v2390 = vunpack.c.l.b16 %v710
      %v2391 = vunpack.c.l.b16 %v711
      %v2392 = vunpack.c.l.b16 %v712
      %v2393 = vunpack.c.l.b16 %v713
      %v2394 = vunpack.c.l.b16 %v714
      %v2395 = vunpack.c.l.b16 %v715
      %v2396 = vunpack.c.l.b16 %v716
      %v2397 = vunpack.c.l.b16 %v717
      %v2398 = vunpack.c.l.b16 %v718
      %v2399 = vunpack.c.l.b16 %v719
      %v2400 = vunpack.c.l.b16 %v720
      %v2401 = vunpack.c.l.b16 %v721
      %v2402 = vunpack.c.l.b16 %v722
      %v2403 = vunpack.c.l.b16 %v723
      %v2404 = vunpack.c.l.b16 %v724
      %v2405 = vunpack.c.l.b16 %v725
      %v2406 = vunpack.c.l.b16 %v726
      %v2407 = vunpack.c.l.b16 %v727
      %v2408 = vunpack.c.l.b16 %v728
      %v2409 = vunpack.c.l.b16 %v729
      %v2410 = vunpack.c.l.b16 %v730
      %v2411 = vunpack.c.l.b16 %v731
      %v2412 = vunpack.c.l.b16 %v732
      %v2413 = vunpack.c.l.b16 %v733
      %v2414 = vunpack.c.l.b16 %v734
      %v2415 = vunpack.c.l.b16 %v735
      %v2416 = vunpack.c.l.b16 %v736
      %v2417 = vunpack.c.l.b16 %v737
      %v2418 = vunpack.c.l.b16 %v738
      %v2419 = vunpack.c.l.b16 %v739
      %v2420 = vunpack.c.l.b16 %v740
      %v2421 = vunpack.c.l.b16 %v741
      %v2422 = vunpack.c.l.b16 %v742
      %v2423 = vunpack.c.l.b16 %v743
      %v2424 = vunpack.c.l.b16 %v744
      %v2425 = vunpack.c.l.b16 %v745
      %v2426 = vunpack.c.l.b16 %v746
      %v2427 = vunpack.c.l.b16 %v747
      %v2428 = vunpack.c.l.b16 %v748
      %v2429 = vunpack.c.l.b16 %v749
      %v2430 = vunpack.c.l.b16 %v750
      %v2431 = vunpack.c.l.b16 %v751
      %v2432 = vunpack.c.l.b16 %v752
      %v2433 = vunpack.c.l.b16 %v753
      %v2434 = vunpack.c.l.b16 %v754
      %v2435 = vunpack.c.l.b16 %v755
      %v2436 = vunpack.c.l.b16 %v756
      %v2437 = vunpack.c.l.b16 %v757
      %v2438 = vunpack.c.l.b16 %v758
      %v2439 = vunpack.c.l.b16 %v759
      %v2440 = vunpack.c.l.b16 %v760
      %v2441 = vunpack.c.l.b16 %v761
      %v2442 = vunpack.c.l.b16 %v762
      %v2443 = vunpack.c.l.b16 %v763
      %v2444 = vunpack.c.l.b16 %v764
      %v2445 = vunpack.c.l.b16 %v765
      %v2446 = vunpack.c.l.b16 %v766
      %v2447 = vunpack.c.l.b16 %v767
      %v2448 = vunpack.c.l.b16 %v768
      %v2449 = vunpack.c.l.b16 %v769
      %v2450 = vunpack.c.l.b16 %v770
      %v2451 = vunpack.c.l.b16 %v771
      %v2452 = vunpack.c.l.b16 %v772
      %v2453 = vunpack.c.l.b16 %v773
      %v2454 = vunpack.c.l.b16 %v774
      %v2455 = vunpack.c.l.b16 %v775
      %v2456 = vunpack.c.l.b16 %v776
      %v2457 = vunpack.c.l.b16 %v777
      %v2458 = vunpack.c.l.b16 %v778
      %v2459 = vunpack.c.l.b16 %v779
      %v2460 = vunpack.c.l.b16 %v780
      %v2461 = vunpack.c.l.b16 %v781
      %v2462 = vunpack.c.l.b16 %v782
      %v2463 = vunpack.c.l.b16 %v783
      %v2464 = vunpack.c.l.b16 %v784
      %v2465 = vunpack.c.l.b16 %v785
      %v2466 = vunpack.c.l.b16 %v786
      %v2467 = vunpack.c.l.b16 %v787
      %v2468 = vunpack.c.l.b16 %v788
      %v2469 = vunpack.c.l.b16 %v789
      %v2470 = vunpack.c.l.b16 %v790
      %v2471 = vunpack.c.l.b16 %v791
      %v2472 = vunpack.c.l.b16 %v792
      %v2473 = vunpack.c.l.b16 %v793
      %v2474 = vunpack.c.l.b16 %v794
      %v2475 = vunpack.c.l.b16 %v795
      %v2476 = vunpack.c.l.b16 %v796
      %v2477 = vunpack.c.l.b16 %v797
      %v2478 = vunpack.c.l.b16 %v798
      %v2479 = vunpack.c.l.b16 %v799
      %v2480 = vunpack.c.l.b16 %v800
      %v2481 = vunpack.c.l.b16 %v801
      %v2482 = vunpack.c.l.b16 %v802
      %v2483 = vunpack.c.l.b16 %v803
      %v2484 = vunpack.c.l.b16 %v804
      %v2485 = vunpack.c.l.b16 %v805
      %v2486 = vunpack.c.l.b16 %v806
      %v2487 = vunpack.c.l.b16 %v807
      %v2488 = vunpack.c.l.b16 %v808
      %v2489 = vunpack.c.l.b16 %v809
      %v2490 = vunpack.c.l.b16 %v810
      %v2491 = vunpack.c.l.b16 %v811
      %v2492 = vunpack.c.l.b16 %v812
      %v2493 = vunpack.c.l.b16 %v813
      %v2494 = vunpack.c.l.b16 %v814
      %v2495 = vunpack.c.l.b16 %v815
      %v2496 = vunpack.c.l.b16 %v816
      %v2497 = vunpack.c.l.b16 %v817
      %v2498 = vunpack.c.l.b16 %v818
      %v2499 = vunpack.c.l.b16 %v819
      %v2500 = vunpack.c.l.b16 %v820
      %v2501 = vunpack.c.l.b16 %v821
      %v2502 = vunpack.c.l.b16 %v822
      %v2503 = vunpack.c.l.b16 %v823
      %v2504 = vunpack.c.l.b16 %v824
      %v2505 = vunpack.c.l.b16 %v825
      %v2506 = vunpack.c.l.b16 %v826
      %v2507 = vunpack.c.l.b16 %v827
      %v2508 = vunpack.c.l.b16 %v828
      %v2509 = vunpack.c.l.b16 %v829
      %v2510 = vunpack.c.l.b16 %v830
      %v2511 = vunpack.c.l.b16 %v831
      %v2512 = vunpack.c.l.b16 %v832
      %v2513 = vunpack.c.l.b16 %v833
      %v2514 = vunpack.c.l.b16 %v834
      %v2515 = vunpack.c.l.b16 %v835
      %v2516 = vunpack.c.l.b16 %v836
      %v2517 = vunpack.c.l.b16 %v837
      %v2518 = vunpack.c.l.b16 %v838
      %v2519 = vunpack.c.l.b16 %v839
      %v2520 = vunpack.c.l.b16 %v840
      %v2521 = vunpack.c.l.b16 %v841
      %v2522 = vunpack.c.l.b16 %v842
      %v2523 = vunpack.c.l.b16 %v843
      %v2524 = vunpack.c.l.b16 %v844
      %v2525 = vunpack.c.l.b16 %v845
      %v2526 = vunpack.c.l.b16 %v846
      %v2527 = vunpack.c.l.b16 %v847
      %v2528 = vunpack.c.l.b16 %v848
      %v2529 = vunpack.c.l.b16 %v849
      %v2530 = vunpack.c.l.b16 %v850
      %v2531 = vpack.c.b16 %v2100, %v2099
      %v2532 = vpack.c.b16 %v2102, %v2101
      %v2533 = vpack.c.b16 %v2104, %v2103
      %v2534 = vpack.c.b16 %v2106, %v2105
      %v2535 = vpack.c.b16 %v2108, %v2107
      %v2536 = vpack.c.b16 %v2110, %v2109
      %v2537 = vpack.c.b16 %v2112, %v2111
      %v2538 = vpack.c.b16 %v2114, %v2113
      %v2539 = vpack.c.b16 %v2116, %v2115
      %v2540 = vpack.c.b16 %v2118, %v2117
      %v2541 = vpack.c.b16 %v2120, %v2119
      %v2542 = vpack.c.b16 %v2122, %v2121
      %v2543 = vpack.c.b16 %v2124, %v2123
      %v2544 = vpack.c.b16 %v2126, %v2125
      %v2545 = vpack.c.b16 %v2128, %v2127
      %v2546 = vpack.c.b16 %v2130, %v2129
      %v2547 = vpack.c.b16 %v2132, %v2131
      %v2548 = vpack.c.b16 %v2134, %v2133
      %v2549 = vpack.c.b16 %v2136, %v2135
      %v2550 = vpack.c.b16 %v2138, %v2137
      %v2551 = vpack.c.b16 %v2140, %v2139
      %v2552 = vpack.c.b16 %v2142, %v2141
      %v2553 = vpack.c.b16 %v2144, %v2143
      %v2554 = vpack.c.b16 %v2146, %v2145
      %v2555 = vpack.c.b16 %v2148, %v2147
      %v2556 = vpack.c.b16 %v2150, %v2149
      %v2557 = vpack.c.b16 %v2152, %v2151
      %v2558 = vpack.c.b16 %v2154, %v2153
      %v2559 = vpack.c.b16 %v2156, %v2155
      %v2560 = vpack.c.b16 %v2158, %v2157
      %v2561 = vpack.c.b16 %v2160, %v2159
      %v2562 = vpack.c.b16 %v2162, %v2161
      %v2563 = vpack.c.b16 %v2164, %v2163
      %v2564 = vpack.c.b16 %v2166, %v2165
      %v2565 = vpack.c.b16 %v2168, %v2167
      %v2566 = vpack.c.b16 %v2170, %v2169
      %v2567 = vpack.c.b16 %v2172, %v2171
      %v2568 = vpack.c.b16 %v2174, %v2173
      %v2569 = vpack.c.b16 %v2176, %v2175
      %v2570 = vpack.c.b16 %v2178, %v2177
      %v2571 = vpack.c.b16 %v2180, %v2179
      %v2572 = vpack.c.b16 %v2182, %v2181
      %v2573 = vpack.c.b16 %v2184, %v2183
      %v2574 = vpack.c.b16 %v2186, %v2185
      %v2575 = vpack.c.b16 %v2188, %v2187
      %v2576 = vpack.c.b16 %v2190, %v2189
      %v2577 = vpack.c.b16 %v2192, %v2191
      %v2578 = vpack.c.b16 %v2194, %v2193
      %v2579 = vpack.c.b16 %v2196, %v2195
      %v2580 = vpack.c.b16 %v2198, %v2197
      %v2581 = vpack.c.b16 %v2200, %v2199
      %v2582 = vpack.c.b16 %v2202, %v2201
      %v2583 = vpack.c.b16 %v2204, %v2203
      %v2584 = vpack.c.b16 %v2206, %v2205
      %v2585 = vpack.c.b16 %v2208, %v2207
      %v2586 = vpack.c.b16 %v2210, %v2209
      %v2587 = vpack.c.b16 %v2212, %v2211
      %v2588 = vpack.c.b16 %v2214, %v2213
      %v2589 = vpack.c.b16 %v2216, %v2215
      %v2590 = vpack.c.b16 %v2218, %v2217
      %v2591 = vpack.c.b16 %v2220, %v2219
      %v2592 = vpack.c.b16 %v2222, %v2221
      %v2593 = vpack.c.b16 %v2224, %v2223
      %v2594 = vpack.c.b16 %v2226, %v2225
      %v2595 = vpack.c.b16 %v2228, %v2227
      %v2596 = vpack.c.b16 %v2230, %v2229
      %v2597 = vpack.c.b16 %v2232, %v2231
      %v2598 = vpack.c.b16 %v2234, %v2233
      %v2599 = vpack.c.b16 %v2236, %v2235
      %v2600 = vpack.c.b16 %v2238, %v2237
      %v2601 = vpack.c.b16 %v2240, %v2239
      %v2602 = vpack.c.b16 %v2242, %v2241
      %v2603 = vpack.c.b16 %v2244, %v2243
      %v2604 = vpack.c.b16 %v2246, %v2245
      %v2605 = vpack.c.b16 %v2248, %v2247
      %v2606 = vpack.c.b16 %v2250, %v2249
      %v2607 = vpack.c.b16 %v2252, %v2251
      %v2608 = vpack.c.b16 %v2254, %v2253
      %v2609 = vpack.c.b16 %v2256, %v2255
      %v2610 = vpack.c.b16 %v2258, %v2257
      %v2611 = vpack.c.b16 %v2260, %v2259
      %v2612 = vpack.c.b16 %v2262, %v2261
      %v2613 = vpack.c.b16 %v2264, %v2263
      %v2614 = vpack.c.b16 %v2266, %v2265
      %v2615 = vpack.c.b16 %v2268, %v2267
      %v2616 = vpack.c.b16 %v2270, %v2269
      %v2617 = vpack.c.b16 %v2272, %v2271
      %v2618 = vpack.c.b16 %v2274, %v2273
      %v2619 = vpack.c.b16 %v2276, %v2275
      %v2620 = vpack.c.b16 %v2278, %v2277
      %v2621 = vpack.c.b16 %v2280, %v2279
      %v2622 = vpack.c.b16 %v2282, %v2281
      %v2623 = vpack.c.b16 %v2284, %v2283
      %v2624 = vpack.c.b16 %v2286, %v2285
      %v2625 = vpack.c.b16 %v2288, %v2287
      %v2626 = vpack.c.b16 %v2290, %v2289
      %v2627 = vpack.c.b16 %v2292, %v2291
      %v2628 = vpack.c.b16 %v2294, %v2293
      %v2629 = vpack.c.b16 %v2296, %v2295
      %v2630 = vpack.c.b16 %v2298, %v2297
      %v2631 = vpack.c.b16 %v2300, %v2299
      %v2632 = vpack.c.b16 %v2302, %v2301
      %v2633 = vpack.c.b16 %v2304, %v2303
      %v2634 = vpack.c.b16 %v2306, %v2305
      %v2635 = vpack.c.b16 %v2308, %v2307
      %v2636 = vpack.c.b16 %v2310, %v2309
      %v2637 = vpack.c.b16 %v2312, %v2311
      %v2638 = vpack.c.b16 %v2314, %v2313
      %v2639 = vpack.c.b16 %v2316, %v2315
      %v2640 = vpack.c.b16 %v2318, %v2317
      %v2641 = vpack.c.b16 %v2320, %v2319
      %v2642 = vpack.c.b16 %v2322, %v2321
      %v2643 = vpack.c.b16 %v2324, %v2323
      %v2644 = vpack.c.b16 %v2326, %v2325
      %v2645 = vpack.c.b16 %v2328, %v2327
      %v2646 = vpack.c.b16 %v2330, %v2329
      %v2647 = vpack.c.b16 %v2332, %v2331
      %v2648 = vpack.c.b16 %v2334, %v2333
      %v2649 = vpack.c.b16 %v2336, %v2335
      %v2650 = vpack.c.b16 %v2338, %v2337
      %v2651 = vpack.c.b16 %v2340, %v2339
      %v2652 = vpack.c.b16 %v2342, %v2341
      %v2653 = vpack.c.b16 %v2344, %v2343
      %v2654 = vpack.c.b16 %v2346, %v2345
      %v2655 = vpack.c.b16 %v2348, %v2347
      %v2656 = vpack.c.b16 %v2350, %v2349
      %v2657 = vpack.c.b16 %v2352, %v2351
      %v2658 = vpack.c.b16 %v2354, %v2353
      %v2659 = vpack.c.b16 %v2356, %v2355
      %v2660 = vpack.c.b16 %v2358, %v2357
      %v2661 = vpack.c.b16 %v2360, %v2359
      %v2662 = vpack.c.b16 %v2362, %v2361
      %v2663 = vpack.c.b16 %v2364, %v2363
      %v2664 = vpack.c.b16 %v2366, %v2365
      %v2665 = vpack.c.b16 %v2368, %v2367
      %v2666 = vpack.c.b16 %v2370, %v2369
      %v2667 = vpack.c.b16 %v2372, %v2371
      %v2668 = vpack.c.b16 %v2374, %v2373
      %v2669 = vpack.c.b16 %v2376, %v2375
      %v2670 = vpack.c.b16 %v2378, %v2377
      %v2671 = vpack.c.b16 %v2380, %v2379
      %v2672 = vpack.c.b16 %v2382, %v2381
      %v2673 = vpack.c.b16 %v2384, %v2383
      %v2674 = vpack.c.b16 %v2386, %v2385
      %v2675 = vpack.c.b16 %v2388, %v2387
      %v2676 = vpack.c.b16 %v2390, %v2389
      %v2677 = vpack.c.b16 %v2392, %v2391
      %v2678 = vpack.c.b16 %v2394, %v2393
      %v2679 = vpack.c.b16 %v2396, %v2395
      %v2680 = vpack.c.b16 %v2398, %v2397
      %v2681 = vpack.c.b16 %v2400, %v2399
      %v2682 = vpack.c.b16 %v2402, %v2401
      %v2683 = vpack.c.b16 %v2404, %v2403
      %v2684 = vpack.c.b16 %v2406, %v2405
      %v2685 = vpack.c.b16 %v2408, %v2407
      %v2686 = vpack.c.b16 %v2410, %v2409
      %v2687 = vpack.c.b16 %v2412, %v2411
      %v2688 = vpack.c.b16 %v2414, %v2413
      %v2689 = vpack.c.b16 %v2416, %v2415
      %v2690 = vpack.c.b16 %v2418, %v2417
      %v2691 = vpack.c.b16 %v2420, %v2419
      %v2692 = vpack.c.b16 %v2422, %v2421
      %v2693 = vpack.c.b16 %v2424, %v2423
      %v2694 = vpack.c.b16 %v2426, %v2425
      %v2695 = vpack.c.b16 %v2428, %v2427
      %v2696 = vpack.c.b16 %v2430, %v2429
      %v2697 = vpack.c.b16 %v2432, %v2431
      %v2698 = vpack.c.b16 %v2434, %v2433
      %v2699 = vpack.c.b16 %v2436, %v2435
      %v2700 = vpack.c.b16 %v2438, %v2437
      %v2701 = vpack.c.b16 %v2440, %v2439
      %v2702 = vpack.c.b16 %v2442, %v2441
      %v2703 = vpack.c.b16 %v2444, %v2443
      %v2704 = vpack.c.b16 %v2446, %v2445
      %v2705 = vpack.c.b16 %v2448, %v2447
      %v2706 = vpack.c.b16 %v2450, %v2449
      %v2707 = vpack.c.b16 %v2452, %v2451
      %v2708 = vpack.c.b16 %v2454, %v2453
      %v2709 = vpack.c.b16 %v2456, %v2455
      %v2710 = vpack.c.b16 %v2458, %v2457
      %v2711 = vpack.c.b16 %v2460, %v2459
      %v2712 = vpack.c.b16 %v2462, %v2461
      %v2713 = vpack.c.b16 %v2464, %v2463
      %v2714 = vpack.c.b16 %v2466, %v2465
      %v2715 = vpack.c.b16 %v2468, %v2467
      %v2716 = vpack.c.b16 %v2470, %v2469
      %v2717 = vpack.c.b16 %v2472, %v2471
      %v2718 = vpack.c.b16 %v2474, %v2473
      %v2719 = vpack.c.b16 %v2476, %v2475
      %v2720 = vpack.c.b16 %v2478, %v2477
      %v2721 = vpack.c.b16 %v2480, %v2479
      %v2722 = vpack.c.b16 %v2482, %v2481
      %v2723 = vpack.c.b16 %v2484, %v2483
      %v2724 = vpack.c.b16 %v2486, %v2485
      %v2725 = vpack.c.b16 %v2488, %v2487
      %v2726 = vpack.c.b16 %v2490, %v2489
      %v2727 = vpack.c.b16 %v2492, %v2491
      %v2728 = vpack.c.b16 %v2494, %v2493
      %v2729 = vpack.c.b16 %v2496, %v2495
      %v2730 = vpack.c.b16 %v2498, %v2497
      %v2731 = vpack.c.b16 %v2500, %v2499
      %v2732 = vpack.c.b16 %v2502, %v2501
      %v2733 = vpack.c.b16 %v2504, %v2503
      %v2734 = vpack.c.b16 %v2506, %v2505
      %v2735 = vpack.c.b16 %v2508, %v2507
      %v2736 = vpack.c.b16 %v2510, %v2509
      %v2737 = vpack.c.b16 %v2512, %v2511
      %v2738 = vpack.c.b16 %v2514, %v2513
      %v2739 = vpack.c.b16 %v2516, %v2515
      %v2740 = vpack.c.b16 %v2518, %v2517
      %v2741 = vpack.c.b16 %v2520, %v2519
      %v2742 = vpack.c.b16 %v2522, %v2521
      %v2743 = vpack.c.b16 %v2524, %v2523
      %v2744 = vpack.c.b16 %v2526, %v2525
      %v2745 = vpack.c.b16 %v2528, %v2527
      %v2746 = vpack.c.b16 %v2530, %v2529
      %2963 = vmatprep.subr.bf16.mxu0 0
      %2964 = vmatpush1.bf16.msra.mxu0 %v2538
      %2965 = vmatprep.subr.bf16.mxu0 0
      %2966 = vmatpush1.bf16.msra.mxu0 %v2537
      %2967 = vmatprep.subr.bf16.mxu0 0
      %2968 = vmatpush1.bf16.msra.mxu0 %v2536
      %2969 = vmatprep.subr.bf16.mxu0 0
      %2970 = vmatpush1.bf16.msra.mxu0 %v2535
      %2971 = vmatprep.subr.bf16.mxu0 0
      %2972 = vmatpush1.bf16.msra.mxu0 %v2534
      %2973 = vmatprep.subr.bf16.mxu0 0
      %2974 = vmatpush1.bf16.msra.mxu0 %v2533
      %2975 = vmatprep.subr.bf16.mxu0 0
      %2976 = vmatpush1.bf16.msra.mxu0 %v2532
      %2977 = vmatprep.subr.bf16.mxu0 0
      %2978 = vmatpush1.bf16.msra.mxu0 %v2531
      %2979 = vmatprep.subr.bf16.mxu0 0
      %2980 = vmatpush2.bf16.msra.mxu0 %v2546
      %2981 = vmatprep.subr.bf16.mxu0 0
      %2982 = vmatpush2.bf16.msra.mxu0 %v2545
      %2983 = vmatprep.subr.bf16.mxu0 0
      %2984 = vmatpush2.bf16.msra.mxu0 %v2544
      %2985 = vmatprep.subr.bf16.mxu0 0
      %2986 = vmatpush2.bf16.msra.mxu0 %v2543
      %2987 = vmatprep.subr.bf16.mxu0 0
      %2988 = vmatpush2.bf16.msra.mxu0 %v2542
      %2989 = vmatprep.subr.bf16.mxu0 0
      %2990 = vmatpush2.bf16.msra.mxu0 %v2541
      %2991 = vmatprep.subr.bf16.mxu0 0
      %2992 = vmatpush2.bf16.msra.mxu0 %v2540
      %2993 = vmatprep.subr.bf16.mxu0 0
      %2994 = vmatpush2.bf16.msra.mxu0 %v2539
      %2995 = vmatprep.mubr.bf16.mxu0 %v1344
      %2996 = vmatmul.mubr.bf16.gmra.mxu0 %v1343
      %v2997 = vpop.f32.mrf.mxu0
      %v2998 = vadd.f32 0.0, %v2997
      %v2999 = vpop.f32.mrf.mxu0
      %v3000 = vpop.f32.mrf.mxu0
      %v3001 = vadd.f32 0.0, %v3000
      %v3002 = vpop.f32.mrf.mxu0
      %3003 = vmatprep.mubr.bf16.mxu0 %v1371
      %3004 = vmatmul.mubr.bf16.gmra.mxu0 %v1370
      %v3005 = vpop.f32.mrf.mxu0
      %v3006 = vadd.f32 0.0, %v3005
      %v3007 = vpop.f32.mrf.mxu0
      %v3008 = vpop.f32.mrf.mxu0
      %v3009 = vadd.f32 0.0, %v3008
      %v3010 = vpop.f32.mrf.mxu0
      %3011 = vmatprep.mubr.bf16.mxu0 %v1398
      %3012 = vmatmul.mubr.bf16.gmra.mxu0 %v1397
      %v3013 = vpop.f32.mrf.mxu0
      %v3014 = vadd.f32 0.0, %v3013
      %v3015 = vpop.f32.mrf.mxu0
      %v3016 = vpop.f32.mrf.mxu0
      %v3017 = vadd.f32 0.0, %v3016
      %v3018 = vpop.f32.mrf.mxu0
      %3019 = vmatprep.mubr.bf16.mxu0 %v1425
      %3020 = vmatmul.mubr.bf16.gmra.mxu0 %v1424
      %v3021 = vpop.f32.mrf.mxu0
      %v3022 = vadd.f32 0.0, %v3021
      %v3023 = vpop.f32.mrf.mxu0
      %v3024 = vpop.f32.mrf.mxu0
      %v3025 = vadd.f32 0.0, %v3024
      %v3026 = vpop.f32.mrf.mxu0
      %3027 = vmatprep.mubr.bf16.mxu0 %v1452
      %3028 = vmatmul.mubr.bf16.gmra.mxu0 %v1451
      %v3029 = vpop.f32.mrf.mxu0
      %v3030 = vadd.f32 0.0, %v3029
      %v3031 = vpop.f32.mrf.mxu0
      %v3032 = vpop.f32.mrf.mxu0
      %v3033 = vadd.f32 0.0, %v3032
      %v3034 = vpop.f32.mrf.mxu0
      %3035 = vmatprep.mubr.bf16.mxu0 %v1479
      %3036 = vmatmul.mubr.bf16.gmra.mxu0 %v1478
      %v3037 = vpop.f32.mrf.mxu0
      %v3038 = vadd.f32 0.0, %v3037
      %v3039 = vpop.f32.mrf.mxu0
      %v3040 = vpop.f32.mrf.mxu0
      %v3041 = vadd.f32 0.0, %v3040
      %v3042 = vpop.f32.mrf.mxu0
      %3043 = vdwg.mxu0
      %3044 = vmatprep.subr.bf16.mxu0 0
      %3045 = vmatpush1.bf16.msra.mxu0 %v2554
      %3046 = vmatprep.subr.bf16.mxu0 0
      %3047 = vmatpush1.bf16.msra.mxu0 %v2553
      %3048 = vmatprep.subr.bf16.mxu0 0
      %3049 = vmatpush1.bf16.msra.mxu0 %v2552
      %3050 = vmatprep.subr.bf16.mxu0 0
      %3051 = vmatpush1.bf16.msra.mxu0 %v2551
      %3052 = vmatprep.subr.bf16.mxu0 0
      %3053 = vmatpush1.bf16.msra.mxu0 %v2550
      %3054 = vmatprep.subr.bf16.mxu0 0
      %3055 = vmatpush1.bf16.msra.mxu0 %v2549
      %3056 = vmatprep.subr.bf16.mxu0 0
      %3057 = vmatpush1.bf16.msra.mxu0 %v2548
      %3058 = vmatprep.subr.bf16.mxu0 0
      %3059 = vmatpush1.bf16.msra.mxu0 %v2547
      %3060 = vmatprep.subr.bf16.mxu0 0
      %3061 = vmatpush2.bf16.msra.mxu0 %v2562
      %3062 = vmatprep.subr.bf16.mxu0 0
      %3063 = vmatpush2.bf16.msra.mxu0 %v2561
      %3064 = vmatprep.subr.bf16.mxu0 0
      %3065 = vmatpush2.bf16.msra.mxu0 %v2560
      %3066 = vmatprep.subr.bf16.mxu0 0
      %3067 = vmatpush2.bf16.msra.mxu0 %v2559
      %3068 = vmatprep.subr.bf16.mxu0 0
      %3069 = vmatpush2.bf16.msra.mxu0 %v2558
      %3070 = vmatprep.subr.bf16.mxu0 0
      %3071 = vmatpush2.bf16.msra.mxu0 %v2557
      %3072 = vmatprep.subr.bf16.mxu0 0
      %3073 = vmatpush2.bf16.msra.mxu0 %v2556
      %3074 = vmatprep.subr.bf16.mxu0 0
      %3075 = vmatpush2.bf16.msra.mxu0 %v2555
      %3076 = vmatprep.mubr.bf16.mxu0 %v1346
      %3077 = vmatmul.mubr.bf16.gmra.mxu0 %v1345
      %v3078 = vpop.f32.mrf.mxu0
      %v3079 = vadd.f32 %v2998, %v3078
      %v3080 = vpop.f32.mrf.mxu0
      %v3081 = vpop.f32.mrf.mxu0
      %v3082 = vadd.f32 %v3001, %v3081
      %v3083 = vpop.f32.mrf.mxu0
      %3084 = vmatprep.mubr.bf16.mxu0 %v1373
      %3085 = vmatmul.mubr.bf16.gmra.mxu0 %v1372
      %v3086 = vpop.f32.mrf.mxu0
      %v3087 = vadd.f32 %v3006, %v3086
      %v3088 = vpop.f32.mrf.mxu0
      %v3089 = vpop.f32.mrf.mxu0
      %v3090 = vadd.f32 %v3009, %v3089
      %v3091 = vpop.f32.mrf.mxu0
      %3092 = vmatprep.mubr.bf16.mxu0 %v1400
      %3093 = vmatmul.mubr.bf16.gmra.mxu0 %v1399
      %v3094 = vpop.f32.mrf.mxu0
      %v3095 = vadd.f32 %v3014, %v3094
      %v3096 = vpop.f32.mrf.mxu0
      %v3097 = vpop.f32.mrf.mxu0
      %v3098 = vadd.f32 %v3017, %v3097
      %v3099 = vpop.f32.mrf.mxu0
      %3100 = vmatprep.mubr.bf16.mxu0 %v1427
      %3101 = vmatmul.mubr.bf16.gmra.mxu0 %v1426
      %v3102 = vpop.f32.mrf.mxu0
      %v3103 = vadd.f32 %v3022, %v3102
      %v3104 = vpop.f32.mrf.mxu0
      %v3105 = vpop.f32.mrf.mxu0
      %v3106 = vadd.f32 %v3025, %v3105
      %v3107 = vpop.f32.mrf.mxu0
      %3108 = vmatprep.mubr.bf16.mxu0 %v1454
      %3109 = vmatmul.mubr.bf16.gmra.mxu0 %v1453
      %v3110 = vpop.f32.mrf.mxu0
      %v3111 = vadd.f32 %v3030, %v3110
      %v3112 = vpop.f32.mrf.mxu0
      %v3113 = vpop.f32.mrf.mxu0
      %v3114 = vadd.f32 %v3033, %v3113
      %v3115 = vpop.f32.mrf.mxu0
      %3116 = vmatprep.mubr.bf16.mxu0 %v1481
      %3117 = vmatmul.mubr.bf16.gmra.mxu0 %v1480
      %v3118 = vpop.f32.mrf.mxu0
      %v3119 = vadd.f32 %v3038, %v3118
      %v3120 = vpop.f32.mrf.mxu0
      %v3121 = vpop.f32.mrf.mxu0
      %v3122 = vadd.f32 %v3041, %v3121
      %v3123 = vpop.f32.mrf.mxu0
      %3124 = vdwg.mxu0
      %3125 = vmatprep.subr.bf16.mxu0 0
      %3126 = vmatpush1.bf16.msra.mxu0 %v2570
      %3127 = vmatprep.subr.bf16.mxu0 0
      %3128 = vmatpush1.bf16.msra.mxu0 %v2569
      %3129 = vmatprep.subr.bf16.mxu0 0
      %3130 = vmatpush1.bf16.msra.mxu0 %v2568
      %3131 = vmatprep.subr.bf16.mxu0 0
      %3132 = vmatpush1.bf16.msra.mxu0 %v2567
      %3133 = vmatprep.subr.bf16.mxu0 0
      %3134 = vmatpush1.bf16.msra.mxu0 %v2566
      %3135 = vmatprep.subr.bf16.mxu0 0
      %3136 = vmatpush1.bf16.msra.mxu0 %v2565
      %3137 = vmatprep.subr.bf16.mxu0 0
      %3138 = vmatpush1.bf16.msra.mxu0 %v2564
      %3139 = vmatprep.subr.bf16.mxu0 0
      %3140 = vmatpush1.bf16.msra.mxu0 %v2563
      %3141 = vmatprep.subr.bf16.mxu0 0
      %3142 = vmatpush2.bf16.msra.mxu0 %v2578
      %3143 = vmatprep.subr.bf16.mxu0 0
      %3144 = vmatpush2.bf16.msra.mxu0 %v2577
      %3145 = vmatprep.subr.bf16.mxu0 0
      %3146 = vmatpush2.bf16.msra.mxu0 %v2576
      %3147 = vmatprep.subr.bf16.mxu0 0
      %3148 = vmatpush2.bf16.msra.mxu0 %v2575
      %3149 = vmatprep.subr.bf16.mxu0 0
      %3150 = vmatpush2.bf16.msra.mxu0 %v2574
      %3151 = vmatprep.subr.bf16.mxu0 0
      %3152 = vmatpush2.bf16.msra.mxu0 %v2573
      %3153 = vmatprep.subr.bf16.mxu0 0
      %3154 = vmatpush2.bf16.msra.mxu0 %v2572
      %3155 = vmatprep.subr.bf16.mxu0 0
      %3156 = vmatpush2.bf16.msra.mxu0 %v2571
      %3157 = vmatprep.mubr.bf16.mxu0 %v1348
      %3158 = vmatmul.mubr.bf16.gmra.mxu0 %v1347
      %v3159 = vpop.f32.mrf.mxu0
      %v3160 = vadd.f32 %v3079, %v3159
      %v3161 = vpop.f32.mrf.mxu0
      %v3162 = vpop.f32.mrf.mxu0
      %v3163 = vadd.f32 %v3082, %v3162
      %v3164 = vpop.f32.mrf.mxu0
      %3165 = vmatprep.mubr.bf16.mxu0 %v1375
      %3166 = vmatmul.mubr.bf16.gmra.mxu0 %v1374
      %v3167 = vpop.f32.mrf.mxu0
      %v3168 = vadd.f32 %v3087, %v3167
      %v3169 = vpop.f32.mrf.mxu0
      %v3170 = vpop.f32.mrf.mxu0
      %v3171 = vadd.f32 %v3090, %v3170
      %v3172 = vpop.f32.mrf.mxu0
      %3173 = vmatprep.mubr.bf16.mxu0 %v1402
      %3174 = vmatmul.mubr.bf16.gmra.mxu0 %v1401
      %v3175 = vpop.f32.mrf.mxu0
      %v3176 = vadd.f32 %v3095, %v3175
      %v3177 = vpop.f32.mrf.mxu0
      %v3178 = vpop.f32.mrf.mxu0
      %v3179 = vadd.f32 %v3098, %v3178
      %v3180 = vpop.f32.mrf.mxu0
      %3181 = vmatprep.mubr.bf16.mxu0 %v1429
      %3182 = vmatmul.mubr.bf16.gmra.mxu0 %v1428
      %v3183 = vpop.f32.mrf.mxu0
      %v3184 = vadd.f32 %v3103, %v3183
      %v3185 = vpop.f32.mrf.mxu0
      %v3186 = vpop.f32.mrf.mxu0
      %v3187 = vadd.f32 %v3106, %v3186
      %v3188 = vpop.f32.mrf.mxu0
      %3189 = vmatprep.mubr.bf16.mxu0 %v1456
      %3190 = vmatmul.mubr.bf16.gmra.mxu0 %v1455
      %v3191 = vpop.f32.mrf.mxu0
      %v3192 = vadd.f32 %v3111, %v3191
      %v3193 = vpop.f32.mrf.mxu0
      %v3194 = vpop.f32.mrf.mxu0
      %v3195 = vadd.f32 %v3114, %v3194
      %v3196 = vpop.f32.mrf.mxu0
      %3197 = vmatprep.mubr.bf16.mxu0 %v1483
      %3198 = vmatmul.mubr.bf16.gmra.mxu0 %v1482
      %v3199 = vpop.f32.mrf.mxu0
      %v3200 = vadd.f32 %v3119, %v3199
      %v3201 = vpop.f32.mrf.mxu0
      %v3202 = vpop.f32.mrf.mxu0
      %v3203 = vadd.f32 %v3122, %v3202
      %v3204 = vpop.f32.mrf.mxu0
      %3205 = vdwg.mxu0
      %3206 = vmatprep.subr.bf16.mxu0 0
      %3207 = vmatpush1.bf16.msra.mxu0 %v2586
      %3208 = vmatprep.subr.bf16.mxu0 0
      %3209 = vmatpush1.bf16.msra.mxu0 %v2585
      %3210 = vmatprep.subr.bf16.mxu0 0
      %3211 = vmatpush1.bf16.msra.mxu0 %v2584
      %3212 = vmatprep.subr.bf16.mxu0 0
      %3213 = vmatpush1.bf16.msra.mxu0 %v2583
      %3214 = vmatprep.subr.bf16.mxu0 0
      %3215 = vmatpush1.bf16.msra.mxu0 %v2582
      %3216 = vmatprep.subr.bf16.mxu0 0
      %3217 = vmatpush1.bf16.msra.mxu0 %v2581
      %3218 = vmatprep.subr.bf16.mxu0 0
      %3219 = vmatpush1.bf16.msra.mxu0 %v2580
      %3220 = vmatprep.subr.bf16.mxu0 0
      %3221 = vmatpush1.bf16.msra.mxu0 %v2579
      %3222 = vmatprep.subr.bf16.mxu0 0
      %3223 = vmatpush2.bf16.msra.mxu0 %v2594
      %3224 = vmatprep.subr.bf16.mxu0 0
      %3225 = vmatpush2.bf16.msra.mxu0 %v2593
      %3226 = vmatprep.subr.bf16.mxu0 0
      %3227 = vmatpush2.bf16.msra.mxu0 %v2592
      %3228 = vmatprep.subr.bf16.mxu0 0
      %3229 = vmatpush2.bf16.msra.mxu0 %v2591
      %3230 = vmatprep.subr.bf16.mxu0 0
      %3231 = vmatpush2.bf16.msra.mxu0 %v2590
      %3232 = vmatprep.subr.bf16.mxu0 0
      %3233 = vmatpush2.bf16.msra.mxu0 %v2589
      %3234 = vmatprep.subr.bf16.mxu0 0
      %3235 = vmatpush2.bf16.msra.mxu0 %v2588
      %3236 = vmatprep.subr.bf16.mxu0 0
      %3237 = vmatpush2.bf16.msra.mxu0 %v2587
      %3238 = vmatprep.mubr.bf16.mxu0 %v1350
      %3239 = vmatmul.mubr.bf16.gmra.mxu0 %v1349
      %v3240 = vpop.f32.mrf.mxu0
      %v3241 = vadd.f32 %v3160, %v3240
      %v3242 = vpop.f32.mrf.mxu0
      %v3243 = vpop.f32.mrf.mxu0
      %v3244 = vadd.f32 %v3163, %v3243
      %v3245 = vpop.f32.mrf.mxu0
      %3246 = vmatprep.mubr.bf16.mxu0 %v1377
      %3247 = vmatmul.mubr.bf16.gmra.mxu0 %v1376
      %v3248 = vpop.f32.mrf.mxu0
      %v3249 = vadd.f32 %v3168, %v3248
      %v3250 = vpop.f32.mrf.mxu0
      %v3251 = vpop.f32.mrf.mxu0
      %v3252 = vadd.f32 %v3171, %v3251
      %v3253 = vpop.f32.mrf.mxu0
      %3254 = vmatprep.mubr.bf16.mxu0 %v1404
      %3255 = vmatmul.mubr.bf16.gmra.mxu0 %v1403
      %v3256 = vpop.f32.mrf.mxu0
      %v3257 = vadd.f32 %v3176, %v3256
      %v3258 = vpop.f32.mrf.mxu0
      %v3259 = vpop.f32.mrf.mxu0
      %v3260 = vadd.f32 %v3179, %v3259
      %v3261 = vpop.f32.mrf.mxu0
      %3262 = vmatprep.mubr.bf16.mxu0 %v1431
      %3263 = vmatmul.mubr.bf16.gmra.mxu0 %v1430
      %v3264 = vpop.f32.mrf.mxu0
      %v3265 = vadd.f32 %v3184, %v3264
      %v3266 = vpop.f32.mrf.mxu0
      %v3267 = vpop.f32.mrf.mxu0
      %v3268 = vadd.f32 %v3187, %v3267
      %v3269 = vpop.f32.mrf.mxu0
      %3270 = vmatprep.mubr.bf16.mxu0 %v1458
      %3271 = vmatmul.mubr.bf16.gmra.mxu0 %v1457
      %v3272 = vpop.f32.mrf.mxu0
      %v3273 = vadd.f32 %v3192, %v3272
      %v3274 = vpop.f32.mrf.mxu0
      %v3275 = vpop.f32.mrf.mxu0
      %v3276 = vadd.f32 %v3195, %v3275
      %v3277 = vpop.f32.mrf.mxu0
      %3278 = vmatprep.mubr.bf16.mxu0 %v1485
      %3279 = vmatmul.mubr.bf16.gmra.mxu0 %v1484
      %v3280 = vpop.f32.mrf.mxu0
      %v3281 = vadd.f32 %v3200, %v3280
      %v3282 = vpop.f32.mrf.mxu0
      %v3283 = vpop.f32.mrf.mxu0
      %v3284 = vadd.f32 %v3203, %v3283
      %v3285 = vpop.f32.mrf.mxu0
      %3286 = vdwg.mxu0
      %3287 = vmatprep.subr.bf16.mxu0 0
      %3288 = vmatpush1.bf16.msra.mxu0 %v2602
      %3289 = vmatprep.subr.bf16.mxu0 0
      %3290 = vmatpush1.bf16.msra.mxu0 %v2601
      %3291 = vmatprep.subr.bf16.mxu0 0
      %3292 = vmatpush1.bf16.msra.mxu0 %v2600
      %3293 = vmatprep.subr.bf16.mxu0 0
      %3294 = vmatpush1.bf16.msra.mxu0 %v2599
      %3295 = vmatprep.subr.bf16.mxu0 0
      %3296 = vmatpush1.bf16.msra.mxu0 %v2598
      %3297 = vmatprep.subr.bf16.mxu0 0
      %3298 = vmatpush1.bf16.msra.mxu0 %v2597
      %3299 = vmatprep.subr.bf16.mxu0 0
      %3300 = vmatpush1.bf16.msra.mxu0 %v2596
      %3301 = vmatprep.subr.bf16.mxu0 0
      %3302 = vmatpush1.bf16.msra.mxu0 %v2595
      %3303 = vmatprep.subr.bf16.mxu0 0
      %3304 = vmatpush2.bf16.msra.mxu0 %v2610
      %3305 = vmatprep.subr.bf16.mxu0 0
      %3306 = vmatpush2.bf16.msra.mxu0 %v2609
      %3307 = vmatprep.subr.bf16.mxu0 0
      %3308 = vmatpush2.bf16.msra.mxu0 %v2608
      %3309 = vmatprep.subr.bf16.mxu0 0
      %3310 = vmatpush2.bf16.msra.mxu0 %v2607
      %3311 = vmatprep.subr.bf16.mxu0 0
      %3312 = vmatpush2.bf16.msra.mxu0 %v2606
      %3313 = vmatprep.subr.bf16.mxu0 0
      %3314 = vmatpush2.bf16.msra.mxu0 %v2605
      %3315 = vmatprep.subr.bf16.mxu0 0
      %3316 = vmatpush2.bf16.msra.mxu0 %v2604
      %3317 = vmatprep.subr.bf16.mxu0 0
      %3318 = vmatpush2.bf16.msra.mxu0 %v2603
      %3319 = vmatprep.mubr.bf16.mxu0 %v1352
      %3320 = vmatmul.mubr.bf16.gmra.mxu0 %v1351
      %v3321 = vpop.f32.mrf.mxu0
      %v3322 = vadd.f32 %v3241, %v3321
      %v3323 = vpop.f32.mrf.mxu0
      %v3324 = vpop.f32.mrf.mxu0
      %v3325 = vadd.f32 %v3244, %v3324
      %v3326 = vpop.f32.mrf.mxu0
      %3327 = vmatprep.mubr.bf16.mxu0 %v1379
      %3328 = vmatmul.mubr.bf16.gmra.mxu0 %v1378
      %v3329 = vpop.f32.mrf.mxu0
      %v3330 = vadd.f32 %v3249, %v3329
      %v3331 = vpop.f32.mrf.mxu0
      %v3332 = vpop.f32.mrf.mxu0
      %v3333 = vadd.f32 %v3252, %v3332
      %v3334 = vpop.f32.mrf.mxu0
      %3335 = vmatprep.mubr.bf16.mxu0 %v1406
      %3336 = vmatmul.mubr.bf16.gmra.mxu0 %v1405
      %v3337 = vpop.f32.mrf.mxu0
      %v3338 = vadd.f32 %v3257, %v3337
      %v3339 = vpop.f32.mrf.mxu0
      %v3340 = vpop.f32.mrf.mxu0
      %v3341 = vadd.f32 %v3260, %v3340
      %v3342 = vpop.f32.mrf.mxu0
      %3343 = vmatprep.mubr.bf16.mxu0 %v1433
      %3344 = vmatmul.mubr.bf16.gmra.mxu0 %v1432
      %v3345 = vpop.f32.mrf.mxu0
      %v3346 = vadd.f32 %v3265, %v3345
      %v3347 = vpop.f32.mrf.mxu0
      %v3348 = vpop.f32.mrf.mxu0
      %v3349 = vadd.f32 %v3268, %v3348
      %v3350 = vpop.f32.mrf.mxu0
      %3351 = vmatprep.mubr.bf16.mxu0 %v1460
      %3352 = vmatmul.mubr.bf16.gmra.mxu0 %v1459
      %v3353 = vpop.f32.mrf.mxu0
      %v3354 = vadd.f32 %v3273, %v3353
      %v3355 = vpop.f32.mrf.mxu0
      %v3356 = vpop.f32.mrf.mxu0
      %v3357 = vadd.f32 %v3276, %v3356
      %v3358 = vpop.f32.mrf.mxu0
      %3359 = vmatprep.mubr.bf16.mxu0 %v1487
      %3360 = vmatmul.mubr.bf16.gmra.mxu0 %v1486
      %v3361 = vpop.f32.mrf.mxu0
      %v3362 = vadd.f32 %v3281, %v3361
      %v3363 = vpop.f32.mrf.mxu0
      %v3364 = vpop.f32.mrf.mxu0
      %v3365 = vadd.f32 %v3284, %v3364
      %v3366 = vpop.f32.mrf.mxu0
      %3367 = vdwg.mxu0
      %3368 = vmatprep.subr.bf16.mxu0 0
      %3369 = vmatpush1.bf16.msra.mxu0 %v2618
      %3370 = vmatprep.subr.bf16.mxu0 0
      %3371 = vmatpush1.bf16.msra.mxu0 %v2617
      %3372 = vmatprep.subr.bf16.mxu0 0
      %3373 = vmatpush1.bf16.msra.mxu0 %v2616
      %3374 = vmatprep.subr.bf16.mxu0 0
      %3375 = vmatpush1.bf16.msra.mxu0 %v2615
      %3376 = vmatprep.subr.bf16.mxu0 0
      %3377 = vmatpush1.bf16.msra.mxu0 %v2614
      %3378 = vmatprep.subr.bf16.mxu0 0
      %3379 = vmatpush1.bf16.msra.mxu0 %v2613
      %3380 = vmatprep.subr.bf16.mxu0 0
      %3381 = vmatpush1.bf16.msra.mxu0 %v2612
      %3382 = vmatprep.subr.bf16.mxu0 0
      %3383 = vmatpush1.bf16.msra.mxu0 %v2611
      %3384 = vmatprep.subr.bf16.mxu0 0
      %3385 = vmatpush2.bf16.msra.mxu0 %v2626
      %3386 = vmatprep.subr.bf16.mxu0 0
      %3387 = vmatpush2.bf16.msra.mxu0 %v2625
      %3388 = vmatprep.subr.bf16.mxu0 0
      %3389 = vmatpush2.bf16.msra.mxu0 %v2624
      %3390 = vmatprep.subr.bf16.mxu0 0
      %3391 = vmatpush2.bf16.msra.mxu0 %v2623
      %3392 = vmatprep.subr.bf16.mxu0 0
      %3393 = vmatpush2.bf16.msra.mxu0 %v2622
      %3394 = vmatprep.subr.bf16.mxu0 0
      %3395 = vmatpush2.bf16.msra.mxu0 %v2621
      %3396 = vmatprep.subr.bf16.mxu0 0
      %3397 = vmatpush2.bf16.msra.mxu0 %v2620
      %3398 = vmatprep.subr.bf16.mxu0 0
      %3399 = vmatpush2.bf16.msra.mxu0 %v2619
      %3400 = vmatprep.mubr.bf16.mxu0 %v1354
      %3401 = vmatmul.mubr.bf16.gmra.mxu0 %v1353
      %v3402 = vpop.f32.mrf.mxu0
      %v3403 = vadd.f32 %v3322, %v3402
      %v3404 = vpop.f32.mrf.mxu0
      %v3405 = vpop.f32.mrf.mxu0
      %v3406 = vadd.f32 %v3325, %v3405
      %v3407 = vpop.f32.mrf.mxu0
      %3408 = vmatprep.mubr.bf16.mxu0 %v1381
      %3409 = vmatmul.mubr.bf16.gmra.mxu0 %v1380
      %v3410 = vpop.f32.mrf.mxu0
      %v3411 = vadd.f32 %v3330, %v3410
      %v3412 = vpop.f32.mrf.mxu0
      %v3413 = vpop.f32.mrf.mxu0
      %v3414 = vadd.f32 %v3333, %v3413
      %v3415 = vpop.f32.mrf.mxu0
      %3416 = vmatprep.mubr.bf16.mxu0 %v1408
      %3417 = vmatmul.mubr.bf16.gmra.mxu0 %v1407
      %v3418 = vpop.f32.mrf.mxu0
      %v3419 = vadd.f32 %v3338, %v3418
      %v3420 = vpop.f32.mrf.mxu0
      %v3421 = vpop.f32.mrf.mxu0
      %v3422 = vadd.f32 %v3341, %v3421
      %v3423 = vpop.f32.mrf.mxu0
      %3424 = vmatprep.mubr.bf16.mxu0 %v1435
      %3425 = vmatmul.mubr.bf16.gmra.mxu0 %v1434
      %v3426 = vpop.f32.mrf.mxu0
      %v3427 = vadd.f32 %v3346, %v3426
      %v3428 = vpop.f32.mrf.mxu0
      %v3429 = vpop.f32.mrf.mxu0
      %v3430 = vadd.f32 %v3349, %v3429
      %v3431 = vpop.f32.mrf.mxu0
      %3432 = vmatprep.mubr.bf16.mxu0 %v1462
      %3433 = vmatmul.mubr.bf16.gmra.mxu0 %v1461
      %v3434 = vpop.f32.mrf.mxu0
      %v3435 = vadd.f32 %v3354, %v3434
      %v3436 = vpop.f32.mrf.mxu0
      %v3437 = vpop.f32.mrf.mxu0
      %v3438 = vadd.f32 %v3357, %v3437
      %v3439 = vpop.f32.mrf.mxu0
      %3440 = vmatprep.mubr.bf16.mxu0 %v1489
      %3441 = vmatmul.mubr.bf16.gmra.mxu0 %v1488
      %v3442 = vpop.f32.mrf.mxu0
      %v3443 = vadd.f32 %v3362, %v3442
      %v3444 = vpop.f32.mrf.mxu0
      %v3445 = vpop.f32.mrf.mxu0
      %v3446 = vadd.f32 %v3365, %v3445
      %v3447 = vpop.f32.mrf.mxu0
      %3448 = vdwg.mxu0
      %3449 = vmatprep.subr.bf16.mxu0 0
      %3450 = vmatpush1.bf16.msra.mxu0 %v2634
      %3451 = vmatprep.subr.bf16.mxu0 0
      %3452 = vmatpush1.bf16.msra.mxu0 %v2633
      %3453 = vmatprep.subr.bf16.mxu0 0
      %3454 = vmatpush1.bf16.msra.mxu0 %v2632
      %3455 = vmatprep.subr.bf16.mxu0 0
      %3456 = vmatpush1.bf16.msra.mxu0 %v2631
      %3457 = vmatprep.subr.bf16.mxu0 0
      %3458 = vmatpush1.bf16.msra.mxu0 %v2630
      %3459 = vmatprep.subr.bf16.mxu0 0
      %3460 = vmatpush1.bf16.msra.mxu0 %v2629
      %3461 = vmatprep.subr.bf16.mxu0 0
      %3462 = vmatpush1.bf16.msra.mxu0 %v2628
      %3463 = vmatprep.subr.bf16.mxu0 0
      %3464 = vmatpush1.bf16.msra.mxu0 %v2627
      %3465 = vmatprep.subr.bf16.mxu0 0
      %3466 = vmatpush2.bf16.msra.mxu0 %v2642
      %3467 = vmatprep.subr.bf16.mxu0 0
      %3468 = vmatpush2.bf16.msra.mxu0 %v2641
      %3469 = vmatprep.subr.bf16.mxu0 0
      %3470 = vmatpush2.bf16.msra.mxu0 %v2640
      %3471 = vmatprep.subr.bf16.mxu0 0
      %3472 = vmatpush2.bf16.msra.mxu0 %v2639
      %3473 = vmatprep.subr.bf16.mxu0 0
      %3474 = vmatpush2.bf16.msra.mxu0 %v2638
      %3475 = vmatprep.subr.bf16.mxu0 0
      %3476 = vmatpush2.bf16.msra.mxu0 %v2637
      %3477 = vmatprep.subr.bf16.mxu0 0
      %3478 = vmatpush2.bf16.msra.mxu0 %v2636
      %3479 = vmatprep.subr.bf16.mxu0 0
      %3480 = vmatpush2.bf16.msra.mxu0 %v2635
      %3481 = vmatprep.mubr.bf16.mxu0 %v1356
      %3482 = vmatmul.mubr.bf16.gmra.mxu0 %v1355
      %v3483 = vpop.f32.mrf.mxu0
      %v3484 = vadd.f32 %v3403, %v3483
      %v3485 = vpop.f32.mrf.mxu0
      %v3486 = vpop.f32.mrf.mxu0
      %v3487 = vadd.f32 %v3406, %v3486
      %v3488 = vpop.f32.mrf.mxu0
      %3489 = vmatprep.mubr.bf16.mxu0 %v1383
      %3490 = vmatmul.mubr.bf16.gmra.mxu0 %v1382
      %v3491 = vpop.f32.mrf.mxu0
      %v3492 = vadd.f32 %v3411, %v3491
      %v3493 = vpop.f32.mrf.mxu0
      %v3494 = vpop.f32.mrf.mxu0
      %v3495 = vadd.f32 %v3414, %v3494
      %v3496 = vpop.f32.mrf.mxu0
      %3497 = vmatprep.mubr.bf16.mxu0 %v1410
      %3498 = vmatmul.mubr.bf16.gmra.mxu0 %v1409
      %v3499 = vpop.f32.mrf.mxu0
      %v3500 = vadd.f32 %v3419, %v3499
      %v3501 = vpop.f32.mrf.mxu0
      %v3502 = vpop.f32.mrf.mxu0
      %v3503 = vadd.f32 %v3422, %v3502
      %v3504 = vpop.f32.mrf.mxu0
      %3505 = vmatprep.mubr.bf16.mxu0 %v1437
      %3506 = vmatmul.mubr.bf16.gmra.mxu0 %v1436
      %v3507 = vpop.f32.mrf.mxu0
      %v3508 = vadd.f32 %v3427, %v3507
      %v3509 = vpop.f32.mrf.mxu0
      %v3510 = vpop.f32.mrf.mxu0
      %v3511 = vadd.f32 %v3430, %v3510
      %v3512 = vpop.f32.mrf.mxu0
      %3513 = vmatprep.mubr.bf16.mxu0 %v1464
      %3514 = vmatmul.mubr.bf16.gmra.mxu0 %v1463
      %v3515 = vpop.f32.mrf.mxu0
      %v3516 = vadd.f32 %v3435, %v3515
      %v3517 = vpop.f32.mrf.mxu0
      %v3518 = vpop.f32.mrf.mxu0
      %v3519 = vadd.f32 %v3438, %v3518
      %v3520 = vpop.f32.mrf.mxu0
      %3521 = vmatprep.mubr.bf16.mxu0 %v1491
      %3522 = vmatmul.mubr.bf16.gmra.mxu0 %v1490
      %v3523 = vpop.f32.mrf.mxu0
      %v3524 = vadd.f32 %v3443, %v3523
      %v3525 = vpop.f32.mrf.mxu0
      %v3526 = vpop.f32.mrf.mxu0
      %v3527 = vadd.f32 %v3446, %v3526
      %v3528 = vpop.f32.mrf.mxu0
      %3529 = vdwg.mxu0
      %3530 = vmatprep.subr.bf16.mxu0 0
      %3531 = vmatpush1.bf16.msra.mxu0 %v2650
      %3532 = vmatprep.subr.bf16.mxu0 0
      %3533 = vmatpush1.bf16.msra.mxu0 %v2649
      %3534 = vmatprep.subr.bf16.mxu0 0
      %3535 = vmatpush1.bf16.msra.mxu0 %v2648
      %3536 = vmatprep.subr.bf16.mxu0 0
      %3537 = vmatpush1.bf16.msra.mxu0 %v2647
      %3538 = vmatprep.subr.bf16.mxu0 0
      %3539 = vmatpush1.bf16.msra.mxu0 %v2646
      %3540 = vmatprep.subr.bf16.mxu0 0
      %3541 = vmatpush1.bf16.msra.mxu0 %v2645
      %3542 = vmatprep.subr.bf16.mxu0 0
      %3543 = vmatpush1.bf16.msra.mxu0 %v2644
      %3544 = vmatprep.subr.bf16.mxu0 0
      %3545 = vmatpush1.bf16.msra.mxu0 %v2643
      %3546 = vmatprep.subr.bf16.mxu0 0
      %3547 = vmatpush2.bf16.msra.mxu0 %v2658
      %3548 = vmatprep.subr.bf16.mxu0 0
      %3549 = vmatpush2.bf16.msra.mxu0 %v2657
      %3550 = vmatprep.subr.bf16.mxu0 0
      %3551 = vmatpush2.bf16.msra.mxu0 %v2656
      %3552 = vmatprep.subr.bf16.mxu0 0
      %3553 = vmatpush2.bf16.msra.mxu0 %v2655
      %3554 = vmatprep.subr.bf16.mxu0 0
      %3555 = vmatpush2.bf16.msra.mxu0 %v2654
      %3556 = vmatprep.subr.bf16.mxu0 0
      %3557 = vmatpush2.bf16.msra.mxu0 %v2653
      %3558 = vmatprep.subr.bf16.mxu0 0
      %3559 = vmatpush2.bf16.msra.mxu0 %v2652
      %3560 = vmatprep.subr.bf16.mxu0 0
      %3561 = vmatpush2.bf16.msra.mxu0 %v2651
      %3562 = vmatprep.mubr.bf16.mxu0 %v1358
      %3563 = vmatmul.mubr.bf16.gmra.mxu0 %v1357
      %v3564 = vpop.f32.mrf.mxu0
      %v3565 = vadd.f32 %v3484, %v3564
      %v3566 = vpop.f32.mrf.mxu0
      %v3567 = vpop.f32.mrf.mxu0
      %v3568 = vadd.f32 %v3487, %v3567
      %v3569 = vpop.f32.mrf.mxu0
      %3570 = vmatprep.mubr.bf16.mxu0 %v1385
      %3571 = vmatmul.mubr.bf16.gmra.mxu0 %v1384
      %v3572 = vpop.f32.mrf.mxu0
      %v3573 = vadd.f32 %v3492, %v3572
      %v3574 = vpop.f32.mrf.mxu0
      %v3575 = vpop.f32.mrf.mxu0
      %v3576 = vadd.f32 %v3495, %v3575
      %v3577 = vpop.f32.mrf.mxu0
      %3578 = vmatprep.mubr.bf16.mxu0 %v1412
      %3579 = vmatmul.mubr.bf16.gmra.mxu0 %v1411
      %v3580 = vpop.f32.mrf.mxu0
      %v3581 = vadd.f32 %v3500, %v3580
      %v3582 = vpop.f32.mrf.mxu0
      %v3583 = vpop.f32.mrf.mxu0
      %v3584 = vadd.f32 %v3503, %v3583
      %v3585 = vpop.f32.mrf.mxu0
      %3586 = vmatprep.mubr.bf16.mxu0 %v1439
      %3587 = vmatmul.mubr.bf16.gmra.mxu0 %v1438
      %v3588 = vpop.f32.mrf.mxu0
      %v3589 = vadd.f32 %v3508, %v3588
      %v3590 = vpop.f32.mrf.mxu0
      %v3591 = vpop.f32.mrf.mxu0
      %v3592 = vadd.f32 %v3511, %v3591
      %v3593 = vpop.f32.mrf.mxu0
      %3594 = vmatprep.mubr.bf16.mxu0 %v1466
      %3595 = vmatmul.mubr.bf16.gmra.mxu0 %v1465
      %v3596 = vpop.f32.mrf.mxu0
      %v3597 = vadd.f32 %v3516, %v3596
      %v3598 = vpop.f32.mrf.mxu0
      %v3599 = vpop.f32.mrf.mxu0
      %v3600 = vadd.f32 %v3519, %v3599
      %v3601 = vpop.f32.mrf.mxu0
      %3602 = vmatprep.mubr.bf16.mxu0 %v1493
      %3603 = vmatmul.mubr.bf16.gmra.mxu0 %v1492
      %v3604 = vpop.f32.mrf.mxu0
      %v3605 = vadd.f32 %v3524, %v3604
      %v3606 = vpop.f32.mrf.mxu0
      %v3607 = vpop.f32.mrf.mxu0
      %v3608 = vadd.f32 %v3527, %v3607
      %v3609 = vpop.f32.mrf.mxu0
      %3610 = vdwg.mxu0
      %3611 = vmatprep.subr.bf16.mxu0 0
      %3612 = vmatpush1.bf16.msra.mxu0 %v2666
      %3613 = vmatprep.subr.bf16.mxu0 0
      %3614 = vmatpush1.bf16.msra.mxu0 %v2665
      %3615 = vmatprep.subr.bf16.mxu0 0
      %3616 = vmatpush1.bf16.msra.mxu0 %v2664
      %3617 = vmatprep.subr.bf16.mxu0 0
      %3618 = vmatpush1.bf16.msra.mxu0 %v2663
      %3619 = vmatprep.subr.bf16.mxu0 0
      %3620 = vmatpush1.bf16.msra.mxu0 %v2662
      %3621 = vmatprep.subr.bf16.mxu0 0
      %3622 = vmatpush1.bf16.msra.mxu0 %v2661
      %3623 = vmatprep.subr.bf16.mxu0 0
      %3624 = vmatpush1.bf16.msra.mxu0 %v2660
      %3625 = vmatprep.subr.bf16.mxu0 0
      %3626 = vmatpush1.bf16.msra.mxu0 %v2659
      %3627 = vmatprep.subr.bf16.mxu0 0
      %3628 = vmatpush2.bf16.msra.mxu0 %v2674
      %3629 = vmatprep.subr.bf16.mxu0 0
      %3630 = vmatpush2.bf16.msra.mxu0 %v2673
      %3631 = vmatprep.subr.bf16.mxu0 0
      %3632 = vmatpush2.bf16.msra.mxu0 %v2672
      %3633 = vmatprep.subr.bf16.mxu0 0
      %3634 = vmatpush2.bf16.msra.mxu0 %v2671
      %3635 = vmatprep.subr.bf16.mxu0 0
      %3636 = vmatpush2.bf16.msra.mxu0 %v2670
      %3637 = vmatprep.subr.bf16.mxu0 0
      %3638 = vmatpush2.bf16.msra.mxu0 %v2669
      %3639 = vmatprep.subr.bf16.mxu0 0
      %3640 = vmatpush2.bf16.msra.mxu0 %v2668
      %3641 = vmatprep.subr.bf16.mxu0 0
      %3642 = vmatpush2.bf16.msra.mxu0 %v2667
      %3643 = vmatprep.mubr.bf16.mxu0 %v1360
      %3644 = vmatmul.mubr.bf16.gmra.mxu0 %v1359
      %v3645 = vpop.f32.mrf.mxu0
      %v3646 = vadd.f32 %v3565, %v3645
      %v3647 = vpop.f32.mrf.mxu0
      %v3648 = vpop.f32.mrf.mxu0
      %v3649 = vadd.f32 %v3568, %v3648
      %v3650 = vpop.f32.mrf.mxu0
      %3651 = vmatprep.mubr.bf16.mxu0 %v1387
      %3652 = vmatmul.mubr.bf16.gmra.mxu0 %v1386
      %v3653 = vpop.f32.mrf.mxu0
      %v3654 = vadd.f32 %v3573, %v3653
      %v3655 = vpop.f32.mrf.mxu0
      %v3656 = vpop.f32.mrf.mxu0
      %v3657 = vadd.f32 %v3576, %v3656
      %v3658 = vpop.f32.mrf.mxu0
      %3659 = vmatprep.mubr.bf16.mxu0 %v1414
      %3660 = vmatmul.mubr.bf16.gmra.mxu0 %v1413
      %v3661 = vpop.f32.mrf.mxu0
      %v3662 = vadd.f32 %v3581, %v3661
      %v3663 = vpop.f32.mrf.mxu0
      %v3664 = vpop.f32.mrf.mxu0
      %v3665 = vadd.f32 %v3584, %v3664
      %v3666 = vpop.f32.mrf.mxu0
      %3667 = vmatprep.mubr.bf16.mxu0 %v1441
      %3668 = vmatmul.mubr.bf16.gmra.mxu0 %v1440
      %v3669 = vpop.f32.mrf.mxu0
      %v3670 = vadd.f32 %v3589, %v3669
      %v3671 = vpop.f32.mrf.mxu0
      %v3672 = vpop.f32.mrf.mxu0
      %v3673 = vadd.f32 %v3592, %v3672
      %v3674 = vpop.f32.mrf.mxu0
      %3675 = vmatprep.mubr.bf16.mxu0 %v1468
      %3676 = vmatmul.mubr.bf16.gmra.mxu0 %v1467
      %v3677 = vpop.f32.mrf.mxu0
      %v3678 = vadd.f32 %v3597, %v3677
      %v3679 = vpop.f32.mrf.mxu0
      %v3680 = vpop.f32.mrf.mxu0
      %v3681 = vadd.f32 %v3600, %v3680
      %v3682 = vpop.f32.mrf.mxu0
      %3683 = vmatprep.mubr.bf16.mxu0 %v1495
      %3684 = vmatmul.mubr.bf16.gmra.mxu0 %v1494
      %v3685 = vpop.f32.mrf.mxu0
      %v3686 = vadd.f32 %v3605, %v3685
      %v3687 = vpop.f32.mrf.mxu0
      %v3688 = vpop.f32.mrf.mxu0
      %v3689 = vadd.f32 %v3608, %v3688
      %v3690 = vpop.f32.mrf.mxu0
      %3691 = vdwg.mxu0
      %3692 = vmatprep.subr.bf16.mxu0 0
      %3693 = vmatpush1.bf16.msra.mxu0 %v2682
      %3694 = vmatprep.subr.bf16.mxu0 0
      %3695 = vmatpush1.bf16.msra.mxu0 %v2681
      %3696 = vmatprep.subr.bf16.mxu0 0
      %3697 = vmatpush1.bf16.msra.mxu0 %v2680
      %3698 = vmatprep.subr.bf16.mxu0 0
      %3699 = vmatpush1.bf16.msra.mxu0 %v2679
      %3700 = vmatprep.subr.bf16.mxu0 0
      %3701 = vmatpush1.bf16.msra.mxu0 %v2678
      %3702 = vmatprep.subr.bf16.mxu0 0
      %3703 = vmatpush1.bf16.msra.mxu0 %v2677
      %3704 = vmatprep.subr.bf16.mxu0 0
      %3705 = vmatpush1.bf16.msra.mxu0 %v2676
      %3706 = vmatprep.subr.bf16.mxu0 0
      %3707 = vmatpush1.bf16.msra.mxu0 %v2675
      %3708 = vmatprep.subr.bf16.mxu0 0
      %3709 = vmatpush2.bf16.msra.mxu0 %v2690
      %3710 = vmatprep.subr.bf16.mxu0 0
      %3711 = vmatpush2.bf16.msra.mxu0 %v2689
      %3712 = vmatprep.subr.bf16.mxu0 0
      %3713 = vmatpush2.bf16.msra.mxu0 %v2688
      %3714 = vmatprep.subr.bf16.mxu0 0
      %3715 = vmatpush2.bf16.msra.mxu0 %v2687
      %3716 = vmatprep.subr.bf16.mxu0 0
      %3717 = vmatpush2.bf16.msra.mxu0 %v2686
      %3718 = vmatprep.subr.bf16.mxu0 0
      %3719 = vmatpush2.bf16.msra.mxu0 %v2685
      %3720 = vmatprep.subr.bf16.mxu0 0
      %3721 = vmatpush2.bf16.msra.mxu0 %v2684
      %3722 = vmatprep.subr.bf16.mxu0 0
      %3723 = vmatpush2.bf16.msra.mxu0 %v2683
      %3724 = vmatprep.mubr.bf16.mxu0 %v1362
      %3725 = vmatmul.mubr.bf16.gmra.mxu0 %v1361
      %v3726 = vpop.f32.mrf.mxu0
      %v3727 = vadd.f32 %v3646, %v3726
      %v3728 = vpop.f32.mrf.mxu0
      %v3729 = vpop.f32.mrf.mxu0
      %v3730 = vadd.f32 %v3649, %v3729
      %v3731 = vpop.f32.mrf.mxu0
      %3732 = vmatprep.mubr.bf16.mxu0 %v1389
      %3733 = vmatmul.mubr.bf16.gmra.mxu0 %v1388
      %v3734 = vpop.f32.mrf.mxu0
      %v3735 = vadd.f32 %v3654, %v3734
      %v3736 = vpop.f32.mrf.mxu0
      %v3737 = vpop.f32.mrf.mxu0
      %v3738 = vadd.f32 %v3657, %v3737
      %v3739 = vpop.f32.mrf.mxu0
      %3740 = vmatprep.mubr.bf16.mxu0 %v1416
      %3741 = vmatmul.mubr.bf16.gmra.mxu0 %v1415
      %v3742 = vpop.f32.mrf.mxu0
      %v3743 = vadd.f32 %v3662, %v3742
      %v3744 = vpop.f32.mrf.mxu0
      %v3745 = vpop.f32.mrf.mxu0
      %v3746 = vadd.f32 %v3665, %v3745
      %v3747 = vpop.f32.mrf.mxu0
      %3748 = vmatprep.mubr.bf16.mxu0 %v1443
      %3749 = vmatmul.mubr.bf16.gmra.mxu0 %v1442
      %v3750 = vpop.f32.mrf.mxu0
      %v3751 = vadd.f32 %v3670, %v3750
      %v3752 = vpop.f32.mrf.mxu0
      %v3753 = vpop.f32.mrf.mxu0
      %v3754 = vadd.f32 %v3673, %v3753
      %v3755 = vpop.f32.mrf.mxu0
      %3756 = vmatprep.mubr.bf16.mxu0 %v1470
      %3757 = vmatmul.mubr.bf16.gmra.mxu0 %v1469
      %v3758 = vpop.f32.mrf.mxu0
      %v3759 = vadd.f32 %v3678, %v3758
      %v3760 = vpop.f32.mrf.mxu0
      %v3761 = vpop.f32.mrf.mxu0
      %v3762 = vadd.f32 %v3681, %v3761
      %v3763 = vpop.f32.mrf.mxu0
      %3764 = vmatprep.mubr.bf16.mxu0 %v1497
      %3765 = vmatmul.mubr.bf16.gmra.mxu0 %v1496
      %v3766 = vpop.f32.mrf.mxu0
      %v3767 = vadd.f32 %v3686, %v3766
      %v3768 = vpop.f32.mrf.mxu0
      %v3769 = vpop.f32.mrf.mxu0
      %v3770 = vadd.f32 %v3689, %v3769
      %v3771 = vpop.f32.mrf.mxu0
      %3772 = vdwg.mxu0
      %3773 = vmatprep.subr.bf16.mxu0 0
      %3774 = vmatpush1.bf16.msra.mxu0 %v2698
      %3775 = vmatprep.subr.bf16.mxu0 0
      %3776 = vmatpush1.bf16.msra.mxu0 %v2697
      %3777 = vmatprep.subr.bf16.mxu0 0
      %3778 = vmatpush1.bf16.msra.mxu0 %v2696
      %3779 = vmatprep.subr.bf16.mxu0 0
      %3780 = vmatpush1.bf16.msra.mxu0 %v2695
      %3781 = vmatprep.subr.bf16.mxu0 0
      %3782 = vmatpush1.bf16.msra.mxu0 %v2694
      %3783 = vmatprep.subr.bf16.mxu0 0
      %3784 = vmatpush1.bf16.msra.mxu0 %v2693
      %3785 = vmatprep.subr.bf16.mxu0 0
      %3786 = vmatpush1.bf16.msra.mxu0 %v2692
      %3787 = vmatprep.subr.bf16.mxu0 0
      %3788 = vmatpush1.bf16.msra.mxu0 %v2691
      %3789 = vmatprep.subr.bf16.mxu0 0
      %3790 = vmatpush2.bf16.msra.mxu0 %v2706
      %3791 = vmatprep.subr.bf16.mxu0 0
      %3792 = vmatpush2.bf16.msra.mxu0 %v2705
      %3793 = vmatprep.subr.bf16.mxu0 0
      %3794 = vmatpush2.bf16.msra.mxu0 %v2704
      %3795 = vmatprep.subr.bf16.mxu0 0
      %3796 = vmatpush2.bf16.msra.mxu0 %v2703
      %3797 = vmatprep.subr.bf16.mxu0 0
      %3798 = vmatpush2.bf16.msra.mxu0 %v2702
      %3799 = vmatprep.subr.bf16.mxu0 0
      %3800 = vmatpush2.bf16.msra.mxu0 %v2701
      %3801 = vmatprep.subr.bf16.mxu0 0
      %3802 = vmatpush2.bf16.msra.mxu0 %v2700
      %3803 = vmatprep.subr.bf16.mxu0 0
      %3804 = vmatpush2.bf16.msra.mxu0 %v2699
      %3805 = vmatprep.mubr.bf16.mxu0 %v1364
      %3806 = vmatmul.mubr.bf16.gmra.mxu0 %v1363
      %v3807 = vpop.f32.mrf.mxu0
      %v3808 = vadd.f32 %v3727, %v3807
      %v3809 = vpop.f32.mrf.mxu0
      %v3810 = vpop.f32.mrf.mxu0
      %v3811 = vadd.f32 %v3730, %v3810
      %v3812 = vpop.f32.mrf.mxu0
      %3813 = vmatprep.mubr.bf16.mxu0 %v1391
      %3814 = vmatmul.mubr.bf16.gmra.mxu0 %v1390
      %v3815 = vpop.f32.mrf.mxu0
      %v3816 = vadd.f32 %v3735, %v3815
      %v3817 = vpop.f32.mrf.mxu0
      %v3818 = vpop.f32.mrf.mxu0
      %v3819 = vadd.f32 %v3738, %v3818
      %v3820 = vpop.f32.mrf.mxu0
      %3821 = vmatprep.mubr.bf16.mxu0 %v1418
      %3822 = vmatmul.mubr.bf16.gmra.mxu0 %v1417
      %v3823 = vpop.f32.mrf.mxu0
      %v3824 = vadd.f32 %v3743, %v3823
      %v3825 = vpop.f32.mrf.mxu0
      %v3826 = vpop.f32.mrf.mxu0
      %v3827 = vadd.f32 %v3746, %v3826
      %v3828 = vpop.f32.mrf.mxu0
      %3829 = vmatprep.mubr.bf16.mxu0 %v1445
      %3830 = vmatmul.mubr.bf16.gmra.mxu0 %v1444
      %v3831 = vpop.f32.mrf.mxu0
      %v3832 = vadd.f32 %v3751, %v3831
      %v3833 = vpop.f32.mrf.mxu0
      %v3834 = vpop.f32.mrf.mxu0
      %v3835 = vadd.f32 %v3754, %v3834
      %v3836 = vpop.f32.mrf.mxu0
      %3837 = vmatprep.mubr.bf16.mxu0 %v1472
      %3838 = vmatmul.mubr.bf16.gmra.mxu0 %v1471
      %v3839 = vpop.f32.mrf.mxu0
      %v3840 = vadd.f32 %v3759, %v3839
      %v3841 = vpop.f32.mrf.mxu0
      %v3842 = vpop.f32.mrf.mxu0
      %v3843 = vadd.f32 %v3762, %v3842
      %v3844 = vpop.f32.mrf.mxu0
      %3845 = vmatprep.mubr.bf16.mxu0 %v1499
      %3846 = vmatmul.mubr.bf16.gmra.mxu0 %v1498
      %v3847 = vpop.f32.mrf.mxu0
      %v3848 = vadd.f32 %v3767, %v3847
      %v3849 = vpop.f32.mrf.mxu0
      %v3850 = vpop.f32.mrf.mxu0
      %v3851 = vadd.f32 %v3770, %v3850
      %v3852 = vpop.f32.mrf.mxu0
      %3853 = vdwg.mxu0
      %3854 = vmatprep.subr.bf16.mxu0 0
      %3855 = vmatpush1.bf16.msra.mxu0 %v2714
      %3856 = vmatprep.subr.bf16.mxu0 0
      %3857 = vmatpush1.bf16.msra.mxu0 %v2713
      %3858 = vmatprep.subr.bf16.mxu0 0
      %3859 = vmatpush1.bf16.msra.mxu0 %v2712
      %3860 = vmatprep.subr.bf16.mxu0 0
      %3861 = vmatpush1.bf16.msra.mxu0 %v2711
      %3862 = vmatprep.subr.bf16.mxu0 0
      %3863 = vmatpush1.bf16.msra.mxu0 %v2710
      %3864 = vmatprep.subr.bf16.mxu0 0
      %3865 = vmatpush1.bf16.msra.mxu0 %v2709
      %3866 = vmatprep.subr.bf16.mxu0 0
      %3867 = vmatpush1.bf16.msra.mxu0 %v2708
      %3868 = vmatprep.subr.bf16.mxu0 0
      %3869 = vmatpush1.bf16.msra.mxu0 %v2707
      %3870 = vmatprep.subr.bf16.mxu0 0
      %3871 = vmatpush2.bf16.msra.mxu0 %v2722
      %3872 = vmatprep.subr.bf16.mxu0 0
      %3873 = vmatpush2.bf16.msra.mxu0 %v2721
      %3874 = vmatprep.subr.bf16.mxu0 0
      %3875 = vmatpush2.bf16.msra.mxu0 %v2720
      %3876 = vmatprep.subr.bf16.mxu0 0
      %3877 = vmatpush2.bf16.msra.mxu0 %v2719
      %3878 = vmatprep.subr.bf16.mxu0 0
      %3879 = vmatpush2.bf16.msra.mxu0 %v2718
      %3880 = vmatprep.subr.bf16.mxu0 0
      %3881 = vmatpush2.bf16.msra.mxu0 %v2717
      %3882 = vmatprep.subr.bf16.mxu0 0
      %3883 = vmatpush2.bf16.msra.mxu0 %v2716
      %3884 = vmatprep.subr.bf16.mxu0 0
      %3885 = vmatpush2.bf16.msra.mxu0 %v2715
      %3886 = vmatprep.mubr.bf16.mxu0 %v1366
      %3887 = vmatmul.mubr.bf16.gmra.mxu0 %v1365
      %v3888 = vpop.f32.mrf.mxu0
      %v3889 = vadd.f32 %v3808, %v3888
      %v3890 = vpop.f32.mrf.mxu0
      %v3891 = vpop.f32.mrf.mxu0
      %v3892 = vadd.f32 %v3811, %v3891
      %v3893 = vpop.f32.mrf.mxu0
      %3894 = vmatprep.mubr.bf16.mxu0 %v1393
      %3895 = vmatmul.mubr.bf16.gmra.mxu0 %v1392
      %v3896 = vpop.f32.mrf.mxu0
      %v3897 = vadd.f32 %v3816, %v3896
      %v3898 = vpop.f32.mrf.mxu0
      %v3899 = vpop.f32.mrf.mxu0
      %v3900 = vadd.f32 %v3819, %v3899
      %v3901 = vpop.f32.mrf.mxu0
      %3902 = vmatprep.mubr.bf16.mxu0 %v1420
      %3903 = vmatmul.mubr.bf16.gmra.mxu0 %v1419
      %v3904 = vpop.f32.mrf.mxu0
      %v3905 = vadd.f32 %v3824, %v3904
      %v3906 = vpop.f32.mrf.mxu0
      %v3907 = vpop.f32.mrf.mxu0
      %v3908 = vadd.f32 %v3827, %v3907
      %v3909 = vpop.f32.mrf.mxu0
      %3910 = vmatprep.mubr.bf16.mxu0 %v1447
      %3911 = vmatmul.mubr.bf16.gmra.mxu0 %v1446
      %v3912 = vpop.f32.mrf.mxu0
      %v3913 = vadd.f32 %v3832, %v3912
      %v3914 = vpop.f32.mrf.mxu0
      %v3915 = vpop.f32.mrf.mxu0
      %v3916 = vadd.f32 %v3835, %v3915
      %v3917 = vpop.f32.mrf.mxu0
      %3918 = vmatprep.mubr.bf16.mxu0 %v1474
      %3919 = vmatmul.mubr.bf16.gmra.mxu0 %v1473
      %v3920 = vpop.f32.mrf.mxu0
      %v3921 = vadd.f32 %v3840, %v3920
      %v3922 = vpop.f32.mrf.mxu0
      %v3923 = vpop.f32.mrf.mxu0
      %v3924 = vadd.f32 %v3843, %v3923
      %v3925 = vpop.f32.mrf.mxu0
      %3926 = vmatprep.mubr.bf16.mxu0 %v1501
      %3927 = vmatmul.mubr.bf16.gmra.mxu0 %v1500
      %v3928 = vpop.f32.mrf.mxu0
      %v3929 = vadd.f32 %v3848, %v3928
      %v3930 = vpop.f32.mrf.mxu0
      %v3931 = vpop.f32.mrf.mxu0
      %v3932 = vadd.f32 %v3851, %v3931
      %v3933 = vpop.f32.mrf.mxu0
      %3934 = vdwg.mxu0
      %3935 = vmatprep.subr.bf16.mxu0 0
      %3936 = vmatpush1.bf16.msra.mxu0 %v2730
      %3937 = vmatprep.subr.bf16.mxu0 0
      %3938 = vmatpush1.bf16.msra.mxu0 %v2729
      %3939 = vmatprep.subr.bf16.mxu0 0
      %3940 = vmatpush1.bf16.msra.mxu0 %v2728
      %3941 = vmatprep.subr.bf16.mxu0 0
      %3942 = vmatpush1.bf16.msra.mxu0 %v2727
      %3943 = vmatprep.subr.bf16.mxu0 0
      %3944 = vmatpush1.bf16.msra.mxu0 %v2726
      %3945 = vmatprep.subr.bf16.mxu0 0
      %3946 = vmatpush1.bf16.msra.mxu0 %v2725
      %3947 = vmatprep.subr.bf16.mxu0 0
      %3948 = vmatpush1.bf16.msra.mxu0 %v2724
      %3949 = vmatprep.subr.bf16.mxu0 0
      %3950 = vmatpush1.bf16.msra.mxu0 %v2723
      %3951 = vmatprep.subr.bf16.mxu0 0
      %3952 = vmatpush2.bf16.msra.mxu0 %v2738
      %3953 = vmatprep.subr.bf16.mxu0 0
      %3954 = vmatpush2.bf16.msra.mxu0 %v2737
      %3955 = vmatprep.subr.bf16.mxu0 0
      %3956 = vmatpush2.bf16.msra.mxu0 %v2736
      %3957 = vmatprep.subr.bf16.mxu0 0
      %3958 = vmatpush2.bf16.msra.mxu0 %v2735
      %3959 = vmatprep.subr.bf16.mxu0 0
      %3960 = vmatpush2.bf16.msra.mxu0 %v2734
      %3961 = vmatprep.subr.bf16.mxu0 0
      %3962 = vmatpush2.bf16.msra.mxu0 %v2733
      %3963 = vmatprep.subr.bf16.mxu0 0
      %3964 = vmatpush2.bf16.msra.mxu0 %v2732
      %3965 = vmatprep.subr.bf16.mxu0 0
      %3966 = vmatpush2.bf16.msra.mxu0 %v2731
      %3967 = vmatprep.mubr.bf16.mxu0 %v1368
      %3968 = vmatmul.mubr.bf16.gmra.mxu0 %v1367
      %v3969 = vpop.f32.mrf.mxu0
      %v3970 = vadd.f32 %v3889, %v3969
      %v3971 = vpop.f32.mrf.mxu0
      %v3972 = vpop.f32.mrf.mxu0
      %v3973 = vadd.f32 %v3892, %v3972
      %v3974 = vpop.f32.mrf.mxu0
      %3975 = vmatprep.mubr.bf16.mxu0 %v1395
      %3976 = vmatmul.mubr.bf16.gmra.mxu0 %v1394
      %v3977 = vpop.f32.mrf.mxu0
      %v3978 = vadd.f32 %v3897, %v3977
      %v3979 = vpop.f32.mrf.mxu0
      %v3980 = vpop.f32.mrf.mxu0
      %v3981 = vadd.f32 %v3900, %v3980
      %v3982 = vpop.f32.mrf.mxu0
      %3983 = vmatprep.mubr.bf16.mxu0 %v1422
      %3984 = vmatmul.mubr.bf16.gmra.mxu0 %v1421
      %v3985 = vpop.f32.mrf.mxu0
      %v3986 = vadd.f32 %v3905, %v3985
      %v3987 = vpop.f32.mrf.mxu0
      %v3988 = vpop.f32.mrf.mxu0
      %v3989 = vadd.f32 %v3908, %v3988
      %v3990 = vpop.f32.mrf.mxu0
      %3991 = vmatprep.mubr.bf16.mxu0 %v1449
      %3992 = vmatmul.mubr.bf16.gmra.mxu0 %v1448
      %v3993 = vpop.f32.mrf.mxu0
      %v3994 = vadd.f32 %v3913, %v3993
      %v3995 = vpop.f32.mrf.mxu0
      %v3996 = vpop.f32.mrf.mxu0
      %v3997 = vadd.f32 %v3916, %v3996
      %v3998 = vpop.f32.mrf.mxu0
      %3999 = vmatprep.mubr.bf16.mxu0 %v1476
      %4000 = vmatmul.mubr.bf16.gmra.mxu0 %v1475
      %v4001 = vpop.f32.mrf.mxu0
      %v4002 = vadd.f32 %v3921, %v4001
      %v4003 = vpop.f32.mrf.mxu0
      %v4004 = vpop.f32.mrf.mxu0
      %v4005 = vadd.f32 %v3924, %v4004
      %v4006 = vpop.f32.mrf.mxu0
      %4007 = vmatprep.mubr.bf16.mxu0 %v1503
      %4008 = vmatmul.mubr.bf16.gmra.mxu0 %v1502
      %v4009 = vpop.f32.mrf.mxu0
      %v4010 = vadd.f32 %v3929, %v4009
      %v4011 = vpop.f32.mrf.mxu0
      %v4012 = vpop.f32.mrf.mxu0
      %v4013 = vadd.f32 %v3932, %v4012
      %v4014 = vpop.f32.mrf.mxu0
      %4015 = vdwg.mxu0
      %4016 = vmatprep.subr.bf16.mxu0 0
      %4017 = vmatpush1.bf16.msra.mxu0 %v2746
      %4018 = vmatprep.subr.bf16.mxu0 0
      %4019 = vmatpush1.bf16.msra.mxu0 %v2745
      %4020 = vmatprep.subr.bf16.mxu0 0
      %4021 = vmatpush1.bf16.msra.mxu0 %v2744
      %4022 = vmatprep.subr.bf16.mxu0 0
      %4023 = vmatpush1.bf16.msra.mxu0 %v2743
      %4024 = vmatprep.subr.bf16.mxu0 0
      %4025 = vmatpush1.bf16.msra.mxu0 %v2742
      %4026 = vmatprep.subr.bf16.mxu0 0
      %4027 = vmatpush1.bf16.msra.mxu0 %v2741
      %4028 = vmatprep.subr.bf16.mxu0 0
      %4029 = vmatpush1.bf16.msra.mxu0 %v2740
      %4030 = vmatprep.subr.bf16.mxu0 0
      %4031 = vmatpush1.bf16.msra.mxu0 %v2739
      %4032 = vmatprep.subr.bf16.mxu0 0
      %4033 = vmatpush2.bf16.msra.mxu0 0
      %4034 = vmatprep.subr.bf16.mxu0 0
      %4035 = vmatpush2.bf16.msra.mxu0 0
      %4036 = vmatprep.subr.bf16.mxu0 0
      %4037 = vmatpush2.bf16.msra.mxu0 0
      %4038 = vmatprep.subr.bf16.mxu0 0
      %4039 = vmatpush2.bf16.msra.mxu0 0
      %4040 = vmatprep.subr.bf16.mxu0 0
      %4041 = vmatpush2.bf16.msra.mxu0 0
      %4042 = vmatprep.subr.bf16.mxu0 0
      %4043 = vmatpush2.bf16.msra.mxu0 0
      %4044 = vmatprep.subr.bf16.mxu0 0
      %4045 = vmatpush2.bf16.msra.mxu0 0
      %4046 = vmatprep.subr.bf16.mxu0 0
      %4047 = vmatpush2.bf16.msra.mxu0 0
      %4048 = vmatprep.mubr.bf16.mxu0 0
      %4049 = vmatmul.mubr.bf16.gmra.mxu0 %v1369
      %v4050 = vpop.f32.mrf.mxu0
      %v4051 = vadd.f32 %v3970, %v4050
      %v4052 = vpop.f32.mrf.mxu0
      %v4053 = vpop.f32.mrf.mxu0
      %v4054 = vadd.f32 %v3973, %v4053
      %v4055 = vpop.f32.mrf.mxu0
      %4056 = vmatprep.mubr.bf16.mxu0 0
      %4057 = vmatmul.mubr.bf16.gmra.mxu0 %v1396
      %v4058 = vpop.f32.mrf.mxu0
      %v4059 = vadd.f32 %v3978, %v4058
      %v4060 = vpop.f32.mrf.mxu0
      %v4061 = vpop.f32.mrf.mxu0
      %v4062 = vadd.f32 %v3981, %v4061
      %v4063 = vpop.f32.mrf.mxu0
      %4064 = vmatprep.mubr.bf16.mxu0 0
      %4065 = vmatmul.mubr.bf16.gmra.mxu0 %v1423
      %v4066 = vpop.f32.mrf.mxu0
      %v4067 = vadd.f32 %v3986, %v4066
      %v4068 = vpop.f32.mrf.mxu0
      %v4069 = vpop.f32.mrf.mxu0
      %v4070 = vadd.f32 %v3989, %v4069
      %v4071 = vpop.f32.mrf.mxu0
      %4072 = vmatprep.mubr.bf16.mxu0 0
      %4073 = vmatmul.mubr.bf16.gmra.mxu0 %v1450
      %v4074 = vpop.f32.mrf.mxu0
      %v4075 = vadd.f32 %v3994, %v4074
      %v4076 = vpop.f32.mrf.mxu0
      %v4077 = vpop.f32.mrf.mxu0
      %v4078 = vadd.f32 %v3997, %v4077
      %v4079 = vpop.f32.mrf.mxu0
      %4080 = vmatprep.mubr.bf16.mxu0 0
      %4081 = vmatmul.mubr.bf16.gmra.mxu0 %v1477
      %v4082 = vpop.f32.mrf.mxu0
      %v4083 = vadd.f32 %v4002, %v4082
      %v4084 = vpop.f32.mrf.mxu0
      %v4085 = vpop.f32.mrf.mxu0
      %v4086 = vadd.f32 %v4005, %v4085
      %v4087 = vpop.f32.mrf.mxu0
      %4088 = vmatprep.mubr.bf16.mxu0 0
      %4089 = vmatmul.mubr.bf16.gmra.mxu0 %v1504
      %v4090 = vpop.f32.mrf.mxu0
      %v4091 = vadd.f32 %v4010, %v4090
      %v4092 = vpop.f32.mrf.mxu0
      %v4093 = vpop.f32.mrf.mxu0
      %v4094 = vadd.f32 %v4013, %v4093
      %v4095 = vpop.f32.mrf.mxu0
      %4096 = vdwg.mxu0
      %v4097 = vpack.c.bf16 %v4054, %v4051
      %v4098 = vpack.c.bf16 %v4062, %v4059
      %v4099 = vpack.c.bf16 %v4070, %v4067
      %v4100 = vpack.c.bf16 %v4078, %v4075
      %v4101 = vpack.c.bf16 %v4086, %v4083
      %v4102 = vpack.c.bf16 %v4094, %v4091
      %v4109 = vunpack.c.l.b16 %v4097
      %v4110 = vunpack.c.h.b16 %v4097
      %v4111 = vunpack.c.l.b16 %v4098
      %v4112 = vunpack.c.h.b16 %v4098
      %v4113 = vunpack.c.l.b16 %v4099
      %v4114 = vunpack.c.h.b16 %v4099
      %v4115 = vunpack.c.l.b16 %v4100
      %v4116 = vunpack.c.h.b16 %v4100
      %v4117 = vunpack.c.l.b16 %v4101
      %v4118 = vunpack.c.h.b16 %v4101
      %v4119 = vunpack.c.l.b16 %v4102
      %v4120 = vunpack.c.h.b16 %v4102
      %v4121 = vpack.c.b16 %v4109, %v4109
      %v4122 = vpack.c.b16 %v4110, %v4110
      %v4123 = vpack.c.b16 %v4111, %v4111
      %v4124 = vpack.c.b16 %v4112, %v4112
      %v4125 = vpack.c.b16 %v4113, %v4113
      %v4126 = vpack.c.b16 %v4114, %v4114
      %v4127 = vpack.c.b16 %v4115, %v4115
      %v4128 = vpack.c.b16 %v4116, %v4116
      %v4129 = vpack.c.b16 %v4117, %v4117
      %v4130 = vpack.c.b16 %v4118, %v4118
      %v4131 = vpack.c.b16 %v4119, %v4119
      %v4132 = vpack.c.b16 %v4120, %v4120
      %4145 = vst [vmem:[%s240] sm:$0xf] %v4121
      %4146 = vst [vmem:[%s240 + $0x4] sm:$0xf] %v4122
      %4147 = vst [vmem:[%s240 + $0x8] sm:$0xf] %v4123
      %4148 = vst [vmem:[%s240 + $0xc] sm:$0xf] %v4124
      %4149 = vst [vmem:[%s240 + $0x10] sm:$0xf] %v4125
      %4150 = vst [vmem:[%s240 + $0x14] sm:$0xf] %v4126
      %4151 = vst [vmem:[%s240 + $0x18] sm:$0xf] %v4127
      %4152 = vst [vmem:[%s240 + $0x1c] sm:$0xf] %v4128
      %4153 = vst [vmem:[%s240 + $0x20] sm:$0xf] %v4129
      %4154 = vst [vmem:[%s240 + $0x24] sm:$0xf] %v4130
      %4155 = vst [vmem:[%s240 + $0x28] sm:$0xf] %v4131
      %4156 = vst [vmem:[%s240 + $0x2c] sm:$0xf] %v4132
      %s4157 = smul.u32 %s16, 96
      %v4158 = vlaneseq
      %v4159 = vshrl.u32 %v4158, 7
      %v4160 = vadd.s32 %v4159, 8
      %v4161 = vadd.s32 %v4159, 16
      %v4162 = vadd.s32 %v4159, 24
      %v4163 = vadd.s32 %v4159, 32
      %v4164 = vadd.s32 %v4159, 40
      %v4165 = vadd.s32 %v4159, 48
      %v4166 = vadd.s32 %v4159, 56
      %v4167 = vadd.s32 %v4159, 64
      %v4168 = vadd.s32 %v4159, 72
      %v4169 = vadd.s32 %v4159, 80
      %v4170 = vadd.s32 %v4159, 88
      %v4171 = vstv %s4157
      %v4172 = vadd.s32 %v4171, %v4159
      %v4173 = vadd.s32 %v4171, %v4160
      %v4174 = vadd.s32 %v4171, %v4161
      %v4175 = vadd.s32 %v4171, %v4162
      %v4176 = vadd.s32 %v4171, %v4163
      %v4177 = vadd.s32 %v4171, %v4164
      %v4178 = vadd.s32 %v4171, %v4165
      %v4179 = vadd.s32 %v4171, %v4166
      %v4180 = vadd.s32 %v4171, %v4167
      %v4181 = vadd.s32 %v4171, %v4168
      %v4182 = vadd.s32 %v4171, %v4169
      %v4183 = vadd.s32 %v4171, %v4170
      %vm4184 = vcmp.lt.s32.totalorder %v4172, 162
      %vm4185 = vcmp.lt.s32.totalorder %v4173, 162
      %vm4186 = vcmp.lt.s32.totalorder %v4174, 162
      %vm4187 = vcmp.lt.s32.totalorder %v4175, 162
      %vm4188 = vcmp.lt.s32.totalorder %v4176, 162
      %vm4189 = vcmp.lt.s32.totalorder %v4177, 162
      %vm4190 = vcmp.lt.s32.totalorder %v4178, 162
      %vm4191 = vcmp.lt.s32.totalorder %v4179, 162
      %vm4192 = vcmp.lt.s32.totalorder %v4180, 162
      %vm4193 = vcmp.lt.s32.totalorder %v4181, 162
      %vm4194 = vcmp.lt.s32.totalorder %v4182, 162
      %vm4195 = vcmp.lt.s32.totalorder %v4183, 162
      %v4196 = vsel %vm4184, %v4051, 0.0
      %v4197 = vsel %vm4185, %v4054, 0.0
      %v4198 = vsel %vm4186, %v4059, 0.0
      %v4199 = vsel %vm4187, %v4062, 0.0
      %v4200 = vsel %vm4188, %v4067, 0.0
      %v4201 = vsel %vm4189, %v4070, 0.0
      %v4202 = vsel %vm4190, %v4075, 0.0
      %v4203 = vsel %vm4191, %v4078, 0.0
      %v4204 = vsel %vm4192, %v4083, 0.0
      %v4205 = vsel %vm4193, %v4086, 0.0
      %v4206 = vsel %vm4194, %v4091, 0.0
      %v4207 = vsel %vm4195, %v4094, 0.0
      %v4208 = vadd.f32 %v4196, %v4197
      %v4209 = vadd.f32 %v4208, %v4198
      %v4210 = vadd.f32 %v4209, %v4199
      %v4211 = vadd.f32 %v4210, %v4200
      %v4212 = vadd.f32 %v4211, %v4201
      %v4213 = vadd.f32 %v4212, %v4202
      %v4214 = vadd.f32 %v4213, %v4203
      %v4215 = vadd.f32 %v4214, %v4204
      %v4216 = vadd.f32 %v4215, %v4205
      %v4217 = vadd.f32 %v4216, %v4206
      %v4218 = vadd.f32 %v4217, %v4207
      %v4219 = vrot.slane %v4218, 4
      %v4220 = vadd.f32 %v4218, %v4219
      %v4221 = vrot.slane %v4220, 2
      %v4222 = vadd.f32 %v4220, %v4221
      %v4223 = vrot.slane %v4222, 1
      %v4224 = vadd.f32 %v4222, %v4223
      %v4225 = vmul.f32 %v4196, %v4196
      %v4226 = vmul.f32 %v4197, %v4197
      %v4227 = vmul.f32 %v4198, %v4198
      %v4228 = vmul.f32 %v4199, %v4199
      %v4229 = vmul.f32 %v4200, %v4200
      %v4230 = vmul.f32 %v4201, %v4201
      %v4231 = vmul.f32 %v4202, %v4202
      %v4232 = vmul.f32 %v4203, %v4203
      %v4233 = vmul.f32 %v4204, %v4204
      %v4234 = vmul.f32 %v4205, %v4205
      %v4235 = vmul.f32 %v4206, %v4206
      %v4236 = vmul.f32 %v4207, %v4207
      %v4237 = vadd.f32 %v4225, %v4226
      %v4238 = vadd.f32 %v4237, %v4227
      %v4239 = vadd.f32 %v4238, %v4228
      %v4240 = vadd.f32 %v4239, %v4229
      %v4241 = vadd.f32 %v4240, %v4230
      %v4242 = vadd.f32 %v4241, %v4231
      %v4243 = vadd.f32 %v4242, %v4232
      %v4244 = vadd.f32 %v4243, %v4233
      %v4245 = vadd.f32 %v4244, %v4234
      %v4246 = vadd.f32 %v4245, %v4235
      %v4247 = vadd.f32 %v4246, %v4236
      %v4248 = vrot.slane %v4247, 4
      %v4249 = vadd.f32 %v4247, %v4248
      %v4250 = vrot.slane %v4249, 2
      %v4251 = vadd.f32 %v4249, %v4250
      %v4252 = vrot.slane %v4251, 1
      %v4253 = vadd.f32 %v4251, %v4252
      %4254 = vst [vmem:[%s245] sm:$0xff] %v4224
      %4255 = vst [vmem:[%s249] sm:$0xff] %v4253
      %s4256 = smul.u32 12, %s16
      %p4257 = scmp.lt.s32.totalorder %s4256, 23
      %s4258 = scalar_select %p4257, %s4256, 23
      %s4259 = smul.addr %s4258, 4
      %s4260 = scalar_lea.vmem %s2, %s4259
      %p4261 = scmp.lt.s32.totalorder %s16, 1
      %s4262 = scalar_select %p4261, %s16, 1
      %s4263 = smul.addr %s4262, 8
      %s4264 = scalar_lea.vmem %s3, %s4263
      %p4265 = scmp.lt.s32.totalorder %s16, 1
      %s4266 = scalar_select %p4265, %s16, 1
      %s4267 = smul.addr %s4266, 8
      %s4268 = scalar_lea.vmem %s4, %s4267
      // Predicated region
      $region29: #{d_res_3d_cnn_forward.17} parent=27 // pred_check
        %p4269 = pneg %p81
      $region30: #{d_res_3d_cnn_forward.17} parent=27 // pred_check_branch
        %4271 = sbr.rel (%p4269) target = $region32
      $region31: #{d_res_3d_cnn_forward.17} parent=27 // pred_region
        %s4272 = smul.u32 12, %s16
      $region32: #{d_res_3d_cnn_forward.17} parent=27 // pred_fallthru
        _
      // Predicated region
      $region33: #{d_res_3d_cnn_forward.17} parent=27 // pred_check
        %p4273 = pneg %p107
      $region34: #{d_res_3d_cnn_forward.17} parent=27 // pred_check_branch
        %4275 = sbr.rel (%p4273) target = $region36
      $region35: #{d_res_3d_cnn_forward.17} parent=27 // pred_region
        _
      $region36: #{d_res_3d_cnn_forward.17} parent=27 // pred_fallthru
        _
      // Predicated region
      $region37: #{d_res_3d_cnn_forward.17} parent=27 // pred_check
        %p4276 = pneg %p133
      $region38: #{d_res_3d_cnn_forward.17} parent=27 // pred_check_branch
        %4278 = sbr.rel (%p4276) target = $region40
      $region39: #{d_res_3d_cnn_forward.17} parent=27 // pred_region
        _
      $region40: #{d_res_3d_cnn_forward.17} parent=27 // pred_fallthru
        _
    $region28: #{d_res_3d_cnn_forward.17} parent=5 // pred_fallthru
      _
    %p4279 = scmp.le.s32.totalorder 2, %s11
    // Predicated region
    $region41: #{d_res_3d_cnn_forward.17} parent=5 // pred_check
      %p4280 = pneg %p4279
    $region42: #{d_res_3d_cnn_forward.17} parent=5 // pred_check_branch
      %4282 = sbr.rel (%p4280) target = $region44
    $region43: #{d_res_3d_cnn_forward.17} parent=5 // pred_region
      %s4283 = ssub.s32 %s11, 2
      // Predicated region
      $region45: #{d_res_3d_cnn_forward.17} parent=43 // pred_check
        %p4284 = pneg %p87
      $region46: #{d_res_3d_cnn_forward.17} parent=43 // pred_check_branch
        %4286 = sbr.rel (%p4284) target = $region48
      $region47: #{d_res_3d_cnn_forward.17} parent=43 // pred_region
        %s4287 = smul.u32 12, %s17
        %p4288 = scmp.lt.s32.totalorder %s4287, 23
        %s4289 = scalar_select %p4288, %s4287, 23
        %s4290 = smul.addr %s4289, 4
        %s4291 = scalar_lea.vmem %s2, %s4290
      $region48: #{d_res_3d_cnn_forward.17} parent=43 // pred_fallthru
        _
      // Predicated region
      $region49: #{d_res_3d_cnn_forward.17} parent=43 // pred_check
        %p4292 = pneg %p113
      $region50: #{d_res_3d_cnn_forward.17} parent=43 // pred_check_branch
        %4294 = sbr.rel (%p4292) target = $region52
      $region51: #{d_res_3d_cnn_forward.17} parent=43 // pred_region
        %p4295 = scmp.lt.s32.totalorder %s17, 1
        %s4296 = scalar_select %p4295, %s17, 1
        %s4297 = smul.addr %s4296, 8
        %s4298 = scalar_lea.vmem %s3, %s4297
      $region52: #{d_res_3d_cnn_forward.17} parent=43 // pred_fallthru
        _
      // Predicated region
      $region53: #{d_res_3d_cnn_forward.17} parent=43 // pred_check
        %p4299 = pneg %p139
      $region54: #{d_res_3d_cnn_forward.17} parent=43 // pred_check_branch
        %4301 = sbr.rel (%p4299) target = $region56
      $region55: #{d_res_3d_cnn_forward.17} parent=43 // pred_region
        %p4302 = scmp.lt.s32.totalorder %s17, 1
        %s4303 = scalar_select %p4302, %s17, 1
        %s4304 = smul.addr %s4303, 8
        %s4305 = scalar_lea.vmem %s4, %s4304
      $region56: #{d_res_3d_cnn_forward.17} parent=43 // pred_fallthru
        _
    $region44: #{d_res_3d_cnn_forward.17} parent=5 // pred_fallthru
      _
  $region6: #{d_res_3d_cnn_forward.17} parent=0 // loop_footer
    %s15 = sadd.s32 1, %s11
  $region7: #{d_res_3d_cnn_forward.17} parent=0 // loop_footer_branch
    %10 = sbr.rel target = $region3
  $region8: #{d_res_3d_cnn_forward.17} parent=0 // loop_exit
    _

// kernel: d_res_3d_cnn_forward.21
$region0: #{d_res_3d_cnn_forward.21}
  #allocation0 [shape = 'u32[]', space=smem, size = 0x4, offset = 0x4, fixed_abs, tag = 'smem constant byte address 0x4 - core index']
  #allocation1 [shape = 'u32[144,128]{1,0:T(1,128)}', space=vmem, size = 0x12000, scoped, tag = 'internal scratch']
  %s0 = inlined_call_operand.vmem [shape: bf16[16,16,128], index: 0, kind: input, shape index: {}]
  %s1 = inlined_call_operand.vmem [shape: bf16[16,128], index: 1, kind: output, shape index: {}]
  %s2 = sld [smem:[#allocation0]]
  $region37: #{d_res_3d_cnn_forward.21} parent=0
    _
  %s4 = ssub.s32 1, %s2
  %s5 = scalar_select 0, %s4, %s2
  loop: start=0, step=1, limit=4
  $region2: #{d_res_3d_cnn_forward.21} parent=0 // loop_pre_header
    _
  $region3: #{d_res_3d_cnn_forward.21} parent=0 // loop_header
    %s7 = sphi 0, %s11
    %p8 = scmp.ge.s32.totalorder %s7, 4
    %s17 = sphi 0, %s19
    %s20 = sphi 0, %s17
    %s21 = sphi 0, %s20
    %s37 = sphi 0, %s21
    %s43 = sphi 0, %s45
    %s46 = sphi 0, %s43
    %s47 = sphi 0, %s46
    %s63 = sphi 0, %s47
  $region4: #{d_res_3d_cnn_forward.21} parent=0 // loop_header_branch
    %10 = sbr.rel (%p8) target = $region8
  $region5: #{d_res_3d_cnn_forward.21} parent=0 // loop_body
    %s12 = ssub.s32 %s7, 1
    %s13 = ssub.s32 %s7, 2
    %s14 = sadd.s32 %s7, 1
    %s15 = ssub.s32 %s7, %s14
    %p16 = scmp.eq.s32.totalorder %s15, 0
    %s18 = sadd.s32 %s17, 1
    %s19 = scalar_select %p16, %s17, %s18
    %p22 = pneg %p16
    %p23 = scmp.eq.s32.totalorder %s7, 1
    %p24 = por %p22, %p23
    %p25 = scmp.ne.s32.totalorder %s17, %s20
    %p26 = scmp.eq.s32.totalorder %s7, 0
    %p27 = por %p25, %p26
    %p28 = scmp.ne.s32.totalorder %s17, %s20
    %p29 = scmp.eq.s32.totalorder %s12, 1
    %p30 = por %p28, %p29
    %p31 = scmp.ne.s32.totalorder %s20, %s21
    %p32 = scmp.eq.s32.totalorder %s12, 0
    %p33 = por %p31, %p32
    %p34 = scmp.ne.s32.totalorder %s20, %s21
    %p35 = scmp.eq.s32.totalorder %s13, 1
    %p36 = por %p34, %p35
    %p38 = scmp.ne.s32.totalorder %s21, %s37
    %p39 = scmp.eq.s32.totalorder %s13, 0
    %p40 = por %p38, %p39
    %s41 = ssub.s32 %s7, %s14
    %p42 = scmp.eq.s32.totalorder %s41, 0
    %s44 = sadd.s32 %s43, 1
    %s45 = scalar_select %p42, %s43, %s44
    %p48 = pneg %p42
    %p49 = scmp.eq.s32.totalorder %s7, 1
    %p50 = por %p48, %p49
    %p51 = scmp.ne.s32.totalorder %s43, %s46
    %p52 = scmp.eq.s32.totalorder %s7, 0
    %p53 = por %p51, %p52
    %p54 = scmp.ne.s32.totalorder %s43, %s46
    %p55 = scmp.eq.s32.totalorder %s12, 1
    %p56 = por %p54, %p55
    %p57 = scmp.ne.s32.totalorder %s46, %s47
    %p58 = scmp.eq.s32.totalorder %s12, 0
    %p59 = por %p57, %p58
    %p60 = scmp.ne.s32.totalorder %s46, %s47
    %p61 = scmp.eq.s32.totalorder %s13, 1
    %p62 = por %p60, %p61
    %p64 = scmp.ne.s32.totalorder %s47, %s63
    %p65 = scmp.eq.s32.totalorder %s13, 0
    %p66 = por %p64, %p65
    %p67 = scmp.le.s32.totalorder 1, %s7
    %p68 = scmp.lt.s32.totalorder %s7, 3
    %p69 = pnand %p67, %p68
    %p70 = pneg %p69
    // Predicated region
    $region9: #{d_res_3d_cnn_forward.21} parent=5 // pred_check
      _
    $region10: #{d_res_3d_cnn_forward.21} parent=5 // pred_check_branch
      %72 = sbr.rel (%p69) target = $region12
    $region11: #{d_res_3d_cnn_forward.21} parent=5 // pred_region
      %s73 = ssub.s32 %s7, 1
    $region12: #{d_res_3d_cnn_forward.21} parent=5 // pred_fallthru
      _
    %p74 = scmp.lt.s32.totalorder %s7, 2
    // Predicated region
    $region13: #{d_res_3d_cnn_forward.21} parent=5 // pred_check
      %p75 = pneg %p74
    $region14: #{d_res_3d_cnn_forward.21} parent=5 // pred_check_branch
      %77 = sbr.rel (%p75) target = $region16
    $region15: #{d_res_3d_cnn_forward.21} parent=5 // pred_region
      // Predicated region
      $region17: #{d_res_3d_cnn_forward.21} parent=15 // pred_check
        %p78 = pneg %p27
      $region18: #{d_res_3d_cnn_forward.21} parent=15 // pred_check_branch
        %80 = sbr.rel (%p78) target = $region20
      $region19: #{d_res_3d_cnn_forward.21} parent=15 // pred_region
        %s81 = smul.u32 8, %s7
        %p82 = scmp.lt.s32.totalorder %s81, 15
        %s83 = scalar_select %p82, %s81, 15
        %s84 = smul.addr %s83, 2
        %s85 = smul.addr %s84, 4
        %s86 = scalar_lea.vmem %s0, %s85
        %s87 = smul.u32 8, %s7
      $region20: #{d_res_3d_cnn_forward.21} parent=15 // pred_fallthru
        _
    $region16: #{d_res_3d_cnn_forward.21} parent=5 // pred_fallthru
      _
    %p88 = scmp.le.s32.totalorder 1, %s7
    %p89 = scmp.lt.s32.totalorder %s7, 3
    %p90 = pnand %p88, %p89
    %p91 = pneg %p90
    // Predicated region
    $region21: #{d_res_3d_cnn_forward.21} parent=5 // pred_check
      _
    $region22: #{d_res_3d_cnn_forward.21} parent=5 // pred_check_branch
      %93 = sbr.rel (%p90) target = $region24
    $region23: #{d_res_3d_cnn_forward.21} parent=5 // pred_region
      %s94 = ssub.s32 %s7, 1
      %s95 = smul.u32 8, %s12
      %p96 = scmp.lt.s32.totalorder %s95, 15
      %s97 = scalar_select %p96, %s95, 15
      %s98 = smul.addr %s97, 2
      %s99 = smul.addr %s98, 4
      %s100 = scalar_lea.vmem %s0, %s99
      %p101 = pneg %p33
      %p102 = pneg %p30
      %p103 = pneg %p59
      %p104 = pneg %p56
      %p105 = scmp.lt.s32.totalorder %s12, 1
      %s106 = scalar_select %p105, %s12, 1
      %s107 = smul.addr %s106, 4
      %s108 = scalar_lea.vmem %s1, %s107
      %s109 = smul.u32 8, %s12
      %p110 = scmp.lt.s32.totalorder %s109, 15
      %s111 = scalar_select %p110, %s109, 15
      %s112 = smul.addr %s111, 2
      %s113 = smul.addr %s112, 4
      %s114 = scalar_lea.vmem %s0, %s113
      %s115 = smul.u32 8, %s12
      %p116 = scmp.lt.s32.totalorder %s12, 1
      %s117 = scalar_select %p116, %s12, 1
      %s118 = smul.addr %s117, 4
      %s119 = scalar_lea.vmem %s1, %s118
      %v120 = vld [vmem:[%s114] sm:$0xf]
      %v121 = vld [vmem:[%s114 + $0x4] sm:$0xf]
      %v122 = vld [vmem:[%s114 + $0x8] sm:$0xf]
      %v123 = vld [vmem:[%s114 + $0xc] sm:$0xf]
      %v124 = vld [vmem:[%s114 + $0x10] sm:$0xf]
      %v125 = vld [vmem:[%s114 + $0x14] sm:$0xf]
      %v126 = vld [vmem:[%s114 + $0x18] sm:$0xf]
      %v127 = vld [vmem:[%s114 + $0x1c] sm:$0xf]
      %v128 = vld [vmem:[%s114 + $0x20] sm:$0xf]
      %v129 = vld [vmem:[%s114 + $0x24] sm:$0xf]
      %v130 = vld [vmem:[%s114 + $0x28] sm:$0xf]
      %v131 = vld [vmem:[%s114 + $0x2c] sm:$0xf]
      %v132 = vld [vmem:[%s114 + $0x30] sm:$0xf]
      %v133 = vld [vmem:[%s114 + $0x34] sm:$0xf]
      %v134 = vld [vmem:[%s114 + $0x38] sm:$0xf]
      %v135 = vld [vmem:[%s114 + $0x3c] sm:$0xf]
      %v152 = vunpack.c.l.b16 %v120
      %v153 = vunpack.c.l.b16 %v121
      %v154 = vunpack.c.l.b16 %v122
      %v155 = vunpack.c.l.b16 %v123
      %v156 = vunpack.c.l.b16 %v124
      %v157 = vunpack.c.l.b16 %v125
      %v158 = vunpack.c.l.b16 %v126
      %v159 = vunpack.c.l.b16 %v127
      %v160 = vunpack.c.l.b16 %v128
      %v161 = vunpack.c.l.b16 %v129
      %v162 = vunpack.c.l.b16 %v130
      %v163 = vunpack.c.l.b16 %v131
      %v164 = vunpack.c.l.b16 %v132
      %v165 = vunpack.c.l.b16 %v133
      %v166 = vunpack.c.l.b16 %v134
      %v167 = vunpack.c.l.b16 %v135
      %v168 = vpack.c.b16 %v153, %v152
      %v169 = vpack.c.b16 %v155, %v154
      %v170 = vpack.c.b16 %v157, %v156
      %v171 = vpack.c.b16 %v159, %v158
      %v172 = vpack.c.b16 %v161, %v160
      %v173 = vpack.c.b16 %v163, %v162
      %v174 = vpack.c.b16 %v165, %v164
      %v175 = vpack.c.b16 %v167, %v166
      %v184 = vunpack.i.l.bf16 %v168
      %v185 = vunpack.i.h.bf16 %v168
      %v186 = vmax.f32 %v184, %v185
      %v187 = vrot.slane %v186, 4
      %v188 = vmax.f32 %v186, %v187
      %v189 = vrot.slane %v188, 2
      %v190 = vmax.f32 %v188, %v189
      %v191 = vrot.slane %v190, 1
      %v192 = vmax.f32 %v190, %v191
      %v193 = vpack.i.bf16 %v192, %v192
      %v194 = vunpack.i.l.bf16 %v169
      %v195 = vunpack.i.h.bf16 %v169
      %v196 = vmax.f32 %v194, %v195
      %v197 = vrot.slane %v196, 4
      %v198 = vmax.f32 %v196, %v197
      %v199 = vrot.slane %v198, 2
      %v200 = vmax.f32 %v198, %v199
      %v201 = vrot.slane %v200, 1
      %v202 = vmax.f32 %v200, %v201
      %v203 = vpack.i.bf16 %v202, %v202
      %v204 = vunpack.i.l.bf16 %v170
      %v205 = vunpack.i.h.bf16 %v170
      %v206 = vmax.f32 %v204, %v205
      %v207 = vrot.slane %v206, 4
      %v208 = vmax.f32 %v206, %v207
      %v209 = vrot.slane %v208, 2
      %v210 = vmax.f32 %v208, %v209
      %v211 = vrot.slane %v210, 1
      %v212 = vmax.f32 %v210, %v211
      %v213 = vpack.i.bf16 %v212, %v212
      %v214 = vunpack.i.l.bf16 %v171
      %v215 = vunpack.i.h.bf16 %v171
      %v216 = vmax.f32 %v214, %v215
      %v217 = vrot.slane %v216, 4
      %v218 = vmax.f32 %v216, %v217
      %v219 = vrot.slane %v218, 2
      %v220 = vmax.f32 %v218, %v219
      %v221 = vrot.slane %v220, 1
      %v222 = vmax.f32 %v220, %v221
      %v223 = vpack.i.bf16 %v222, %v222
      %v224 = vunpack.i.l.bf16 %v172
      %v225 = vunpack.i.h.bf16 %v172
      %v226 = vmax.f32 %v224, %v225
      %v227 = vrot.slane %v226, 4
      %v228 = vmax.f32 %v226, %v227
      %v229 = vrot.slane %v228, 2
      %v230 = vmax.f32 %v228, %v229
      %v231 = vrot.slane %v230, 1
      %v232 = vmax.f32 %v230, %v231
      %v233 = vpack.i.bf16 %v232, %v232
      %v234 = vunpack.i.l.bf16 %v173
      %v235 = vunpack.i.h.bf16 %v173
      %v236 = vmax.f32 %v234, %v235
      %v237 = vrot.slane %v236, 4
      %v238 = vmax.f32 %v236, %v237
      %v239 = vrot.slane %v238, 2
      %v240 = vmax.f32 %v238, %v239
      %v241 = vrot.slane %v240, 1
      %v242 = vmax.f32 %v240, %v241
      %v243 = vpack.i.bf16 %v242, %v242
      %v244 = vunpack.i.l.bf16 %v174
      %v245 = vunpack.i.h.bf16 %v174
      %v246 = vmax.f32 %v244, %v245
      %v247 = vrot.slane %v246, 4
      %v248 = vmax.f32 %v246, %v247
      %v249 = vrot.slane %v248, 2
      %v250 = vmax.f32 %v248, %v249
      %v251 = vrot.slane %v250, 1
      %v252 = vmax.f32 %v250, %v251
      %v253 = vpack.i.bf16 %v252, %v252
      %v254 = vunpack.i.l.bf16 %v175
      %v255 = vunpack.i.h.bf16 %v175
      %v256 = vmax.f32 %v254, %v255
      %v257 = vrot.slane %v256, 4
      %v258 = vmax.f32 %v256, %v257
      %v259 = vrot.slane %v258, 2
      %v260 = vmax.f32 %v258, %v259
      %v261 = vrot.slane %v260, 1
      %v262 = vmax.f32 %v260, %v261
      %v263 = vpack.i.bf16 %v262, %v262
      %v272 = vunpack.c.l.b16 %v193
      %v273 = vunpack.c.l.b16 %v203
      %v274 = vunpack.c.l.b16 %v213
      %v275 = vunpack.c.l.b16 %v223
      %v276 = vunpack.c.l.b16 %v233
      %v277 = vunpack.c.l.b16 %v243
      %v278 = vunpack.c.l.b16 %v253
      %v279 = vunpack.c.l.b16 %v263
      %v280 = vpack.c.b16 %v272, %v272
      %v281 = vpack.c.b16 %v273, %v273
      %v282 = vpack.c.b16 %v274, %v274
      %v283 = vpack.c.b16 %v275, %v275
      %v284 = vpack.c.b16 %v276, %v276
      %v285 = vpack.c.b16 %v277, %v277
      %v286 = vpack.c.b16 %v278, %v278
      %v287 = vpack.c.b16 %v279, %v279
      %v288 = vunpack.c.l.b16 %v280
      %v289 = vunpack.c.l.b16 %v281
      %v290 = vunpack.c.l.b16 %v282
      %v291 = vunpack.c.l.b16 %v283
      %v292 = vunpack.c.l.b16 %v284
      %v293 = vunpack.c.l.b16 %v285
      %v294 = vunpack.c.l.b16 %v286
      %v295 = vunpack.c.l.b16 %v287
      %vm296 = vcmask 1041409
      %v297 = vsel %vm296, %v289, %v288
      %vm298 = vcmask 1042434
      %v299 = vsel %vm298, %v290, %v297
      %vm300 = vcmask 1043459
      %v301 = vsel %vm300, %v291, %v299
      %vm302 = vcmask 1044484
      %v303 = vsel %vm302, %v292, %v301
      %vm304 = vcmask 1045509
      %v305 = vsel %vm304, %v293, %v303
      %vm306 = vcmask 1046534
      %v307 = vsel %vm306, %v294, %v305
      %vm308 = vcmask 1047559
      %v309 = vsel %vm308, %v295, %v307
      %v310 = vpack.c.b16 %v309, %v309
      %312 = vst [vmem:[%s119] sm:$0xf] %v310
      %p313 = scmp.lt.s32.totalorder %s12, 1
      %s314 = scalar_select %p313, %s12, 1
      %s315 = smul.addr %s314, 4
      %s316 = scalar_lea.vmem %s1, %s315
      // Predicated region
      $region25: #{d_res_3d_cnn_forward.21} parent=23 // pred_check
        %p317 = pneg %p56
      $region26: #{d_res_3d_cnn_forward.21} parent=23 // pred_check_branch
        %319 = sbr.rel (%p317) target = $region28
      $region27: #{d_res_3d_cnn_forward.21} parent=23 // pred_region
        _
      $region28: #{d_res_3d_cnn_forward.21} parent=23 // pred_fallthru
        _
    $region24: #{d_res_3d_cnn_forward.21} parent=5 // pred_fallthru
      _
    %p320 = scmp.le.s32.totalorder 2, %s7
    // Predicated region
    $region29: #{d_res_3d_cnn_forward.21} parent=5 // pred_check
      %p321 = pneg %p320
    $region30: #{d_res_3d_cnn_forward.21} parent=5 // pred_check_branch
      %323 = sbr.rel (%p321) target = $region32
    $region31: #{d_res_3d_cnn_forward.21} parent=5 // pred_region
      %s324 = ssub.s32 %s7, 2
      // Predicated region
      $region33: #{d_res_3d_cnn_forward.21} parent=31 // pred_check
        %p325 = pneg %p62
      $region34: #{d_res_3d_cnn_forward.21} parent=31 // pred_check_branch
        %327 = sbr.rel (%p325) target = $region36
      $region35: #{d_res_3d_cnn_forward.21} parent=31 // pred_region
        %p328 = scmp.lt.s32.totalorder %s13, 1
        %s329 = scalar_select %p328, %s13, 1
        %s330 = smul.addr %s329, 4
        %s331 = scalar_lea.vmem %s1, %s330
      $region36: #{d_res_3d_cnn_forward.21} parent=31 // pred_fallthru
        _
    $region32: #{d_res_3d_cnn_forward.21} parent=5 // pred_fallthru
      _
  $region6: #{d_res_3d_cnn_forward.21} parent=0 // loop_footer
    %s11 = sadd.s32 1, %s7
  $region7: #{d_res_3d_cnn_forward.21} parent=0 // loop_footer_branch
    %6 = sbr.rel target = $region3
  $region8: #{d_res_3d_cnn_forward.21} parent=0 // loop_exit
    _

// kernel: d_res_3d_cnn_forward.22
$region0: #{d_res_3d_cnn_forward.22}
  #allocation0 [shape = 'u32[]', space=smem, size = 0x4, offset = 0x4, fixed_abs, tag = 'smem constant byte address 0x4 - core index']
  #allocation1 [shape = 'u32[144,128]{1,0:T(1,128)}', space=vmem, size = 0x12000, scoped, tag = 'internal scratch']
  %s0 = inlined_call_operand.vmem [shape: bf16[25,1728], index: 0, kind: input, shape index: {}]
  %s1 = inlined_call_operand.vmem [shape: bf16[1728,128], index: 1, kind: input, shape index: {}]
  %s2 = inlined_call_operand.vmem [shape: bf16[32,128], index: 2, kind: output, shape index: {0}]
  %s3 = inlined_call_operand.vmem [shape: f32[16,128], index: 3, kind: output, shape index: {1}]
  %s4 = inlined_call_operand.vmem [shape: f32[16,128], index: 4, kind: output, shape index: {2}]
  %5 = xla_tuple %s2, %s3, %s4
  %s6 = sld [smem:[#allocation0]]
  $region57: #{d_res_3d_cnn_forward.22} parent=0
    _
  %s8 = ssub.s32 1, %s6
  %s9 = scalar_select 0, %s8, %s6
  loop: start=0, step=1, limit=4
  $region2: #{d_res_3d_cnn_forward.22} parent=0 // loop_pre_header
    _
  $region3: #{d_res_3d_cnn_forward.22} parent=0 // loop_header
    %s11 = sphi 0, %s15
    %p12 = scmp.ge.s32.totalorder %s11, 4
    %s21 = sphi 0, %s23
    %s24 = sphi 0, %s21
    %s25 = sphi 0, %s24
    %s41 = sphi 0, %s25
    %s45 = sphi 0, %s45
    %s47 = sphi 0, %s45
    %s48 = sphi 0, %s47
    %s62 = sphi 0, %s48
    %s68 = sphi 0, %s70
    %s71 = sphi 0, %s68
    %s72 = sphi 0, %s71
    %s88 = sphi 0, %s72
    %s94 = sphi 0, %s96
    %s97 = sphi 0, %s94
    %s98 = sphi 0, %s97
    %s114 = sphi 0, %s98
    %s120 = sphi 0, %s122
    %s123 = sphi 0, %s120
    %s124 = sphi 0, %s123
    %s140 = sphi 0, %s124
  $region4: #{d_res_3d_cnn_forward.22} parent=0 // loop_header_branch
    %14 = sbr.rel (%p12) target = $region8
  $region5: #{d_res_3d_cnn_forward.22} parent=0 // loop_body
    %s16 = ssub.s32 %s11, 1
    %s17 = ssub.s32 %s11, 2
    %s18 = sadd.s32 %s11, 1
    %s19 = ssub.s32 %s11, %s18
    %p20 = scmp.eq.s32.totalorder %s19, 0
    %s22 = sadd.s32 %s21, 1
    %s23 = scalar_select %p20, %s21, %s22
    %p26 = pneg %p20
    %p27 = scmp.eq.s32.totalorder %s11, 1
    %p28 = por %p26, %p27
    %p29 = scmp.ne.s32.totalorder %s21, %s24
    %p30 = scmp.eq.s32.totalorder %s11, 0
    %p31 = por %p29, %p30
    %p32 = scmp.ne.s32.totalorder %s21, %s24
    %p33 = scmp.eq.s32.totalorder %s16, 1
    %p34 = por %p32, %p33
    %p35 = scmp.ne.s32.totalorder %s24, %s25
    %p36 = scmp.eq.s32.totalorder %s16, 0
    %p37 = por %p35, %p36
    %p38 = scmp.ne.s32.totalorder %s24, %s25
    %p39 = scmp.eq.s32.totalorder %s17, 1
    %p40 = por %p38, %p39
    %p42 = scmp.ne.s32.totalorder %s25, %s41
    %p43 = scmp.eq.s32.totalorder %s17, 0
    %p44 = por %p42, %p43
    %s46 = sadd.s32 %s45, 1
    %p49 = scmp.eq.s32.totalorder %s11, 1
    %p50 = scmp.ne.s32.totalorder %s45, %s47
    %p51 = scmp.eq.s32.totalorder %s11, 0
    %p52 = por %p50, %p51
    %p53 = scmp.ne.s32.totalorder %s45, %s47
    %p54 = scmp.eq.s32.totalorder %s16, 1
    %p55 = por %p53, %p54
    %p56 = scmp.ne.s32.totalorder %s47, %s48
    %p57 = scmp.eq.s32.totalorder %s16, 0
    %p58 = por %p56, %p57
    %p59 = scmp.ne.s32.totalorder %s47, %s48
    %p60 = scmp.eq.s32.totalorder %s17, 1
    %p61 = por %p59, %p60
    %p63 = scmp.ne.s32.totalorder %s48, %s62
    %p64 = scmp.eq.s32.totalorder %s17, 0
    %p65 = por %p63, %p64
    %s66 = ssub.s32 %s11, %s18
    %p67 = scmp.eq.s32.totalorder %s66, 0
    %s69 = sadd.s32 %s68, 1
    %s70 = scalar_select %p67, %s68, %s69
    %p73 = pneg %p67
    %p74 = scmp.eq.s32.totalorder %s11, 1
    %p75 = por %p73, %p74
    %p76 = scmp.ne.s32.totalorder %s68, %s71
    %p77 = scmp.eq.s32.totalorder %s11, 0
    %p78 = por %p76, %p77
    %p79 = scmp.ne.s32.totalorder %s68, %s71
    %p80 = scmp.eq.s32.totalorder %s16, 1
    %p81 = por %p79, %p80
    %p82 = scmp.ne.s32.totalorder %s71, %s72
    %p83 = scmp.eq.s32.totalorder %s16, 0
    %p84 = por %p82, %p83
    %p85 = scmp.ne.s32.totalorder %s71, %s72
    %p86 = scmp.eq.s32.totalorder %s17, 1
    %p87 = por %p85, %p86
    %p89 = scmp.ne.s32.totalorder %s72, %s88
    %p90 = scmp.eq.s32.totalorder %s17, 0
    %p91 = por %p89, %p90
    %s92 = ssub.s32 %s11, %s18
    %p93 = scmp.eq.s32.totalorder %s92, 0
    %s95 = sadd.s32 %s94, 1
    %s96 = scalar_select %p93, %s94, %s95
    %p99 = pneg %p93
    %p100 = scmp.eq.s32.totalorder %s11, 1
    %p101 = por %p99, %p100
    %p102 = scmp.ne.s32.totalorder %s94, %s97
    %p103 = scmp.eq.s32.totalorder %s11, 0
    %p104 = por %p102, %p103
    %p105 = scmp.ne.s32.totalorder %s94, %s97
    %p106 = scmp.eq.s32.totalorder %s16, 1
    %p107 = por %p105, %p106
    %p108 = scmp.ne.s32.totalorder %s97, %s98
    %p109 = scmp.eq.s32.totalorder %s16, 0
    %p110 = por %p108, %p109
    %p111 = scmp.ne.s32.totalorder %s97, %s98
    %p112 = scmp.eq.s32.totalorder %s17, 1
    %p113 = por %p111, %p112
    %p115 = scmp.ne.s32.totalorder %s98, %s114
    %p116 = scmp.eq.s32.totalorder %s17, 0
    %p117 = por %p115, %p116
    %s118 = ssub.s32 %s11, %s18
    %p119 = scmp.eq.s32.totalorder %s118, 0
    %s121 = sadd.s32 %s120, 1
    %s122 = scalar_select %p119, %s120, %s121
    %p125 = pneg %p119
    %p126 = scmp.eq.s32.totalorder %s11, 1
    %p127 = por %p125, %p126
    %p128 = scmp.ne.s32.totalorder %s120, %s123
    %p129 = scmp.eq.s32.totalorder %s11, 0
    %p130 = por %p128, %p129
    %p131 = scmp.ne.s32.totalorder %s120, %s123
    %p132 = scmp.eq.s32.totalorder %s16, 1
    %p133 = por %p131, %p132
    %p134 = scmp.ne.s32.totalorder %s123, %s124
    %p135 = scmp.eq.s32.totalorder %s16, 0
    %p136 = por %p134, %p135
    %p137 = scmp.ne.s32.totalorder %s123, %s124
    %p138 = scmp.eq.s32.totalorder %s17, 1
    %p139 = por %p137, %p138
    %p141 = scmp.ne.s32.totalorder %s124, %s140
    %p142 = scmp.eq.s32.totalorder %s17, 0
    %p143 = por %p141, %p142
    %p144 = scmp.le.s32.totalorder 1, %s11
    %p145 = scmp.lt.s32.totalorder %s11, 3
    %p146 = pnand %p144, %p145
    %p147 = pneg %p146
    // Predicated region
    $region9: #{d_res_3d_cnn_forward.22} parent=5 // pred_check
      _
    $region10: #{d_res_3d_cnn_forward.22} parent=5 // pred_check_branch
      %149 = sbr.rel (%p146) target = $region12
    $region11: #{d_res_3d_cnn_forward.22} parent=5 // pred_region
      %s150 = ssub.s32 %s11, 1
      // Predicated region
      $region13: #{d_res_3d_cnn_forward.22} parent=11 // pred_check
        %p151 = pneg %p58
      $region14: #{d_res_3d_cnn_forward.22} parent=11 // pred_check_branch
        %153 = sbr.rel (%p151) target = $region16
      $region15: #{d_res_3d_cnn_forward.22} parent=11 // pred_region
        _
      $region16: #{d_res_3d_cnn_forward.22} parent=11 // pred_fallthru
        _
    $region12: #{d_res_3d_cnn_forward.22} parent=5 // pred_fallthru
      _
    %p154 = scmp.lt.s32.totalorder %s11, 2
    // Predicated region
    $region17: #{d_res_3d_cnn_forward.22} parent=5 // pred_check
      %p155 = pneg %p154
    $region18: #{d_res_3d_cnn_forward.22} parent=5 // pred_check_branch
      %157 = sbr.rel (%p155) target = $region20
    $region19: #{d_res_3d_cnn_forward.22} parent=5 // pred_region
      // Predicated region
      $region21: #{d_res_3d_cnn_forward.22} parent=19 // pred_check
        %p158 = pneg %p31
      $region22: #{d_res_3d_cnn_forward.22} parent=19 // pred_check_branch
        %160 = sbr.rel (%p158) target = $region24
      $region23: #{d_res_3d_cnn_forward.22} parent=19 // pred_region
        %s161 = smul.u32 2, %s11
        %p162 = scmp.lt.s32.totalorder %s161, 3
        %s163 = scalar_select %p162, %s161, 3
        %s164 = smul.addr %s163, 14
        %s165 = smul.addr %s164, 4
        %s166 = scalar_lea.vmem %s0, %s165
        %s167 = smul.u32 2, %s11
      $region24: #{d_res_3d_cnn_forward.22} parent=19 // pred_fallthru
        _
    $region20: #{d_res_3d_cnn_forward.22} parent=5 // pred_fallthru
      _
    %p168 = scmp.le.s32.totalorder 1, %s11
    %p169 = scmp.lt.s32.totalorder %s11, 3
    %p170 = pnand %p168, %p169
    %p171 = pneg %p170
    // Predicated region
    $region25: #{d_res_3d_cnn_forward.22} parent=5 // pred_check
      _
    $region26: #{d_res_3d_cnn_forward.22} parent=5 // pred_check_branch
      %173 = sbr.rel (%p170) target = $region28
    $region27: #{d_res_3d_cnn_forward.22} parent=5 // pred_region
      %s174 = ssub.s32 %s11, 1
      %s175 = smul.u32 2, %s16
      %p176 = scmp.lt.s32.totalorder %s175, 3
      %s177 = scalar_select %p176, %s175, 3
      %s178 = smul.addr %s177, 14
      %s179 = smul.addr %s178, 4
      %s180 = scalar_lea.vmem %s0, %s179
      %p181 = pneg %p37
      %p182 = pneg %p34
      %p183 = pneg %p58
      %p184 = pneg %p55
      %p185 = pneg %p84
      %p186 = pneg %p81
      %s187 = smul.u32 2, %s16
      %p188 = scmp.lt.s32.totalorder %s187, 3
      %s189 = scalar_select %p188, %s187, 3
      %s190 = smul.addr %s189, 4
      %s191 = scalar_lea.vmem %s2, %s190
      %p192 = pneg %p110
      %p193 = pneg %p107
      %p194 = scmp.lt.s32.totalorder %s16, 1
      %s195 = scalar_select %p194, %s16, 1
      %s196 = smul.addr %s195, 8
      %s197 = scalar_lea.vmem %s3, %s196
      %p198 = pneg %p136
      %p199 = pneg %p133
      %p200 = scmp.lt.s32.totalorder %s16, 1
      %s201 = scalar_select %p200, %s16, 1
      %s202 = smul.addr %s201, 8
      %s203 = scalar_lea.vmem %s4, %s202
      %s204 = smul.u32 2, %s16
      %p205 = scmp.lt.s32.totalorder %s204, 3
      %s206 = scalar_select %p205, %s204, 3
      %s207 = smul.addr %s206, 14
      %s208 = smul.addr %s207, 4
      %s209 = scalar_lea.vmem %s0, %s208
      %s210 = smul.u32 2, %s16
      %s211 = smul.u32 2, %s16
      %p212 = scmp.lt.s32.totalorder %s211, 3
      %s213 = scalar_select %p212, %s211, 3
      %s214 = smul.addr %s213, 4
      %s215 = scalar_lea.vmem %s2, %s214
      %s216 = smul.u32 2, %s16
      %p217 = scmp.lt.s32.totalorder %s16, 1
      %s218 = scalar_select %p217, %s16, 1
      %s219 = smul.addr %s218, 8
      %s220 = scalar_lea.vmem %s3, %s219
      %p221 = scmp.lt.s32.totalorder %s16, 1
      %s222 = scalar_select %p221, %s16, 1
      %s223 = smul.addr %s222, 8
      %s224 = scalar_lea.vmem %s4, %s223
      %v226 = vld [vmem:[%s209] sm:$0xff]
      %v227 = vld [vmem:[%s209 + $0x8] sm:$0xff]
      %v228 = vld [vmem:[%s209 + $0x10] sm:$0xff]
      %v229 = vld [vmem:[%s209 + $0x18] sm:$0xff]
      %v230 = vld [vmem:[%s209 + $0x20] sm:$0xff]
      %v231 = vld [vmem:[%s209 + $0x28] sm:$0xff]
      %v232 = vld [vmem:[%s209 + $0x30] sm:$0xff]
      %v233 = vld [vmem:[%s209 + $0x38] sm:$0xff]
      %v234 = vld [vmem:[%s209 + $0x40] sm:$0xff]
      %v235 = vld [vmem:[%s209 + $0x48] sm:$0xff]
      %v236 = vld [vmem:[%s209 + $0x50] sm:$0xff]
      %v237 = vld [vmem:[%s209 + $0x58] sm:$0xff]
      %v238 = vld [vmem:[%s209 + $0x60] sm:$0xff]
      %v239 = vld [vmem:[%s209 + $0x68] sm:$0xff]
      %v240 = vld [vmem:[%s1] sm:$0xf]
      %v241 = vld [vmem:[%s1 + $0x4] sm:$0xf]
      %v242 = vld [vmem:[%s1 + $0x8] sm:$0xf]
      %v243 = vld [vmem:[%s1 + $0xc] sm:$0xf]
      %v244 = vld [vmem:[%s1 + $0x10] sm:$0xf]
      %v245 = vld [vmem:[%s1 + $0x14] sm:$0xf]
      %v246 = vld [vmem:[%s1 + $0x18] sm:$0xf]
      %v247 = vld [vmem:[%s1 + $0x1c] sm:$0xf]
      %v248 = vld [vmem:[%s1 + $0x20] sm:$0xf]
      %v249 = vld [vmem:[%s1 + $0x24] sm:$0xf]
      %v250 = vld [vmem:[%s1 + $0x28] sm:$0xf]
      %v251 = vld [vmem:[%s1 + $0x2c] sm:$0xf]
      %v252 = vld [vmem:[%s1 + $0x30] sm:$0xf]
      %v253 = vld [vmem:[%s1 + $0x34] sm:$0xf]
      %v254 = vld [vmem:[%s1 + $0x38] sm:$0xf]
      %v255 = vld [vmem:[%s1 + $0x3c] sm:$0xf]
      %v256 = vld [vmem:[%s1 + $0x40] sm:$0xf]
      %v257 = vld [vmem:[%s1 + $0x44] sm:$0xf]
      %v258 = vld [vmem:[%s1 + $0x48] sm:$0xf]
      %v259 = vld [vmem:[%s1 + $0x4c] sm:$0xf]
      %v260 = vld [vmem:[%s1 + $0x50] sm:$0xf]
      %v261 = vld [vmem:[%s1 + $0x54] sm:$0xf]
      %v262 = vld [vmem:[%s1 + $0x58] sm:$0xf]
      %v263 = vld [vmem:[%s1 + $0x5c] sm:$0xf]
      %v264 = vld [vmem:[%s1 + $0x60] sm:$0xf]
      %v265 = vld [vmem:[%s1 + $0x64] sm:$0xf]
      %v266 = vld [vmem:[%s1 + $0x68] sm:$0xf]
      %v267 = vld [vmem:[%s1 + $0x6c] sm:$0xf]
      %v268 = vld [vmem:[%s1 + $0x70] sm:$0xf]
      %v269 = vld [vmem:[%s1 + $0x74] sm:$0xf]
      %v270 = vld [vmem:[%s1 + $0x78] sm:$0xf]
      %v271 = vld [vmem:[%s1 + $0x7c] sm:$0xf]
      %v272 = vld [vmem:[%s1 + $0x80] sm:$0xf]
      %v273 = vld [vmem:[%s1 + $0x84] sm:$0xf]
      %v274 = vld [vmem:[%s1 + $0x88] sm:$0xf]
      %v275 = vld [vmem:[%s1 + $0x8c] sm:$0xf]
      %v276 = vld [vmem:[%s1 + $0x90] sm:$0xf]
      %v277 = vld [vmem:[%s1 + $0x94] sm:$0xf]
      %v278 = vld [vmem:[%s1 + $0x98] sm:$0xf]
      %v279 = vld [vmem:[%s1 + $0x9c] sm:$0xf]
      %v280 = vld [vmem:[%s1 + $0xa0] sm:$0xf]
      %v281 = vld [vmem:[%s1 + $0xa4] sm:$0xf]
      %v282 = vld [vmem:[%s1 + $0xa8] sm:$0xf]
      %v283 = vld [vmem:[%s1 + $0xac] sm:$0xf]
      %v284 = vld [vmem:[%s1 + $0xb0] sm:$0xf]
      %v285 = vld [vmem:[%s1 + $0xb4] sm:$0xf]
      %v286 = vld [vmem:[%s1 + $0xb8] sm:$0xf]
      %v287 = vld [vmem:[%s1 + $0xbc] sm:$0xf]
      %v288 = vld [vmem:[%s1 + $0xc0] sm:$0xf]
      %v289 = vld [vmem:[%s1 + $0xc4] sm:$0xf]
      %v290 = vld [vmem:[%s1 + $0xc8] sm:$0xf]
      %v291 = vld [vmem:[%s1 + $0xcc] sm:$0xf]
      %v292 = vld [vmem:[%s1 + $0xd0] sm:$0xf]
      %v293 = vld [vmem:[%s1 + $0xd4] sm:$0xf]
      %v294 = vld [vmem:[%s1 + $0xd8] sm:$0xf]
      %v295 = vld [vmem:[%s1 + $0xdc] sm:$0xf]
      %v296 = vld [vmem:[%s1 + $0xe0] sm:$0xf]
      %v297 = vld [vmem:[%s1 + $0xe4] sm:$0xf]
      %v298 = vld [vmem:[%s1 + $0xe8] sm:$0xf]
      %v299 = vld [vmem:[%s1 + $0xec] sm:$0xf]
      %v300 = vld [vmem:[%s1 + $0xf0] sm:$0xf]
      %v301 = vld [vmem:[%s1 + $0xf4] sm:$0xf]
      %v302 = vld [vmem:[%s1 + $0xf8] sm:$0xf]
      %v303 = vld [vmem:[%s1 + $0xfc] sm:$0xf]
      %v304 = vld [vmem:[%s1 + $0x100] sm:$0xf]
      %v305 = vld [vmem:[%s1 + $0x104] sm:$0xf]
      %v306 = vld [vmem:[%s1 + $0x108] sm:$0xf]
      %v307 = vld [vmem:[%s1 + $0x10c] sm:$0xf]
      %v308 = vld [vmem:[%s1 + $0x110] sm:$0xf]
      %v309 = vld [vmem:[%s1 + $0x114] sm:$0xf]
      %v310 = vld [vmem:[%s1 + $0x118] sm:$0xf]
      %v311 = vld [vmem:[%s1 + $0x11c] sm:$0xf]
      %v312 = vld [vmem:[%s1 + $0x120] sm:$0xf]
      %v313 = vld [vmem:[%s1 + $0x124] sm:$0xf]
      %v314 = vld [vmem:[%s1 + $0x128] sm:$0xf]
      %v315 = vld [vmem:[%s1 + $0x12c] sm:$0xf]
      %v316 = vld [vmem:[%s1 + $0x130] sm:$0xf]
      %v317 = vld [vmem:[%s1 + $0x134] sm:$0xf]
      %v318 = vld [vmem:[%s1 + $0x138] sm:$0xf]
      %v319 = vld [vmem:[%s1 + $0x13c] sm:$0xf]
      %v320 = vld [vmem:[%s1 + $0x140] sm:$0xf]
      %v321 = vld [vmem:[%s1 + $0x144] sm:$0xf]
      %v322 = vld [vmem:[%s1 + $0x148] sm:$0xf]
      %v323 = vld [vmem:[%s1 + $0x14c] sm:$0xf]
      %v324 = vld [vmem:[%s1 + $0x150] sm:$0xf]
      %v325 = vld [vmem:[%s1 + $0x154] sm:$0xf]
      %v326 = vld [vmem:[%s1 + $0x158] sm:$0xf]
      %v327 = vld [vmem:[%s1 + $0x15c] sm:$0xf]
      %v328 = vld [vmem:[%s1 + $0x160] sm:$0xf]
      %v329 = vld [vmem:[%s1 + $0x164] sm:$0xf]
      %v330 = vld [vmem:[%s1 + $0x168] sm:$0xf]
      %v331 = vld [vmem:[%s1 + $0x16c] sm:$0xf]
      %v332 = vld [vmem:[%s1 + $0x170] sm:$0xf]
      %v333 = vld [vmem:[%s1 + $0x174] sm:$0xf]
      %v334 = vld [vmem:[%s1 + $0x178] sm:$0xf]
      %v335 = vld [vmem:[%s1 + $0x17c] sm:$0xf]
      %v336 = vld [vmem:[%s1 + $0x180] sm:$0xf]
      %v337 = vld [vmem:[%s1 + $0x184] sm:$0xf]
      %v338 = vld [vmem:[%s1 + $0x188] sm:$0xf]
      %v339 = vld [vmem:[%s1 + $0x18c] sm:$0xf]
      %v340 = vld [vmem:[%s1 + $0x190] sm:$0xf]
      %v341 = vld [vmem:[%s1 + $0x194] sm:$0xf]
      %v342 = vld [vmem:[%s1 + $0x198] sm:$0xf]
      %v343 = vld [vmem:[%s1 + $0x19c] sm:$0xf]
      %v344 = vld [vmem:[%s1 + $0x1a0] sm:$0xf]
      %v345 = vld [vmem:[%s1 + $0x1a4] sm:$0xf]
      %v346 = vld [vmem:[%s1 + $0x1a8] sm:$0xf]
      %v347 = vld [vmem:[%s1 + $0x1ac] sm:$0xf]
      %v348 = vld [vmem:[%s1 + $0x1b0] sm:$0xf]
      %v349 = vld [vmem:[%s1 + $0x1b4] sm:$0xf]
      %v350 = vld [vmem:[%s1 + $0x1b8] sm:$0xf]
      %v351 = vld [vmem:[%s1 + $0x1bc] sm:$0xf]
      %v352 = vld [vmem:[%s1 + $0x1c0] sm:$0xf]
      %v353 = vld [vmem:[%s1 + $0x1c4] sm:$0xf]
      %v354 = vld [vmem:[%s1 + $0x1c8] sm:$0xf]
      %v355 = vld [vmem:[%s1 + $0x1cc] sm:$0xf]
      %v356 = vld [vmem:[%s1 + $0x1d0] sm:$0xf]
      %v357 = vld [vmem:[%s1 + $0x1d4] sm:$0xf]
      %v358 = vld [vmem:[%s1 + $0x1d8] sm:$0xf]
      %v359 = vld [vmem:[%s1 + $0x1dc] sm:$0xf]
      %v360 = vld [vmem:[%s1 + $0x1e0] sm:$0xf]
      %v361 = vld [vmem:[%s1 + $0x1e4] sm:$0xf]
      %v362 = vld [vmem:[%s1 + $0x1e8] sm:$0xf]
      %v363 = vld [vmem:[%s1 + $0x1ec] sm:$0xf]
      %v364 = vld [vmem:[%s1 + $0x1f0] sm:$0xf]
      %v365 = vld [vmem:[%s1 + $0x1f4] sm:$0xf]
      %v366 = vld [vmem:[%s1 + $0x1f8] sm:$0xf]
      %v367 = vld [vmem:[%s1 + $0x1fc] sm:$0xf]
      %v368 = vld [vmem:[%s1 + $0x200] sm:$0xf]
      %v369 = vld [vmem:[%s1 + $0x204] sm:$0xf]
      %v370 = vld [vmem:[%s1 + $0x208] sm:$0xf]
      %v371 = vld [vmem:[%s1 + $0x20c] sm:$0xf]
      %v372 = vld [vmem:[%s1 + $0x210] sm:$0xf]
      %v373 = vld [vmem:[%s1 + $0x214] sm:$0xf]
      %v374 = vld [vmem:[%s1 + $0x218] sm:$0xf]
      %v375 = vld [vmem:[%s1 + $0x21c] sm:$0xf]
      %v376 = vld [vmem:[%s1 + $0x220] sm:$0xf]
      %v377 = vld [vmem:[%s1 + $0x224] sm:$0xf]
      %v378 = vld [vmem:[%s1 + $0x228] sm:$0xf]
      %v379 = vld [vmem:[%s1 + $0x22c] sm:$0xf]
      %v380 = vld [vmem:[%s1 + $0x230] sm:$0xf]
      %v381 = vld [vmem:[%s1 + $0x234] sm:$0xf]
      %v382 = vld [vmem:[%s1 + $0x238] sm:$0xf]
      %v383 = vld [vmem:[%s1 + $0x23c] sm:$0xf]
      %v384 = vld [vmem:[%s1 + $0x240] sm:$0xf]
      %v385 = vld [vmem:[%s1 + $0x244] sm:$0xf]
      %v386 = vld [vmem:[%s1 + $0x248] sm:$0xf]
      %v387 = vld [vmem:[%s1 + $0x24c] sm:$0xf]
      %v388 = vld [vmem:[%s1 + $0x250] sm:$0xf]
      %v389 = vld [vmem:[%s1 + $0x254] sm:$0xf]
      %v390 = vld [vmem:[%s1 + $0x258] sm:$0xf]
      %v391 = vld [vmem:[%s1 + $0x25c] sm:$0xf]
      %v392 = vld [vmem:[%s1 + $0x260] sm:$0xf]
      %v393 = vld [vmem:[%s1 + $0x264] sm:$0xf]
      %v394 = vld [vmem:[%s1 + $0x268] sm:$0xf]
      %v395 = vld [vmem:[%s1 + $0x26c] sm:$0xf]
      %v396 = vld [vmem:[%s1 + $0x270] sm:$0xf]
      %v397 = vld [vmem:[%s1 + $0x274] sm:$0xf]
      %v398 = vld [vmem:[%s1 + $0x278] sm:$0xf]
      %v399 = vld [vmem:[%s1 + $0x27c] sm:$0xf]
      %v400 = vld [vmem:[%s1 + $0x280] sm:$0xf]
      %v401 = vld [vmem:[%s1 + $0x284] sm:$0xf]
      %v402 = vld [vmem:[%s1 + $0x288] sm:$0xf]
      %v403 = vld [vmem:[%s1 + $0x28c] sm:$0xf]
      %v404 = vld [vmem:[%s1 + $0x290] sm:$0xf]
      %v405 = vld [vmem:[%s1 + $0x294] sm:$0xf]
      %v406 = vld [vmem:[%s1 + $0x298] sm:$0xf]
      %v407 = vld [vmem:[%s1 + $0x29c] sm:$0xf]
      %v408 = vld [vmem:[%s1 + $0x2a0] sm:$0xf]
      %v409 = vld [vmem:[%s1 + $0x2a4] sm:$0xf]
      %v410 = vld [vmem:[%s1 + $0x2a8] sm:$0xf]
      %v411 = vld [vmem:[%s1 + $0x2ac] sm:$0xf]
      %v412 = vld [vmem:[%s1 + $0x2b0] sm:$0xf]
      %v413 = vld [vmem:[%s1 + $0x2b4] sm:$0xf]
      %v414 = vld [vmem:[%s1 + $0x2b8] sm:$0xf]
      %v415 = vld [vmem:[%s1 + $0x2bc] sm:$0xf]
      %v416 = vld [vmem:[%s1 + $0x2c0] sm:$0xf]
      %v417 = vld [vmem:[%s1 + $0x2c4] sm:$0xf]
      %v418 = vld [vmem:[%s1 + $0x2c8] sm:$0xf]
      %v419 = vld [vmem:[%s1 + $0x2cc] sm:$0xf]
      %v420 = vld [vmem:[%s1 + $0x2d0] sm:$0xf]
      %v421 = vld [vmem:[%s1 + $0x2d4] sm:$0xf]
      %v422 = vld [vmem:[%s1 + $0x2d8] sm:$0xf]
      %v423 = vld [vmem:[%s1 + $0x2dc] sm:$0xf]
      %v424 = vld [vmem:[%s1 + $0x2e0] sm:$0xf]
      %v425 = vld [vmem:[%s1 + $0x2e4] sm:$0xf]
      %v426 = vld [vmem:[%s1 + $0x2e8] sm:$0xf]
      %v427 = vld [vmem:[%s1 + $0x2ec] sm:$0xf]
      %v428 = vld [vmem:[%s1 + $0x2f0] sm:$0xf]
      %v429 = vld [vmem:[%s1 + $0x2f4] sm:$0xf]
      %v430 = vld [vmem:[%s1 + $0x2f8] sm:$0xf]
      %v431 = vld [vmem:[%s1 + $0x2fc] sm:$0xf]
      %v432 = vld [vmem:[%s1 + $0x300] sm:$0xf]
      %v433 = vld [vmem:[%s1 + $0x304] sm:$0xf]
      %v434 = vld [vmem:[%s1 + $0x308] sm:$0xf]
      %v435 = vld [vmem:[%s1 + $0x30c] sm:$0xf]
      %v436 = vld [vmem:[%s1 + $0x310] sm:$0xf]
      %v437 = vld [vmem:[%s1 + $0x314] sm:$0xf]
      %v438 = vld [vmem:[%s1 + $0x318] sm:$0xf]
      %v439 = vld [vmem:[%s1 + $0x31c] sm:$0xf]
      %v440 = vld [vmem:[%s1 + $0x320] sm:$0xf]
      %v441 = vld [vmem:[%s1 + $0x324] sm:$0xf]
      %v442 = vld [vmem:[%s1 + $0x328] sm:$0xf]
      %v443 = vld [vmem:[%s1 + $0x32c] sm:$0xf]
      %v444 = vld [vmem:[%s1 + $0x330] sm:$0xf]
      %v445 = vld [vmem:[%s1 + $0x334] sm:$0xf]
      %v446 = vld [vmem:[%s1 + $0x338] sm:$0xf]
      %v447 = vld [vmem:[%s1 + $0x33c] sm:$0xf]
      %v448 = vld [vmem:[%s1 + $0x340] sm:$0xf]
      %v449 = vld [vmem:[%s1 + $0x344] sm:$0xf]
      %v450 = vld [vmem:[%s1 + $0x348] sm:$0xf]
      %v451 = vld [vmem:[%s1 + $0x34c] sm:$0xf]
      %v452 = vld [vmem:[%s1 + $0x350] sm:$0xf]
      %v453 = vld [vmem:[%s1 + $0x354] sm:$0xf]
      %v454 = vld [vmem:[%s1 + $0x358] sm:$0xf]
      %v455 = vld [vmem:[%s1 + $0x35c] sm:$0xf]
      %v470 = vunpack.c.l.b16 %v226
      %v471 = vunpack.c.h.b16 %v226
      %v472 = vunpack.c.l.b16 %v227
      %v473 = vunpack.c.h.b16 %v227
      %v474 = vunpack.c.l.b16 %v228
      %v475 = vunpack.c.h.b16 %v228
      %v476 = vunpack.c.l.b16 %v229
      %v477 = vunpack.c.h.b16 %v229
      %v478 = vunpack.c.l.b16 %v230
      %v479 = vunpack.c.h.b16 %v230
      %v480 = vunpack.c.l.b16 %v231
      %v481 = vunpack.c.h.b16 %v231
      %v482 = vunpack.c.l.b16 %v232
      %v483 = vunpack.c.h.b16 %v232
      %v484 = vunpack.c.l.b16 %v233
      %v485 = vunpack.c.h.b16 %v233
      %v486 = vunpack.c.l.b16 %v234
      %v487 = vunpack.c.h.b16 %v234
      %v488 = vunpack.c.l.b16 %v235
      %v489 = vunpack.c.h.b16 %v235
      %v490 = vunpack.c.l.b16 %v236
      %v491 = vunpack.c.h.b16 %v236
      %v492 = vunpack.c.l.b16 %v237
      %v493 = vunpack.c.h.b16 %v237
      %v494 = vunpack.c.l.b16 %v238
      %v495 = vunpack.c.h.b16 %v238
      %v496 = vunpack.c.l.b16 %v239
      %v497 = vunpack.c.h.b16 %v239
      %v498 = vpack.c.b16 %v484, %v470
      %v499 = vpack.c.b16 %v485, %v471
      %v500 = vpack.c.b16 %v486, %v472
      %v501 = vpack.c.b16 %v487, %v473
      %v502 = vpack.c.b16 %v488, %v474
      %v503 = vpack.c.b16 %v489, %v475
      %v504 = vpack.c.b16 %v490, %v476
      %v505 = vpack.c.b16 %v491, %v477
      %v506 = vpack.c.b16 %v492, %v478
      %v507 = vpack.c.b16 %v493, %v479
      %v508 = vpack.c.b16 %v494, %v480
      %v509 = vpack.c.b16 %v495, %v481
      %v510 = vpack.c.b16 %v496, %v482
      %v511 = vpack.c.b16 %v497, %v483
      %v741 = vunpack.c.l.b16 %v240
      %v742 = vunpack.c.l.b16 %v241
      %v743 = vunpack.c.l.b16 %v242
      %v744 = vunpack.c.l.b16 %v243
      %v745 = vunpack.c.l.b16 %v244
      %v746 = vunpack.c.l.b16 %v245
      %v747 = vunpack.c.l.b16 %v246
      %v748 = vunpack.c.l.b16 %v247
      %v749 = vunpack.c.l.b16 %v248
      %v750 = vunpack.c.l.b16 %v249
      %v751 = vunpack.c.l.b16 %v250
      %v752 = vunpack.c.l.b16 %v251
      %v753 = vunpack.c.l.b16 %v252
      %v754 = vunpack.c.l.b16 %v253
      %v755 = vunpack.c.l.b16 %v254
      %v756 = vunpack.c.l.b16 %v255
      %v757 = vunpack.c.l.b16 %v256
      %v758 = vunpack.c.l.b16 %v257
      %v759 = vunpack.c.l.b16 %v258
      %v760 = vunpack.c.l.b16 %v259
      %v761 = vunpack.c.l.b16 %v260
      %v762 = vunpack.c.l.b16 %v261
      %v763 = vunpack.c.l.b16 %v262
      %v764 = vunpack.c.l.b16 %v263
      %v765 = vunpack.c.l.b16 %v264
      %v766 = vunpack.c.l.b16 %v265
      %v767 = vunpack.c.l.b16 %v266
      %v768 = vunpack.c.l.b16 %v267
      %v769 = vunpack.c.l.b16 %v268
      %v770 = vunpack.c.l.b16 %v269
      %v771 = vunpack.c.l.b16 %v270
      %v772 = vunpack.c.l.b16 %v271
      %v773 = vunpack.c.l.b16 %v272
      %v774 = vunpack.c.l.b16 %v273
      %v775 = vunpack.c.l.b16 %v274
      %v776 = vunpack.c.l.b16 %v275
      %v777 = vunpack.c.l.b16 %v276
      %v778 = vunpack.c.l.b16 %v277
      %v779 = vunpack.c.l.b16 %v278
      %v780 = vunpack.c.l.b16 %v279
      %v781 = vunpack.c.l.b16 %v280
      %v782 = vunpack.c.l.b16 %v281
      %v783 = vunpack.c.l.b16 %v282
      %v784 = vunpack.c.l.b16 %v283
      %v785 = vunpack.c.l.b16 %v284
      %v786 = vunpack.c.l.b16 %v285
      %v787 = vunpack.c.l.b16 %v286
      %v788 = vunpack.c.l.b16 %v287
      %v789 = vunpack.c.l.b16 %v288
      %v790 = vunpack.c.l.b16 %v289
      %v791 = vunpack.c.l.b16 %v290
      %v792 = vunpack.c.l.b16 %v291
      %v793 = vunpack.c.l.b16 %v292
      %v794 = vunpack.c.l.b16 %v293
      %v795 = vunpack.c.l.b16 %v294
      %v796 = vunpack.c.l.b16 %v295
      %v797 = vunpack.c.l.b16 %v296
      %v798 = vunpack.c.l.b16 %v297
      %v799 = vunpack.c.l.b16 %v298
      %v800 = vunpack.c.l.b16 %v299
      %v801 = vunpack.c.l.b16 %v300
      %v802 = vunpack.c.l.b16 %v301
      %v803 = vunpack.c.l.b16 %v302
      %v804 = vunpack.c.l.b16 %v303
      %v805 = vunpack.c.l.b16 %v304
      %v806 = vunpack.c.l.b16 %v305
      %v807 = vunpack.c.l.b16 %v306
      %v808 = vunpack.c.l.b16 %v307
      %v809 = vunpack.c.l.b16 %v308
      %v810 = vunpack.c.l.b16 %v309
      %v811 = vunpack.c.l.b16 %v310
      %v812 = vunpack.c.l.b16 %v311
      %v813 = vunpack.c.l.b16 %v312
      %v814 = vunpack.c.l.b16 %v313
      %v815 = vunpack.c.l.b16 %v314
      %v816 = vunpack.c.l.b16 %v315
      %v817 = vunpack.c.l.b16 %v316
      %v818 = vunpack.c.l.b16 %v317
      %v819 = vunpack.c.l.b16 %v318
      %v820 = vunpack.c.l.b16 %v319
      %v821 = vunpack.c.l.b16 %v320
      %v822 = vunpack.c.l.b16 %v321
      %v823 = vunpack.c.l.b16 %v322
      %v824 = vunpack.c.l.b16 %v323
      %v825 = vunpack.c.l.b16 %v324
      %v826 = vunpack.c.l.b16 %v325
      %v827 = vunpack.c.l.b16 %v326
      %v828 = vunpack.c.l.b16 %v327
      %v829 = vunpack.c.l.b16 %v328
      %v830 = vunpack.c.l.b16 %v329
      %v831 = vunpack.c.l.b16 %v330
      %v832 = vunpack.c.l.b16 %v331
      %v833 = vunpack.c.l.b16 %v332
      %v834 = vunpack.c.l.b16 %v333
      %v835 = vunpack.c.l.b16 %v334
      %v836 = vunpack.c.l.b16 %v335
      %v837 = vunpack.c.l.b16 %v336
      %v838 = vunpack.c.l.b16 %v337
      %v839 = vunpack.c.l.b16 %v338
      %v840 = vunpack.c.l.b16 %v339
      %v841 = vunpack.c.l.b16 %v340
      %v842 = vunpack.c.l.b16 %v341
      %v843 = vunpack.c.l.b16 %v342
      %v844 = vunpack.c.l.b16 %v343
      %v845 = vunpack.c.l.b16 %v344
      %v846 = vunpack.c.l.b16 %v345
      %v847 = vunpack.c.l.b16 %v346
      %v848 = vunpack.c.l.b16 %v347
      %v849 = vunpack.c.l.b16 %v348
      %v850 = vunpack.c.l.b16 %v349
      %v851 = vunpack.c.l.b16 %v350
      %v852 = vunpack.c.l.b16 %v351
      %v853 = vunpack.c.l.b16 %v352
      %v854 = vunpack.c.l.b16 %v353
      %v855 = vunpack.c.l.b16 %v354
      %v856 = vunpack.c.l.b16 %v355
      %v857 = vunpack.c.l.b16 %v356
      %v858 = vunpack.c.l.b16 %v357
      %v859 = vunpack.c.l.b16 %v358
      %v860 = vunpack.c.l.b16 %v359
      %v861 = vunpack.c.l.b16 %v360
      %v862 = vunpack.c.l.b16 %v361
      %v863 = vunpack.c.l.b16 %v362
      %v864 = vunpack.c.l.b16 %v363
      %v865 = vunpack.c.l.b16 %v364
      %v866 = vunpack.c.l.b16 %v365
      %v867 = vunpack.c.l.b16 %v366
      %v868 = vunpack.c.l.b16 %v367
      %v869 = vunpack.c.l.b16 %v368
      %v870 = vunpack.c.l.b16 %v369
      %v871 = vunpack.c.l.b16 %v370
      %v872 = vunpack.c.l.b16 %v371
      %v873 = vunpack.c.l.b16 %v372
      %v874 = vunpack.c.l.b16 %v373
      %v875 = vunpack.c.l.b16 %v374
      %v876 = vunpack.c.l.b16 %v375
      %v877 = vunpack.c.l.b16 %v376
      %v878 = vunpack.c.l.b16 %v377
      %v879 = vunpack.c.l.b16 %v378
      %v880 = vunpack.c.l.b16 %v379
      %v881 = vunpack.c.l.b16 %v380
      %v882 = vunpack.c.l.b16 %v381
      %v883 = vunpack.c.l.b16 %v382
      %v884 = vunpack.c.l.b16 %v383
      %v885 = vunpack.c.l.b16 %v384
      %v886 = vunpack.c.l.b16 %v385
      %v887 = vunpack.c.l.b16 %v386
      %v888 = vunpack.c.l.b16 %v387
      %v889 = vunpack.c.l.b16 %v388
      %v890 = vunpack.c.l.b16 %v389
      %v891 = vunpack.c.l.b16 %v390
      %v892 = vunpack.c.l.b16 %v391
      %v893 = vunpack.c.l.b16 %v392
      %v894 = vunpack.c.l.b16 %v393
      %v895 = vunpack.c.l.b16 %v394
      %v896 = vunpack.c.l.b16 %v395
      %v897 = vunpack.c.l.b16 %v396
      %v898 = vunpack.c.l.b16 %v397
      %v899 = vunpack.c.l.b16 %v398
      %v900 = vunpack.c.l.b16 %v399
      %v901 = vunpack.c.l.b16 %v400
      %v902 = vunpack.c.l.b16 %v401
      %v903 = vunpack.c.l.b16 %v402
      %v904 = vunpack.c.l.b16 %v403
      %v905 = vunpack.c.l.b16 %v404
      %v906 = vunpack.c.l.b16 %v405
      %v907 = vunpack.c.l.b16 %v406
      %v908 = vunpack.c.l.b16 %v407
      %v909 = vunpack.c.l.b16 %v408
      %v910 = vunpack.c.l.b16 %v409
      %v911 = vunpack.c.l.b16 %v410
      %v912 = vunpack.c.l.b16 %v411
      %v913 = vunpack.c.l.b16 %v412
      %v914 = vunpack.c.l.b16 %v413
      %v915 = vunpack.c.l.b16 %v414
      %v916 = vunpack.c.l.b16 %v415
      %v917 = vunpack.c.l.b16 %v416
      %v918 = vunpack.c.l.b16 %v417
      %v919 = vunpack.c.l.b16 %v418
      %v920 = vunpack.c.l.b16 %v419
      %v921 = vunpack.c.l.b16 %v420
      %v922 = vunpack.c.l.b16 %v421
      %v923 = vunpack.c.l.b16 %v422
      %v924 = vunpack.c.l.b16 %v423
      %v925 = vunpack.c.l.b16 %v424
      %v926 = vunpack.c.l.b16 %v425
      %v927 = vunpack.c.l.b16 %v426
      %v928 = vunpack.c.l.b16 %v427
      %v929 = vunpack.c.l.b16 %v428
      %v930 = vunpack.c.l.b16 %v429
      %v931 = vunpack.c.l.b16 %v430
      %v932 = vunpack.c.l.b16 %v431
      %v933 = vunpack.c.l.b16 %v432
      %v934 = vunpack.c.l.b16 %v433
      %v935 = vunpack.c.l.b16 %v434
      %v936 = vunpack.c.l.b16 %v435
      %v937 = vunpack.c.l.b16 %v436
      %v938 = vunpack.c.l.b16 %v437
      %v939 = vunpack.c.l.b16 %v438
      %v940 = vunpack.c.l.b16 %v439
      %v941 = vunpack.c.l.b16 %v440
      %v942 = vunpack.c.l.b16 %v441
      %v943 = vunpack.c.l.b16 %v442
      %v944 = vunpack.c.l.b16 %v443
      %v945 = vunpack.c.l.b16 %v444
      %v946 = vunpack.c.l.b16 %v445
      %v947 = vunpack.c.l.b16 %v446
      %v948 = vunpack.c.l.b16 %v447
      %v949 = vunpack.c.l.b16 %v448
      %v950 = vunpack.c.l.b16 %v449
      %v951 = vunpack.c.l.b16 %v450
      %v952 = vunpack.c.l.b16 %v451
      %v953 = vunpack.c.l.b16 %v452
      %v954 = vunpack.c.l.b16 %v453
      %v955 = vunpack.c.l.b16 %v454
      %v956 = vunpack.c.l.b16 %v455
      %v957 = vpack.c.b16 %v742, %v741
      %v958 = vpack.c.b16 %v744, %v743
      %v959 = vpack.c.b16 %v746, %v745
      %v960 = vpack.c.b16 %v748, %v747
      %v961 = vpack.c.b16 %v750, %v749
      %v962 = vpack.c.b16 %v752, %v751
      %v963 = vpack.c.b16 %v754, %v753
      %v964 = vpack.c.b16 %v756, %v755
      %v965 = vpack.c.b16 %v758, %v757
      %v966 = vpack.c.b16 %v760, %v759
      %v967 = vpack.c.b16 %v762, %v761
      %v968 = vpack.c.b16 %v764, %v763
      %v969 = vpack.c.b16 %v766, %v765
      %v970 = vpack.c.b16 %v768, %v767
      %v971 = vpack.c.b16 %v770, %v769
      %v972 = vpack.c.b16 %v772, %v771
      %v973 = vpack.c.b16 %v774, %v773
      %v974 = vpack.c.b16 %v776, %v775
      %v975 = vpack.c.b16 %v778, %v777
      %v976 = vpack.c.b16 %v780, %v779
      %v977 = vpack.c.b16 %v782, %v781
      %v978 = vpack.c.b16 %v784, %v783
      %v979 = vpack.c.b16 %v786, %v785
      %v980 = vpack.c.b16 %v788, %v787
      %v981 = vpack.c.b16 %v790, %v789
      %v982 = vpack.c.b16 %v792, %v791
      %v983 = vpack.c.b16 %v794, %v793
      %v984 = vpack.c.b16 %v796, %v795
      %v985 = vpack.c.b16 %v798, %v797
      %v986 = vpack.c.b16 %v800, %v799
      %v987 = vpack.c.b16 %v802, %v801
      %v988 = vpack.c.b16 %v804, %v803
      %v989 = vpack.c.b16 %v806, %v805
      %v990 = vpack.c.b16 %v808, %v807
      %v991 = vpack.c.b16 %v810, %v809
      %v992 = vpack.c.b16 %v812, %v811
      %v993 = vpack.c.b16 %v814, %v813
      %v994 = vpack.c.b16 %v816, %v815
      %v995 = vpack.c.b16 %v818, %v817
      %v996 = vpack.c.b16 %v820, %v819
      %v997 = vpack.c.b16 %v822, %v821
      %v998 = vpack.c.b16 %v824, %v823
      %v999 = vpack.c.b16 %v826, %v825
      %v1000 = vpack.c.b16 %v828, %v827
      %v1001 = vpack.c.b16 %v830, %v829
      %v1002 = vpack.c.b16 %v832, %v831
      %v1003 = vpack.c.b16 %v834, %v833
      %v1004 = vpack.c.b16 %v836, %v835
      %v1005 = vpack.c.b16 %v838, %v837
      %v1006 = vpack.c.b16 %v840, %v839
      %v1007 = vpack.c.b16 %v842, %v841
      %v1008 = vpack.c.b16 %v844, %v843
      %v1009 = vpack.c.b16 %v846, %v845
      %v1010 = vpack.c.b16 %v848, %v847
      %v1011 = vpack.c.b16 %v850, %v849
      %v1012 = vpack.c.b16 %v852, %v851
      %v1013 = vpack.c.b16 %v854, %v853
      %v1014 = vpack.c.b16 %v856, %v855
      %v1015 = vpack.c.b16 %v858, %v857
      %v1016 = vpack.c.b16 %v860, %v859
      %v1017 = vpack.c.b16 %v862, %v861
      %v1018 = vpack.c.b16 %v864, %v863
      %v1019 = vpack.c.b16 %v866, %v865
      %v1020 = vpack.c.b16 %v868, %v867
      %v1021 = vpack.c.b16 %v870, %v869
      %v1022 = vpack.c.b16 %v872, %v871
      %v1023 = vpack.c.b16 %v874, %v873
      %v1024 = vpack.c.b16 %v876, %v875
      %v1025 = vpack.c.b16 %v878, %v877
      %v1026 = vpack.c.b16 %v880, %v879
      %v1027 = vpack.c.b16 %v882, %v881
      %v1028 = vpack.c.b16 %v884, %v883
      %v1029 = vpack.c.b16 %v886, %v885
      %v1030 = vpack.c.b16 %v888, %v887
      %v1031 = vpack.c.b16 %v890, %v889
      %v1032 = vpack.c.b16 %v892, %v891
      %v1033 = vpack.c.b16 %v894, %v893
      %v1034 = vpack.c.b16 %v896, %v895
      %v1035 = vpack.c.b16 %v898, %v897
      %v1036 = vpack.c.b16 %v900, %v899
      %v1037 = vpack.c.b16 %v902, %v901
      %v1038 = vpack.c.b16 %v904, %v903
      %v1039 = vpack.c.b16 %v906, %v905
      %v1040 = vpack.c.b16 %v908, %v907
      %v1041 = vpack.c.b16 %v910, %v909
      %v1042 = vpack.c.b16 %v912, %v911
      %v1043 = vpack.c.b16 %v914, %v913
      %v1044 = vpack.c.b16 %v916, %v915
      %v1045 = vpack.c.b16 %v918, %v917
      %v1046 = vpack.c.b16 %v920, %v919
      %v1047 = vpack.c.b16 %v922, %v921
      %v1048 = vpack.c.b16 %v924, %v923
      %v1049 = vpack.c.b16 %v926, %v925
      %v1050 = vpack.c.b16 %v928, %v927
      %v1051 = vpack.c.b16 %v930, %v929
      %v1052 = vpack.c.b16 %v932, %v931
      %v1053 = vpack.c.b16 %v934, %v933
      %v1054 = vpack.c.b16 %v936, %v935
      %v1055 = vpack.c.b16 %v938, %v937
      %v1056 = vpack.c.b16 %v940, %v939
      %v1057 = vpack.c.b16 %v942, %v941
      %v1058 = vpack.c.b16 %v944, %v943
      %v1059 = vpack.c.b16 %v946, %v945
      %v1060 = vpack.c.b16 %v948, %v947
      %v1061 = vpack.c.b16 %v950, %v949
      %v1062 = vpack.c.b16 %v952, %v951
      %v1063 = vpack.c.b16 %v954, %v953
      %v1064 = vpack.c.b16 %v956, %v955
      %vm1173 = vcmask 523264
      %v1175 = vsel %vm1173, %v511, 0
      %1177 = vmatprep.subr.bf16.mxu0 0
      %1178 = vmatpush1.bf16.msra.mxu0 %v964
      %1179 = vmatprep.subr.bf16.mxu0 0
      %1180 = vmatpush1.bf16.msra.mxu0 %v963
      %1181 = vmatprep.subr.bf16.mxu0 0
      %1182 = vmatpush1.bf16.msra.mxu0 %v962
      %1183 = vmatprep.subr.bf16.mxu0 0
      %1184 = vmatpush1.bf16.msra.mxu0 %v961
      %1185 = vmatprep.subr.bf16.mxu0 0
      %1186 = vmatpush1.bf16.msra.mxu0 %v960
      %1187 = vmatprep.subr.bf16.mxu0 0
      %1188 = vmatpush1.bf16.msra.mxu0 %v959
      %1189 = vmatprep.subr.bf16.mxu0 0
      %1190 = vmatpush1.bf16.msra.mxu0 %v958
      %1191 = vmatprep.subr.bf16.mxu0 0
      %1192 = vmatpush1.bf16.msra.mxu0 %v957
      %1193 = vmatprep.subr.bf16.mxu0 0
      %1194 = vmatpush2.bf16.msra.mxu0 %v972
      %1195 = vmatprep.subr.bf16.mxu0 0
      %1196 = vmatpush2.bf16.msra.mxu0 %v971
      %1197 = vmatprep.subr.bf16.mxu0 0
      %1198 = vmatpush2.bf16.msra.mxu0 %v970
      %1199 = vmatprep.subr.bf16.mxu0 0
      %1200 = vmatpush2.bf16.msra.mxu0 %v969
      %1201 = vmatprep.subr.bf16.mxu0 0
      %1202 = vmatpush2.bf16.msra.mxu0 %v968
      %1203 = vmatprep.subr.bf16.mxu0 0
      %1204 = vmatpush2.bf16.msra.mxu0 %v967
      %1205 = vmatprep.subr.bf16.mxu0 0
      %1206 = vmatpush2.bf16.msra.mxu0 %v966
      %1207 = vmatprep.subr.bf16.mxu0 0
      %1208 = vmatpush2.bf16.msra.mxu0 %v965
      %1209 = vmatprep.mubr.bf16.mxu0 %v499
      %1210 = vmatmul.mubr.bf16.gmra.mxu0 %v498
      %v1211 = vpop.f32.mrf.mxu0
      %v1212 = vadd.f32 0.0, %v1211
      %v1213 = vpop.f32.mrf.mxu0
      %v1214 = vpop.f32.mrf.mxu0
      %v1215 = vadd.f32 0.0, %v1214
      %v1216 = vpop.f32.mrf.mxu0
      %1217 = vdwg.mxu0
      %1218 = vmatprep.subr.bf16.mxu0 0
      %1219 = vmatpush1.bf16.msra.mxu0 %v980
      %1220 = vmatprep.subr.bf16.mxu0 0
      %1221 = vmatpush1.bf16.msra.mxu0 %v979
      %1222 = vmatprep.subr.bf16.mxu0 0
      %1223 = vmatpush1.bf16.msra.mxu0 %v978
      %1224 = vmatprep.subr.bf16.mxu0 0
      %1225 = vmatpush1.bf16.msra.mxu0 %v977
      %1226 = vmatprep.subr.bf16.mxu0 0
      %1227 = vmatpush1.bf16.msra.mxu0 %v976
      %1228 = vmatprep.subr.bf16.mxu0 0
      %1229 = vmatpush1.bf16.msra.mxu0 %v975
      %1230 = vmatprep.subr.bf16.mxu0 0
      %1231 = vmatpush1.bf16.msra.mxu0 %v974
      %1232 = vmatprep.subr.bf16.mxu0 0
      %1233 = vmatpush1.bf16.msra.mxu0 %v973
      %1234 = vmatprep.subr.bf16.mxu0 0
      %1235 = vmatpush2.bf16.msra.mxu0 %v988
      %1236 = vmatprep.subr.bf16.mxu0 0
      %1237 = vmatpush2.bf16.msra.mxu0 %v987
      %1238 = vmatprep.subr.bf16.mxu0 0
      %1239 = vmatpush2.bf16.msra.mxu0 %v986
      %1240 = vmatprep.subr.bf16.mxu0 0
      %1241 = vmatpush2.bf16.msra.mxu0 %v985
      %1242 = vmatprep.subr.bf16.mxu0 0
      %1243 = vmatpush2.bf16.msra.mxu0 %v984
      %1244 = vmatprep.subr.bf16.mxu0 0
      %1245 = vmatpush2.bf16.msra.mxu0 %v983
      %1246 = vmatprep.subr.bf16.mxu0 0
      %1247 = vmatpush2.bf16.msra.mxu0 %v982
      %1248 = vmatprep.subr.bf16.mxu0 0
      %1249 = vmatpush2.bf16.msra.mxu0 %v981
      %1250 = vmatprep.mubr.bf16.mxu0 %v501
      %1251 = vmatmul.mubr.bf16.gmra.mxu0 %v500
      %v1252 = vpop.f32.mrf.mxu0
      %v1253 = vadd.f32 %v1212, %v1252
      %v1254 = vpop.f32.mrf.mxu0
      %v1255 = vpop.f32.mrf.mxu0
      %v1256 = vadd.f32 %v1215, %v1255
      %v1257 = vpop.f32.mrf.mxu0
      %1258 = vdwg.mxu0
      %1259 = vmatprep.subr.bf16.mxu0 0
      %1260 = vmatpush1.bf16.msra.mxu0 %v996
      %1261 = vmatprep.subr.bf16.mxu0 0
      %1262 = vmatpush1.bf16.msra.mxu0 %v995
      %1263 = vmatprep.subr.bf16.mxu0 0
      %1264 = vmatpush1.bf16.msra.mxu0 %v994
      %1265 = vmatprep.subr.bf16.mxu0 0
      %1266 = vmatpush1.bf16.msra.mxu0 %v993
      %1267 = vmatprep.subr.bf16.mxu0 0
      %1268 = vmatpush1.bf16.msra.mxu0 %v992
      %1269 = vmatprep.subr.bf16.mxu0 0
      %1270 = vmatpush1.bf16.msra.mxu0 %v991
      %1271 = vmatprep.subr.bf16.mxu0 0
      %1272 = vmatpush1.bf16.msra.mxu0 %v990
      %1273 = vmatprep.subr.bf16.mxu0 0
      %1274 = vmatpush1.bf16.msra.mxu0 %v989
      %1275 = vmatprep.subr.bf16.mxu0 0
      %1276 = vmatpush2.bf16.msra.mxu0 %v1004
      %1277 = vmatprep.subr.bf16.mxu0 0
      %1278 = vmatpush2.bf16.msra.mxu0 %v1003
      %1279 = vmatprep.subr.bf16.mxu0 0
      %1280 = vmatpush2.bf16.msra.mxu0 %v1002
      %1281 = vmatprep.subr.bf16.mxu0 0
      %1282 = vmatpush2.bf16.msra.mxu0 %v1001
      %1283 = vmatprep.subr.bf16.mxu0 0
      %1284 = vmatpush2.bf16.msra.mxu0 %v1000
      %1285 = vmatprep.subr.bf16.mxu0 0
      %1286 = vmatpush2.bf16.msra.mxu0 %v999
      %1287 = vmatprep.subr.bf16.mxu0 0
      %1288 = vmatpush2.bf16.msra.mxu0 %v998
      %1289 = vmatprep.subr.bf16.mxu0 0
      %1290 = vmatpush2.bf16.msra.mxu0 %v997
      %1291 = vmatprep.mubr.bf16.mxu0 %v503
      %1292 = vmatmul.mubr.bf16.gmra.mxu0 %v502
      %v1293 = vpop.f32.mrf.mxu0
      %v1294 = vadd.f32 %v1253, %v1293
      %v1295 = vpop.f32.mrf.mxu0
      %v1296 = vpop.f32.mrf.mxu0
      %v1297 = vadd.f32 %v1256, %v1296
      %v1298 = vpop.f32.mrf.mxu0
      %1299 = vdwg.mxu0
      %1300 = vmatprep.subr.bf16.mxu0 0
      %1301 = vmatpush1.bf16.msra.mxu0 %v1012
      %1302 = vmatprep.subr.bf16.mxu0 0
      %1303 = vmatpush1.bf16.msra.mxu0 %v1011
      %1304 = vmatprep.subr.bf16.mxu0 0
      %1305 = vmatpush1.bf16.msra.mxu0 %v1010
      %1306 = vmatprep.subr.bf16.mxu0 0
      %1307 = vmatpush1.bf16.msra.mxu0 %v1009
      %1308 = vmatprep.subr.bf16.mxu0 0
      %1309 = vmatpush1.bf16.msra.mxu0 %v1008
      %1310 = vmatprep.subr.bf16.mxu0 0
      %1311 = vmatpush1.bf16.msra.mxu0 %v1007
      %1312 = vmatprep.subr.bf16.mxu0 0
      %1313 = vmatpush1.bf16.msra.mxu0 %v1006
      %1314 = vmatprep.subr.bf16.mxu0 0
      %1315 = vmatpush1.bf16.msra.mxu0 %v1005
      %1316 = vmatprep.subr.bf16.mxu0 0
      %1317 = vmatpush2.bf16.msra.mxu0 %v1020
      %1318 = vmatprep.subr.bf16.mxu0 0
      %1319 = vmatpush2.bf16.msra.mxu0 %v1019
      %1320 = vmatprep.subr.bf16.mxu0 0
      %1321 = vmatpush2.bf16.msra.mxu0 %v1018
      %1322 = vmatprep.subr.bf16.mxu0 0
      %1323 = vmatpush2.bf16.msra.mxu0 %v1017
      %1324 = vmatprep.subr.bf16.mxu0 0
      %1325 = vmatpush2.bf16.msra.mxu0 %v1016
      %1326 = vmatprep.subr.bf16.mxu0 0
      %1327 = vmatpush2.bf16.msra.mxu0 %v1015
      %1328 = vmatprep.subr.bf16.mxu0 0
      %1329 = vmatpush2.bf16.msra.mxu0 %v1014
      %1330 = vmatprep.subr.bf16.mxu0 0
      %1331 = vmatpush2.bf16.msra.mxu0 %v1013
      %1332 = vmatprep.mubr.bf16.mxu0 %v505
      %1333 = vmatmul.mubr.bf16.gmra.mxu0 %v504
      %v1334 = vpop.f32.mrf.mxu0
      %v1335 = vadd.f32 %v1294, %v1334
      %v1336 = vpop.f32.mrf.mxu0
      %v1337 = vpop.f32.mrf.mxu0
      %v1338 = vadd.f32 %v1297, %v1337
      %v1339 = vpop.f32.mrf.mxu0
      %1340 = vdwg.mxu0
      %1341 = vmatprep.subr.bf16.mxu0 0
      %1342 = vmatpush1.bf16.msra.mxu0 %v1028
      %1343 = vmatprep.subr.bf16.mxu0 0
      %1344 = vmatpush1.bf16.msra.mxu0 %v1027
      %1345 = vmatprep.subr.bf16.mxu0 0
      %1346 = vmatpush1.bf16.msra.mxu0 %v1026
      %1347 = vmatprep.subr.bf16.mxu0 0
      %1348 = vmatpush1.bf16.msra.mxu0 %v1025
      %1349 = vmatprep.subr.bf16.mxu0 0
      %1350 = vmatpush1.bf16.msra.mxu0 %v1024
      %1351 = vmatprep.subr.bf16.mxu0 0
      %1352 = vmatpush1.bf16.msra.mxu0 %v1023
      %1353 = vmatprep.subr.bf16.mxu0 0
      %1354 = vmatpush1.bf16.msra.mxu0 %v1022
      %1355 = vmatprep.subr.bf16.mxu0 0
      %1356 = vmatpush1.bf16.msra.mxu0 %v1021
      %1357 = vmatprep.subr.bf16.mxu0 0
      %1358 = vmatpush2.bf16.msra.mxu0 %v1036
      %1359 = vmatprep.subr.bf16.mxu0 0
      %1360 = vmatpush2.bf16.msra.mxu0 %v1035
      %1361 = vmatprep.subr.bf16.mxu0 0
      %1362 = vmatpush2.bf16.msra.mxu0 %v1034
      %1363 = vmatprep.subr.bf16.mxu0 0
      %1364 = vmatpush2.bf16.msra.mxu0 %v1033
      %1365 = vmatprep.subr.bf16.mxu0 0
      %1366 = vmatpush2.bf16.msra.mxu0 %v1032
      %1367 = vmatprep.subr.bf16.mxu0 0
      %1368 = vmatpush2.bf16.msra.mxu0 %v1031
      %1369 = vmatprep.subr.bf16.mxu0 0
      %1370 = vmatpush2.bf16.msra.mxu0 %v1030
      %1371 = vmatprep.subr.bf16.mxu0 0
      %1372 = vmatpush2.bf16.msra.mxu0 %v1029
      %1373 = vmatprep.mubr.bf16.mxu0 %v507
      %1374 = vmatmul.mubr.bf16.gmra.mxu0 %v506
      %v1375 = vpop.f32.mrf.mxu0
      %v1376 = vadd.f32 %v1335, %v1375
      %v1377 = vpop.f32.mrf.mxu0
      %v1378 = vpop.f32.mrf.mxu0
      %v1379 = vadd.f32 %v1338, %v1378
      %v1380 = vpop.f32.mrf.mxu0
      %1381 = vdwg.mxu0
      %1382 = vmatprep.subr.bf16.mxu0 0
      %1383 = vmatpush1.bf16.msra.mxu0 %v1044
      %1384 = vmatprep.subr.bf16.mxu0 0
      %1385 = vmatpush1.bf16.msra.mxu0 %v1043
      %1386 = vmatprep.subr.bf16.mxu0 0
      %1387 = vmatpush1.bf16.msra.mxu0 %v1042
      %1388 = vmatprep.subr.bf16.mxu0 0
      %1389 = vmatpush1.bf16.msra.mxu0 %v1041
      %1390 = vmatprep.subr.bf16.mxu0 0
      %1391 = vmatpush1.bf16.msra.mxu0 %v1040
      %1392 = vmatprep.subr.bf16.mxu0 0
      %1393 = vmatpush1.bf16.msra.mxu0 %v1039
      %1394 = vmatprep.subr.bf16.mxu0 0
      %1395 = vmatpush1.bf16.msra.mxu0 %v1038
      %1396 = vmatprep.subr.bf16.mxu0 0
      %1397 = vmatpush1.bf16.msra.mxu0 %v1037
      %1398 = vmatprep.subr.bf16.mxu0 0
      %1399 = vmatpush2.bf16.msra.mxu0 %v1052
      %1400 = vmatprep.subr.bf16.mxu0 0
      %1401 = vmatpush2.bf16.msra.mxu0 %v1051
      %1402 = vmatprep.subr.bf16.mxu0 0
      %1403 = vmatpush2.bf16.msra.mxu0 %v1050
      %1404 = vmatprep.subr.bf16.mxu0 0
      %1405 = vmatpush2.bf16.msra.mxu0 %v1049
      %1406 = vmatprep.subr.bf16.mxu0 0
      %1407 = vmatpush2.bf16.msra.mxu0 %v1048
      %1408 = vmatprep.subr.bf16.mxu0 0
      %1409 = vmatpush2.bf16.msra.mxu0 %v1047
      %1410 = vmatprep.subr.bf16.mxu0 0
      %1411 = vmatpush2.bf16.msra.mxu0 %v1046
      %1412 = vmatprep.subr.bf16.mxu0 0
      %1413 = vmatpush2.bf16.msra.mxu0 %v1045
      %1414 = vmatprep.mubr.bf16.mxu0 %v509
      %1415 = vmatmul.mubr.bf16.gmra.mxu0 %v508
      %v1416 = vpop.f32.mrf.mxu0
      %v1417 = vadd.f32 %v1376, %v1416
      %v1418 = vpop.f32.mrf.mxu0
      %v1419 = vpop.f32.mrf.mxu0
      %v1420 = vadd.f32 %v1379, %v1419
      %v1421 = vpop.f32.mrf.mxu0
      %1422 = vdwg.mxu0
      %1423 = vmatprep.subr.bf16.mxu0 0
      %1424 = vmatpush1.bf16.msra.mxu0 %v1060
      %1425 = vmatprep.subr.bf16.mxu0 0
      %1426 = vmatpush1.bf16.msra.mxu0 %v1059
      %1427 = vmatprep.subr.bf16.mxu0 0
      %1428 = vmatpush1.bf16.msra.mxu0 %v1058
      %1429 = vmatprep.subr.bf16.mxu0 0
      %1430 = vmatpush1.bf16.msra.mxu0 %v1057
      %1431 = vmatprep.subr.bf16.mxu0 0
      %1432 = vmatpush1.bf16.msra.mxu0 %v1056
      %1433 = vmatprep.subr.bf16.mxu0 0
      %1434 = vmatpush1.bf16.msra.mxu0 %v1055
      %1435 = vmatprep.subr.bf16.mxu0 0
      %1436 = vmatpush1.bf16.msra.mxu0 %v1054
      %1437 = vmatprep.subr.bf16.mxu0 0
      %1438 = vmatpush1.bf16.msra.mxu0 %v1053
      %1439 = vmatprep.subr.bf16.mxu0 0
      %1440 = vmatpush2.bf16.msra.mxu0 0
      %1441 = vmatprep.subr.bf16.mxu0 0
      %1442 = vmatpush2.bf16.msra.mxu0 0
      %1443 = vmatprep.subr.bf16.mxu0 0
      %1444 = vmatpush2.bf16.msra.mxu0 0
      %1445 = vmatprep.subr.bf16.mxu0 0
      %1446 = vmatpush2.bf16.msra.mxu0 0
      %1447 = vmatprep.subr.bf16.mxu0 0
      %1448 = vmatpush2.bf16.msra.mxu0 %v1064
      %1449 = vmatprep.subr.bf16.mxu0 0
      %1450 = vmatpush2.bf16.msra.mxu0 %v1063
      %1451 = vmatprep.subr.bf16.mxu0 0
      %1452 = vmatpush2.bf16.msra.mxu0 %v1062
      %1453 = vmatprep.subr.bf16.mxu0 0
      %1454 = vmatpush2.bf16.msra.mxu0 %v1061
      %1455 = vmatprep.mubr.bf16.mxu0 %v1175
      %1456 = vmatmul.mubr.bf16.gmra.mxu0 %v510
      %v1457 = vpop.f32.mrf.mxu0
      %v1458 = vadd.f32 %v1417, %v1457
      %v1459 = vpop.f32.mrf.mxu0
      %v1460 = vpop.f32.mrf.mxu0
      %v1461 = vadd.f32 %v1420, %v1460
      %v1462 = vpop.f32.mrf.mxu0
      %1463 = vdwg.mxu0
      %v1464 = vpack.c.bf16 %v1461, %v1458
      %v1466 = vunpack.c.l.b16 %v1464
      %v1467 = vunpack.c.h.b16 %v1464
      %v1468 = vpack.c.b16 %v1466, %v1466
      %v1469 = vpack.c.b16 %v1467, %v1467
      %1472 = vst [vmem:[%s215] sm:$0xf] %v1468
      %1473 = vst [vmem:[%s215 + $0x4] sm:$0xf] %v1469
      %s1474 = smul.u32 %s16, 16
      %v1475 = vlaneseq
      %v1476 = vshrl.u32 %v1475, 7
      %v1477 = vadd.s32 %v1476, 8
      %v1478 = vstv %s1474
      %v1479 = vadd.s32 %v1478, %v1476
      %v1480 = vadd.s32 %v1478, %v1477
      %vm1481 = vcmp.lt.s32.totalorder %v1479, 25
      %vm1482 = vcmp.lt.s32.totalorder %v1480, 25
      %v1483 = vsel %vm1481, %v1458, 0.0
      %v1484 = vsel %vm1482, %v1461, 0.0
      %v1485 = vadd.f32 %v1483, %v1484
      %v1486 = vrot.slane %v1485, 4
      %v1487 = vadd.f32 %v1485, %v1486
      %v1488 = vrot.slane %v1487, 2
      %v1489 = vadd.f32 %v1487, %v1488
      %v1490 = vrot.slane %v1489, 1
      %v1491 = vadd.f32 %v1489, %v1490
      %v1492 = vmul.f32 %v1483, %v1483
      %v1493 = vmul.f32 %v1484, %v1484
      %v1494 = vadd.f32 %v1492, %v1493
      %v1495 = vrot.slane %v1494, 4
      %v1496 = vadd.f32 %v1494, %v1495
      %v1497 = vrot.slane %v1496, 2
      %v1498 = vadd.f32 %v1496, %v1497
      %v1499 = vrot.slane %v1498, 1
      %v1500 = vadd.f32 %v1498, %v1499
      %1501 = vst [vmem:[%s220] sm:$0xff] %v1491
      %1502 = vst [vmem:[%s224] sm:$0xff] %v1500
      %s1503 = smul.u32 2, %s16
      %p1504 = scmp.lt.s32.totalorder %s1503, 3
      %s1505 = scalar_select %p1504, %s1503, 3
      %s1506 = smul.addr %s1505, 4
      %s1507 = scalar_lea.vmem %s2, %s1506
      %p1508 = scmp.lt.s32.totalorder %s16, 1
      %s1509 = scalar_select %p1508, %s16, 1
      %s1510 = smul.addr %s1509, 8
      %s1511 = scalar_lea.vmem %s3, %s1510
      %p1512 = scmp.lt.s32.totalorder %s16, 1
      %s1513 = scalar_select %p1512, %s16, 1
      %s1514 = smul.addr %s1513, 8
      %s1515 = scalar_lea.vmem %s4, %s1514
      // Predicated region
      $region29: #{d_res_3d_cnn_forward.22} parent=27 // pred_check
        %p1516 = pneg %p81
      $region30: #{d_res_3d_cnn_forward.22} parent=27 // pred_check_branch
        %1518 = sbr.rel (%p1516) target = $region32
      $region31: #{d_res_3d_cnn_forward.22} parent=27 // pred_region
        %s1519 = smul.u32 2, %s16
      $region32: #{d_res_3d_cnn_forward.22} parent=27 // pred_fallthru
        _
      // Predicated region
      $region33: #{d_res_3d_cnn_forward.22} parent=27 // pred_check
        %p1520 = pneg %p107
      $region34: #{d_res_3d_cnn_forward.22} parent=27 // pred_check_branch
        %1522 = sbr.rel (%p1520) target = $region36
      $region35: #{d_res_3d_cnn_forward.22} parent=27 // pred_region
        _
      $region36: #{d_res_3d_cnn_forward.22} parent=27 // pred_fallthru
        _
      // Predicated region
      $region37: #{d_res_3d_cnn_forward.22} parent=27 // pred_check
        %p1523 = pneg %p133
      $region38: #{d_res_3d_cnn_forward.22} parent=27 // pred_check_branch
        %1525 = sbr.rel (%p1523) target = $region40
      $region39: #{d_res_3d_cnn_forward.22} parent=27 // pred_region
        _
      $region40: #{d_res_3d_cnn_forward.22} parent=27 // pred_fallthru
        _
    $region28: #{d_res_3d_cnn_forward.22} parent=5 // pred_fallthru
      _
    %p1526 = scmp.le.s32.totalorder 2, %s11
    // Predicated region
    $region41: #{d_res_3d_cnn_forward.22} parent=5 // pred_check
      %p1527 = pneg %p1526
    $region42: #{d_res_3d_cnn_forward.22} parent=5 // pred_check_branch
      %1529 = sbr.rel (%p1527) target = $region44
    $region43: #{d_res_3d_cnn_forward.22} parent=5 // pred_region
      %s1530 = ssub.s32 %s11, 2
      // Predicated region
      $region45: #{d_res_3d_cnn_forward.22} parent=43 // pred_check
        %p1531 = pneg %p87
      $region46: #{d_res_3d_cnn_forward.22} parent=43 // pred_check_branch
        %1533 = sbr.rel (%p1531) target = $region48
      $region47: #{d_res_3d_cnn_forward.22} parent=43 // pred_region
        %s1534 = smul.u32 2, %s17
        %p1535 = scmp.lt.s32.totalorder %s1534, 3
        %s1536 = scalar_select %p1535, %s1534, 3
        %s1537 = smul.addr %s1536, 4
        %s1538 = scalar_lea.vmem %s2, %s1537
      $region48: #{d_res_3d_cnn_forward.22} parent=43 // pred_fallthru
        _
      // Predicated region
      $region49: #{d_res_3d_cnn_forward.22} parent=43 // pred_check
        %p1539 = pneg %p113
      $region50: #{d_res_3d_cnn_forward.22} parent=43 // pred_check_branch
        %1541 = sbr.rel (%p1539) target = $region52
      $region51: #{d_res_3d_cnn_forward.22} parent=43 // pred_region
        %p1542 = scmp.lt.s32.totalorder %s17, 1
        %s1543 = scalar_select %p1542, %s17, 1
        %s1544 = smul.addr %s1543, 8
        %s1545 = scalar_lea.vmem %s3, %s1544
      $region52: #{d_res_3d_cnn_forward.22} parent=43 // pred_fallthru
        _
      // Predicated region
      $region53: #{d_res_3d_cnn_forward.22} parent=43 // pred_check
        %p1546 = pneg %p139
      $region54: #{d_res_3d_cnn_forward.22} parent=43 // pred_check_branch
        %1548 = sbr.rel (%p1546) target = $region56
      $region55: #{d_res_3d_cnn_forward.22} parent=43 // pred_region
        %p1549 = scmp.lt.s32.totalorder %s17, 1
        %s1550 = scalar_select %p1549, %s17, 1
        %s1551 = smul.addr %s1550, 8
        %s1552 = scalar_lea.vmem %s4, %s1551
      $region56: #{d_res_3d_cnn_forward.22} parent=43 // pred_fallthru
        _
    $region44: #{d_res_3d_cnn_forward.22} parent=5 // pred_fallthru
      _
  $region6: #{d_res_3d_cnn_forward.22} parent=0 // loop_footer
    %s15 = sadd.s32 1, %s11
  $region7: #{d_res_3d_cnn_forward.22} parent=0 // loop_footer_branch
    %10 = sbr.rel target = $region3
  $region8: #{d_res_3d_cnn_forward.22} parent=0 // loop_exit
    _

// kernel: tile.93
$region0: #{tile.93}
  #allocation0 [shape = 's32[1]{0}', space=sflag, size = 0x4, scoped, tag = 'scoped memory for tile.93']
  %s0 = inlined_call_operand.vmem [shape: f32[8], index: 0, kind: input, shape index: {}]
  %s1 = inlined_call_operand.vmem [shape: f32[16,8], index: 1, kind: output, shape index: {}]
  // Predicated region
  $region2: #{tile.93} parent=0 // pred_check
    _
  $region3: #{tile.93} parent=0 // pred_check_branch
    %3 = sbr.rel (0) target = $region5
  $region4: #{tile.93} parent=0 // pred_region
    _
  $region5: #{tile.93} parent=0 // pred_fallthru
    _
  %v4 = vld [vmem:[%s0] ss:$0 sm:$0xff]
  %5 = vst [vmem:[%s1] sm:$0xff] %v4
  %s6 = scalar_lea.vmem %s1, 8
  %7 = vst [vmem:[%s6] sm:$0xff] %v4

// kernel: tile.94
$region0: #{tile.94}
  %s0 = inlined_call_operand.vmem [shape: f32[16,8], index: 0, kind: input, shape index: {}]
  %s1 = inlined_call_operand.vmem [shape: f32[1,128], index: 1, kind: output, shape index: {}]
  $region1: #{tile.94} parent=0
    #allocation0 [shape = 'u8[4096]{0}', space=vmem, size = 0x1000, scoped, tag = 'scoped mem for output reshape']
    %v2 = vld [vmem:[%s0] sm:$0x1]
    %vm3 = vcmask 64512
    %4 = vst.msk [vmem:[#allocation0] sm:$0x1] %vm3, %v2
    %s5 = scalar_lea.vmem %s0, 15
    %v6 = vld [vmem:[%s5] sm:$0x1]
    %7 = vrot.lane.b32.xlu0 %v6, 120
    %v8 = vpop.permute.xlu0 %7
    %vm9 = vcmask 1048512
    %10 = vst.msk [vmem:[#allocation0] sm:$0x1] %vm9, %v8
    %s11 = scalar_lea.vmem %s0, 14
    %v12 = vld [vmem:[%s11] sm:$0x1]
    %13 = vrot.lane.b32.xlu0 %v12, 112
    %v14 = vpop.permute.xlu0 %13
    %vm15 = vcmask 982912
    %16 = vst.msk [vmem:[#allocation0] sm:$0x1] %vm15, %v14
    %s17 = scalar_lea.vmem %s0, 13
    %v18 = vld [vmem:[%s17] sm:$0x1]
    %19 = vrot.lane.b32.xlu0 %v18, 104
    %v20 = vpop.permute.xlu0 %19
    %vm21 = vcmask 917312
    %22 = vst.msk [vmem:[#allocation0] sm:$0x1] %vm21, %v20
    %s23 = scalar_lea.vmem %s0, 12
    %v24 = vld [vmem:[%s23] sm:$0x1]
    %25 = vrot.lane.b32.xlu0 %v24, 96
    %v26 = vpop.permute.xlu0 %25
    %vm27 = vcmask 851712
    %28 = vst.msk [vmem:[#allocation0] sm:$0x1] %vm27, %v26
    %s29 = scalar_lea.vmem %s0, 11
    %v30 = vld [vmem:[%s29] sm:$0x1]
    %31 = vrot.lane.b32.xlu0 %v30, 88
    %v32 = vpop.permute.xlu0 %31
    %vm33 = vcmask 786112
    %34 = vst.msk [vmem:[#allocation0] sm:$0x1] %vm33, %v32
    %s35 = scalar_lea.vmem %s0, 10
    %v36 = vld [vmem:[%s35] sm:$0x1]
    %37 = vrot.lane.b32.xlu0 %v36, 80
    %v38 = vpop.permute.xlu0 %37
    %vm39 = vcmask 720512
    %40 = vst.msk [vmem:[#allocation0] sm:$0x1] %vm39, %v38
    %s41 = scalar_lea.vmem %s0, 9
    %v42 = vld [vmem:[%s41] sm:$0x1]
    %43 = vrot.lane.b32.xlu0 %v42, 72
    %v44 = vpop.permute.xlu0 %43
    %vm45 = vcmask 654912
    %46 = vst.msk [vmem:[#allocation0] sm:$0x1] %vm45, %v44
    %s47 = scalar_lea.vmem %s0, 8
    %v48 = vld [vmem:[%s47] sm:$0x1]
    %49 = vrot.lane.b32.xlu0 %v48, 64
    %v50 = vpop.permute.xlu0 %49
    %vm51 = vcmask 589312
    %52 = vst.msk [vmem:[#allocation0] sm:$0x1] %vm51, %v50
    %s53 = scalar_lea.vmem %s0, 7
    %v54 = vld [vmem:[%s53] sm:$0x1]
    %55 = vrot.lane.b32.xlu0 %v54, 56
    %v56 = vpop.permute.xlu0 %55
    %vm57 = vcmask 523712
    %58 = vst.msk [vmem:[#allocation0] sm:$0x1] %vm57, %v56
    %s59 = scalar_lea.vmem %s0, 6
    %v60 = vld [vmem:[%s59] sm:$0x1]
    %61 = vrot.lane.b32.xlu0 %v60, 48
    %v62 = vpop.permute.xlu0 %61
    %vm63 = vcmask 458112
    %64 = vst.msk [vmem:[#allocation0] sm:$0x1] %vm63, %v62
    %s65 = scalar_lea.vmem %s0, 5
    %v66 = vld [vmem:[%s65] sm:$0x1]
    %67 = vrot.lane.b32.xlu0 %v66, 40
    %v68 = vpop.permute.xlu0 %67
    %vm69 = vcmask 392512
    %70 = vst.msk [vmem:[#allocation0] sm:$0x1] %vm69, %v68
    %s71 = scalar_lea.vmem %s0, 4
    %v72 = vld [vmem:[%s71] sm:$0x1]
    %73 = vrot.lane.b32.xlu0 %v72, 32
    %v74 = vpop.permute.xlu0 %73
    %vm75 = vcmask 326912
    %76 = vst.msk [vmem:[#allocation0] sm:$0x1] %vm75, %v74
    %s77 = scalar_lea.vmem %s0, 3
    %v78 = vld [vmem:[%s77] sm:$0x1]
    %79 = vrot.lane.b32.xlu0 %v78, 24
    %v80 = vpop.permute.xlu0 %79
    %vm81 = vcmask 261312
    %82 = vst.msk [vmem:[#allocation0] sm:$0x1] %vm81, %v80
    %s83 = scalar_lea.vmem %s0, 2
    %v84 = vld [vmem:[%s83] sm:$0x1]
    %85 = vrot.lane.b32.xlu0 %v84, 16
    %v86 = vpop.permute.xlu0 %85
    %vm87 = vcmask 195712
    %88 = vst.msk [vmem:[#allocation0] sm:$0x1] %vm87, %v86
    %s89 = scalar_lea.vmem %s0, 1
    %v90 = vld [vmem:[%s89] sm:$0x1]
    %91 = vrot.lane.b32.xlu0 %v90, 8
    %v92 = vpop.permute.xlu0 %91
    %vm93 = vcmask 130112
    %94 = vst.msk [vmem:[#allocation0] sm:$0x1] %vm93, %v92
    %s96 = sshll.u32 1, 1
    %s97 = ssub.s32 %s96, 1
    %v99 = vld [vmem:[#allocation0] sm:%s97]
    %s100 = sshll.u32 1, 1
    %s101 = ssub.s32 %s100, 1
    %102 = vst [vmem:[%s1] sm:%s101] %v99

// kernel: d_res_3d_cnn_forward.23
$region0: #{d_res_3d_cnn_forward.23}
  #allocation0 [shape = 'u32[]', space=smem, size = 0x4, offset = 0x4, fixed_abs, tag = 'smem constant byte address 0x4 - core index']
  #allocation1 [shape = 'u32[144,128]{1,0:T(1,128)}', space=vmem, size = 0x12000, scoped, tag = 'internal scratch']
  %s0 = inlined_call_operand.vmem [shape: bf16[32,128], index: 0, kind: input, shape index: {}]
  %s1 = inlined_call_operand.vmem [shape: f32[1,128], index: 1, kind: input, shape index: {}]
  %s2 = inlined_call_operand.vmem [shape: f32[1,128], index: 2, kind: input, shape index: {}]
  %s3 = inlined_call_operand.vmem [shape: bf16[32,128], index: 3, kind: output, shape index: {}]
  %s4 = sld [smem:[#allocation0]]
  $region45: #{d_res_3d_cnn_forward.23} parent=0
    _
  %s6 = ssub.s32 1, %s4
  %s7 = scalar_select 0, %s6, %s4
  loop: start=0, step=1, limit=4
  $region2: #{d_res_3d_cnn_forward.23} parent=0 // loop_pre_header
    _
  $region3: #{d_res_3d_cnn_forward.23} parent=0 // loop_header
    %s9 = sphi 0, %s13
    %p10 = scmp.ge.s32.totalorder %s9, 4
    %s19 = sphi 0, %s21
    %s22 = sphi 0, %s19
    %s23 = sphi 0, %s22
    %s39 = sphi 0, %s23
    %s43 = sphi 0, %s43
    %s45 = sphi 0, %s43
    %s46 = sphi 0, %s45
    %s60 = sphi 0, %s46
    %s64 = sphi 0, %s64
    %s66 = sphi 0, %s64
    %s67 = sphi 0, %s66
    %s81 = sphi 0, %s67
    %s87 = sphi 0, %s89
    %s90 = sphi 0, %s87
    %s91 = sphi 0, %s90
    %s107 = sphi 0, %s91
  $region4: #{d_res_3d_cnn_forward.23} parent=0 // loop_header_branch
    %12 = sbr.rel (%p10) target = $region8
  $region5: #{d_res_3d_cnn_forward.23} parent=0 // loop_body
    %s14 = ssub.s32 %s9, 1
    %s15 = ssub.s32 %s9, 2
    %s16 = sadd.s32 %s9, 1
    %s17 = ssub.s32 %s9, %s16
    %p18 = scmp.eq.s32.totalorder %s17, 0
    %s20 = sadd.s32 %s19, 1
    %s21 = scalar_select %p18, %s19, %s20
    %p24 = pneg %p18
    %p25 = scmp.eq.s32.totalorder %s9, 1
    %p26 = por %p24, %p25
    %p27 = scmp.ne.s32.totalorder %s19, %s22
    %p28 = scmp.eq.s32.totalorder %s9, 0
    %p29 = por %p27, %p28
    %p30 = scmp.ne.s32.totalorder %s19, %s22
    %p31 = scmp.eq.s32.totalorder %s14, 1
    %p32 = por %p30, %p31
    %p33 = scmp.ne.s32.totalorder %s22, %s23
    %p34 = scmp.eq.s32.totalorder %s14, 0
    %p35 = por %p33, %p34
    %p36 = scmp.ne.s32.totalorder %s22, %s23
    %p37 = scmp.eq.s32.totalorder %s15, 1
    %p38 = por %p36, %p37
    %p40 = scmp.ne.s32.totalorder %s23, %s39
    %p41 = scmp.eq.s32.totalorder %s15, 0
    %p42 = por %p40, %p41
    %s44 = sadd.s32 %s43, 1
    %p47 = scmp.eq.s32.totalorder %s9, 1
    %p48 = scmp.ne.s32.totalorder %s43, %s45
    %p49 = scmp.eq.s32.totalorder %s9, 0
    %p50 = por %p48, %p49
    %p51 = scmp.ne.s32.totalorder %s43, %s45
    %p52 = scmp.eq.s32.totalorder %s14, 1
    %p53 = por %p51, %p52
    %p54 = scmp.ne.s32.totalorder %s45, %s46
    %p55 = scmp.eq.s32.totalorder %s14, 0
    %p56 = por %p54, %p55
    %p57 = scmp.ne.s32.totalorder %s45, %s46
    %p58 = scmp.eq.s32.totalorder %s15, 1
    %p59 = por %p57, %p58
    %p61 = scmp.ne.s32.totalorder %s46, %s60
    %p62 = scmp.eq.s32.totalorder %s15, 0
    %p63 = por %p61, %p62
    %s65 = sadd.s32 %s64, 1
    %p68 = scmp.eq.s32.totalorder %s9, 1
    %p69 = scmp.ne.s32.totalorder %s64, %s66
    %p70 = scmp.eq.s32.totalorder %s9, 0
    %p71 = por %p69, %p70
    %p72 = scmp.ne.s32.totalorder %s64, %s66
    %p73 = scmp.eq.s32.totalorder %s14, 1
    %p74 = por %p72, %p73
    %p75 = scmp.ne.s32.totalorder %s66, %s67
    %p76 = scmp.eq.s32.totalorder %s14, 0
    %p77 = por %p75, %p76
    %p78 = scmp.ne.s32.totalorder %s66, %s67
    %p79 = scmp.eq.s32.totalorder %s15, 1
    %p80 = por %p78, %p79
    %p82 = scmp.ne.s32.totalorder %s67, %s81
    %p83 = scmp.eq.s32.totalorder %s15, 0
    %p84 = por %p82, %p83
    %s85 = ssub.s32 %s9, %s16
    %p86 = scmp.eq.s32.totalorder %s85, 0
    %s88 = sadd.s32 %s87, 1
    %s89 = scalar_select %p86, %s87, %s88
    %p92 = pneg %p86
    %p93 = scmp.eq.s32.totalorder %s9, 1
    %p94 = por %p92, %p93
    %p95 = scmp.ne.s32.totalorder %s87, %s90
    %p96 = scmp.eq.s32.totalorder %s9, 0
    %p97 = por %p95, %p96
    %p98 = scmp.ne.s32.totalorder %s87, %s90
    %p99 = scmp.eq.s32.totalorder %s14, 1
    %p100 = por %p98, %p99
    %p101 = scmp.ne.s32.totalorder %s90, %s91
    %p102 = scmp.eq.s32.totalorder %s14, 0
    %p103 = por %p101, %p102
    %p104 = scmp.ne.s32.totalorder %s90, %s91
    %p105 = scmp.eq.s32.totalorder %s15, 1
    %p106 = por %p104, %p105
    %p108 = scmp.ne.s32.totalorder %s91, %s107
    %p109 = scmp.eq.s32.totalorder %s15, 0
    %p110 = por %p108, %p109
    %p111 = scmp.le.s32.totalorder 1, %s9
    %p112 = scmp.lt.s32.totalorder %s9, 3
    %p113 = pnand %p111, %p112
    %p114 = pneg %p113
    // Predicated region
    $region9: #{d_res_3d_cnn_forward.23} parent=5 // pred_check
      _
    $region10: #{d_res_3d_cnn_forward.23} parent=5 // pred_check_branch
      %116 = sbr.rel (%p113) target = $region12
    $region11: #{d_res_3d_cnn_forward.23} parent=5 // pred_region
      %s117 = ssub.s32 %s9, 1
      // Predicated region
      $region13: #{d_res_3d_cnn_forward.23} parent=11 // pred_check
        %p118 = pneg %p56
      $region14: #{d_res_3d_cnn_forward.23} parent=11 // pred_check_branch
        %120 = sbr.rel (%p118) target = $region16
      $region15: #{d_res_3d_cnn_forward.23} parent=11 // pred_region
        _
      $region16: #{d_res_3d_cnn_forward.23} parent=11 // pred_fallthru
        _
      // Predicated region
      $region17: #{d_res_3d_cnn_forward.23} parent=11 // pred_check
        %p121 = pneg %p77
      $region18: #{d_res_3d_cnn_forward.23} parent=11 // pred_check_branch
        %123 = sbr.rel (%p121) target = $region20
      $region19: #{d_res_3d_cnn_forward.23} parent=11 // pred_region
        _
      $region20: #{d_res_3d_cnn_forward.23} parent=11 // pred_fallthru
        _
    $region12: #{d_res_3d_cnn_forward.23} parent=5 // pred_fallthru
      _
    %p124 = scmp.lt.s32.totalorder %s9, 2
    // Predicated region
    $region21: #{d_res_3d_cnn_forward.23} parent=5 // pred_check
      %p125 = pneg %p124
    $region22: #{d_res_3d_cnn_forward.23} parent=5 // pred_check_branch
      %127 = sbr.rel (%p125) target = $region24
    $region23: #{d_res_3d_cnn_forward.23} parent=5 // pred_region
      // Predicated region
      $region25: #{d_res_3d_cnn_forward.23} parent=23 // pred_check
        %p128 = pneg %p29
      $region26: #{d_res_3d_cnn_forward.23} parent=23 // pred_check_branch
        %130 = sbr.rel (%p128) target = $region28
      $region27: #{d_res_3d_cnn_forward.23} parent=23 // pred_region
        %s131 = smul.u32 2, %s9
        %p132 = scmp.lt.s32.totalorder %s131, 3
        %s133 = scalar_select %p132, %s131, 3
        %s134 = smul.addr %s133, 4
        %s135 = scalar_lea.vmem %s0, %s134
        %s136 = smul.u32 2, %s9
      $region28: #{d_res_3d_cnn_forward.23} parent=23 // pred_fallthru
        _
    $region24: #{d_res_3d_cnn_forward.23} parent=5 // pred_fallthru
      _
    %p137 = scmp.le.s32.totalorder 1, %s9
    %p138 = scmp.lt.s32.totalorder %s9, 3
    %p139 = pnand %p137, %p138
    %p140 = pneg %p139
    // Predicated region
    $region29: #{d_res_3d_cnn_forward.23} parent=5 // pred_check
      _
    $region30: #{d_res_3d_cnn_forward.23} parent=5 // pred_check_branch
      %142 = sbr.rel (%p139) target = $region32
    $region31: #{d_res_3d_cnn_forward.23} parent=5 // pred_region
      %s143 = ssub.s32 %s9, 1
      %s144 = smul.u32 2, %s14
      %p145 = scmp.lt.s32.totalorder %s144, 3
      %s146 = scalar_select %p145, %s144, 3
      %s147 = smul.addr %s146, 4
      %s148 = scalar_lea.vmem %s0, %s147
      %p149 = pneg %p35
      %p150 = pneg %p32
      %p151 = pneg %p56
      %p152 = pneg %p53
      %p153 = pneg %p77
      %p154 = pneg %p74
      %p155 = pneg %p103
      %p156 = pneg %p100
      %s157 = smul.u32 2, %s14
      %p158 = scmp.lt.s32.totalorder %s157, 3
      %s159 = scalar_select %p158, %s157, 3
      %s160 = smul.addr %s159, 4
      %s161 = scalar_lea.vmem %s3, %s160
      %s162 = smul.u32 2, %s14
      %p163 = scmp.lt.s32.totalorder %s162, 3
      %s164 = scalar_select %p163, %s162, 3
      %s165 = smul.addr %s164, 4
      %s166 = scalar_lea.vmem %s0, %s165
      %s167 = smul.u32 2, %s14
      %s168 = smul.u32 2, %s14
      %p169 = scmp.lt.s32.totalorder %s168, 3
      %s170 = scalar_select %p169, %s168, 3
      %s171 = smul.addr %s170, 4
      %s172 = scalar_lea.vmem %s3, %s171
      %s173 = smul.u32 2, %s14
      %v174 = vld [vmem:[%s166] sm:$0xf]
      %v175 = vld [vmem:[%s166 + $0x4] sm:$0xf]
      %v176 = vunpack.c.l.bf16 %v174
      %v177 = vunpack.c.l.bf16 %v175
      %v178 = vld [vmem:[%s1] sm:$0x1]
      %v180 = vlaneseq
      %v181 = vshrl.u32 %v180, 7
      %v182 = vsub.s32 0, %v181
      %v183 = vrot.slane %v178, %v182
      %v185 = vmul.f32 %v176, %v183
      %v186 = vmul.f32 %v177, %v183
      %v187 = vld [vmem:[%s2] sm:$0x1]
      %v189 = vlaneseq
      %v190 = vshrl.u32 %v189, 7
      %v191 = vsub.s32 0, %v190
      %v192 = vrot.slane %v187, %v191
      %v194 = vadd.f32 %v185, %v192
      %v195 = vadd.f32 %v186, %v192
      %v196 = vmax.f32 %v194, 0.0
      %v197 = vmax.f32 %v195, 0.0
      %v198 = vpack.c.bf16 %v197, %v196
      %v200 = vunpack.c.l.b16 %v198
      %v201 = vunpack.c.h.b16 %v198
      %v202 = vpack.c.b16 %v200, %v200
      %v203 = vpack.c.b16 %v201, %v201
      %206 = vst [vmem:[%s172] sm:$0xf] %v202
      %207 = vst [vmem:[%s172 + $0x4] sm:$0xf] %v203
      %s208 = smul.u32 2, %s14
      %p209 = scmp.lt.s32.totalorder %s208, 3
      %s210 = scalar_select %p209, %s208, 3
      %s211 = smul.addr %s210, 4
      %s212 = scalar_lea.vmem %s3, %s211
      // Predicated region
      $region33: #{d_res_3d_cnn_forward.23} parent=31 // pred_check
        %p213 = pneg %p100
      $region34: #{d_res_3d_cnn_forward.23} parent=31 // pred_check_branch
        %215 = sbr.rel (%p213) target = $region36
      $region35: #{d_res_3d_cnn_forward.23} parent=31 // pred_region
        %s216 = smul.u32 2, %s14
      $region36: #{d_res_3d_cnn_forward.23} parent=31 // pred_fallthru
        _
    $region32: #{d_res_3d_cnn_forward.23} parent=5 // pred_fallthru
      _
    %p217 = scmp.le.s32.totalorder 2, %s9
    // Predicated region
    $region37: #{d_res_3d_cnn_forward.23} parent=5 // pred_check
      %p218 = pneg %p217
    $region38: #{d_res_3d_cnn_forward.23} parent=5 // pred_check_branch
      %220 = sbr.rel (%p218) target = $region40
    $region39: #{d_res_3d_cnn_forward.23} parent=5 // pred_region
      %s221 = ssub.s32 %s9, 2
      // Predicated region
      $region41: #{d_res_3d_cnn_forward.23} parent=39 // pred_check
        %p222 = pneg %p106
      $region42: #{d_res_3d_cnn_forward.23} parent=39 // pred_check_branch
        %224 = sbr.rel (%p222) target = $region44
      $region43: #{d_res_3d_cnn_forward.23} parent=39 // pred_region
        %s225 = smul.u32 2, %s15
        %p226 = scmp.lt.s32.totalorder %s225, 3
        %s227 = scalar_select %p226, %s225, 3
        %s228 = smul.addr %s227, 4
        %s229 = scalar_lea.vmem %s3, %s228
      $region44: #{d_res_3d_cnn_forward.23} parent=39 // pred_fallthru
        _
    $region40: #{d_res_3d_cnn_forward.23} parent=5 // pred_fallthru
      _
  $region6: #{d_res_3d_cnn_forward.23} parent=0 // loop_footer
    %s13 = sadd.s32 1, %s9
  $region7: #{d_res_3d_cnn_forward.23} parent=0 // loop_footer_branch
    %8 = sbr.rel target = $region3
  $region8: #{d_res_3d_cnn_forward.23} parent=0 // loop_exit
    _

// kernel: d_res_3d_cnn_forward.24
$region0: #{d_res_3d_cnn_forward.24}
  #allocation0 [shape = 'u32[]', space=smem, size = 0x4, offset = 0x4, fixed_abs, tag = 'smem constant byte address 0x4 - core index']
  #allocation1 [shape = 'u32[144,128]{1,0:T(1,128)}', space=vmem, size = 0x12000, scoped, tag = 'internal scratch']
  %s0 = inlined_call_operand.vmem [shape: bf16[25,3456], index: 0, kind: input, shape index: {}]
  %s1 = inlined_call_operand.vmem [shape: bf16[3456,128], index: 1, kind: input, shape index: {}]
  %s2 = inlined_call_operand.vmem [shape: bf16[32,128], index: 2, kind: output, shape index: {0}]
  %s3 = inlined_call_operand.vmem [shape: f32[16,128], index: 3, kind: output, shape index: {1}]
  %s4 = inlined_call_operand.vmem [shape: f32[16,128], index: 4, kind: output, shape index: {2}]
  %5 = xla_tuple %s2, %s3, %s4
  %s6 = sld [smem:[#allocation0]]
  $region57: #{d_res_3d_cnn_forward.24} parent=0
    _
  %s8 = ssub.s32 1, %s6
  %s9 = scalar_select 0, %s8, %s6
  loop: start=0, step=1, limit=4
  $region2: #{d_res_3d_cnn_forward.24} parent=0 // loop_pre_header
    _
  $region3: #{d_res_3d_cnn_forward.24} parent=0 // loop_header
    %s11 = sphi 0, %s15
    %p12 = scmp.ge.s32.totalorder %s11, 4
    %s21 = sphi 0, %s23
    %s24 = sphi 0, %s21
    %s25 = sphi 0, %s24
    %s41 = sphi 0, %s25
    %s45 = sphi 0, %s45
    %s47 = sphi 0, %s45
    %s48 = sphi 0, %s47
    %s62 = sphi 0, %s48
    %s68 = sphi 0, %s70
    %s71 = sphi 0, %s68
    %s72 = sphi 0, %s71
    %s88 = sphi 0, %s72
    %s94 = sphi 0, %s96
    %s97 = sphi 0, %s94
    %s98 = sphi 0, %s97
    %s114 = sphi 0, %s98
    %s120 = sphi 0, %s122
    %s123 = sphi 0, %s120
    %s124 = sphi 0, %s123
    %s140 = sphi 0, %s124
  $region4: #{d_res_3d_cnn_forward.24} parent=0 // loop_header_branch
    %14 = sbr.rel (%p12) target = $region8
  $region5: #{d_res_3d_cnn_forward.24} parent=0 // loop_body
    %s16 = ssub.s32 %s11, 1
    %s17 = ssub.s32 %s11, 2
    %s18 = sadd.s32 %s11, 1
    %s19 = ssub.s32 %s11, %s18
    %p20 = scmp.eq.s32.totalorder %s19, 0
    %s22 = sadd.s32 %s21, 1
    %s23 = scalar_select %p20, %s21, %s22
    %p26 = pneg %p20
    %p27 = scmp.eq.s32.totalorder %s11, 1
    %p28 = por %p26, %p27
    %p29 = scmp.ne.s32.totalorder %s21, %s24
    %p30 = scmp.eq.s32.totalorder %s11, 0
    %p31 = por %p29, %p30
    %p32 = scmp.ne.s32.totalorder %s21, %s24
    %p33 = scmp.eq.s32.totalorder %s16, 1
    %p34 = por %p32, %p33
    %p35 = scmp.ne.s32.totalorder %s24, %s25
    %p36 = scmp.eq.s32.totalorder %s16, 0
    %p37 = por %p35, %p36
    %p38 = scmp.ne.s32.totalorder %s24, %s25
    %p39 = scmp.eq.s32.totalorder %s17, 1
    %p40 = por %p38, %p39
    %p42 = scmp.ne.s32.totalorder %s25, %s41
    %p43 = scmp.eq.s32.totalorder %s17, 0
    %p44 = por %p42, %p43
    %s46 = sadd.s32 %s45, 1
    %p49 = scmp.eq.s32.totalorder %s11, 1
    %p50 = scmp.ne.s32.totalorder %s45, %s47
    %p51 = scmp.eq.s32.totalorder %s11, 0
    %p52 = por %p50, %p51
    %p53 = scmp.ne.s32.totalorder %s45, %s47
    %p54 = scmp.eq.s32.totalorder %s16, 1
    %p55 = por %p53, %p54
    %p56 = scmp.ne.s32.totalorder %s47, %s48
    %p57 = scmp.eq.s32.totalorder %s16, 0
    %p58 = por %p56, %p57
    %p59 = scmp.ne.s32.totalorder %s47, %s48
    %p60 = scmp.eq.s32.totalorder %s17, 1
    %p61 = por %p59, %p60
    %p63 = scmp.ne.s32.totalorder %s48, %s62
    %p64 = scmp.eq.s32.totalorder %s17, 0
    %p65 = por %p63, %p64
    %s66 = ssub.s32 %s11, %s18
    %p67 = scmp.eq.s32.totalorder %s66, 0
    %s69 = sadd.s32 %s68, 1
    %s70 = scalar_select %p67, %s68, %s69
    %p73 = pneg %p67
    %p74 = scmp.eq.s32.totalorder %s11, 1
    %p75 = por %p73, %p74
    %p76 = scmp.ne.s32.totalorder %s68, %s71
    %p77 = scmp.eq.s32.totalorder %s11, 0
    %p78 = por %p76, %p77
    %p79 = scmp.ne.s32.totalorder %s68, %s71
    %p80 = scmp.eq.s32.totalorder %s16, 1
    %p81 = por %p79, %p80
    %p82 = scmp.ne.s32.totalorder %s71, %s72
    %p83 = scmp.eq.s32.totalorder %s16, 0
    %p84 = por %p82, %p83
    %p85 = scmp.ne.s32.totalorder %s71, %s72
    %p86 = scmp.eq.s32.totalorder %s17, 1
    %p87 = por %p85, %p86
    %p89 = scmp.ne.s32.totalorder %s72, %s88
    %p90 = scmp.eq.s32.totalorder %s17, 0
    %p91 = por %p89, %p90
    %s92 = ssub.s32 %s11, %s18
    %p93 = scmp.eq.s32.totalorder %s92, 0
    %s95 = sadd.s32 %s94, 1
    %s96 = scalar_select %p93, %s94, %s95
    %p99 = pneg %p93
    %p100 = scmp.eq.s32.totalorder %s11, 1
    %p101 = por %p99, %p100
    %p102 = scmp.ne.s32.totalorder %s94, %s97
    %p103 = scmp.eq.s32.totalorder %s11, 0
    %p104 = por %p102, %p103
    %p105 = scmp.ne.s32.totalorder %s94, %s97
    %p106 = scmp.eq.s32.totalorder %s16, 1
    %p107 = por %p105, %p106
    %p108 = scmp.ne.s32.totalorder %s97, %s98
    %p109 = scmp.eq.s32.totalorder %s16, 0
    %p110 = por %p108, %p109
    %p111 = scmp.ne.s32.totalorder %s97, %s98
    %p112 = scmp.eq.s32.totalorder %s17, 1
    %p113 = por %p111, %p112
    %p115 = scmp.ne.s32.totalorder %s98, %s114
    %p116 = scmp.eq.s32.totalorder %s17, 0
    %p117 = por %p115, %p116
    %s118 = ssub.s32 %s11, %s18
    %p119 = scmp.eq.s32.totalorder %s118, 0
    %s121 = sadd.s32 %s120, 1
    %s122 = scalar_select %p119, %s120, %s121
    %p125 = pneg %p119
    %p126 = scmp.eq.s32.totalorder %s11, 1
    %p127 = por %p125, %p126
    %p128 = scmp.ne.s32.totalorder %s120, %s123
    %p129 = scmp.eq.s32.totalorder %s11, 0
    %p130 = por %p128, %p129
    %p131 = scmp.ne.s32.totalorder %s120, %s123
    %p132 = scmp.eq.s32.totalorder %s16, 1
    %p133 = por %p131, %p132
    %p134 = scmp.ne.s32.totalorder %s123, %s124
    %p135 = scmp.eq.s32.totalorder %s16, 0
    %p136 = por %p134, %p135
    %p137 = scmp.ne.s32.totalorder %s123, %s124
    %p138 = scmp.eq.s32.totalorder %s17, 1
    %p139 = por %p137, %p138
    %p141 = scmp.ne.s32.totalorder %s124, %s140
    %p142 = scmp.eq.s32.totalorder %s17, 0
    %p143 = por %p141, %p142
    %p144 = scmp.le.s32.totalorder 1, %s11
    %p145 = scmp.lt.s32.totalorder %s11, 3
    %p146 = pnand %p144, %p145
    %p147 = pneg %p146
    // Predicated region
    $region9: #{d_res_3d_cnn_forward.24} parent=5 // pred_check
      _
    $region10: #{d_res_3d_cnn_forward.24} parent=5 // pred_check_branch
      %149 = sbr.rel (%p146) target = $region12
    $region11: #{d_res_3d_cnn_forward.24} parent=5 // pred_region
      %s150 = ssub.s32 %s11, 1
      // Predicated region
      $region13: #{d_res_3d_cnn_forward.24} parent=11 // pred_check
        %p151 = pneg %p58
      $region14: #{d_res_3d_cnn_forward.24} parent=11 // pred_check_branch
        %153 = sbr.rel (%p151) target = $region16
      $region15: #{d_res_3d_cnn_forward.24} parent=11 // pred_region
        _
      $region16: #{d_res_3d_cnn_forward.24} parent=11 // pred_fallthru
        _
    $region12: #{d_res_3d_cnn_forward.24} parent=5 // pred_fallthru
      _
    %p154 = scmp.lt.s32.totalorder %s11, 2
    // Predicated region
    $region17: #{d_res_3d_cnn_forward.24} parent=5 // pred_check
      %p155 = pneg %p154
    $region18: #{d_res_3d_cnn_forward.24} parent=5 // pred_check_branch
      %157 = sbr.rel (%p155) target = $region20
    $region19: #{d_res_3d_cnn_forward.24} parent=5 // pred_region
      // Predicated region
      $region21: #{d_res_3d_cnn_forward.24} parent=19 // pred_check
        %p158 = pneg %p31
      $region22: #{d_res_3d_cnn_forward.24} parent=19 // pred_check_branch
        %160 = sbr.rel (%p158) target = $region24
      $region23: #{d_res_3d_cnn_forward.24} parent=19 // pred_region
        %s161 = smul.u32 2, %s11
        %p162 = scmp.lt.s32.totalorder %s161, 3
        %s163 = scalar_select %p162, %s161, 3
        %s164 = smul.addr %s163, 27
        %s165 = smul.addr %s164, 4
        %s166 = scalar_lea.vmem %s0, %s165
        %s167 = smul.u32 2, %s11
      $region24: #{d_res_3d_cnn_forward.24} parent=19 // pred_fallthru
        _
    $region20: #{d_res_3d_cnn_forward.24} parent=5 // pred_fallthru
      _
    %p168 = scmp.le.s32.totalorder 1, %s11
    %p169 = scmp.lt.s32.totalorder %s11, 3
    %p170 = pnand %p168, %p169
    %p171 = pneg %p170
    // Predicated region
    $region25: #{d_res_3d_cnn_forward.24} parent=5 // pred_check
      _
    $region26: #{d_res_3d_cnn_forward.24} parent=5 // pred_check_branch
      %173 = sbr.rel (%p170) target = $region28
    $region27: #{d_res_3d_cnn_forward.24} parent=5 // pred_region
      %s174 = ssub.s32 %s11, 1
      %s175 = smul.u32 2, %s16
      %p176 = scmp.lt.s32.totalorder %s175, 3
      %s177 = scalar_select %p176, %s175, 3
      %s178 = smul.addr %s177, 27
      %s179 = smul.addr %s178, 4
      %s180 = scalar_lea.vmem %s0, %s179
      %p181 = pneg %p37
      %p182 = pneg %p34
      %p183 = pneg %p58
      %p184 = pneg %p55
      %p185 = pneg %p84
      %p186 = pneg %p81
      %s187 = smul.u32 2, %s16
      %p188 = scmp.lt.s32.totalorder %s187, 3
      %s189 = scalar_select %p188, %s187, 3
      %s190 = smul.addr %s189, 4
      %s191 = scalar_lea.vmem %s2, %s190
      %p192 = pneg %p110
      %p193 = pneg %p107
      %p194 = scmp.lt.s32.totalorder %s16, 1
      %s195 = scalar_select %p194, %s16, 1
      %s196 = smul.addr %s195, 8
      %s197 = scalar_lea.vmem %s3, %s196
      %p198 = pneg %p136
      %p199 = pneg %p133
      %p200 = scmp.lt.s32.totalorder %s16, 1
      %s201 = scalar_select %p200, %s16, 1
      %s202 = smul.addr %s201, 8
      %s203 = scalar_lea.vmem %s4, %s202
      %s204 = smul.u32 2, %s16
      %p205 = scmp.lt.s32.totalorder %s204, 3
      %s206 = scalar_select %p205, %s204, 3
      %s207 = smul.addr %s206, 27
      %s208 = smul.addr %s207, 4
      %s209 = scalar_lea.vmem %s0, %s208
      %s210 = smul.u32 2, %s16
      %s211 = smul.u32 2, %s16
      %p212 = scmp.lt.s32.totalorder %s211, 3
      %s213 = scalar_select %p212, %s211, 3
      %s214 = smul.addr %s213, 4
      %s215 = scalar_lea.vmem %s2, %s214
      %s216 = smul.u32 2, %s16
      %p217 = scmp.lt.s32.totalorder %s16, 1
      %s218 = scalar_select %p217, %s16, 1
      %s219 = smul.addr %s218, 8
      %s220 = scalar_lea.vmem %s3, %s219
      %p221 = scmp.lt.s32.totalorder %s16, 1
      %s222 = scalar_select %p221, %s16, 1
      %s223 = smul.addr %s222, 8
      %s224 = scalar_lea.vmem %s4, %s223
      %v226 = vld [vmem:[%s209] sm:$0xff]
      %v227 = vld [vmem:[%s209 + $0x8] sm:$0xff]
      %v228 = vld [vmem:[%s209 + $0x10] sm:$0xff]
      %v229 = vld [vmem:[%s209 + $0x18] sm:$0xff]
      %v230 = vld [vmem:[%s209 + $0x20] sm:$0xff]
      %v231 = vld [vmem:[%s209 + $0x28] sm:$0xff]
      %v232 = vld [vmem:[%s209 + $0x30] sm:$0xff]
      %v233 = vld [vmem:[%s209 + $0x38] sm:$0xff]
      %v234 = vld [vmem:[%s209 + $0x40] sm:$0xff]
      %v235 = vld [vmem:[%s209 + $0x48] sm:$0xff]
      %v236 = vld [vmem:[%s209 + $0x50] sm:$0xff]
      %v237 = vld [vmem:[%s209 + $0x58] sm:$0xff]
      %v238 = vld [vmem:[%s209 + $0x60] sm:$0xff]
      %v239 = vld [vmem:[%s209 + $0x68] sm:$0xf]
      %v240 = vld [vmem:[%s209 + $0x6c] sm:$0xff]
      %v241 = vld [vmem:[%s209 + $0x74] sm:$0xff]
      %v242 = vld [vmem:[%s209 + $0x7c] sm:$0xff]
      %v243 = vld [vmem:[%s209 + $0x84] sm:$0xff]
      %v244 = vld [vmem:[%s209 + $0x8c] sm:$0xff]
      %v245 = vld [vmem:[%s209 + $0x94] sm:$0xff]
      %v246 = vld [vmem:[%s209 + $0x9c] sm:$0xff]
      %v247 = vld [vmem:[%s209 + $0xa4] sm:$0xff]
      %v248 = vld [vmem:[%s209 + $0xac] sm:$0xff]
      %v249 = vld [vmem:[%s209 + $0xb4] sm:$0xff]
      %v250 = vld [vmem:[%s209 + $0xbc] sm:$0xff]
      %v251 = vld [vmem:[%s209 + $0xc4] sm:$0xff]
      %v252 = vld [vmem:[%s209 + $0xcc] sm:$0xff]
      %v253 = vld [vmem:[%s209 + $0xd4] sm:$0xf]
      %v254 = vld [vmem:[%s1] sm:$0xf]
      %v255 = vld [vmem:[%s1 + $0x4] sm:$0xf]
      %v256 = vld [vmem:[%s1 + $0x8] sm:$0xf]
      %v257 = vld [vmem:[%s1 + $0xc] sm:$0xf]
      %v258 = vld [vmem:[%s1 + $0x10] sm:$0xf]
      %v259 = vld [vmem:[%s1 + $0x14] sm:$0xf]
      %v260 = vld [vmem:[%s1 + $0x18] sm:$0xf]
      %v261 = vld [vmem:[%s1 + $0x1c] sm:$0xf]
      %v262 = vld [vmem:[%s1 + $0x20] sm:$0xf]
      %v263 = vld [vmem:[%s1 + $0x24] sm:$0xf]
      %v264 = vld [vmem:[%s1 + $0x28] sm:$0xf]
      %v265 = vld [vmem:[%s1 + $0x2c] sm:$0xf]
      %v266 = vld [vmem:[%s1 + $0x30] sm:$0xf]
      %v267 = vld [vmem:[%s1 + $0x34] sm:$0xf]
      %v268 = vld [vmem:[%s1 + $0x38] sm:$0xf]
      %v269 = vld [vmem:[%s1 + $0x3c] sm:$0xf]
      %v270 = vld [vmem:[%s1 + $0x40] sm:$0xf]
      %v271 = vld [vmem:[%s1 + $0x44] sm:$0xf]
      %v272 = vld [vmem:[%s1 + $0x48] sm:$0xf]
      %v273 = vld [vmem:[%s1 + $0x4c] sm:$0xf]
      %v274 = vld [vmem:[%s1 + $0x50] sm:$0xf]
      %v275 = vld [vmem:[%s1 + $0x54] sm:$0xf]
      %v276 = vld [vmem:[%s1 + $0x58] sm:$0xf]
      %v277 = vld [vmem:[%s1 + $0x5c] sm:$0xf]
      %v278 = vld [vmem:[%s1 + $0x60] sm:$0xf]
      %v279 = vld [vmem:[%s1 + $0x64] sm:$0xf]
      %v280 = vld [vmem:[%s1 + $0x68] sm:$0xf]
      %v281 = vld [vmem:[%s1 + $0x6c] sm:$0xf]
      %v282 = vld [vmem:[%s1 + $0x70] sm:$0xf]
      %v283 = vld [vmem:[%s1 + $0x74] sm:$0xf]
      %v284 = vld [vmem:[%s1 + $0x78] sm:$0xf]
      %v285 = vld [vmem:[%s1 + $0x7c] sm:$0xf]
      %v286 = vld [vmem:[%s1 + $0x80] sm:$0xf]
      %v287 = vld [vmem:[%s1 + $0x84] sm:$0xf]
      %v288 = vld [vmem:[%s1 + $0x88] sm:$0xf]
      %v289 = vld [vmem:[%s1 + $0x8c] sm:$0xf]
      %v290 = vld [vmem:[%s1 + $0x90] sm:$0xf]
      %v291 = vld [vmem:[%s1 + $0x94] sm:$0xf]
      %v292 = vld [vmem:[%s1 + $0x98] sm:$0xf]
      %v293 = vld [vmem:[%s1 + $0x9c] sm:$0xf]
      %v294 = vld [vmem:[%s1 + $0xa0] sm:$0xf]
      %v295 = vld [vmem:[%s1 + $0xa4] sm:$0xf]
      %v296 = vld [vmem:[%s1 + $0xa8] sm:$0xf]
      %v297 = vld [vmem:[%s1 + $0xac] sm:$0xf]
      %v298 = vld [vmem:[%s1 + $0xb0] sm:$0xf]
      %v299 = vld [vmem:[%s1 + $0xb4] sm:$0xf]
      %v300 = vld [vmem:[%s1 + $0xb8] sm:$0xf]
      %v301 = vld [vmem:[%s1 + $0xbc] sm:$0xf]
      %v302 = vld [vmem:[%s1 + $0xc0] sm:$0xf]
      %v303 = vld [vmem:[%s1 + $0xc4] sm:$0xf]
      %v304 = vld [vmem:[%s1 + $0xc8] sm:$0xf]
      %v305 = vld [vmem:[%s1 + $0xcc] sm:$0xf]
      %v306 = vld [vmem:[%s1 + $0xd0] sm:$0xf]
      %v307 = vld [vmem:[%s1 + $0xd4] sm:$0xf]
      %v308 = vld [vmem:[%s1 + $0xd8] sm:$0xf]
      %v309 = vld [vmem:[%s1 + $0xdc] sm:$0xf]
      %v310 = vld [vmem:[%s1 + $0xe0] sm:$0xf]
      %v311 = vld [vmem:[%s1 + $0xe4] sm:$0xf]
      %v312 = vld [vmem:[%s1 + $0xe8] sm:$0xf]
      %v313 = vld [vmem:[%s1 + $0xec] sm:$0xf]
      %v314 = vld [vmem:[%s1 + $0xf0] sm:$0xf]
      %v315 = vld [vmem:[%s1 + $0xf4] sm:$0xf]
      %v316 = vld [vmem:[%s1 + $0xf8] sm:$0xf]
      %v317 = vld [vmem:[%s1 + $0xfc] sm:$0xf]
      %v318 = vld [vmem:[%s1 + $0x100] sm:$0xf]
      %v319 = vld [vmem:[%s1 + $0x104] sm:$0xf]
      %v320 = vld [vmem:[%s1 + $0x108] sm:$0xf]
      %v321 = vld [vmem:[%s1 + $0x10c] sm:$0xf]
      %v322 = vld [vmem:[%s1 + $0x110] sm:$0xf]
      %v323 = vld [vmem:[%s1 + $0x114] sm:$0xf]
      %v324 = vld [vmem:[%s1 + $0x118] sm:$0xf]
      %v325 = vld [vmem:[%s1 + $0x11c] sm:$0xf]
      %v326 = vld [vmem:[%s1 + $0x120] sm:$0xf]
      %v327 = vld [vmem:[%s1 + $0x124] sm:$0xf]
      %v328 = vld [vmem:[%s1 + $0x128] sm:$0xf]
      %v329 = vld [vmem:[%s1 + $0x12c] sm:$0xf]
      %v330 = vld [vmem:[%s1 + $0x130] sm:$0xf]
      %v331 = vld [vmem:[%s1 + $0x134] sm:$0xf]
      %v332 = vld [vmem:[%s1 + $0x138] sm:$0xf]
      %v333 = vld [vmem:[%s1 + $0x13c] sm:$0xf]
      %v334 = vld [vmem:[%s1 + $0x140] sm:$0xf]
      %v335 = vld [vmem:[%s1 + $0x144] sm:$0xf]
      %v336 = vld [vmem:[%s1 + $0x148] sm:$0xf]
      %v337 = vld [vmem:[%s1 + $0x14c] sm:$0xf]
      %v338 = vld [vmem:[%s1 + $0x150] sm:$0xf]
      %v339 = vld [vmem:[%s1 + $0x154] sm:$0xf]
      %v340 = vld [vmem:[%s1 + $0x158] sm:$0xf]
      %v341 = vld [vmem:[%s1 + $0x15c] sm:$0xf]
      %v342 = vld [vmem:[%s1 + $0x160] sm:$0xf]
      %v343 = vld [vmem:[%s1 + $0x164] sm:$0xf]
      %v344 = vld [vmem:[%s1 + $0x168] sm:$0xf]
      %v345 = vld [vmem:[%s1 + $0x16c] sm:$0xf]
      %v346 = vld [vmem:[%s1 + $0x170] sm:$0xf]
      %v347 = vld [vmem:[%s1 + $0x174] sm:$0xf]
      %v348 = vld [vmem:[%s1 + $0x178] sm:$0xf]
      %v349 = vld [vmem:[%s1 + $0x17c] sm:$0xf]
      %v350 = vld [vmem:[%s1 + $0x180] sm:$0xf]
      %v351 = vld [vmem:[%s1 + $0x184] sm:$0xf]
      %v352 = vld [vmem:[%s1 + $0x188] sm:$0xf]
      %v353 = vld [vmem:[%s1 + $0x18c] sm:$0xf]
      %v354 = vld [vmem:[%s1 + $0x190] sm:$0xf]
      %v355 = vld [vmem:[%s1 + $0x194] sm:$0xf]
      %v356 = vld [vmem:[%s1 + $0x198] sm:$0xf]
      %v357 = vld [vmem:[%s1 + $0x19c] sm:$0xf]
      %v358 = vld [vmem:[%s1 + $0x1a0] sm:$0xf]
      %v359 = vld [vmem:[%s1 + $0x1a4] sm:$0xf]
      %v360 = vld [vmem:[%s1 + $0x1a8] sm:$0xf]
      %v361 = vld [vmem:[%s1 + $0x1ac] sm:$0xf]
      %v362 = vld [vmem:[%s1 + $0x1b0] sm:$0xf]
      %v363 = vld [vmem:[%s1 + $0x1b4] sm:$0xf]
      %v364 = vld [vmem:[%s1 + $0x1b8] sm:$0xf]
      %v365 = vld [vmem:[%s1 + $0x1bc] sm:$0xf]
      %v366 = vld [vmem:[%s1 + $0x1c0] sm:$0xf]
      %v367 = vld [vmem:[%s1 + $0x1c4] sm:$0xf]
      %v368 = vld [vmem:[%s1 + $0x1c8] sm:$0xf]
      %v369 = vld [vmem:[%s1 + $0x1cc] sm:$0xf]
      %v370 = vld [vmem:[%s1 + $0x1d0] sm:$0xf]
      %v371 = vld [vmem:[%s1 + $0x1d4] sm:$0xf]
      %v372 = vld [vmem:[%s1 + $0x1d8] sm:$0xf]
      %v373 = vld [vmem:[%s1 + $0x1dc] sm:$0xf]
      %v374 = vld [vmem:[%s1 + $0x1e0] sm:$0xf]
      %v375 = vld [vmem:[%s1 + $0x1e4] sm:$0xf]
      %v376 = vld [vmem:[%s1 + $0x1e8] sm:$0xf]
      %v377 = vld [vmem:[%s1 + $0x1ec] sm:$0xf]
      %v378 = vld [vmem:[%s1 + $0x1f0] sm:$0xf]
      %v379 = vld [vmem:[%s1 + $0x1f4] sm:$0xf]
      %v380 = vld [vmem:[%s1 + $0x1f8] sm:$0xf]
      %v381 = vld [vmem:[%s1 + $0x1fc] sm:$0xf]
      %v382 = vld [vmem:[%s1 + $0x200] sm:$0xf]
      %v383 = vld [vmem:[%s1 + $0x204] sm:$0xf]
      %v384 = vld [vmem:[%s1 + $0x208] sm:$0xf]
      %v385 = vld [vmem:[%s1 + $0x20c] sm:$0xf]
      %v386 = vld [vmem:[%s1 + $0x210] sm:$0xf]
      %v387 = vld [vmem:[%s1 + $0x214] sm:$0xf]
      %v388 = vld [vmem:[%s1 + $0x218] sm:$0xf]
      %v389 = vld [vmem:[%s1 + $0x21c] sm:$0xf]
      %v390 = vld [vmem:[%s1 + $0x220] sm:$0xf]
      %v391 = vld [vmem:[%s1 + $0x224] sm:$0xf]
      %v392 = vld [vmem:[%s1 + $0x228] sm:$0xf]
      %v393 = vld [vmem:[%s1 + $0x22c] sm:$0xf]
      %v394 = vld [vmem:[%s1 + $0x230] sm:$0xf]
      %v395 = vld [vmem:[%s1 + $0x234] sm:$0xf]
      %v396 = vld [vmem:[%s1 + $0x238] sm:$0xf]
      %v397 = vld [vmem:[%s1 + $0x23c] sm:$0xf]
      %v398 = vld [vmem:[%s1 + $0x240] sm:$0xf]
      %v399 = vld [vmem:[%s1 + $0x244] sm:$0xf]
      %v400 = vld [vmem:[%s1 + $0x248] sm:$0xf]
      %v401 = vld [vmem:[%s1 + $0x24c] sm:$0xf]
      %v402 = vld [vmem:[%s1 + $0x250] sm:$0xf]
      %v403 = vld [vmem:[%s1 + $0x254] sm:$0xf]
      %v404 = vld [vmem:[%s1 + $0x258] sm:$0xf]
      %v405 = vld [vmem:[%s1 + $0x25c] sm:$0xf]
      %v406 = vld [vmem:[%s1 + $0x260] sm:$0xf]
      %v407 = vld [vmem:[%s1 + $0x264] sm:$0xf]
      %v408 = vld [vmem:[%s1 + $0x268] sm:$0xf]
      %v409 = vld [vmem:[%s1 + $0x26c] sm:$0xf]
      %v410 = vld [vmem:[%s1 + $0x270] sm:$0xf]
      %v411 = vld [vmem:[%s1 + $0x274] sm:$0xf]
      %v412 = vld [vmem:[%s1 + $0x278] sm:$0xf]
      %v413 = vld [vmem:[%s1 + $0x27c] sm:$0xf]
      %v414 = vld [vmem:[%s1 + $0x280] sm:$0xf]
      %v415 = vld [vmem:[%s1 + $0x284] sm:$0xf]
      %v416 = vld [vmem:[%s1 + $0x288] sm:$0xf]
      %v417 = vld [vmem:[%s1 + $0x28c] sm:$0xf]
      %v418 = vld [vmem:[%s1 + $0x290] sm:$0xf]
      %v419 = vld [vmem:[%s1 + $0x294] sm:$0xf]
      %v420 = vld [vmem:[%s1 + $0x298] sm:$0xf]
      %v421 = vld [vmem:[%s1 + $0x29c] sm:$0xf]
      %v422 = vld [vmem:[%s1 + $0x2a0] sm:$0xf]
      %v423 = vld [vmem:[%s1 + $0x2a4] sm:$0xf]
      %v424 = vld [vmem:[%s1 + $0x2a8] sm:$0xf]
      %v425 = vld [vmem:[%s1 + $0x2ac] sm:$0xf]
      %v426 = vld [vmem:[%s1 + $0x2b0] sm:$0xf]
      %v427 = vld [vmem:[%s1 + $0x2b4] sm:$0xf]
      %v428 = vld [vmem:[%s1 + $0x2b8] sm:$0xf]
      %v429 = vld [vmem:[%s1 + $0x2bc] sm:$0xf]
      %v430 = vld [vmem:[%s1 + $0x2c0] sm:$0xf]
      %v431 = vld [vmem:[%s1 + $0x2c4] sm:$0xf]
      %v432 = vld [vmem:[%s1 + $0x2c8] sm:$0xf]
      %v433 = vld [vmem:[%s1 + $0x2cc] sm:$0xf]
      %v434 = vld [vmem:[%s1 + $0x2d0] sm:$0xf]
      %v435 = vld [vmem:[%s1 + $0x2d4] sm:$0xf]
      %v436 = vld [vmem:[%s1 + $0x2d8] sm:$0xf]
      %v437 = vld [vmem:[%s1 + $0x2dc] sm:$0xf]
      %v438 = vld [vmem:[%s1 + $0x2e0] sm:$0xf]
      %v439 = vld [vmem:[%s1 + $0x2e4] sm:$0xf]
      %v440 = vld [vmem:[%s1 + $0x2e8] sm:$0xf]
      %v441 = vld [vmem:[%s1 + $0x2ec] sm:$0xf]
      %v442 = vld [vmem:[%s1 + $0x2f0] sm:$0xf]
      %v443 = vld [vmem:[%s1 + $0x2f4] sm:$0xf]
      %v444 = vld [vmem:[%s1 + $0x2f8] sm:$0xf]
      %v445 = vld [vmem:[%s1 + $0x2fc] sm:$0xf]
      %v446 = vld [vmem:[%s1 + $0x300] sm:$0xf]
      %v447 = vld [vmem:[%s1 + $0x304] sm:$0xf]
      %v448 = vld [vmem:[%s1 + $0x308] sm:$0xf]
      %v449 = vld [vmem:[%s1 + $0x30c] sm:$0xf]
      %v450 = vld [vmem:[%s1 + $0x310] sm:$0xf]
      %v451 = vld [vmem:[%s1 + $0x314] sm:$0xf]
      %v452 = vld [vmem:[%s1 + $0x318] sm:$0xf]
      %v453 = vld [vmem:[%s1 + $0x31c] sm:$0xf]
      %v454 = vld [vmem:[%s1 + $0x320] sm:$0xf]
      %v455 = vld [vmem:[%s1 + $0x324] sm:$0xf]
      %v456 = vld [vmem:[%s1 + $0x328] sm:$0xf]
      %v457 = vld [vmem:[%s1 + $0x32c] sm:$0xf]
      %v458 = vld [vmem:[%s1 + $0x330] sm:$0xf]
      %v459 = vld [vmem:[%s1 + $0x334] sm:$0xf]
      %v460 = vld [vmem:[%s1 + $0x338] sm:$0xf]
      %v461 = vld [vmem:[%s1 + $0x33c] sm:$0xf]
      %v462 = vld [vmem:[%s1 + $0x340] sm:$0xf]
      %v463 = vld [vmem:[%s1 + $0x344] sm:$0xf]
      %v464 = vld [vmem:[%s1 + $0x348] sm:$0xf]
      %v465 = vld [vmem:[%s1 + $0x34c] sm:$0xf]
      %v466 = vld [vmem:[%s1 + $0x350] sm:$0xf]
      %v467 = vld [vmem:[%s1 + $0x354] sm:$0xf]
      %v468 = vld [vmem:[%s1 + $0x358] sm:$0xf]
      %v469 = vld [vmem:[%s1 + $0x35c] sm:$0xf]
      %v470 = vld [vmem:[%s1 + $0x360] sm:$0xf]
      %v471 = vld [vmem:[%s1 + $0x364] sm:$0xf]
      %v472 = vld [vmem:[%s1 + $0x368] sm:$0xf]
      %v473 = vld [vmem:[%s1 + $0x36c] sm:$0xf]
      %v474 = vld [vmem:[%s1 + $0x370] sm:$0xf]
      %v475 = vld [vmem:[%s1 + $0x374] sm:$0xf]
      %v476 = vld [vmem:[%s1 + $0x378] sm:$0xf]
      %v477 = vld [vmem:[%s1 + $0x37c] sm:$0xf]
      %v478 = vld [vmem:[%s1 + $0x380] sm:$0xf]
      %v479 = vld [vmem:[%s1 + $0x384] sm:$0xf]
      %v480 = vld [vmem:[%s1 + $0x388] sm:$0xf]
      %v481 = vld [vmem:[%s1 + $0x38c] sm:$0xf]
      %v482 = vld [vmem:[%s1 + $0x390] sm:$0xf]
      %v483 = vld [vmem:[%s1 + $0x394] sm:$0xf]
      %v484 = vld [vmem:[%s1 + $0x398] sm:$0xf]
      %v485 = vld [vmem:[%s1 + $0x39c] sm:$0xf]
      %v486 = vld [vmem:[%s1 + $0x3a0] sm:$0xf]
      %v487 = vld [vmem:[%s1 + $0x3a4] sm:$0xf]
      %v488 = vld [vmem:[%s1 + $0x3a8] sm:$0xf]
      %v489 = vld [vmem:[%s1 + $0x3ac] sm:$0xf]
      %v490 = vld [vmem:[%s1 + $0x3b0] sm:$0xf]
      %v491 = vld [vmem:[%s1 + $0x3b4] sm:$0xf]
      %v492 = vld [vmem:[%s1 + $0x3b8] sm:$0xf]
      %v493 = vld [vmem:[%s1 + $0x3bc] sm:$0xf]
      %v494 = vld [vmem:[%s1 + $0x3c0] sm:$0xf]
      %v495 = vld [vmem:[%s1 + $0x3c4] sm:$0xf]
      %v496 = vld [vmem:[%s1 + $0x3c8] sm:$0xf]
      %v497 = vld [vmem:[%s1 + $0x3cc] sm:$0xf]
      %v498 = vld [vmem:[%s1 + $0x3d0] sm:$0xf]
      %v499 = vld [vmem:[%s1 + $0x3d4] sm:$0xf]
      %v500 = vld [vmem:[%s1 + $0x3d8] sm:$0xf]
      %v501 = vld [vmem:[%s1 + $0x3dc] sm:$0xf]
      %v502 = vld [vmem:[%s1 + $0x3e0] sm:$0xf]
      %v503 = vld [vmem:[%s1 + $0x3e4] sm:$0xf]
      %v504 = vld [vmem:[%s1 + $0x3e8] sm:$0xf]
      %v505 = vld [vmem:[%s1 + $0x3ec] sm:$0xf]
      %v506 = vld [vmem:[%s1 + $0x3f0] sm:$0xf]
      %v507 = vld [vmem:[%s1 + $0x3f4] sm:$0xf]
      %v508 = vld [vmem:[%s1 + $0x3f8] sm:$0xf]
      %v509 = vld [vmem:[%s1 + $0x3fc] sm:$0xf]
      %v510 = vld [vmem:[%s1 + $0x400] sm:$0xf]
      %v511 = vld [vmem:[%s1 + $0x404] sm:$0xf]
      %v512 = vld [vmem:[%s1 + $0x408] sm:$0xf]
      %v513 = vld [vmem:[%s1 + $0x40c] sm:$0xf]
      %v514 = vld [vmem:[%s1 + $0x410] sm:$0xf]
      %v515 = vld [vmem:[%s1 + $0x414] sm:$0xf]
      %v516 = vld [vmem:[%s1 + $0x418] sm:$0xf]
      %v517 = vld [vmem:[%s1 + $0x41c] sm:$0xf]
      %v518 = vld [vmem:[%s1 + $0x420] sm:$0xf]
      %v519 = vld [vmem:[%s1 + $0x424] sm:$0xf]
      %v520 = vld [vmem:[%s1 + $0x428] sm:$0xf]
      %v521 = vld [vmem:[%s1 + $0x42c] sm:$0xf]
      %v522 = vld [vmem:[%s1 + $0x430] sm:$0xf]
      %v523 = vld [vmem:[%s1 + $0x434] sm:$0xf]
      %v524 = vld [vmem:[%s1 + $0x438] sm:$0xf]
      %v525 = vld [vmem:[%s1 + $0x43c] sm:$0xf]
      %v526 = vld [vmem:[%s1 + $0x440] sm:$0xf]
      %v527 = vld [vmem:[%s1 + $0x444] sm:$0xf]
      %v528 = vld [vmem:[%s1 + $0x448] sm:$0xf]
      %v529 = vld [vmem:[%s1 + $0x44c] sm:$0xf]
      %v530 = vld [vmem:[%s1 + $0x450] sm:$0xf]
      %v531 = vld [vmem:[%s1 + $0x454] sm:$0xf]
      %v532 = vld [vmem:[%s1 + $0x458] sm:$0xf]
      %v533 = vld [vmem:[%s1 + $0x45c] sm:$0xf]
      %v534 = vld [vmem:[%s1 + $0x460] sm:$0xf]
      %v535 = vld [vmem:[%s1 + $0x464] sm:$0xf]
      %v536 = vld [vmem:[%s1 + $0x468] sm:$0xf]
      %v537 = vld [vmem:[%s1 + $0x46c] sm:$0xf]
      %v538 = vld [vmem:[%s1 + $0x470] sm:$0xf]
      %v539 = vld [vmem:[%s1 + $0x474] sm:$0xf]
      %v540 = vld [vmem:[%s1 + $0x478] sm:$0xf]
      %v541 = vld [vmem:[%s1 + $0x47c] sm:$0xf]
      %v542 = vld [vmem:[%s1 + $0x480] sm:$0xf]
      %v543 = vld [vmem:[%s1 + $0x484] sm:$0xf]
      %v544 = vld [vmem:[%s1 + $0x488] sm:$0xf]
      %v545 = vld [vmem:[%s1 + $0x48c] sm:$0xf]
      %v546 = vld [vmem:[%s1 + $0x490] sm:$0xf]
      %v547 = vld [vmem:[%s1 + $0x494] sm:$0xf]
      %v548 = vld [vmem:[%s1 + $0x498] sm:$0xf]
      %v549 = vld [vmem:[%s1 + $0x49c] sm:$0xf]
      %v550 = vld [vmem:[%s1 + $0x4a0] sm:$0xf]
      %v551 = vld [vmem:[%s1 + $0x4a4] sm:$0xf]
      %v552 = vld [vmem:[%s1 + $0x4a8] sm:$0xf]
      %v553 = vld [vmem:[%s1 + $0x4ac] sm:$0xf]
      %v554 = vld [vmem:[%s1 + $0x4b0] sm:$0xf]
      %v555 = vld [vmem:[%s1 + $0x4b4] sm:$0xf]
      %v556 = vld [vmem:[%s1 + $0x4b8] sm:$0xf]
      %v557 = vld [vmem:[%s1 + $0x4bc] sm:$0xf]
      %v558 = vld [vmem:[%s1 + $0x4c0] sm:$0xf]
      %v559 = vld [vmem:[%s1 + $0x4c4] sm:$0xf]
      %v560 = vld [vmem:[%s1 + $0x4c8] sm:$0xf]
      %v561 = vld [vmem:[%s1 + $0x4cc] sm:$0xf]
      %v562 = vld [vmem:[%s1 + $0x4d0] sm:$0xf]
      %v563 = vld [vmem:[%s1 + $0x4d4] sm:$0xf]
      %v564 = vld [vmem:[%s1 + $0x4d8] sm:$0xf]
      %v565 = vld [vmem:[%s1 + $0x4dc] sm:$0xf]
      %v566 = vld [vmem:[%s1 + $0x4e0] sm:$0xf]
      %v567 = vld [vmem:[%s1 + $0x4e4] sm:$0xf]
      %v568 = vld [vmem:[%s1 + $0x4e8] sm:$0xf]
      %v569 = vld [vmem:[%s1 + $0x4ec] sm:$0xf]
      %v570 = vld [vmem:[%s1 + $0x4f0] sm:$0xf]
      %v571 = vld [vmem:[%s1 + $0x4f4] sm:$0xf]
      %v572 = vld [vmem:[%s1 + $0x4f8] sm:$0xf]
      %v573 = vld [vmem:[%s1 + $0x4fc] sm:$0xf]
      %v574 = vld [vmem:[%s1 + $0x500] sm:$0xf]
      %v575 = vld [vmem:[%s1 + $0x504] sm:$0xf]
      %v576 = vld [vmem:[%s1 + $0x508] sm:$0xf]
      %v577 = vld [vmem:[%s1 + $0x50c] sm:$0xf]
      %v578 = vld [vmem:[%s1 + $0x510] sm:$0xf]
      %v579 = vld [vmem:[%s1 + $0x514] sm:$0xf]
      %v580 = vld [vmem:[%s1 + $0x518] sm:$0xf]
      %v581 = vld [vmem:[%s1 + $0x51c] sm:$0xf]
      %v582 = vld [vmem:[%s1 + $0x520] sm:$0xf]
      %v583 = vld [vmem:[%s1 + $0x524] sm:$0xf]
      %v584 = vld [vmem:[%s1 + $0x528] sm:$0xf]
      %v585 = vld [vmem:[%s1 + $0x52c] sm:$0xf]
      %v586 = vld [vmem:[%s1 + $0x530] sm:$0xf]
      %v587 = vld [vmem:[%s1 + $0x534] sm:$0xf]
      %v588 = vld [vmem:[%s1 + $0x538] sm:$0xf]
      %v589 = vld [vmem:[%s1 + $0x53c] sm:$0xf]
      %v590 = vld [vmem:[%s1 + $0x540] sm:$0xf]
      %v591 = vld [vmem:[%s1 + $0x544] sm:$0xf]
      %v592 = vld [vmem:[%s1 + $0x548] sm:$0xf]
      %v593 = vld [vmem:[%s1 + $0x54c] sm:$0xf]
      %v594 = vld [vmem:[%s1 + $0x550] sm:$0xf]
      %v595 = vld [vmem:[%s1 + $0x554] sm:$0xf]
      %v596 = vld [vmem:[%s1 + $0x558] sm:$0xf]
      %v597 = vld [vmem:[%s1 + $0x55c] sm:$0xf]
      %v598 = vld [vmem:[%s1 + $0x560] sm:$0xf]
      %v599 = vld [vmem:[%s1 + $0x564] sm:$0xf]
      %v600 = vld [vmem:[%s1 + $0x568] sm:$0xf]
      %v601 = vld [vmem:[%s1 + $0x56c] sm:$0xf]
      %v602 = vld [vmem:[%s1 + $0x570] sm:$0xf]
      %v603 = vld [vmem:[%s1 + $0x574] sm:$0xf]
      %v604 = vld [vmem:[%s1 + $0x578] sm:$0xf]
      %v605 = vld [vmem:[%s1 + $0x57c] sm:$0xf]
      %v606 = vld [vmem:[%s1 + $0x580] sm:$0xf]
      %v607 = vld [vmem:[%s1 + $0x584] sm:$0xf]
      %v608 = vld [vmem:[%s1 + $0x588] sm:$0xf]
      %v609 = vld [vmem:[%s1 + $0x58c] sm:$0xf]
      %v610 = vld [vmem:[%s1 + $0x590] sm:$0xf]
      %v611 = vld [vmem:[%s1 + $0x594] sm:$0xf]
      %v612 = vld [vmem:[%s1 + $0x598] sm:$0xf]
      %v613 = vld [vmem:[%s1 + $0x59c] sm:$0xf]
      %v614 = vld [vmem:[%s1 + $0x5a0] sm:$0xf]
      %v615 = vld [vmem:[%s1 + $0x5a4] sm:$0xf]
      %v616 = vld [vmem:[%s1 + $0x5a8] sm:$0xf]
      %v617 = vld [vmem:[%s1 + $0x5ac] sm:$0xf]
      %v618 = vld [vmem:[%s1 + $0x5b0] sm:$0xf]
      %v619 = vld [vmem:[%s1 + $0x5b4] sm:$0xf]
      %v620 = vld [vmem:[%s1 + $0x5b8] sm:$0xf]
      %v621 = vld [vmem:[%s1 + $0x5bc] sm:$0xf]
      %v622 = vld [vmem:[%s1 + $0x5c0] sm:$0xf]
      %v623 = vld [vmem:[%s1 + $0x5c4] sm:$0xf]
      %v624 = vld [vmem:[%s1 + $0x5c8] sm:$0xf]
      %v625 = vld [vmem:[%s1 + $0x5cc] sm:$0xf]
      %v626 = vld [vmem:[%s1 + $0x5d0] sm:$0xf]
      %v627 = vld [vmem:[%s1 + $0x5d4] sm:$0xf]
      %v628 = vld [vmem:[%s1 + $0x5d8] sm:$0xf]
      %v629 = vld [vmem:[%s1 + $0x5dc] sm:$0xf]
      %v630 = vld [vmem:[%s1 + $0x5e0] sm:$0xf]
      %v631 = vld [vmem:[%s1 + $0x5e4] sm:$0xf]
      %v632 = vld [vmem:[%s1 + $0x5e8] sm:$0xf]
      %v633 = vld [vmem:[%s1 + $0x5ec] sm:$0xf]
      %v634 = vld [vmem:[%s1 + $0x5f0] sm:$0xf]
      %v635 = vld [vmem:[%s1 + $0x5f4] sm:$0xf]
      %v636 = vld [vmem:[%s1 + $0x5f8] sm:$0xf]
      %v637 = vld [vmem:[%s1 + $0x5fc] sm:$0xf]
      %v638 = vld [vmem:[%s1 + $0x600] sm:$0xf]
      %v639 = vld [vmem:[%s1 + $0x604] sm:$0xf]
      %v640 = vld [vmem:[%s1 + $0x608] sm:$0xf]
      %v641 = vld [vmem:[%s1 + $0x60c] sm:$0xf]
      %v642 = vld [vmem:[%s1 + $0x610] sm:$0xf]
      %v643 = vld [vmem:[%s1 + $0x614] sm:$0xf]
      %v644 = vld [vmem:[%s1 + $0x618] sm:$0xf]
      %v645 = vld [vmem:[%s1 + $0x61c] sm:$0xf]
      %v646 = vld [vmem:[%s1 + $0x620] sm:$0xf]
      %v647 = vld [vmem:[%s1 + $0x624] sm:$0xf]
      %v648 = vld [vmem:[%s1 + $0x628] sm:$0xf]
      %v649 = vld [vmem:[%s1 + $0x62c] sm:$0xf]
      %v650 = vld [vmem:[%s1 + $0x630] sm:$0xf]
      %v651 = vld [vmem:[%s1 + $0x634] sm:$0xf]
      %v652 = vld [vmem:[%s1 + $0x638] sm:$0xf]
      %v653 = vld [vmem:[%s1 + $0x63c] sm:$0xf]
      %v654 = vld [vmem:[%s1 + $0x640] sm:$0xf]
      %v655 = vld [vmem:[%s1 + $0x644] sm:$0xf]
      %v656 = vld [vmem:[%s1 + $0x648] sm:$0xf]
      %v657 = vld [vmem:[%s1 + $0x64c] sm:$0xf]
      %v658 = vld [vmem:[%s1 + $0x650] sm:$0xf]
      %v659 = vld [vmem:[%s1 + $0x654] sm:$0xf]
      %v660 = vld [vmem:[%s1 + $0x658] sm:$0xf]
      %v661 = vld [vmem:[%s1 + $0x65c] sm:$0xf]
      %v662 = vld [vmem:[%s1 + $0x660] sm:$0xf]
      %v663 = vld [vmem:[%s1 + $0x664] sm:$0xf]
      %v664 = vld [vmem:[%s1 + $0x668] sm:$0xf]
      %v665 = vld [vmem:[%s1 + $0x66c] sm:$0xf]
      %v666 = vld [vmem:[%s1 + $0x670] sm:$0xf]
      %v667 = vld [vmem:[%s1 + $0x674] sm:$0xf]
      %v668 = vld [vmem:[%s1 + $0x678] sm:$0xf]
      %v669 = vld [vmem:[%s1 + $0x67c] sm:$0xf]
      %v670 = vld [vmem:[%s1 + $0x680] sm:$0xf]
      %v671 = vld [vmem:[%s1 + $0x684] sm:$0xf]
      %v672 = vld [vmem:[%s1 + $0x688] sm:$0xf]
      %v673 = vld [vmem:[%s1 + $0x68c] sm:$0xf]
      %v674 = vld [vmem:[%s1 + $0x690] sm:$0xf]
      %v675 = vld [vmem:[%s1 + $0x694] sm:$0xf]
      %v676 = vld [vmem:[%s1 + $0x698] sm:$0xf]
      %v677 = vld [vmem:[%s1 + $0x69c] sm:$0xf]
      %v678 = vld [vmem:[%s1 + $0x6a0] sm:$0xf]
      %v679 = vld [vmem:[%s1 + $0x6a4] sm:$0xf]
      %v680 = vld [vmem:[%s1 + $0x6a8] sm:$0xf]
      %v681 = vld [vmem:[%s1 + $0x6ac] sm:$0xf]
      %v682 = vld [vmem:[%s1 + $0x6b0] sm:$0xf]
      %v683 = vld [vmem:[%s1 + $0x6b4] sm:$0xf]
      %v684 = vld [vmem:[%s1 + $0x6b8] sm:$0xf]
      %v685 = vld [vmem:[%s1 + $0x6bc] sm:$0xf]
      %v714 = vunpack.c.l.b16 %v226
      %v715 = vunpack.c.h.b16 %v226
      %v716 = vunpack.c.l.b16 %v227
      %v717 = vunpack.c.h.b16 %v227
      %v718 = vunpack.c.l.b16 %v228
      %v719 = vunpack.c.h.b16 %v228
      %v720 = vunpack.c.l.b16 %v229
      %v721 = vunpack.c.h.b16 %v229
      %v722 = vunpack.c.l.b16 %v230
      %v723 = vunpack.c.h.b16 %v230
      %v724 = vunpack.c.l.b16 %v231
      %v725 = vunpack.c.h.b16 %v231
      %v726 = vunpack.c.l.b16 %v232
      %v727 = vunpack.c.h.b16 %v232
      %v728 = vunpack.c.l.b16 %v233
      %v729 = vunpack.c.h.b16 %v233
      %v730 = vunpack.c.l.b16 %v234
      %v731 = vunpack.c.h.b16 %v234
      %v732 = vunpack.c.l.b16 %v235
      %v733 = vunpack.c.h.b16 %v235
      %v734 = vunpack.c.l.b16 %v236
      %v735 = vunpack.c.h.b16 %v236
      %v736 = vunpack.c.l.b16 %v237
      %v737 = vunpack.c.h.b16 %v237
      %v738 = vunpack.c.l.b16 %v238
      %v739 = vunpack.c.h.b16 %v238
      %v740 = vunpack.c.l.b16 %v239
      %v741 = vunpack.c.l.b16 %v240
      %v742 = vunpack.c.h.b16 %v240
      %v743 = vunpack.c.l.b16 %v241
      %v744 = vunpack.c.h.b16 %v241
      %v745 = vunpack.c.l.b16 %v242
      %v746 = vunpack.c.h.b16 %v242
      %v747 = vunpack.c.l.b16 %v243
      %v748 = vunpack.c.h.b16 %v243
      %v749 = vunpack.c.l.b16 %v244
      %v750 = vunpack.c.h.b16 %v244
      %v751 = vunpack.c.l.b16 %v245
      %v752 = vunpack.c.h.b16 %v245
      %v753 = vunpack.c.l.b16 %v246
      %v754 = vunpack.c.h.b16 %v246
      %v755 = vunpack.c.l.b16 %v247
      %v756 = vunpack.c.h.b16 %v247
      %v757 = vunpack.c.l.b16 %v248
      %v758 = vunpack.c.h.b16 %v248
      %v759 = vunpack.c.l.b16 %v249
      %v760 = vunpack.c.h.b16 %v249
      %v761 = vunpack.c.l.b16 %v250
      %v762 = vunpack.c.h.b16 %v250
      %v763 = vunpack.c.l.b16 %v251
      %v764 = vunpack.c.h.b16 %v251
      %v765 = vunpack.c.l.b16 %v252
      %v766 = vunpack.c.h.b16 %v252
      %v767 = vunpack.c.l.b16 %v253
      %v768 = vpack.c.b16 %v741, %v714
      %v769 = vpack.c.b16 %v742, %v715
      %v770 = vpack.c.b16 %v743, %v716
      %v771 = vpack.c.b16 %v744, %v717
      %v772 = vpack.c.b16 %v745, %v718
      %v773 = vpack.c.b16 %v746, %v719
      %v774 = vpack.c.b16 %v747, %v720
      %v775 = vpack.c.b16 %v748, %v721
      %v776 = vpack.c.b16 %v749, %v722
      %v777 = vpack.c.b16 %v750, %v723
      %v778 = vpack.c.b16 %v751, %v724
      %v779 = vpack.c.b16 %v752, %v725
      %v780 = vpack.c.b16 %v753, %v726
      %v781 = vpack.c.b16 %v754, %v727
      %v782 = vpack.c.b16 %v755, %v728
      %v783 = vpack.c.b16 %v756, %v729
      %v784 = vpack.c.b16 %v757, %v730
      %v785 = vpack.c.b16 %v758, %v731
      %v786 = vpack.c.b16 %v759, %v732
      %v787 = vpack.c.b16 %v760, %v733
      %v788 = vpack.c.b16 %v761, %v734
      %v789 = vpack.c.b16 %v762, %v735
      %v790 = vpack.c.b16 %v763, %v736
      %v791 = vpack.c.b16 %v764, %v737
      %v792 = vpack.c.b16 %v765, %v738
      %v793 = vpack.c.b16 %v766, %v739
      %v794 = vpack.c.b16 %v767, %v740
      %v1254 = vunpack.c.l.b16 %v254
      %v1255 = vunpack.c.l.b16 %v255
      %v1256 = vunpack.c.l.b16 %v256
      %v1257 = vunpack.c.l.b16 %v257
      %v1258 = vunpack.c.l.b16 %v258
      %v1259 = vunpack.c.l.b16 %v259
      %v1260 = vunpack.c.l.b16 %v260
      %v1261 = vunpack.c.l.b16 %v261
      %v1262 = vunpack.c.l.b16 %v262
      %v1263 = vunpack.c.l.b16 %v263
      %v1264 = vunpack.c.l.b16 %v264
      %v1265 = vunpack.c.l.b16 %v265
      %v1266 = vunpack.c.l.b16 %v266
      %v1267 = vunpack.c.l.b16 %v267
      %v1268 = vunpack.c.l.b16 %v268
      %v1269 = vunpack.c.l.b16 %v269
      %v1270 = vunpack.c.l.b16 %v270
      %v1271 = vunpack.c.l.b16 %v271
      %v1272 = vunpack.c.l.b16 %v272
      %v1273 = vunpack.c.l.b16 %v273
      %v1274 = vunpack.c.l.b16 %v274
      %v1275 = vunpack.c.l.b16 %v275
      %v1276 = vunpack.c.l.b16 %v276
      %v1277 = vunpack.c.l.b16 %v277
      %v1278 = vunpack.c.l.b16 %v278
      %v1279 = vunpack.c.l.b16 %v279
      %v1280 = vunpack.c.l.b16 %v280
      %v1281 = vunpack.c.l.b16 %v281
      %v1282 = vunpack.c.l.b16 %v282
      %v1283 = vunpack.c.l.b16 %v283
      %v1284 = vunpack.c.l.b16 %v284
      %v1285 = vunpack.c.l.b16 %v285
      %v1286 = vunpack.c.l.b16 %v286
      %v1287 = vunpack.c.l.b16 %v287
      %v1288 = vunpack.c.l.b16 %v288
      %v1289 = vunpack.c.l.b16 %v289
      %v1290 = vunpack.c.l.b16 %v290
      %v1291 = vunpack.c.l.b16 %v291
      %v1292 = vunpack.c.l.b16 %v292
      %v1293 = vunpack.c.l.b16 %v293
      %v1294 = vunpack.c.l.b16 %v294
      %v1295 = vunpack.c.l.b16 %v295
      %v1296 = vunpack.c.l.b16 %v296
      %v1297 = vunpack.c.l.b16 %v297
      %v1298 = vunpack.c.l.b16 %v298
      %v1299 = vunpack.c.l.b16 %v299
      %v1300 = vunpack.c.l.b16 %v300
      %v1301 = vunpack.c.l.b16 %v301
      %v1302 = vunpack.c.l.b16 %v302
      %v1303 = vunpack.c.l.b16 %v303
      %v1304 = vunpack.c.l.b16 %v304
      %v1305 = vunpack.c.l.b16 %v305
      %v1306 = vunpack.c.l.b16 %v306
      %v1307 = vunpack.c.l.b16 %v307
      %v1308 = vunpack.c.l.b16 %v308
      %v1309 = vunpack.c.l.b16 %v309
      %v1310 = vunpack.c.l.b16 %v310
      %v1311 = vunpack.c.l.b16 %v311
      %v1312 = vunpack.c.l.b16 %v312
      %v1313 = vunpack.c.l.b16 %v313
      %v1314 = vunpack.c.l.b16 %v314
      %v1315 = vunpack.c.l.b16 %v315
      %v1316 = vunpack.c.l.b16 %v316
      %v1317 = vunpack.c.l.b16 %v317
      %v1318 = vunpack.c.l.b16 %v318
      %v1319 = vunpack.c.l.b16 %v319
      %v1320 = vunpack.c.l.b16 %v320
      %v1321 = vunpack.c.l.b16 %v321
      %v1322 = vunpack.c.l.b16 %v322
      %v1323 = vunpack.c.l.b16 %v323
      %v1324 = vunpack.c.l.b16 %v324
      %v1325 = vunpack.c.l.b16 %v325
      %v1326 = vunpack.c.l.b16 %v326
      %v1327 = vunpack.c.l.b16 %v327
      %v1328 = vunpack.c.l.b16 %v328
      %v1329 = vunpack.c.l.b16 %v329
      %v1330 = vunpack.c.l.b16 %v330
      %v1331 = vunpack.c.l.b16 %v331
      %v1332 = vunpack.c.l.b16 %v332
      %v1333 = vunpack.c.l.b16 %v333
      %v1334 = vunpack.c.l.b16 %v334
      %v1335 = vunpack.c.l.b16 %v335
      %v1336 = vunpack.c.l.b16 %v336
      %v1337 = vunpack.c.l.b16 %v337
      %v1338 = vunpack.c.l.b16 %v338
      %v1339 = vunpack.c.l.b16 %v339
      %v1340 = vunpack.c.l.b16 %v340
      %v1341 = vunpack.c.l.b16 %v341
      %v1342 = vunpack.c.l.b16 %v342
      %v1343 = vunpack.c.l.b16 %v343
      %v1344 = vunpack.c.l.b16 %v344
      %v1345 = vunpack.c.l.b16 %v345
      %v1346 = vunpack.c.l.b16 %v346
      %v1347 = vunpack.c.l.b16 %v347
      %v1348 = vunpack.c.l.b16 %v348
      %v1349 = vunpack.c.l.b16 %v349
      %v1350 = vunpack.c.l.b16 %v350
      %v1351 = vunpack.c.l.b16 %v351
      %v1352 = vunpack.c.l.b16 %v352
      %v1353 = vunpack.c.l.b16 %v353
      %v1354 = vunpack.c.l.b16 %v354
      %v1355 = vunpack.c.l.b16 %v355
      %v1356 = vunpack.c.l.b16 %v356
      %v1357 = vunpack.c.l.b16 %v357
      %v1358 = vunpack.c.l.b16 %v358
      %v1359 = vunpack.c.l.b16 %v359
      %v1360 = vunpack.c.l.b16 %v360
      %v1361 = vunpack.c.l.b16 %v361
      %v1362 = vunpack.c.l.b16 %v362
      %v1363 = vunpack.c.l.b16 %v363
      %v1364 = vunpack.c.l.b16 %v364
      %v1365 = vunpack.c.l.b16 %v365
      %v1366 = vunpack.c.l.b16 %v366
      %v1367 = vunpack.c.l.b16 %v367
      %v1368 = vunpack.c.l.b16 %v368
      %v1369 = vunpack.c.l.b16 %v369
      %v1370 = vunpack.c.l.b16 %v370
      %v1371 = vunpack.c.l.b16 %v371
      %v1372 = vunpack.c.l.b16 %v372
      %v1373 = vunpack.c.l.b16 %v373
      %v1374 = vunpack.c.l.b16 %v374
      %v1375 = vunpack.c.l.b16 %v375
      %v1376 = vunpack.c.l.b16 %v376
      %v1377 = vunpack.c.l.b16 %v377
      %v1378 = vunpack.c.l.b16 %v378
      %v1379 = vunpack.c.l.b16 %v379
      %v1380 = vunpack.c.l.b16 %v380
      %v1381 = vunpack.c.l.b16 %v381
      %v1382 = vunpack.c.l.b16 %v382
      %v1383 = vunpack.c.l.b16 %v383
      %v1384 = vunpack.c.l.b16 %v384
      %v1385 = vunpack.c.l.b16 %v385
      %v1386 = vunpack.c.l.b16 %v386
      %v1387 = vunpack.c.l.b16 %v387
      %v1388 = vunpack.c.l.b16 %v388
      %v1389 = vunpack.c.l.b16 %v389
      %v1390 = vunpack.c.l.b16 %v390
      %v1391 = vunpack.c.l.b16 %v391
      %v1392 = vunpack.c.l.b16 %v392
      %v1393 = vunpack.c.l.b16 %v393
      %v1394 = vunpack.c.l.b16 %v394
      %v1395 = vunpack.c.l.b16 %v395
      %v1396 = vunpack.c.l.b16 %v396
      %v1397 = vunpack.c.l.b16 %v397
      %v1398 = vunpack.c.l.b16 %v398
      %v1399 = vunpack.c.l.b16 %v399
      %v1400 = vunpack.c.l.b16 %v400
      %v1401 = vunpack.c.l.b16 %v401
      %v1402 = vunpack.c.l.b16 %v402
      %v1403 = vunpack.c.l.b16 %v403
      %v1404 = vunpack.c.l.b16 %v404
      %v1405 = vunpack.c.l.b16 %v405
      %v1406 = vunpack.c.l.b16 %v406
      %v1407 = vunpack.c.l.b16 %v407
      %v1408 = vunpack.c.l.b16 %v408
      %v1409 = vunpack.c.l.b16 %v409
      %v1410 = vunpack.c.l.b16 %v410
      %v1411 = vunpack.c.l.b16 %v411
      %v1412 = vunpack.c.l.b16 %v412
      %v1413 = vunpack.c.l.b16 %v413
      %v1414 = vunpack.c.l.b16 %v414
      %v1415 = vunpack.c.l.b16 %v415
      %v1416 = vunpack.c.l.b16 %v416
      %v1417 = vunpack.c.l.b16 %v417
      %v1418 = vunpack.c.l.b16 %v418
      %v1419 = vunpack.c.l.b16 %v419
      %v1420 = vunpack.c.l.b16 %v420
      %v1421 = vunpack.c.l.b16 %v421
      %v1422 = vunpack.c.l.b16 %v422
      %v1423 = vunpack.c.l.b16 %v423
      %v1424 = vunpack.c.l.b16 %v424
      %v1425 = vunpack.c.l.b16 %v425
      %v1426 = vunpack.c.l.b16 %v426
      %v1427 = vunpack.c.l.b16 %v427
      %v1428 = vunpack.c.l.b16 %v428
      %v1429 = vunpack.c.l.b16 %v429
      %v1430 = vunpack.c.l.b16 %v430
      %v1431 = vunpack.c.l.b16 %v431
      %v1432 = vunpack.c.l.b16 %v432
      %v1433 = vunpack.c.l.b16 %v433
      %v1434 = vunpack.c.l.b16 %v434
      %v1435 = vunpack.c.l.b16 %v435
      %v1436 = vunpack.c.l.b16 %v436
      %v1437 = vunpack.c.l.b16 %v437
      %v1438 = vunpack.c.l.b16 %v438
      %v1439 = vunpack.c.l.b16 %v439
      %v1440 = vunpack.c.l.b16 %v440
      %v1441 = vunpack.c.l.b16 %v441
      %v1442 = vunpack.c.l.b16 %v442
      %v1443 = vunpack.c.l.b16 %v443
      %v1444 = vunpack.c.l.b16 %v444
      %v1445 = vunpack.c.l.b16 %v445
      %v1446 = vunpack.c.l.b16 %v446
      %v1447 = vunpack.c.l.b16 %v447
      %v1448 = vunpack.c.l.b16 %v448
      %v1449 = vunpack.c.l.b16 %v449
      %v1450 = vunpack.c.l.b16 %v450
      %v1451 = vunpack.c.l.b16 %v451
      %v1452 = vunpack.c.l.b16 %v452
      %v1453 = vunpack.c.l.b16 %v453
      %v1454 = vunpack.c.l.b16 %v454
      %v1455 = vunpack.c.l.b16 %v455
      %v1456 = vunpack.c.l.b16 %v456
      %v1457 = vunpack.c.l.b16 %v457
      %v1458 = vunpack.c.l.b16 %v458
      %v1459 = vunpack.c.l.b16 %v459
      %v1460 = vunpack.c.l.b16 %v460
      %v1461 = vunpack.c.l.b16 %v461
      %v1462 = vunpack.c.l.b16 %v462
      %v1463 = vunpack.c.l.b16 %v463
      %v1464 = vunpack.c.l.b16 %v464
      %v1465 = vunpack.c.l.b16 %v465
      %v1466 = vunpack.c.l.b16 %v466
      %v1467 = vunpack.c.l.b16 %v467
      %v1468 = vunpack.c.l.b16 %v468
      %v1469 = vunpack.c.l.b16 %v469
      %v1470 = vunpack.c.l.b16 %v470
      %v1471 = vunpack.c.l.b16 %v471
      %v1472 = vunpack.c.l.b16 %v472
      %v1473 = vunpack.c.l.b16 %v473
      %v1474 = vunpack.c.l.b16 %v474
      %v1475 = vunpack.c.l.b16 %v475
      %v1476 = vunpack.c.l.b16 %v476
      %v1477 = vunpack.c.l.b16 %v477
      %v1478 = vunpack.c.l.b16 %v478
      %v1479 = vunpack.c.l.b16 %v479
      %v1480 = vunpack.c.l.b16 %v480
      %v1481 = vunpack.c.l.b16 %v481
      %v1482 = vunpack.c.l.b16 %v482
      %v1483 = vunpack.c.l.b16 %v483
      %v1484 = vunpack.c.l.b16 %v484
      %v1485 = vunpack.c.l.b16 %v485
      %v1486 = vunpack.c.l.b16 %v486
      %v1487 = vunpack.c.l.b16 %v487
      %v1488 = vunpack.c.l.b16 %v488
      %v1489 = vunpack.c.l.b16 %v489
      %v1490 = vunpack.c.l.b16 %v490
      %v1491 = vunpack.c.l.b16 %v491
      %v1492 = vunpack.c.l.b16 %v492
      %v1493 = vunpack.c.l.b16 %v493
      %v1494 = vunpack.c.l.b16 %v494
      %v1495 = vunpack.c.l.b16 %v495
      %v1496 = vunpack.c.l.b16 %v496
      %v1497 = vunpack.c.l.b16 %v497
      %v1498 = vunpack.c.l.b16 %v498
      %v1499 = vunpack.c.l.b16 %v499
      %v1500 = vunpack.c.l.b16 %v500
      %v1501 = vunpack.c.l.b16 %v501
      %v1502 = vunpack.c.l.b16 %v502
      %v1503 = vunpack.c.l.b16 %v503
      %v1504 = vunpack.c.l.b16 %v504
      %v1505 = vunpack.c.l.b16 %v505
      %v1506 = vunpack.c.l.b16 %v506
      %v1507 = vunpack.c.l.b16 %v507
      %v1508 = vunpack.c.l.b16 %v508
      %v1509 = vunpack.c.l.b16 %v509
      %v1510 = vunpack.c.l.b16 %v510
      %v1511 = vunpack.c.l.b16 %v511
      %v1512 = vunpack.c.l.b16 %v512
      %v1513 = vunpack.c.l.b16 %v513
      %v1514 = vunpack.c.l.b16 %v514
      %v1515 = vunpack.c.l.b16 %v515
      %v1516 = vunpack.c.l.b16 %v516
      %v1517 = vunpack.c.l.b16 %v517
      %v1518 = vunpack.c.l.b16 %v518
      %v1519 = vunpack.c.l.b16 %v519
      %v1520 = vunpack.c.l.b16 %v520
      %v1521 = vunpack.c.l.b16 %v521
      %v1522 = vunpack.c.l.b16 %v522
      %v1523 = vunpack.c.l.b16 %v523
      %v1524 = vunpack.c.l.b16 %v524
      %v1525 = vunpack.c.l.b16 %v525
      %v1526 = vunpack.c.l.b16 %v526
      %v1527 = vunpack.c.l.b16 %v527
      %v1528 = vunpack.c.l.b16 %v528
      %v1529 = vunpack.c.l.b16 %v529
      %v1530 = vunpack.c.l.b16 %v530
      %v1531 = vunpack.c.l.b16 %v531
      %v1532 = vunpack.c.l.b16 %v532
      %v1533 = vunpack.c.l.b16 %v533
      %v1534 = vunpack.c.l.b16 %v534
      %v1535 = vunpack.c.l.b16 %v535
      %v1536 = vunpack.c.l.b16 %v536
      %v1537 = vunpack.c.l.b16 %v537
      %v1538 = vunpack.c.l.b16 %v538
      %v1539 = vunpack.c.l.b16 %v539
      %v1540 = vunpack.c.l.b16 %v540
      %v1541 = vunpack.c.l.b16 %v541
      %v1542 = vunpack.c.l.b16 %v542
      %v1543 = vunpack.c.l.b16 %v543
      %v1544 = vunpack.c.l.b16 %v544
      %v1545 = vunpack.c.l.b16 %v545
      %v1546 = vunpack.c.l.b16 %v546
      %v1547 = vunpack.c.l.b16 %v547
      %v1548 = vunpack.c.l.b16 %v548
      %v1549 = vunpack.c.l.b16 %v549
      %v1550 = vunpack.c.l.b16 %v550
      %v1551 = vunpack.c.l.b16 %v551
      %v1552 = vunpack.c.l.b16 %v552
      %v1553 = vunpack.c.l.b16 %v553
      %v1554 = vunpack.c.l.b16 %v554
      %v1555 = vunpack.c.l.b16 %v555
      %v1556 = vunpack.c.l.b16 %v556
      %v1557 = vunpack.c.l.b16 %v557
      %v1558 = vunpack.c.l.b16 %v558
      %v1559 = vunpack.c.l.b16 %v559
      %v1560 = vunpack.c.l.b16 %v560
      %v1561 = vunpack.c.l.b16 %v561
      %v1562 = vunpack.c.l.b16 %v562
      %v1563 = vunpack.c.l.b16 %v563
      %v1564 = vunpack.c.l.b16 %v564
      %v1565 = vunpack.c.l.b16 %v565
      %v1566 = vunpack.c.l.b16 %v566
      %v1567 = vunpack.c.l.b16 %v567
      %v1568 = vunpack.c.l.b16 %v568
      %v1569 = vunpack.c.l.b16 %v569
      %v1570 = vunpack.c.l.b16 %v570
      %v1571 = vunpack.c.l.b16 %v571
      %v1572 = vunpack.c.l.b16 %v572
      %v1573 = vunpack.c.l.b16 %v573
      %v1574 = vunpack.c.l.b16 %v574
      %v1575 = vunpack.c.l.b16 %v575
      %v1576 = vunpack.c.l.b16 %v576
      %v1577 = vunpack.c.l.b16 %v577
      %v1578 = vunpack.c.l.b16 %v578
      %v1579 = vunpack.c.l.b16 %v579
      %v1580 = vunpack.c.l.b16 %v580
      %v1581 = vunpack.c.l.b16 %v581
      %v1582 = vunpack.c.l.b16 %v582
      %v1583 = vunpack.c.l.b16 %v583
      %v1584 = vunpack.c.l.b16 %v584
      %v1585 = vunpack.c.l.b16 %v585
      %v1586 = vunpack.c.l.b16 %v586
      %v1587 = vunpack.c.l.b16 %v587
      %v1588 = vunpack.c.l.b16 %v588
      %v1589 = vunpack.c.l.b16 %v589
      %v1590 = vunpack.c.l.b16 %v590
      %v1591 = vunpack.c.l.b16 %v591
      %v1592 = vunpack.c.l.b16 %v592
      %v1593 = vunpack.c.l.b16 %v593
      %v1594 = vunpack.c.l.b16 %v594
      %v1595 = vunpack.c.l.b16 %v595
      %v1596 = vunpack.c.l.b16 %v596
      %v1597 = vunpack.c.l.b16 %v597
      %v1598 = vunpack.c.l.b16 %v598
      %v1599 = vunpack.c.l.b16 %v599
      %v1600 = vunpack.c.l.b16 %v600
      %v1601 = vunpack.c.l.b16 %v601
      %v1602 = vunpack.c.l.b16 %v602
      %v1603 = vunpack.c.l.b16 %v603
      %v1604 = vunpack.c.l.b16 %v604
      %v1605 = vunpack.c.l.b16 %v605
      %v1606 = vunpack.c.l.b16 %v606
      %v1607 = vunpack.c.l.b16 %v607
      %v1608 = vunpack.c.l.b16 %v608
      %v1609 = vunpack.c.l.b16 %v609
      %v1610 = vunpack.c.l.b16 %v610
      %v1611 = vunpack.c.l.b16 %v611
      %v1612 = vunpack.c.l.b16 %v612
      %v1613 = vunpack.c.l.b16 %v613
      %v1614 = vunpack.c.l.b16 %v614
      %v1615 = vunpack.c.l.b16 %v615
      %v1616 = vunpack.c.l.b16 %v616
      %v1617 = vunpack.c.l.b16 %v617
      %v1618 = vunpack.c.l.b16 %v618
      %v1619 = vunpack.c.l.b16 %v619
      %v1620 = vunpack.c.l.b16 %v620
      %v1621 = vunpack.c.l.b16 %v621
      %v1622 = vunpack.c.l.b16 %v622
      %v1623 = vunpack.c.l.b16 %v623
      %v1624 = vunpack.c.l.b16 %v624
      %v1625 = vunpack.c.l.b16 %v625
      %v1626 = vunpack.c.l.b16 %v626
      %v1627 = vunpack.c.l.b16 %v627
      %v1628 = vunpack.c.l.b16 %v628
      %v1629 = vunpack.c.l.b16 %v629
      %v1630 = vunpack.c.l.b16 %v630
      %v1631 = vunpack.c.l.b16 %v631
      %v1632 = vunpack.c.l.b16 %v632
      %v1633 = vunpack.c.l.b16 %v633
      %v1634 = vunpack.c.l.b16 %v634
      %v1635 = vunpack.c.l.b16 %v635
      %v1636 = vunpack.c.l.b16 %v636
      %v1637 = vunpack.c.l.b16 %v637
      %v1638 = vunpack.c.l.b16 %v638
      %v1639 = vunpack.c.l.b16 %v639
      %v1640 = vunpack.c.l.b16 %v640
      %v1641 = vunpack.c.l.b16 %v641
      %v1642 = vunpack.c.l.b16 %v642
      %v1643 = vunpack.c.l.b16 %v643
      %v1644 = vunpack.c.l.b16 %v644
      %v1645 = vunpack.c.l.b16 %v645
      %v1646 = vunpack.c.l.b16 %v646
      %v1647 = vunpack.c.l.b16 %v647
      %v1648 = vunpack.c.l.b16 %v648
      %v1649 = vunpack.c.l.b16 %v649
      %v1650 = vunpack.c.l.b16 %v650
      %v1651 = vunpack.c.l.b16 %v651
      %v1652 = vunpack.c.l.b16 %v652
      %v1653 = vunpack.c.l.b16 %v653
      %v1654 = vunpack.c.l.b16 %v654
      %v1655 = vunpack.c.l.b16 %v655
      %v1656 = vunpack.c.l.b16 %v656
      %v1657 = vunpack.c.l.b16 %v657
      %v1658 = vunpack.c.l.b16 %v658
      %v1659 = vunpack.c.l.b16 %v659
      %v1660 = vunpack.c.l.b16 %v660
      %v1661 = vunpack.c.l.b16 %v661
      %v1662 = vunpack.c.l.b16 %v662
      %v1663 = vunpack.c.l.b16 %v663
      %v1664 = vunpack.c.l.b16 %v664
      %v1665 = vunpack.c.l.b16 %v665
      %v1666 = vunpack.c.l.b16 %v666
      %v1667 = vunpack.c.l.b16 %v667
      %v1668 = vunpack.c.l.b16 %v668
      %v1669 = vunpack.c.l.b16 %v669
      %v1670 = vunpack.c.l.b16 %v670
      %v1671 = vunpack.c.l.b16 %v671
      %v1672 = vunpack.c.l.b16 %v672
      %v1673 = vunpack.c.l.b16 %v673
      %v1674 = vunpack.c.l.b16 %v674
      %v1675 = vunpack.c.l.b16 %v675
      %v1676 = vunpack.c.l.b16 %v676
      %v1677 = vunpack.c.l.b16 %v677
      %v1678 = vunpack.c.l.b16 %v678
      %v1679 = vunpack.c.l.b16 %v679
      %v1680 = vunpack.c.l.b16 %v680
      %v1681 = vunpack.c.l.b16 %v681
      %v1682 = vunpack.c.l.b16 %v682
      %v1683 = vunpack.c.l.b16 %v683
      %v1684 = vunpack.c.l.b16 %v684
      %v1685 = vunpack.c.l.b16 %v685
      %v1686 = vpack.c.b16 %v1255, %v1254
      %v1687 = vpack.c.b16 %v1257, %v1256
      %v1688 = vpack.c.b16 %v1259, %v1258
      %v1689 = vpack.c.b16 %v1261, %v1260
      %v1690 = vpack.c.b16 %v1263, %v1262
      %v1691 = vpack.c.b16 %v1265, %v1264
      %v1692 = vpack.c.b16 %v1267, %v1266
      %v1693 = vpack.c.b16 %v1269, %v1268
      %v1694 = vpack.c.b16 %v1271, %v1270
      %v1695 = vpack.c.b16 %v1273, %v1272
      %v1696 = vpack.c.b16 %v1275, %v1274
      %v1697 = vpack.c.b16 %v1277, %v1276
      %v1698 = vpack.c.b16 %v1279, %v1278
      %v1699 = vpack.c.b16 %v1281, %v1280
      %v1700 = vpack.c.b16 %v1283, %v1282
      %v1701 = vpack.c.b16 %v1285, %v1284
      %v1702 = vpack.c.b16 %v1287, %v1286
      %v1703 = vpack.c.b16 %v1289, %v1288
      %v1704 = vpack.c.b16 %v1291, %v1290
      %v1705 = vpack.c.b16 %v1293, %v1292
      %v1706 = vpack.c.b16 %v1295, %v1294
      %v1707 = vpack.c.b16 %v1297, %v1296
      %v1708 = vpack.c.b16 %v1299, %v1298
      %v1709 = vpack.c.b16 %v1301, %v1300
      %v1710 = vpack.c.b16 %v1303, %v1302
      %v1711 = vpack.c.b16 %v1305, %v1304
      %v1712 = vpack.c.b16 %v1307, %v1306
      %v1713 = vpack.c.b16 %v1309, %v1308
      %v1714 = vpack.c.b16 %v1311, %v1310
      %v1715 = vpack.c.b16 %v1313, %v1312
      %v1716 = vpack.c.b16 %v1315, %v1314
      %v1717 = vpack.c.b16 %v1317, %v1316
      %v1718 = vpack.c.b16 %v1319, %v1318
      %v1719 = vpack.c.b16 %v1321, %v1320
      %v1720 = vpack.c.b16 %v1323, %v1322
      %v1721 = vpack.c.b16 %v1325, %v1324
      %v1722 = vpack.c.b16 %v1327, %v1326
      %v1723 = vpack.c.b16 %v1329, %v1328
      %v1724 = vpack.c.b16 %v1331, %v1330
      %v1725 = vpack.c.b16 %v1333, %v1332
      %v1726 = vpack.c.b16 %v1335, %v1334
      %v1727 = vpack.c.b16 %v1337, %v1336
      %v1728 = vpack.c.b16 %v1339, %v1338
      %v1729 = vpack.c.b16 %v1341, %v1340
      %v1730 = vpack.c.b16 %v1343, %v1342
      %v1731 = vpack.c.b16 %v1345, %v1344
      %v1732 = vpack.c.b16 %v1347, %v1346
      %v1733 = vpack.c.b16 %v1349, %v1348
      %v1734 = vpack.c.b16 %v1351, %v1350
      %v1735 = vpack.c.b16 %v1353, %v1352
      %v1736 = vpack.c.b16 %v1355, %v1354
      %v1737 = vpack.c.b16 %v1357, %v1356
      %v1738 = vpack.c.b16 %v1359, %v1358
      %v1739 = vpack.c.b16 %v1361, %v1360
      %v1740 = vpack.c.b16 %v1363, %v1362
      %v1741 = vpack.c.b16 %v1365, %v1364
      %v1742 = vpack.c.b16 %v1367, %v1366
      %v1743 = vpack.c.b16 %v1369, %v1368
      %v1744 = vpack.c.b16 %v1371, %v1370
      %v1745 = vpack.c.b16 %v1373, %v1372
      %v1746 = vpack.c.b16 %v1375, %v1374
      %v1747 = vpack.c.b16 %v1377, %v1376
      %v1748 = vpack.c.b16 %v1379, %v1378
      %v1749 = vpack.c.b16 %v1381, %v1380
      %v1750 = vpack.c.b16 %v1383, %v1382
      %v1751 = vpack.c.b16 %v1385, %v1384
      %v1752 = vpack.c.b16 %v1387, %v1386
      %v1753 = vpack.c.b16 %v1389, %v1388
      %v1754 = vpack.c.b16 %v1391, %v1390
      %v1755 = vpack.c.b16 %v1393, %v1392
      %v1756 = vpack.c.b16 %v1395, %v1394
      %v1757 = vpack.c.b16 %v1397, %v1396
      %v1758 = vpack.c.b16 %v1399, %v1398
      %v1759 = vpack.c.b16 %v1401, %v1400
      %v1760 = vpack.c.b16 %v1403, %v1402
      %v1761 = vpack.c.b16 %v1405, %v1404
      %v1762 = vpack.c.b16 %v1407, %v1406
      %v1763 = vpack.c.b16 %v1409, %v1408
      %v1764 = vpack.c.b16 %v1411, %v1410
      %v1765 = vpack.c.b16 %v1413, %v1412
      %v1766 = vpack.c.b16 %v1415, %v1414
      %v1767 = vpack.c.b16 %v1417, %v1416
      %v1768 = vpack.c.b16 %v1419, %v1418
      %v1769 = vpack.c.b16 %v1421, %v1420
      %v1770 = vpack.c.b16 %v1423, %v1422
      %v1771 = vpack.c.b16 %v1425, %v1424
      %v1772 = vpack.c.b16 %v1427, %v1426
      %v1773 = vpack.c.b16 %v1429, %v1428
      %v1774 = vpack.c.b16 %v1431, %v1430
      %v1775 = vpack.c.b16 %v1433, %v1432
      %v1776 = vpack.c.b16 %v1435, %v1434
      %v1777 = vpack.c.b16 %v1437, %v1436
      %v1778 = vpack.c.b16 %v1439, %v1438
      %v1779 = vpack.c.b16 %v1441, %v1440
      %v1780 = vpack.c.b16 %v1443, %v1442
      %v1781 = vpack.c.b16 %v1445, %v1444
      %v1782 = vpack.c.b16 %v1447, %v1446
      %v1783 = vpack.c.b16 %v1449, %v1448
      %v1784 = vpack.c.b16 %v1451, %v1450
      %v1785 = vpack.c.b16 %v1453, %v1452
      %v1786 = vpack.c.b16 %v1455, %v1454
      %v1787 = vpack.c.b16 %v1457, %v1456
      %v1788 = vpack.c.b16 %v1459, %v1458
      %v1789 = vpack.c.b16 %v1461, %v1460
      %v1790 = vpack.c.b16 %v1463, %v1462
      %v1791 = vpack.c.b16 %v1465, %v1464
      %v1792 = vpack.c.b16 %v1467, %v1466
      %v1793 = vpack.c.b16 %v1469, %v1468
      %v1794 = vpack.c.b16 %v1471, %v1470
      %v1795 = vpack.c.b16 %v1473, %v1472
      %v1796 = vpack.c.b16 %v1475, %v1474
      %v1797 = vpack.c.b16 %v1477, %v1476
      %v1798 = vpack.c.b16 %v1479, %v1478
      %v1799 = vpack.c.b16 %v1481, %v1480
      %v1800 = vpack.c.b16 %v1483, %v1482
      %v1801 = vpack.c.b16 %v1485, %v1484
      %v1802 = vpack.c.b16 %v1487, %v1486
      %v1803 = vpack.c.b16 %v1489, %v1488
      %v1804 = vpack.c.b16 %v1491, %v1490
      %v1805 = vpack.c.b16 %v1493, %v1492
      %v1806 = vpack.c.b16 %v1495, %v1494
      %v1807 = vpack.c.b16 %v1497, %v1496
      %v1808 = vpack.c.b16 %v1499, %v1498
      %v1809 = vpack.c.b16 %v1501, %v1500
      %v1810 = vpack.c.b16 %v1503, %v1502
      %v1811 = vpack.c.b16 %v1505, %v1504
      %v1812 = vpack.c.b16 %v1507, %v1506
      %v1813 = vpack.c.b16 %v1509, %v1508
      %v1814 = vpack.c.b16 %v1511, %v1510
      %v1815 = vpack.c.b16 %v1513, %v1512
      %v1816 = vpack.c.b16 %v1515, %v1514
      %v1817 = vpack.c.b16 %v1517, %v1516
      %v1818 = vpack.c.b16 %v1519, %v1518
      %v1819 = vpack.c.b16 %v1521, %v1520
      %v1820 = vpack.c.b16 %v1523, %v1522
      %v1821 = vpack.c.b16 %v1525, %v1524
      %v1822 = vpack.c.b16 %v1527, %v1526
      %v1823 = vpack.c.b16 %v1529, %v1528
      %v1824 = vpack.c.b16 %v1531, %v1530
      %v1825 = vpack.c.b16 %v1533, %v1532
      %v1826 = vpack.c.b16 %v1535, %v1534
      %v1827 = vpack.c.b16 %v1537, %v1536
      %v1828 = vpack.c.b16 %v1539, %v1538
      %v1829 = vpack.c.b16 %v1541, %v1540
      %v1830 = vpack.c.b16 %v1543, %v1542
      %v1831 = vpack.c.b16 %v1545, %v1544
      %v1832 = vpack.c.b16 %v1547, %v1546
      %v1833 = vpack.c.b16 %v1549, %v1548
      %v1834 = vpack.c.b16 %v1551, %v1550
      %v1835 = vpack.c.b16 %v1553, %v1552
      %v1836 = vpack.c.b16 %v1555, %v1554
      %v1837 = vpack.c.b16 %v1557, %v1556
      %v1838 = vpack.c.b16 %v1559, %v1558
      %v1839 = vpack.c.b16 %v1561, %v1560
      %v1840 = vpack.c.b16 %v1563, %v1562
      %v1841 = vpack.c.b16 %v1565, %v1564
      %v1842 = vpack.c.b16 %v1567, %v1566
      %v1843 = vpack.c.b16 %v1569, %v1568
      %v1844 = vpack.c.b16 %v1571, %v1570
      %v1845 = vpack.c.b16 %v1573, %v1572
      %v1846 = vpack.c.b16 %v1575, %v1574
      %v1847 = vpack.c.b16 %v1577, %v1576
      %v1848 = vpack.c.b16 %v1579, %v1578
      %v1849 = vpack.c.b16 %v1581, %v1580
      %v1850 = vpack.c.b16 %v1583, %v1582
      %v1851 = vpack.c.b16 %v1585, %v1584
      %v1852 = vpack.c.b16 %v1587, %v1586
      %v1853 = vpack.c.b16 %v1589, %v1588
      %v1854 = vpack.c.b16 %v1591, %v1590
      %v1855 = vpack.c.b16 %v1593, %v1592
      %v1856 = vpack.c.b16 %v1595, %v1594
      %v1857 = vpack.c.b16 %v1597, %v1596
      %v1858 = vpack.c.b16 %v1599, %v1598
      %v1859 = vpack.c.b16 %v1601, %v1600
      %v1860 = vpack.c.b16 %v1603, %v1602
      %v1861 = vpack.c.b16 %v1605, %v1604
      %v1862 = vpack.c.b16 %v1607, %v1606
      %v1863 = vpack.c.b16 %v1609, %v1608
      %v1864 = vpack.c.b16 %v1611, %v1610
      %v1865 = vpack.c.b16 %v1613, %v1612
      %v1866 = vpack.c.b16 %v1615, %v1614
      %v1867 = vpack.c.b16 %v1617, %v1616
      %v1868 = vpack.c.b16 %v1619, %v1618
      %v1869 = vpack.c.b16 %v1621, %v1620
      %v1870 = vpack.c.b16 %v1623, %v1622
      %v1871 = vpack.c.b16 %v1625, %v1624
      %v1872 = vpack.c.b16 %v1627, %v1626
      %v1873 = vpack.c.b16 %v1629, %v1628
      %v1874 = vpack.c.b16 %v1631, %v1630
      %v1875 = vpack.c.b16 %v1633, %v1632
      %v1876 = vpack.c.b16 %v1635, %v1634
      %v1877 = vpack.c.b16 %v1637, %v1636
      %v1878 = vpack.c.b16 %v1639, %v1638
      %v1879 = vpack.c.b16 %v1641, %v1640
      %v1880 = vpack.c.b16 %v1643, %v1642
      %v1881 = vpack.c.b16 %v1645, %v1644
      %v1882 = vpack.c.b16 %v1647, %v1646
      %v1883 = vpack.c.b16 %v1649, %v1648
      %v1884 = vpack.c.b16 %v1651, %v1650
      %v1885 = vpack.c.b16 %v1653, %v1652
      %v1886 = vpack.c.b16 %v1655, %v1654
      %v1887 = vpack.c.b16 %v1657, %v1656
      %v1888 = vpack.c.b16 %v1659, %v1658
      %v1889 = vpack.c.b16 %v1661, %v1660
      %v1890 = vpack.c.b16 %v1663, %v1662
      %v1891 = vpack.c.b16 %v1665, %v1664
      %v1892 = vpack.c.b16 %v1667, %v1666
      %v1893 = vpack.c.b16 %v1669, %v1668
      %v1894 = vpack.c.b16 %v1671, %v1670
      %v1895 = vpack.c.b16 %v1673, %v1672
      %v1896 = vpack.c.b16 %v1675, %v1674
      %v1897 = vpack.c.b16 %v1677, %v1676
      %v1898 = vpack.c.b16 %v1679, %v1678
      %v1899 = vpack.c.b16 %v1681, %v1680
      %v1900 = vpack.c.b16 %v1683, %v1682
      %v1901 = vpack.c.b16 %v1685, %v1684
      %2118 = vmatprep.subr.bf16.mxu0 0
      %2119 = vmatpush1.bf16.msra.mxu0 %v1693
      %2120 = vmatprep.subr.bf16.mxu0 0
      %2121 = vmatpush1.bf16.msra.mxu0 %v1692
      %2122 = vmatprep.subr.bf16.mxu0 0
      %2123 = vmatpush1.bf16.msra.mxu0 %v1691
      %2124 = vmatprep.subr.bf16.mxu0 0
      %2125 = vmatpush1.bf16.msra.mxu0 %v1690
      %2126 = vmatprep.subr.bf16.mxu0 0
      %2127 = vmatpush1.bf16.msra.mxu0 %v1689
      %2128 = vmatprep.subr.bf16.mxu0 0
      %2129 = vmatpush1.bf16.msra.mxu0 %v1688
      %2130 = vmatprep.subr.bf16.mxu0 0
      %2131 = vmatpush1.bf16.msra.mxu0 %v1687
      %2132 = vmatprep.subr.bf16.mxu0 0
      %2133 = vmatpush1.bf16.msra.mxu0 %v1686
      %2134 = vmatprep.subr.bf16.mxu0 0
      %2135 = vmatpush2.bf16.msra.mxu0 %v1701
      %2136 = vmatprep.subr.bf16.mxu0 0
      %2137 = vmatpush2.bf16.msra.mxu0 %v1700
      %2138 = vmatprep.subr.bf16.mxu0 0
      %2139 = vmatpush2.bf16.msra.mxu0 %v1699
      %2140 = vmatprep.subr.bf16.mxu0 0
      %2141 = vmatpush2.bf16.msra.mxu0 %v1698
      %2142 = vmatprep.subr.bf16.mxu0 0
      %2143 = vmatpush2.bf16.msra.mxu0 %v1697
      %2144 = vmatprep.subr.bf16.mxu0 0
      %2145 = vmatpush2.bf16.msra.mxu0 %v1696
      %2146 = vmatprep.subr.bf16.mxu0 0
      %2147 = vmatpush2.bf16.msra.mxu0 %v1695
      %2148 = vmatprep.subr.bf16.mxu0 0
      %2149 = vmatpush2.bf16.msra.mxu0 %v1694
      %2150 = vmatprep.mubr.bf16.mxu0 %v769
      %2151 = vmatmul.mubr.bf16.gmra.mxu0 %v768
      %v2152 = vpop.f32.mrf.mxu0
      %v2153 = vadd.f32 0.0, %v2152
      %v2154 = vpop.f32.mrf.mxu0
      %v2155 = vpop.f32.mrf.mxu0
      %v2156 = vadd.f32 0.0, %v2155
      %v2157 = vpop.f32.mrf.mxu0
      %2158 = vdwg.mxu0
      %2159 = vmatprep.subr.bf16.mxu0 0
      %2160 = vmatpush1.bf16.msra.mxu0 %v1709
      %2161 = vmatprep.subr.bf16.mxu0 0
      %2162 = vmatpush1.bf16.msra.mxu0 %v1708
      %2163 = vmatprep.subr.bf16.mxu0 0
      %2164 = vmatpush1.bf16.msra.mxu0 %v1707
      %2165 = vmatprep.subr.bf16.mxu0 0
      %2166 = vmatpush1.bf16.msra.mxu0 %v1706
      %2167 = vmatprep.subr.bf16.mxu0 0
      %2168 = vmatpush1.bf16.msra.mxu0 %v1705
      %2169 = vmatprep.subr.bf16.mxu0 0
      %2170 = vmatpush1.bf16.msra.mxu0 %v1704
      %2171 = vmatprep.subr.bf16.mxu0 0
      %2172 = vmatpush1.bf16.msra.mxu0 %v1703
      %2173 = vmatprep.subr.bf16.mxu0 0
      %2174 = vmatpush1.bf16.msra.mxu0 %v1702
      %2175 = vmatprep.subr.bf16.mxu0 0
      %2176 = vmatpush2.bf16.msra.mxu0 %v1717
      %2177 = vmatprep.subr.bf16.mxu0 0
      %2178 = vmatpush2.bf16.msra.mxu0 %v1716
      %2179 = vmatprep.subr.bf16.mxu0 0
      %2180 = vmatpush2.bf16.msra.mxu0 %v1715
      %2181 = vmatprep.subr.bf16.mxu0 0
      %2182 = vmatpush2.bf16.msra.mxu0 %v1714
      %2183 = vmatprep.subr.bf16.mxu0 0
      %2184 = vmatpush2.bf16.msra.mxu0 %v1713
      %2185 = vmatprep.subr.bf16.mxu0 0
      %2186 = vmatpush2.bf16.msra.mxu0 %v1712
      %2187 = vmatprep.subr.bf16.mxu0 0
      %2188 = vmatpush2.bf16.msra.mxu0 %v1711
      %2189 = vmatprep.subr.bf16.mxu0 0
      %2190 = vmatpush2.bf16.msra.mxu0 %v1710
      %2191 = vmatprep.mubr.bf16.mxu0 %v771
      %2192 = vmatmul.mubr.bf16.gmra.mxu0 %v770
      %v2193 = vpop.f32.mrf.mxu0
      %v2194 = vadd.f32 %v2153, %v2193
      %v2195 = vpop.f32.mrf.mxu0
      %v2196 = vpop.f32.mrf.mxu0
      %v2197 = vadd.f32 %v2156, %v2196
      %v2198 = vpop.f32.mrf.mxu0
      %2199 = vdwg.mxu0
      %2200 = vmatprep.subr.bf16.mxu0 0
      %2201 = vmatpush1.bf16.msra.mxu0 %v1725
      %2202 = vmatprep.subr.bf16.mxu0 0
      %2203 = vmatpush1.bf16.msra.mxu0 %v1724
      %2204 = vmatprep.subr.bf16.mxu0 0
      %2205 = vmatpush1.bf16.msra.mxu0 %v1723
      %2206 = vmatprep.subr.bf16.mxu0 0
      %2207 = vmatpush1.bf16.msra.mxu0 %v1722
      %2208 = vmatprep.subr.bf16.mxu0 0
      %2209 = vmatpush1.bf16.msra.mxu0 %v1721
      %2210 = vmatprep.subr.bf16.mxu0 0
      %2211 = vmatpush1.bf16.msra.mxu0 %v1720
      %2212 = vmatprep.subr.bf16.mxu0 0
      %2213 = vmatpush1.bf16.msra.mxu0 %v1719
      %2214 = vmatprep.subr.bf16.mxu0 0
      %2215 = vmatpush1.bf16.msra.mxu0 %v1718
      %2216 = vmatprep.subr.bf16.mxu0 0
      %2217 = vmatpush2.bf16.msra.mxu0 %v1733
      %2218 = vmatprep.subr.bf16.mxu0 0
      %2219 = vmatpush2.bf16.msra.mxu0 %v1732
      %2220 = vmatprep.subr.bf16.mxu0 0
      %2221 = vmatpush2.bf16.msra.mxu0 %v1731
      %2222 = vmatprep.subr.bf16.mxu0 0
      %2223 = vmatpush2.bf16.msra.mxu0 %v1730
      %2224 = vmatprep.subr.bf16.mxu0 0
      %2225 = vmatpush2.bf16.msra.mxu0 %v1729
      %2226 = vmatprep.subr.bf16.mxu0 0
      %2227 = vmatpush2.bf16.msra.mxu0 %v1728
      %2228 = vmatprep.subr.bf16.mxu0 0
      %2229 = vmatpush2.bf16.msra.mxu0 %v1727
      %2230 = vmatprep.subr.bf16.mxu0 0
      %2231 = vmatpush2.bf16.msra.mxu0 %v1726
      %2232 = vmatprep.mubr.bf16.mxu0 %v773
      %2233 = vmatmul.mubr.bf16.gmra.mxu0 %v772
      %v2234 = vpop.f32.mrf.mxu0
      %v2235 = vadd.f32 %v2194, %v2234
      %v2236 = vpop.f32.mrf.mxu0
      %v2237 = vpop.f32.mrf.mxu0
      %v2238 = vadd.f32 %v2197, %v2237
      %v2239 = vpop.f32.mrf.mxu0
      %2240 = vdwg.mxu0
      %2241 = vmatprep.subr.bf16.mxu0 0
      %2242 = vmatpush1.bf16.msra.mxu0 %v1741
      %2243 = vmatprep.subr.bf16.mxu0 0
      %2244 = vmatpush1.bf16.msra.mxu0 %v1740
      %2245 = vmatprep.subr.bf16.mxu0 0
      %2246 = vmatpush1.bf16.msra.mxu0 %v1739
      %2247 = vmatprep.subr.bf16.mxu0 0
      %2248 = vmatpush1.bf16.msra.mxu0 %v1738
      %2249 = vmatprep.subr.bf16.mxu0 0
      %2250 = vmatpush1.bf16.msra.mxu0 %v1737
      %2251 = vmatprep.subr.bf16.mxu0 0
      %2252 = vmatpush1.bf16.msra.mxu0 %v1736
      %2253 = vmatprep.subr.bf16.mxu0 0
      %2254 = vmatpush1.bf16.msra.mxu0 %v1735
      %2255 = vmatprep.subr.bf16.mxu0 0
      %2256 = vmatpush1.bf16.msra.mxu0 %v1734
      %2257 = vmatprep.subr.bf16.mxu0 0
      %2258 = vmatpush2.bf16.msra.mxu0 %v1749
      %2259 = vmatprep.subr.bf16.mxu0 0
      %2260 = vmatpush2.bf16.msra.mxu0 %v1748
      %2261 = vmatprep.subr.bf16.mxu0 0
      %2262 = vmatpush2.bf16.msra.mxu0 %v1747
      %2263 = vmatprep.subr.bf16.mxu0 0
      %2264 = vmatpush2.bf16.msra.mxu0 %v1746
      %2265 = vmatprep.subr.bf16.mxu0 0
      %2266 = vmatpush2.bf16.msra.mxu0 %v1745
      %2267 = vmatprep.subr.bf16.mxu0 0
      %2268 = vmatpush2.bf16.msra.mxu0 %v1744
      %2269 = vmatprep.subr.bf16.mxu0 0
      %2270 = vmatpush2.bf16.msra.mxu0 %v1743
      %2271 = vmatprep.subr.bf16.mxu0 0
      %2272 = vmatpush2.bf16.msra.mxu0 %v1742
      %2273 = vmatprep.mubr.bf16.mxu0 %v775
      %2274 = vmatmul.mubr.bf16.gmra.mxu0 %v774
      %v2275 = vpop.f32.mrf.mxu0
      %v2276 = vadd.f32 %v2235, %v2275
      %v2277 = vpop.f32.mrf.mxu0
      %v2278 = vpop.f32.mrf.mxu0
      %v2279 = vadd.f32 %v2238, %v2278
      %v2280 = vpop.f32.mrf.mxu0
      %2281 = vdwg.mxu0
      %2282 = vmatprep.subr.bf16.mxu0 0
      %2283 = vmatpush1.bf16.msra.mxu0 %v1757
      %2284 = vmatprep.subr.bf16.mxu0 0
      %2285 = vmatpush1.bf16.msra.mxu0 %v1756
      %2286 = vmatprep.subr.bf16.mxu0 0
      %2287 = vmatpush1.bf16.msra.mxu0 %v1755
      %2288 = vmatprep.subr.bf16.mxu0 0
      %2289 = vmatpush1.bf16.msra.mxu0 %v1754
      %2290 = vmatprep.subr.bf16.mxu0 0
      %2291 = vmatpush1.bf16.msra.mxu0 %v1753
      %2292 = vmatprep.subr.bf16.mxu0 0
      %2293 = vmatpush1.bf16.msra.mxu0 %v1752
      %2294 = vmatprep.subr.bf16.mxu0 0
      %2295 = vmatpush1.bf16.msra.mxu0 %v1751
      %2296 = vmatprep.subr.bf16.mxu0 0
      %2297 = vmatpush1.bf16.msra.mxu0 %v1750
      %2298 = vmatprep.subr.bf16.mxu0 0
      %2299 = vmatpush2.bf16.msra.mxu0 %v1765
      %2300 = vmatprep.subr.bf16.mxu0 0
      %2301 = vmatpush2.bf16.msra.mxu0 %v1764
      %2302 = vmatprep.subr.bf16.mxu0 0
      %2303 = vmatpush2.bf16.msra.mxu0 %v1763
      %2304 = vmatprep.subr.bf16.mxu0 0
      %2305 = vmatpush2.bf16.msra.mxu0 %v1762
      %2306 = vmatprep.subr.bf16.mxu0 0
      %2307 = vmatpush2.bf16.msra.mxu0 %v1761
      %2308 = vmatprep.subr.bf16.mxu0 0
      %2309 = vmatpush2.bf16.msra.mxu0 %v1760
      %2310 = vmatprep.subr.bf16.mxu0 0
      %2311 = vmatpush2.bf16.msra.mxu0 %v1759
      %2312 = vmatprep.subr.bf16.mxu0 0
      %2313 = vmatpush2.bf16.msra.mxu0 %v1758
      %2314 = vmatprep.mubr.bf16.mxu0 %v777
      %2315 = vmatmul.mubr.bf16.gmra.mxu0 %v776
      %v2316 = vpop.f32.mrf.mxu0
      %v2317 = vadd.f32 %v2276, %v2316
      %v2318 = vpop.f32.mrf.mxu0
      %v2319 = vpop.f32.mrf.mxu0
      %v2320 = vadd.f32 %v2279, %v2319
      %v2321 = vpop.f32.mrf.mxu0
      %2322 = vdwg.mxu0
      %2323 = vmatprep.subr.bf16.mxu0 0
      %2324 = vmatpush1.bf16.msra.mxu0 %v1773
      %2325 = vmatprep.subr.bf16.mxu0 0
      %2326 = vmatpush1.bf16.msra.mxu0 %v1772
      %2327 = vmatprep.subr.bf16.mxu0 0
      %2328 = vmatpush1.bf16.msra.mxu0 %v1771
      %2329 = vmatprep.subr.bf16.mxu0 0
      %2330 = vmatpush1.bf16.msra.mxu0 %v1770
      %2331 = vmatprep.subr.bf16.mxu0 0
      %2332 = vmatpush1.bf16.msra.mxu0 %v1769
      %2333 = vmatprep.subr.bf16.mxu0 0
      %2334 = vmatpush1.bf16.msra.mxu0 %v1768
      %2335 = vmatprep.subr.bf16.mxu0 0
      %2336 = vmatpush1.bf16.msra.mxu0 %v1767
      %2337 = vmatprep.subr.bf16.mxu0 0
      %2338 = vmatpush1.bf16.msra.mxu0 %v1766
      %2339 = vmatprep.subr.bf16.mxu0 0
      %2340 = vmatpush2.bf16.msra.mxu0 %v1781
      %2341 = vmatprep.subr.bf16.mxu0 0
      %2342 = vmatpush2.bf16.msra.mxu0 %v1780
      %2343 = vmatprep.subr.bf16.mxu0 0
      %2344 = vmatpush2.bf16.msra.mxu0 %v1779
      %2345 = vmatprep.subr.bf16.mxu0 0
      %2346 = vmatpush2.bf16.msra.mxu0 %v1778
      %2347 = vmatprep.subr.bf16.mxu0 0
      %2348 = vmatpush2.bf16.msra.mxu0 %v1777
      %2349 = vmatprep.subr.bf16.mxu0 0
      %2350 = vmatpush2.bf16.msra.mxu0 %v1776
      %2351 = vmatprep.subr.bf16.mxu0 0
      %2352 = vmatpush2.bf16.msra.mxu0 %v1775
      %2353 = vmatprep.subr.bf16.mxu0 0
      %2354 = vmatpush2.bf16.msra.mxu0 %v1774
      %2355 = vmatprep.mubr.bf16.mxu0 %v779
      %2356 = vmatmul.mubr.bf16.gmra.mxu0 %v778
      %v2357 = vpop.f32.mrf.mxu0
      %v2358 = vadd.f32 %v2317, %v2357
      %v2359 = vpop.f32.mrf.mxu0
      %v2360 = vpop.f32.mrf.mxu0
      %v2361 = vadd.f32 %v2320, %v2360
      %v2362 = vpop.f32.mrf.mxu0
      %2363 = vdwg.mxu0
      %2364 = vmatprep.subr.bf16.mxu0 0
      %2365 = vmatpush1.bf16.msra.mxu0 %v1789
      %2366 = vmatprep.subr.bf16.mxu0 0
      %2367 = vmatpush1.bf16.msra.mxu0 %v1788
      %2368 = vmatprep.subr.bf16.mxu0 0
      %2369 = vmatpush1.bf16.msra.mxu0 %v1787
      %2370 = vmatprep.subr.bf16.mxu0 0
      %2371 = vmatpush1.bf16.msra.mxu0 %v1786
      %2372 = vmatprep.subr.bf16.mxu0 0
      %2373 = vmatpush1.bf16.msra.mxu0 %v1785
      %2374 = vmatprep.subr.bf16.mxu0 0
      %2375 = vmatpush1.bf16.msra.mxu0 %v1784
      %2376 = vmatprep.subr.bf16.mxu0 0
      %2377 = vmatpush1.bf16.msra.mxu0 %v1783
      %2378 = vmatprep.subr.bf16.mxu0 0
      %2379 = vmatpush1.bf16.msra.mxu0 %v1782
      %2380 = vmatprep.subr.bf16.mxu0 0
      %2381 = vmatpush2.bf16.msra.mxu0 %v1797
      %2382 = vmatprep.subr.bf16.mxu0 0
      %2383 = vmatpush2.bf16.msra.mxu0 %v1796
      %2384 = vmatprep.subr.bf16.mxu0 0
      %2385 = vmatpush2.bf16.msra.mxu0 %v1795
      %2386 = vmatprep.subr.bf16.mxu0 0
      %2387 = vmatpush2.bf16.msra.mxu0 %v1794
      %2388 = vmatprep.subr.bf16.mxu0 0
      %2389 = vmatpush2.bf16.msra.mxu0 %v1793
      %2390 = vmatprep.subr.bf16.mxu0 0
      %2391 = vmatpush2.bf16.msra.mxu0 %v1792
      %2392 = vmatprep.subr.bf16.mxu0 0
      %2393 = vmatpush2.bf16.msra.mxu0 %v1791
      %2394 = vmatprep.subr.bf16.mxu0 0
      %2395 = vmatpush2.bf16.msra.mxu0 %v1790
      %2396 = vmatprep.mubr.bf16.mxu0 %v781
      %2397 = vmatmul.mubr.bf16.gmra.mxu0 %v780
      %v2398 = vpop.f32.mrf.mxu0
      %v2399 = vadd.f32 %v2358, %v2398
      %v2400 = vpop.f32.mrf.mxu0
      %v2401 = vpop.f32.mrf.mxu0
      %v2402 = vadd.f32 %v2361, %v2401
      %v2403 = vpop.f32.mrf.mxu0
      %2404 = vdwg.mxu0
      %2405 = vmatprep.subr.bf16.mxu0 0
      %2406 = vmatpush1.bf16.msra.mxu0 %v1805
      %2407 = vmatprep.subr.bf16.mxu0 0
      %2408 = vmatpush1.bf16.msra.mxu0 %v1804
      %2409 = vmatprep.subr.bf16.mxu0 0
      %2410 = vmatpush1.bf16.msra.mxu0 %v1803
      %2411 = vmatprep.subr.bf16.mxu0 0
      %2412 = vmatpush1.bf16.msra.mxu0 %v1802
      %2413 = vmatprep.subr.bf16.mxu0 0
      %2414 = vmatpush1.bf16.msra.mxu0 %v1801
      %2415 = vmatprep.subr.bf16.mxu0 0
      %2416 = vmatpush1.bf16.msra.mxu0 %v1800
      %2417 = vmatprep.subr.bf16.mxu0 0
      %2418 = vmatpush1.bf16.msra.mxu0 %v1799
      %2419 = vmatprep.subr.bf16.mxu0 0
      %2420 = vmatpush1.bf16.msra.mxu0 %v1798
      %2421 = vmatprep.subr.bf16.mxu0 0
      %2422 = vmatpush2.bf16.msra.mxu0 %v1813
      %2423 = vmatprep.subr.bf16.mxu0 0
      %2424 = vmatpush2.bf16.msra.mxu0 %v1812
      %2425 = vmatprep.subr.bf16.mxu0 0
      %2426 = vmatpush2.bf16.msra.mxu0 %v1811
      %2427 = vmatprep.subr.bf16.mxu0 0
      %2428 = vmatpush2.bf16.msra.mxu0 %v1810
      %2429 = vmatprep.subr.bf16.mxu0 0
      %2430 = vmatpush2.bf16.msra.mxu0 %v1809
      %2431 = vmatprep.subr.bf16.mxu0 0
      %2432 = vmatpush2.bf16.msra.mxu0 %v1808
      %2433 = vmatprep.subr.bf16.mxu0 0
      %2434 = vmatpush2.bf16.msra.mxu0 %v1807
      %2435 = vmatprep.subr.bf16.mxu0 0
      %2436 = vmatpush2.bf16.msra.mxu0 %v1806
      %2437 = vmatprep.mubr.bf16.mxu0 %v783
      %2438 = vmatmul.mubr.bf16.gmra.mxu0 %v782
      %v2439 = vpop.f32.mrf.mxu0
      %v2440 = vadd.f32 %v2399, %v2439
      %v2441 = vpop.f32.mrf.mxu0
      %v2442 = vpop.f32.mrf.mxu0
      %v2443 = vadd.f32 %v2402, %v2442
      %v2444 = vpop.f32.mrf.mxu0
      %2445 = vdwg.mxu0
      %2446 = vmatprep.subr.bf16.mxu0 0
      %2447 = vmatpush1.bf16.msra.mxu0 %v1821
      %2448 = vmatprep.subr.bf16.mxu0 0
      %2449 = vmatpush1.bf16.msra.mxu0 %v1820
      %2450 = vmatprep.subr.bf16.mxu0 0
      %2451 = vmatpush1.bf16.msra.mxu0 %v1819
      %2452 = vmatprep.subr.bf16.mxu0 0
      %2453 = vmatpush1.bf16.msra.mxu0 %v1818
      %2454 = vmatprep.subr.bf16.mxu0 0
      %2455 = vmatpush1.bf16.msra.mxu0 %v1817
      %2456 = vmatprep.subr.bf16.mxu0 0
      %2457 = vmatpush1.bf16.msra.mxu0 %v1816
      %2458 = vmatprep.subr.bf16.mxu0 0
      %2459 = vmatpush1.bf16.msra.mxu0 %v1815
      %2460 = vmatprep.subr.bf16.mxu0 0
      %2461 = vmatpush1.bf16.msra.mxu0 %v1814
      %2462 = vmatprep.subr.bf16.mxu0 0
      %2463 = vmatpush2.bf16.msra.mxu0 %v1829
      %2464 = vmatprep.subr.bf16.mxu0 0
      %2465 = vmatpush2.bf16.msra.mxu0 %v1828
      %2466 = vmatprep.subr.bf16.mxu0 0
      %2467 = vmatpush2.bf16.msra.mxu0 %v1827
      %2468 = vmatprep.subr.bf16.mxu0 0
      %2469 = vmatpush2.bf16.msra.mxu0 %v1826
      %2470 = vmatprep.subr.bf16.mxu0 0
      %2471 = vmatpush2.bf16.msra.mxu0 %v1825
      %2472 = vmatprep.subr.bf16.mxu0 0
      %2473 = vmatpush2.bf16.msra.mxu0 %v1824
      %2474 = vmatprep.subr.bf16.mxu0 0
      %2475 = vmatpush2.bf16.msra.mxu0 %v1823
      %2476 = vmatprep.subr.bf16.mxu0 0
      %2477 = vmatpush2.bf16.msra.mxu0 %v1822
      %2478 = vmatprep.mubr.bf16.mxu0 %v785
      %2479 = vmatmul.mubr.bf16.gmra.mxu0 %v784
      %v2480 = vpop.f32.mrf.mxu0
      %v2481 = vadd.f32 %v2440, %v2480
      %v2482 = vpop.f32.mrf.mxu0
      %v2483 = vpop.f32.mrf.mxu0
      %v2484 = vadd.f32 %v2443, %v2483
      %v2485 = vpop.f32.mrf.mxu0
      %2486 = vdwg.mxu0
      %2487 = vmatprep.subr.bf16.mxu0 0
      %2488 = vmatpush1.bf16.msra.mxu0 %v1837
      %2489 = vmatprep.subr.bf16.mxu0 0
      %2490 = vmatpush1.bf16.msra.mxu0 %v1836
      %2491 = vmatprep.subr.bf16.mxu0 0
      %2492 = vmatpush1.bf16.msra.mxu0 %v1835
      %2493 = vmatprep.subr.bf16.mxu0 0
      %2494 = vmatpush1.bf16.msra.mxu0 %v1834
      %2495 = vmatprep.subr.bf16.mxu0 0
      %2496 = vmatpush1.bf16.msra.mxu0 %v1833
      %2497 = vmatprep.subr.bf16.mxu0 0
      %2498 = vmatpush1.bf16.msra.mxu0 %v1832
      %2499 = vmatprep.subr.bf16.mxu0 0
      %2500 = vmatpush1.bf16.msra.mxu0 %v1831
      %2501 = vmatprep.subr.bf16.mxu0 0
      %2502 = vmatpush1.bf16.msra.mxu0 %v1830
      %2503 = vmatprep.subr.bf16.mxu0 0
      %2504 = vmatpush2.bf16.msra.mxu0 %v1845
      %2505 = vmatprep.subr.bf16.mxu0 0
      %2506 = vmatpush2.bf16.msra.mxu0 %v1844
      %2507 = vmatprep.subr.bf16.mxu0 0
      %2508 = vmatpush2.bf16.msra.mxu0 %v1843
      %2509 = vmatprep.subr.bf16.mxu0 0
      %2510 = vmatpush2.bf16.msra.mxu0 %v1842
      %2511 = vmatprep.subr.bf16.mxu0 0
      %2512 = vmatpush2.bf16.msra.mxu0 %v1841
      %2513 = vmatprep.subr.bf16.mxu0 0
      %2514 = vmatpush2.bf16.msra.mxu0 %v1840
      %2515 = vmatprep.subr.bf16.mxu0 0
      %2516 = vmatpush2.bf16.msra.mxu0 %v1839
      %2517 = vmatprep.subr.bf16.mxu0 0
      %2518 = vmatpush2.bf16.msra.mxu0 %v1838
      %2519 = vmatprep.mubr.bf16.mxu0 %v787
      %2520 = vmatmul.mubr.bf16.gmra.mxu0 %v786
      %v2521 = vpop.f32.mrf.mxu0
      %v2522 = vadd.f32 %v2481, %v2521
      %v2523 = vpop.f32.mrf.mxu0
      %v2524 = vpop.f32.mrf.mxu0
      %v2525 = vadd.f32 %v2484, %v2524
      %v2526 = vpop.f32.mrf.mxu0
      %2527 = vdwg.mxu0
      %2528 = vmatprep.subr.bf16.mxu0 0
      %2529 = vmatpush1.bf16.msra.mxu0 %v1853
      %2530 = vmatprep.subr.bf16.mxu0 0
      %2531 = vmatpush1.bf16.msra.mxu0 %v1852
      %2532 = vmatprep.subr.bf16.mxu0 0
      %2533 = vmatpush1.bf16.msra.mxu0 %v1851
      %2534 = vmatprep.subr.bf16.mxu0 0
      %2535 = vmatpush1.bf16.msra.mxu0 %v1850
      %2536 = vmatprep.subr.bf16.mxu0 0
      %2537 = vmatpush1.bf16.msra.mxu0 %v1849
      %2538 = vmatprep.subr.bf16.mxu0 0
      %2539 = vmatpush1.bf16.msra.mxu0 %v1848
      %2540 = vmatprep.subr.bf16.mxu0 0
      %2541 = vmatpush1.bf16.msra.mxu0 %v1847
      %2542 = vmatprep.subr.bf16.mxu0 0
      %2543 = vmatpush1.bf16.msra.mxu0 %v1846
      %2544 = vmatprep.subr.bf16.mxu0 0
      %2545 = vmatpush2.bf16.msra.mxu0 %v1861
      %2546 = vmatprep.subr.bf16.mxu0 0
      %2547 = vmatpush2.bf16.msra.mxu0 %v1860
      %2548 = vmatprep.subr.bf16.mxu0 0
      %2549 = vmatpush2.bf16.msra.mxu0 %v1859
      %2550 = vmatprep.subr.bf16.mxu0 0
      %2551 = vmatpush2.bf16.msra.mxu0 %v1858
      %2552 = vmatprep.subr.bf16.mxu0 0
      %2553 = vmatpush2.bf16.msra.mxu0 %v1857
      %2554 = vmatprep.subr.bf16.mxu0 0
      %2555 = vmatpush2.bf16.msra.mxu0 %v1856
      %2556 = vmatprep.subr.bf16.mxu0 0
      %2557 = vmatpush2.bf16.msra.mxu0 %v1855
      %2558 = vmatprep.subr.bf16.mxu0 0
      %2559 = vmatpush2.bf16.msra.mxu0 %v1854
      %2560 = vmatprep.mubr.bf16.mxu0 %v789
      %2561 = vmatmul.mubr.bf16.gmra.mxu0 %v788
      %v2562 = vpop.f32.mrf.mxu0
      %v2563 = vadd.f32 %v2522, %v2562
      %v2564 = vpop.f32.mrf.mxu0
      %v2565 = vpop.f32.mrf.mxu0
      %v2566 = vadd.f32 %v2525, %v2565
      %v2567 = vpop.f32.mrf.mxu0
      %2568 = vdwg.mxu0
      %2569 = vmatprep.subr.bf16.mxu0 0
      %2570 = vmatpush1.bf16.msra.mxu0 %v1869
      %2571 = vmatprep.subr.bf16.mxu0 0
      %2572 = vmatpush1.bf16.msra.mxu0 %v1868
      %2573 = vmatprep.subr.bf16.mxu0 0
      %2574 = vmatpush1.bf16.msra.mxu0 %v1867
      %2575 = vmatprep.subr.bf16.mxu0 0
      %2576 = vmatpush1.bf16.msra.mxu0 %v1866
      %2577 = vmatprep.subr.bf16.mxu0 0
      %2578 = vmatpush1.bf16.msra.mxu0 %v1865
      %2579 = vmatprep.subr.bf16.mxu0 0
      %2580 = vmatpush1.bf16.msra.mxu0 %v1864
      %2581 = vmatprep.subr.bf16.mxu0 0
      %2582 = vmatpush1.bf16.msra.mxu0 %v1863
      %2583 = vmatprep.subr.bf16.mxu0 0
      %2584 = vmatpush1.bf16.msra.mxu0 %v1862
      %2585 = vmatprep.subr.bf16.mxu0 0
      %2586 = vmatpush2.bf16.msra.mxu0 %v1877
      %2587 = vmatprep.subr.bf16.mxu0 0
      %2588 = vmatpush2.bf16.msra.mxu0 %v1876
      %2589 = vmatprep.subr.bf16.mxu0 0
      %2590 = vmatpush2.bf16.msra.mxu0 %v1875
      %2591 = vmatprep.subr.bf16.mxu0 0
      %2592 = vmatpush2.bf16.msra.mxu0 %v1874
      %2593 = vmatprep.subr.bf16.mxu0 0
      %2594 = vmatpush2.bf16.msra.mxu0 %v1873
      %2595 = vmatprep.subr.bf16.mxu0 0
      %2596 = vmatpush2.bf16.msra.mxu0 %v1872
      %2597 = vmatprep.subr.bf16.mxu0 0
      %2598 = vmatpush2.bf16.msra.mxu0 %v1871
      %2599 = vmatprep.subr.bf16.mxu0 0
      %2600 = vmatpush2.bf16.msra.mxu0 %v1870
      %2601 = vmatprep.mubr.bf16.mxu0 %v791
      %2602 = vmatmul.mubr.bf16.gmra.mxu0 %v790
      %v2603 = vpop.f32.mrf.mxu0
      %v2604 = vadd.f32 %v2563, %v2603
      %v2605 = vpop.f32.mrf.mxu0
      %v2606 = vpop.f32.mrf.mxu0
      %v2607 = vadd.f32 %v2566, %v2606
      %v2608 = vpop.f32.mrf.mxu0
      %2609 = vdwg.mxu0
      %2610 = vmatprep.subr.bf16.mxu0 0
      %2611 = vmatpush1.bf16.msra.mxu0 %v1885
      %2612 = vmatprep.subr.bf16.mxu0 0
      %2613 = vmatpush1.bf16.msra.mxu0 %v1884
      %2614 = vmatprep.subr.bf16.mxu0 0
      %2615 = vmatpush1.bf16.msra.mxu0 %v1883
      %2616 = vmatprep.subr.bf16.mxu0 0
      %2617 = vmatpush1.bf16.msra.mxu0 %v1882
      %2618 = vmatprep.subr.bf16.mxu0 0
      %2619 = vmatpush1.bf16.msra.mxu0 %v1881
      %2620 = vmatprep.subr.bf16.mxu0 0
      %2621 = vmatpush1.bf16.msra.mxu0 %v1880
      %2622 = vmatprep.subr.bf16.mxu0 0
      %2623 = vmatpush1.bf16.msra.mxu0 %v1879
      %2624 = vmatprep.subr.bf16.mxu0 0
      %2625 = vmatpush1.bf16.msra.mxu0 %v1878
      %2626 = vmatprep.subr.bf16.mxu0 0
      %2627 = vmatpush2.bf16.msra.mxu0 %v1893
      %2628 = vmatprep.subr.bf16.mxu0 0
      %2629 = vmatpush2.bf16.msra.mxu0 %v1892
      %2630 = vmatprep.subr.bf16.mxu0 0
      %2631 = vmatpush2.bf16.msra.mxu0 %v1891
      %2632 = vmatprep.subr.bf16.mxu0 0
      %2633 = vmatpush2.bf16.msra.mxu0 %v1890
      %2634 = vmatprep.subr.bf16.mxu0 0
      %2635 = vmatpush2.bf16.msra.mxu0 %v1889
      %2636 = vmatprep.subr.bf16.mxu0 0
      %2637 = vmatpush2.bf16.msra.mxu0 %v1888
      %2638 = vmatprep.subr.bf16.mxu0 0
      %2639 = vmatpush2.bf16.msra.mxu0 %v1887
      %2640 = vmatprep.subr.bf16.mxu0 0
      %2641 = vmatpush2.bf16.msra.mxu0 %v1886
      %2642 = vmatprep.mubr.bf16.mxu0 %v793
      %2643 = vmatmul.mubr.bf16.gmra.mxu0 %v792
      %v2644 = vpop.f32.mrf.mxu0
      %v2645 = vadd.f32 %v2604, %v2644
      %v2646 = vpop.f32.mrf.mxu0
      %v2647 = vpop.f32.mrf.mxu0
      %v2648 = vadd.f32 %v2607, %v2647
      %v2649 = vpop.f32.mrf.mxu0
      %2650 = vdwg.mxu0
      %2651 = vmatprep.subr.bf16.mxu0 0
      %2652 = vmatpush1.bf16.msra.mxu0 %v1901
      %2653 = vmatprep.subr.bf16.mxu0 0
      %2654 = vmatpush1.bf16.msra.mxu0 %v1900
      %2655 = vmatprep.subr.bf16.mxu0 0
      %2656 = vmatpush1.bf16.msra.mxu0 %v1899
      %2657 = vmatprep.subr.bf16.mxu0 0
      %2658 = vmatpush1.bf16.msra.mxu0 %v1898
      %2659 = vmatprep.subr.bf16.mxu0 0
      %2660 = vmatpush1.bf16.msra.mxu0 %v1897
      %2661 = vmatprep.subr.bf16.mxu0 0
      %2662 = vmatpush1.bf16.msra.mxu0 %v1896
      %2663 = vmatprep.subr.bf16.mxu0 0
      %2664 = vmatpush1.bf16.msra.mxu0 %v1895
      %2665 = vmatprep.subr.bf16.mxu0 0
      %2666 = vmatpush1.bf16.msra.mxu0 %v1894
      %2667 = vmatprep.subr.bf16.mxu0 0
      %2668 = vmatpush2.bf16.msra.mxu0 0
      %2669 = vmatprep.subr.bf16.mxu0 0
      %2670 = vmatpush2.bf16.msra.mxu0 0
      %2671 = vmatprep.subr.bf16.mxu0 0
      %2672 = vmatpush2.bf16.msra.mxu0 0
      %2673 = vmatprep.subr.bf16.mxu0 0
      %2674 = vmatpush2.bf16.msra.mxu0 0
      %2675 = vmatprep.subr.bf16.mxu0 0
      %2676 = vmatpush2.bf16.msra.mxu0 0
      %2677 = vmatprep.subr.bf16.mxu0 0
      %2678 = vmatpush2.bf16.msra.mxu0 0
      %2679 = vmatprep.subr.bf16.mxu0 0
      %2680 = vmatpush2.bf16.msra.mxu0 0
      %2681 = vmatprep.subr.bf16.mxu0 0
      %2682 = vmatpush2.bf16.msra.mxu0 0
      %2683 = vmatprep.mubr.bf16.mxu0 0
      %2684 = vmatmul.mubr.bf16.gmra.mxu0 %v794
      %v2685 = vpop.f32.mrf.mxu0
      %v2686 = vadd.f32 %v2645, %v2685
      %v2687 = vpop.f32.mrf.mxu0
      %v2688 = vpop.f32.mrf.mxu0
      %v2689 = vadd.f32 %v2648, %v2688
      %v2690 = vpop.f32.mrf.mxu0
      %2691 = vdwg.mxu0
      %v2692 = vpack.c.bf16 %v2689, %v2686
      %v2694 = vunpack.c.l.b16 %v2692
      %v2695 = vunpack.c.h.b16 %v2692
      %v2696 = vpack.c.b16 %v2694, %v2694
      %v2697 = vpack.c.b16 %v2695, %v2695
      %2700 = vst [vmem:[%s215] sm:$0xf] %v2696
      %2701 = vst [vmem:[%s215 + $0x4] sm:$0xf] %v2697
      %s2702 = smul.u32 %s16, 16
      %v2703 = vlaneseq
      %v2704 = vshrl.u32 %v2703, 7
      %v2705 = vadd.s32 %v2704, 8
      %v2706 = vstv %s2702
      %v2707 = vadd.s32 %v2706, %v2704
      %v2708 = vadd.s32 %v2706, %v2705
      %vm2709 = vcmp.lt.s32.totalorder %v2707, 25
      %vm2710 = vcmp.lt.s32.totalorder %v2708, 25
      %v2711 = vsel %vm2709, %v2686, 0.0
      %v2712 = vsel %vm2710, %v2689, 0.0
      %v2713 = vadd.f32 %v2711, %v2712
      %v2714 = vrot.slane %v2713, 4
      %v2715 = vadd.f32 %v2713, %v2714
      %v2716 = vrot.slane %v2715, 2
      %v2717 = vadd.f32 %v2715, %v2716
      %v2718 = vrot.slane %v2717, 1
      %v2719 = vadd.f32 %v2717, %v2718
      %v2720 = vmul.f32 %v2711, %v2711
      %v2721 = vmul.f32 %v2712, %v2712
      %v2722 = vadd.f32 %v2720, %v2721
      %v2723 = vrot.slane %v2722, 4
      %v2724 = vadd.f32 %v2722, %v2723
      %v2725 = vrot.slane %v2724, 2
      %v2726 = vadd.f32 %v2724, %v2725
      %v2727 = vrot.slane %v2726, 1
      %v2728 = vadd.f32 %v2726, %v2727
      %2729 = vst [vmem:[%s220] sm:$0xff] %v2719
      %2730 = vst [vmem:[%s224] sm:$0xff] %v2728
      %s2731 = smul.u32 2, %s16
      %p2732 = scmp.lt.s32.totalorder %s2731, 3
      %s2733 = scalar_select %p2732, %s2731, 3
      %s2734 = smul.addr %s2733, 4
      %s2735 = scalar_lea.vmem %s2, %s2734
      %p2736 = scmp.lt.s32.totalorder %s16, 1
      %s2737 = scalar_select %p2736, %s16, 1
      %s2738 = smul.addr %s2737, 8
      %s2739 = scalar_lea.vmem %s3, %s2738
      %p2740 = scmp.lt.s32.totalorder %s16, 1
      %s2741 = scalar_select %p2740, %s16, 1
      %s2742 = smul.addr %s2741, 8
      %s2743 = scalar_lea.vmem %s4, %s2742
      // Predicated region
      $region29: #{d_res_3d_cnn_forward.24} parent=27 // pred_check
        %p2744 = pneg %p81
      $region30: #{d_res_3d_cnn_forward.24} parent=27 // pred_check_branch
        %2746 = sbr.rel (%p2744) target = $region32
      $region31: #{d_res_3d_cnn_forward.24} parent=27 // pred_region
        %s2747 = smul.u32 2, %s16
      $region32: #{d_res_3d_cnn_forward.24} parent=27 // pred_fallthru
        _
      // Predicated region
      $region33: #{d_res_3d_cnn_forward.24} parent=27 // pred_check
        %p2748 = pneg %p107
      $region34: #{d_res_3d_cnn_forward.24} parent=27 // pred_check_branch
        %2750 = sbr.rel (%p2748) target = $region36
      $region35: #{d_res_3d_cnn_forward.24} parent=27 // pred_region
        _
      $region36: #{d_res_3d_cnn_forward.24} parent=27 // pred_fallthru
        _
      // Predicated region
      $region37: #{d_res_3d_cnn_forward.24} parent=27 // pred_check
        %p2751 = pneg %p133
      $region38: #{d_res_3d_cnn_forward.24} parent=27 // pred_check_branch
        %2753 = sbr.rel (%p2751) target = $region40
      $region39: #{d_res_3d_cnn_forward.24} parent=27 // pred_region
        _
      $region40: #{d_res_3d_cnn_forward.24} parent=27 // pred_fallthru
        _
    $region28: #{d_res_3d_cnn_forward.24} parent=5 // pred_fallthru
      _
    %p2754 = scmp.le.s32.totalorder 2, %s11
    // Predicated region
    $region41: #{d_res_3d_cnn_forward.24} parent=5 // pred_check
      %p2755 = pneg %p2754
    $region42: #{d_res_3d_cnn_forward.24} parent=5 // pred_check_branch
      %2757 = sbr.rel (%p2755) target = $region44
    $region43: #{d_res_3d_cnn_forward.24} parent=5 // pred_region
      %s2758 = ssub.s32 %s11, 2
      // Predicated region
      $region45: #{d_res_3d_cnn_forward.24} parent=43 // pred_check
        %p2759 = pneg %p87
      $region46: #{d_res_3d_cnn_forward.24} parent=43 // pred_check_branch
        %2761 = sbr.rel (%p2759) target = $region48
      $region47: #{d_res_3d_cnn_forward.24} parent=43 // pred_region
        %s2762 = smul.u32 2, %s17
        %p2763 = scmp.lt.s32.totalorder %s2762, 3
        %s2764 = scalar_select %p2763, %s2762, 3
        %s2765 = smul.addr %s2764, 4
        %s2766 = scalar_lea.vmem %s2, %s2765
      $region48: #{d_res_3d_cnn_forward.24} parent=43 // pred_fallthru
        _
      // Predicated region
      $region49: #{d_res_3d_cnn_forward.24} parent=43 // pred_check
        %p2767 = pneg %p113
      $region50: #{d_res_3d_cnn_forward.24} parent=43 // pred_check_branch
        %2769 = sbr.rel (%p2767) target = $region52
      $region51: #{d_res_3d_cnn_forward.24} parent=43 // pred_region
        %p2770 = scmp.lt.s32.totalorder %s17, 1
        %s2771 = scalar_select %p2770, %s17, 1
        %s2772 = smul.addr %s2771, 8
        %s2773 = scalar_lea.vmem %s3, %s2772
      $region52: #{d_res_3d_cnn_forward.24} parent=43 // pred_fallthru
        _
      // Predicated region
      $region53: #{d_res_3d_cnn_forward.24} parent=43 // pred_check
        %p2774 = pneg %p139
      $region54: #{d_res_3d_cnn_forward.24} parent=43 // pred_check_branch
        %2776 = sbr.rel (%p2774) target = $region56
      $region55: #{d_res_3d_cnn_forward.24} parent=43 // pred_region
        %p2777 = scmp.lt.s32.totalorder %s17, 1
        %s2778 = scalar_select %p2777, %s17, 1
        %s2779 = smul.addr %s2778, 8
        %s2780 = scalar_lea.vmem %s4, %s2779
      $region56: #{d_res_3d_cnn_forward.24} parent=43 // pred_fallthru
        _
    $region44: #{d_res_3d_cnn_forward.24} parent=5 // pred_fallthru
      _
  $region6: #{d_res_3d_cnn_forward.24} parent=0 // loop_footer
    %s15 = sadd.s32 1, %s11
  $region7: #{d_res_3d_cnn_forward.24} parent=0 // loop_footer_branch
    %10 = sbr.rel target = $region3
  $region8: #{d_res_3d_cnn_forward.24} parent=0 // loop_exit
    _

// kernel: d_res_3d_cnn_forward.27
$region0: #{d_res_3d_cnn_forward.27}
  #allocation0 [shape = 'u32[]', space=smem, size = 0x4, offset = 0x4, fixed_abs, tag = 'smem constant byte address 0x4 - core index']
  #allocation1 [shape = 'u32[144,128]{1,0:T(1,128)}', space=vmem, size = 0x12000, scoped, tag = 'internal scratch']
  %s0 = inlined_call_operand.vmem [shape: bf16[32,128], index: 0, kind: input, shape index: {}]
  %s1 = inlined_call_operand.vmem [shape: f32[1,128], index: 1, kind: input, shape index: {}]
  %s2 = inlined_call_operand.vmem [shape: f32[1,128], index: 2, kind: input, shape index: {}]
  %s3 = inlined_call_operand.vmem [shape: bf16[25,128], index: 3, kind: input, shape index: {}]
  %s4 = inlined_call_operand.vmem [shape: bf16[32,128], index: 4, kind: output, shape index: {}]
  %s5 = sld [smem:[#allocation0]]
  $region49: #{d_res_3d_cnn_forward.27} parent=0
    _
  %s7 = ssub.s32 1, %s5
  %s8 = scalar_select 0, %s7, %s5
  loop: start=0, step=1, limit=4
  $region2: #{d_res_3d_cnn_forward.27} parent=0 // loop_pre_header
    _
  $region3: #{d_res_3d_cnn_forward.27} parent=0 // loop_header
    %s10 = sphi 0, %s14
    %p11 = scmp.ge.s32.totalorder %s10, 4
    %s20 = sphi 0, %s22
    %s23 = sphi 0, %s20
    %s24 = sphi 0, %s23
    %s40 = sphi 0, %s24
    %s44 = sphi 0, %s44
    %s46 = sphi 0, %s44
    %s47 = sphi 0, %s46
    %s61 = sphi 0, %s47
    %s65 = sphi 0, %s65
    %s67 = sphi 0, %s65
    %s68 = sphi 0, %s67
    %s82 = sphi 0, %s68
    %s88 = sphi 0, %s90
    %s91 = sphi 0, %s88
    %s92 = sphi 0, %s91
    %s108 = sphi 0, %s92
    %s114 = sphi 0, %s116
    %s117 = sphi 0, %s114
    %s118 = sphi 0, %s117
    %s134 = sphi 0, %s118
  $region4: #{d_res_3d_cnn_forward.27} parent=0 // loop_header_branch
    %13 = sbr.rel (%p11) target = $region8
  $region5: #{d_res_3d_cnn_forward.27} parent=0 // loop_body
    %s15 = ssub.s32 %s10, 1
    %s16 = ssub.s32 %s10, 2
    %s17 = sadd.s32 %s10, 1
    %s18 = ssub.s32 %s10, %s17
    %p19 = scmp.eq.s32.totalorder %s18, 0
    %s21 = sadd.s32 %s20, 1
    %s22 = scalar_select %p19, %s20, %s21
    %p25 = pneg %p19
    %p26 = scmp.eq.s32.totalorder %s10, 1
    %p27 = por %p25, %p26
    %p28 = scmp.ne.s32.totalorder %s20, %s23
    %p29 = scmp.eq.s32.totalorder %s10, 0
    %p30 = por %p28, %p29
    %p31 = scmp.ne.s32.totalorder %s20, %s23
    %p32 = scmp.eq.s32.totalorder %s15, 1
    %p33 = por %p31, %p32
    %p34 = scmp.ne.s32.totalorder %s23, %s24
    %p35 = scmp.eq.s32.totalorder %s15, 0
    %p36 = por %p34, %p35
    %p37 = scmp.ne.s32.totalorder %s23, %s24
    %p38 = scmp.eq.s32.totalorder %s16, 1
    %p39 = por %p37, %p38
    %p41 = scmp.ne.s32.totalorder %s24, %s40
    %p42 = scmp.eq.s32.totalorder %s16, 0
    %p43 = por %p41, %p42
    %s45 = sadd.s32 %s44, 1
    %p48 = scmp.eq.s32.totalorder %s10, 1
    %p49 = scmp.ne.s32.totalorder %s44, %s46
    %p50 = scmp.eq.s32.totalorder %s10, 0
    %p51 = por %p49, %p50
    %p52 = scmp.ne.s32.totalorder %s44, %s46
    %p53 = scmp.eq.s32.totalorder %s15, 1
    %p54 = por %p52, %p53
    %p55 = scmp.ne.s32.totalorder %s46, %s47
    %p56 = scmp.eq.s32.totalorder %s15, 0
    %p57 = por %p55, %p56
    %p58 = scmp.ne.s32.totalorder %s46, %s47
    %p59 = scmp.eq.s32.totalorder %s16, 1
    %p60 = por %p58, %p59
    %p62 = scmp.ne.s32.totalorder %s47, %s61
    %p63 = scmp.eq.s32.totalorder %s16, 0
    %p64 = por %p62, %p63
    %s66 = sadd.s32 %s65, 1
    %p69 = scmp.eq.s32.totalorder %s10, 1
    %p70 = scmp.ne.s32.totalorder %s65, %s67
    %p71 = scmp.eq.s32.totalorder %s10, 0
    %p72 = por %p70, %p71
    %p73 = scmp.ne.s32.totalorder %s65, %s67
    %p74 = scmp.eq.s32.totalorder %s15, 1
    %p75 = por %p73, %p74
    %p76 = scmp.ne.s32.totalorder %s67, %s68
    %p77 = scmp.eq.s32.totalorder %s15, 0
    %p78 = por %p76, %p77
    %p79 = scmp.ne.s32.totalorder %s67, %s68
    %p80 = scmp.eq.s32.totalorder %s16, 1
    %p81 = por %p79, %p80
    %p83 = scmp.ne.s32.totalorder %s68, %s82
    %p84 = scmp.eq.s32.totalorder %s16, 0
    %p85 = por %p83, %p84
    %s86 = ssub.s32 %s10, %s17
    %p87 = scmp.eq.s32.totalorder %s86, 0
    %s89 = sadd.s32 %s88, 1
    %s90 = scalar_select %p87, %s88, %s89
    %p93 = pneg %p87
    %p94 = scmp.eq.s32.totalorder %s10, 1
    %p95 = por %p93, %p94
    %p96 = scmp.ne.s32.totalorder %s88, %s91
    %p97 = scmp.eq.s32.totalorder %s10, 0
    %p98 = por %p96, %p97
    %p99 = scmp.ne.s32.totalorder %s88, %s91
    %p100 = scmp.eq.s32.totalorder %s15, 1
    %p101 = por %p99, %p100
    %p102 = scmp.ne.s32.totalorder %s91, %s92
    %p103 = scmp.eq.s32.totalorder %s15, 0
    %p104 = por %p102, %p103
    %p105 = scmp.ne.s32.totalorder %s91, %s92
    %p106 = scmp.eq.s32.totalorder %s16, 1
    %p107 = por %p105, %p106
    %p109 = scmp.ne.s32.totalorder %s92, %s108
    %p110 = scmp.eq.s32.totalorder %s16, 0
    %p111 = por %p109, %p110
    %s112 = ssub.s32 %s10, %s17
    %p113 = scmp.eq.s32.totalorder %s112, 0
    %s115 = sadd.s32 %s114, 1
    %s116 = scalar_select %p113, %s114, %s115
    %p119 = pneg %p113
    %p120 = scmp.eq.s32.totalorder %s10, 1
    %p121 = por %p119, %p120
    %p122 = scmp.ne.s32.totalorder %s114, %s117
    %p123 = scmp.eq.s32.totalorder %s10, 0
    %p124 = por %p122, %p123
    %p125 = scmp.ne.s32.totalorder %s114, %s117
    %p126 = scmp.eq.s32.totalorder %s15, 1
    %p127 = por %p125, %p126
    %p128 = scmp.ne.s32.totalorder %s117, %s118
    %p129 = scmp.eq.s32.totalorder %s15, 0
    %p130 = por %p128, %p129
    %p131 = scmp.ne.s32.totalorder %s117, %s118
    %p132 = scmp.eq.s32.totalorder %s16, 1
    %p133 = por %p131, %p132
    %p135 = scmp.ne.s32.totalorder %s118, %s134
    %p136 = scmp.eq.s32.totalorder %s16, 0
    %p137 = por %p135, %p136
    %p138 = scmp.le.s32.totalorder 1, %s10
    %p139 = scmp.lt.s32.totalorder %s10, 3
    %p140 = pnand %p138, %p139
    %p141 = pneg %p140
    // Predicated region
    $region9: #{d_res_3d_cnn_forward.27} parent=5 // pred_check
      _
    $region10: #{d_res_3d_cnn_forward.27} parent=5 // pred_check_branch
      %143 = sbr.rel (%p140) target = $region12
    $region11: #{d_res_3d_cnn_forward.27} parent=5 // pred_region
      %s144 = ssub.s32 %s10, 1
      // Predicated region
      $region13: #{d_res_3d_cnn_forward.27} parent=11 // pred_check
        %p145 = pneg %p57
      $region14: #{d_res_3d_cnn_forward.27} parent=11 // pred_check_branch
        %147 = sbr.rel (%p145) target = $region16
      $region15: #{d_res_3d_cnn_forward.27} parent=11 // pred_region
        _
      $region16: #{d_res_3d_cnn_forward.27} parent=11 // pred_fallthru
        _
      // Predicated region
      $region17: #{d_res_3d_cnn_forward.27} parent=11 // pred_check
        %p148 = pneg %p78
      $region18: #{d_res_3d_cnn_forward.27} parent=11 // pred_check_branch
        %150 = sbr.rel (%p148) target = $region20
      $region19: #{d_res_3d_cnn_forward.27} parent=11 // pred_region
        _
      $region20: #{d_res_3d_cnn_forward.27} parent=11 // pred_fallthru
        _
    $region12: #{d_res_3d_cnn_forward.27} parent=5 // pred_fallthru
      _
    %p151 = scmp.lt.s32.totalorder %s10, 2
    // Predicated region
    $region21: #{d_res_3d_cnn_forward.27} parent=5 // pred_check
      %p152 = pneg %p151
    $region22: #{d_res_3d_cnn_forward.27} parent=5 // pred_check_branch
      %154 = sbr.rel (%p152) target = $region24
    $region23: #{d_res_3d_cnn_forward.27} parent=5 // pred_region
      // Predicated region
      $region25: #{d_res_3d_cnn_forward.27} parent=23 // pred_check
        %p155 = pneg %p30
      $region26: #{d_res_3d_cnn_forward.27} parent=23 // pred_check_branch
        %157 = sbr.rel (%p155) target = $region28
      $region27: #{d_res_3d_cnn_forward.27} parent=23 // pred_region
        %s158 = smul.u32 2, %s10
        %p159 = scmp.lt.s32.totalorder %s158, 3
        %s160 = scalar_select %p159, %s158, 3
        %s161 = smul.addr %s160, 4
        %s162 = scalar_lea.vmem %s0, %s161
        %s163 = smul.u32 2, %s10
      $region28: #{d_res_3d_cnn_forward.27} parent=23 // pred_fallthru
        _
      // Predicated region
      $region29: #{d_res_3d_cnn_forward.27} parent=23 // pred_check
        %p164 = pneg %p98
      $region30: #{d_res_3d_cnn_forward.27} parent=23 // pred_check_branch
        %166 = sbr.rel (%p164) target = $region32
      $region31: #{d_res_3d_cnn_forward.27} parent=23 // pred_region
        %s167 = smul.u32 2, %s10
        %p168 = scmp.lt.s32.totalorder %s167, 3
        %s169 = scalar_select %p168, %s167, 3
        %s170 = smul.addr %s169, 4
        %s171 = scalar_lea.vmem %s3, %s170
        %s172 = smul.u32 2, %s10
      $region32: #{d_res_3d_cnn_forward.27} parent=23 // pred_fallthru
        _
    $region24: #{d_res_3d_cnn_forward.27} parent=5 // pred_fallthru
      _
    %p173 = scmp.le.s32.totalorder 1, %s10
    %p174 = scmp.lt.s32.totalorder %s10, 3
    %p175 = pnand %p173, %p174
    %p176 = pneg %p175
    // Predicated region
    $region33: #{d_res_3d_cnn_forward.27} parent=5 // pred_check
      _
    $region34: #{d_res_3d_cnn_forward.27} parent=5 // pred_check_branch
      %178 = sbr.rel (%p175) target = $region36
    $region35: #{d_res_3d_cnn_forward.27} parent=5 // pred_region
      %s179 = ssub.s32 %s10, 1
      %s180 = smul.u32 2, %s15
      %p181 = scmp.lt.s32.totalorder %s180, 3
      %s182 = scalar_select %p181, %s180, 3
      %s183 = smul.addr %s182, 4
      %s184 = scalar_lea.vmem %s0, %s183
      %p185 = pneg %p36
      %p186 = pneg %p33
      %p187 = pneg %p57
      %p188 = pneg %p54
      %p189 = pneg %p78
      %p190 = pneg %p75
      %s191 = smul.u32 2, %s15
      %p192 = scmp.lt.s32.totalorder %s191, 3
      %s193 = scalar_select %p192, %s191, 3
      %s194 = smul.addr %s193, 4
      %s195 = scalar_lea.vmem %s3, %s194
      %p196 = pneg %p104
      %p197 = pneg %p101
      %p198 = pneg %p130
      %p199 = pneg %p127
      %s200 = smul.u32 2, %s15
      %p201 = scmp.lt.s32.totalorder %s200, 3
      %s202 = scalar_select %p201, %s200, 3
      %s203 = smul.addr %s202, 4
      %s204 = scalar_lea.vmem %s4, %s203
      %s205 = smul.u32 2, %s15
      %p206 = scmp.lt.s32.totalorder %s205, 3
      %s207 = scalar_select %p206, %s205, 3
      %s208 = smul.addr %s207, 4
      %s209 = scalar_lea.vmem %s0, %s208
      %s210 = smul.u32 2, %s15
      %s211 = smul.u32 2, %s15
      %p212 = scmp.lt.s32.totalorder %s211, 3
      %s213 = scalar_select %p212, %s211, 3
      %s214 = smul.addr %s213, 4
      %s215 = scalar_lea.vmem %s3, %s214
      %s216 = smul.u32 2, %s15
      %s217 = smul.u32 2, %s15
      %p218 = scmp.lt.s32.totalorder %s217, 3
      %s219 = scalar_select %p218, %s217, 3
      %s220 = smul.addr %s219, 4
      %s221 = scalar_lea.vmem %s4, %s220
      %s222 = smul.u32 2, %s15
      %v223 = vld [vmem:[%s209] sm:$0xf]
      %v224 = vld [vmem:[%s209 + $0x4] sm:$0xf]
      %v225 = vunpack.c.l.bf16 %v223
      %v226 = vunpack.c.l.bf16 %v224
      %v227 = vld [vmem:[%s1] sm:$0x1]
      %v229 = vlaneseq
      %v230 = vshrl.u32 %v229, 7
      %v231 = vsub.s32 0, %v230
      %v232 = vrot.slane %v227, %v231
      %v234 = vmul.f32 %v225, %v232
      %v235 = vmul.f32 %v226, %v232
      %v236 = vld [vmem:[%s2] sm:$0x1]
      %v238 = vlaneseq
      %v239 = vshrl.u32 %v238, 7
      %v240 = vsub.s32 0, %v239
      %v241 = vrot.slane %v236, %v240
      %v243 = vadd.f32 %v234, %v241
      %v244 = vadd.f32 %v235, %v241
      %v245 = vld [vmem:[%s215] sm:$0xf]
      %v246 = vld [vmem:[%s215 + $0x4] sm:$0xf]
      %v247 = vunpack.c.l.bf16 %v245
      %v248 = vunpack.c.l.bf16 %v246
      %v249 = vadd.f32 %v243, %v247
      %v250 = vadd.f32 %v244, %v248
      %v251 = vmax.f32 %v249, 0.0
      %v252 = vmax.f32 %v250, 0.0
      %v253 = vpack.c.bf16 %v252, %v251
      %v255 = vunpack.c.l.b16 %v253
      %v256 = vunpack.c.h.b16 %v253
      %v257 = vpack.c.b16 %v255, %v255
      %v258 = vpack.c.b16 %v256, %v256
      %261 = vst [vmem:[%s221] sm:$0xf] %v257
      %262 = vst [vmem:[%s221 + $0x4] sm:$0xf] %v258
      %s263 = smul.u32 2, %s15
      %p264 = scmp.lt.s32.totalorder %s263, 3
      %s265 = scalar_select %p264, %s263, 3
      %s266 = smul.addr %s265, 4
      %s267 = scalar_lea.vmem %s4, %s266
      // Predicated region
      $region37: #{d_res_3d_cnn_forward.27} parent=35 // pred_check
        %p268 = pneg %p127
      $region38: #{d_res_3d_cnn_forward.27} parent=35 // pred_check_branch
        %270 = sbr.rel (%p268) target = $region40
      $region39: #{d_res_3d_cnn_forward.27} parent=35 // pred_region
        %s271 = smul.u32 2, %s15
      $region40: #{d_res_3d_cnn_forward.27} parent=35 // pred_fallthru
        _
    $region36: #{d_res_3d_cnn_forward.27} parent=5 // pred_fallthru
      _
    %p272 = scmp.le.s32.totalorder 2, %s10
    // Predicated region
    $region41: #{d_res_3d_cnn_forward.27} parent=5 // pred_check
      %p273 = pneg %p272
    $region42: #{d_res_3d_cnn_forward.27} parent=5 // pred_check_branch
      %275 = sbr.rel (%p273) target = $region44
    $region43: #{d_res_3d_cnn_forward.27} parent=5 // pred_region
      %s276 = ssub.s32 %s10, 2
      // Predicated region
      $region45: #{d_res_3d_cnn_forward.27} parent=43 // pred_check
        %p277 = pneg %p133
      $region46: #{d_res_3d_cnn_forward.27} parent=43 // pred_check_branch
        %279 = sbr.rel (%p277) target = $region48
      $region47: #{d_res_3d_cnn_forward.27} parent=43 // pred_region
        %s280 = smul.u32 2, %s16
        %p281 = scmp.lt.s32.totalorder %s280, 3
        %s282 = scalar_select %p281, %s280, 3
        %s283 = smul.addr %s282, 4
        %s284 = scalar_lea.vmem %s4, %s283
      $region48: #{d_res_3d_cnn_forward.27} parent=43 // pred_fallthru
        _
    $region44: #{d_res_3d_cnn_forward.27} parent=5 // pred_fallthru
      _
  $region6: #{d_res_3d_cnn_forward.27} parent=0 // loop_footer
    %s14 = sadd.s32 1, %s10
  $region7: #{d_res_3d_cnn_forward.27} parent=0 // loop_footer_branch
    %9 = sbr.rel target = $region3
  $region8: #{d_res_3d_cnn_forward.27} parent=0 // loop_exit
    _

// kernel: d_res_3d_cnn_forward.28
$region0: #{d_res_3d_cnn_forward.28}
  #allocation0 [shape = 'u32[]', space=smem, size = 0x4, offset = 0x4, fixed_abs, tag = 'smem constant byte address 0x4 - core index']
  #allocation1 [shape = 'u32[144,128]{1,0:T(1,128)}', space=vmem, size = 0x12000, scoped, tag = 'internal scratch']
  %s0 = inlined_call_operand.vmem [shape: bf16[8,16,128], index: 0, kind: input, shape index: {}]
  %s1 = inlined_call_operand.vmem [shape: bf16[8,128], index: 1, kind: output, shape index: {}]
  %s2 = sld [smem:[#allocation0]]
  $region14: #{d_res_3d_cnn_forward.28} parent=0
    _
  %s4 = ssub.s32 1, %s2
  %s5 = scalar_select 0, %s4, %s2
  // Predicated region
  $region2: #{d_res_3d_cnn_forward.28} parent=0 // pred_check
    _
  $region3: #{d_res_3d_cnn_forward.28} parent=0 // pred_check_branch
    %7 = sbr.rel (0) target = $region5
  $region4: #{d_res_3d_cnn_forward.28} parent=0 // pred_region
    _
  $region5: #{d_res_3d_cnn_forward.28} parent=0 // pred_fallthru
    _
  %v8 = vld [vmem:[%s0] sm:$0xf]
  %v9 = vld [vmem:[%s0 + $0x4] sm:$0xf]
  %v10 = vld [vmem:[%s0 + $0x8] sm:$0xf]
  %v11 = vld [vmem:[%s0 + $0xc] sm:$0xf]
  %v12 = vld [vmem:[%s0 + $0x10] sm:$0xf]
  %v13 = vld [vmem:[%s0 + $0x14] sm:$0xf]
  %v14 = vld [vmem:[%s0 + $0x18] sm:$0xf]
  %v15 = vld [vmem:[%s0 + $0x1c] sm:$0xf]
  %v16 = vld [vmem:[%s0 + $0x20] sm:$0xf]
  %v17 = vld [vmem:[%s0 + $0x24] sm:$0xf]
  %v18 = vld [vmem:[%s0 + $0x28] sm:$0xf]
  %v19 = vld [vmem:[%s0 + $0x2c] sm:$0xf]
  %v20 = vld [vmem:[%s0 + $0x30] sm:$0xf]
  %v21 = vld [vmem:[%s0 + $0x34] sm:$0xf]
  %v22 = vld [vmem:[%s0 + $0x38] sm:$0xf]
  %v23 = vld [vmem:[%s0 + $0x3c] sm:$0xf]
  %v40 = vunpack.c.l.b16 %v8
  %v41 = vunpack.c.l.b16 %v9
  %v42 = vunpack.c.l.b16 %v10
  %v43 = vunpack.c.l.b16 %v11
  %v44 = vunpack.c.l.b16 %v12
  %v45 = vunpack.c.l.b16 %v13
  %v46 = vunpack.c.l.b16 %v14
  %v47 = vunpack.c.l.b16 %v15
  %v48 = vunpack.c.l.b16 %v16
  %v49 = vunpack.c.l.b16 %v17
  %v50 = vunpack.c.l.b16 %v18
  %v51 = vunpack.c.l.b16 %v19
  %v52 = vunpack.c.l.b16 %v20
  %v53 = vunpack.c.l.b16 %v21
  %v54 = vunpack.c.l.b16 %v22
  %v55 = vunpack.c.l.b16 %v23
  %v56 = vpack.c.b16 %v41, %v40
  %v57 = vpack.c.b16 %v43, %v42
  %v58 = vpack.c.b16 %v45, %v44
  %v59 = vpack.c.b16 %v47, %v46
  %v60 = vpack.c.b16 %v49, %v48
  %v61 = vpack.c.b16 %v51, %v50
  %v62 = vpack.c.b16 %v53, %v52
  %v63 = vpack.c.b16 %v55, %v54
  %v72 = vunpack.i.l.bf16 %v56
  %v73 = vunpack.i.h.bf16 %v56
  %v74 = vmax.f32 %v72, %v73
  %v75 = vrot.slane %v74, 4
  %v76 = vmax.f32 %v74, %v75
  %v77 = vrot.slane %v76, 2
  %v78 = vmax.f32 %v76, %v77
  %v79 = vrot.slane %v78, 1
  %v80 = vmax.f32 %v78, %v79
  %v81 = vpack.i.bf16 %v80, %v80
  %v82 = vunpack.i.l.bf16 %v57
  %v83 = vunpack.i.h.bf16 %v57
  %v84 = vmax.f32 %v82, %v83
  %v85 = vrot.slane %v84, 4
  %v86 = vmax.f32 %v84, %v85
  %v87 = vrot.slane %v86, 2
  %v88 = vmax.f32 %v86, %v87
  %v89 = vrot.slane %v88, 1
  %v90 = vmax.f32 %v88, %v89
  %v91 = vpack.i.bf16 %v90, %v90
  %v92 = vunpack.i.l.bf16 %v58
  %v93 = vunpack.i.h.bf16 %v58
  %v94 = vmax.f32 %v92, %v93
  %v95 = vrot.slane %v94, 4
  %v96 = vmax.f32 %v94, %v95
  %v97 = vrot.slane %v96, 2
  %v98 = vmax.f32 %v96, %v97
  %v99 = vrot.slane %v98, 1
  %v100 = vmax.f32 %v98, %v99
  %v101 = vpack.i.bf16 %v100, %v100
  %v102 = vunpack.i.l.bf16 %v59
  %v103 = vunpack.i.h.bf16 %v59
  %v104 = vmax.f32 %v102, %v103
  %v105 = vrot.slane %v104, 4
  %v106 = vmax.f32 %v104, %v105
  %v107 = vrot.slane %v106, 2
  %v108 = vmax.f32 %v106, %v107
  %v109 = vrot.slane %v108, 1
  %v110 = vmax.f32 %v108, %v109
  %v111 = vpack.i.bf16 %v110, %v110
  %v112 = vunpack.i.l.bf16 %v60
  %v113 = vunpack.i.h.bf16 %v60
  %v114 = vmax.f32 %v112, %v113
  %v115 = vrot.slane %v114, 4
  %v116 = vmax.f32 %v114, %v115
  %v117 = vrot.slane %v116, 2
  %v118 = vmax.f32 %v116, %v117
  %v119 = vrot.slane %v118, 1
  %v120 = vmax.f32 %v118, %v119
  %v121 = vpack.i.bf16 %v120, %v120
  %v122 = vunpack.i.l.bf16 %v61
  %v123 = vunpack.i.h.bf16 %v61
  %v124 = vmax.f32 %v122, %v123
  %v125 = vrot.slane %v124, 4
  %v126 = vmax.f32 %v124, %v125
  %v127 = vrot.slane %v126, 2
  %v128 = vmax.f32 %v126, %v127
  %v129 = vrot.slane %v128, 1
  %v130 = vmax.f32 %v128, %v129
  %v131 = vpack.i.bf16 %v130, %v130
  %v132 = vunpack.i.l.bf16 %v62
  %v133 = vunpack.i.h.bf16 %v62
  %v134 = vmax.f32 %v132, %v133
  %v135 = vrot.slane %v134, 4
  %v136 = vmax.f32 %v134, %v135
  %v137 = vrot.slane %v136, 2
  %v138 = vmax.f32 %v136, %v137
  %v139 = vrot.slane %v138, 1
  %v140 = vmax.f32 %v138, %v139
  %v141 = vpack.i.bf16 %v140, %v140
  %v142 = vunpack.i.l.bf16 %v63
  %v143 = vunpack.i.h.bf16 %v63
  %v144 = vmax.f32 %v142, %v143
  %v145 = vrot.slane %v144, 4
  %v146 = vmax.f32 %v144, %v145
  %v147 = vrot.slane %v146, 2
  %v148 = vmax.f32 %v146, %v147
  %v149 = vrot.slane %v148, 1
  %v150 = vmax.f32 %v148, %v149
  %v151 = vpack.i.bf16 %v150, %v150
  %v160 = vunpack.c.l.b16 %v81
  %v161 = vunpack.c.l.b16 %v91
  %v162 = vunpack.c.l.b16 %v101
  %v163 = vunpack.c.l.b16 %v111
  %v164 = vunpack.c.l.b16 %v121
  %v165 = vunpack.c.l.b16 %v131
  %v166 = vunpack.c.l.b16 %v141
  %v167 = vunpack.c.l.b16 %v151
  %v168 = vpack.c.b16 %v160, %v160
  %v169 = vpack.c.b16 %v161, %v161
  %v170 = vpack.c.b16 %v162, %v162
  %v171 = vpack.c.b16 %v163, %v163
  %v172 = vpack.c.b16 %v164, %v164
  %v173 = vpack.c.b16 %v165, %v165
  %v174 = vpack.c.b16 %v166, %v166
  %v175 = vpack.c.b16 %v167, %v167
  %v176 = vunpack.c.l.b16 %v168
  %v177 = vunpack.c.l.b16 %v169
  %v178 = vunpack.c.l.b16 %v170
  %v179 = vunpack.c.l.b16 %v171
  %v180 = vunpack.c.l.b16 %v172
  %v181 = vunpack.c.l.b16 %v173
  %v182 = vunpack.c.l.b16 %v174
  %v183 = vunpack.c.l.b16 %v175
  %vm184 = vcmask 1041409
  %v185 = vsel %vm184, %v177, %v176
  %vm186 = vcmask 1042434
  %v187 = vsel %vm186, %v178, %v185
  %vm188 = vcmask 1043459
  %v189 = vsel %vm188, %v179, %v187
  %vm190 = vcmask 1044484
  %v191 = vsel %vm190, %v180, %v189
  %vm192 = vcmask 1045509
  %v193 = vsel %vm192, %v181, %v191
  %vm194 = vcmask 1046534
  %v195 = vsel %vm194, %v182, %v193
  %vm196 = vcmask 1047559
  %v197 = vsel %vm196, %v183, %v195
  %v198 = vpack.c.b16 %v197, %v197
  %200 = vst [vmem:[%s1] sm:$0xf] %v198
  // Predicated region
  $region6: #{d_res_3d_cnn_forward.28} parent=0 // pred_check
    _
  $region7: #{d_res_3d_cnn_forward.28} parent=0 // pred_check_branch
    %202 = sbr.rel (0) target = $region9
  $region8: #{d_res_3d_cnn_forward.28} parent=0 // pred_region
    _
  $region9: #{d_res_3d_cnn_forward.28} parent=0 // pred_fallthru
    _
  // Predicated region
  $region10: #{d_res_3d_cnn_forward.28} parent=0 // pred_check
    _
  $region11: #{d_res_3d_cnn_forward.28} parent=0 // pred_check_branch
    %204 = sbr.rel (0) target = $region13
  $region12: #{d_res_3d_cnn_forward.28} parent=0 // pred_region
    _
  $region13: #{d_res_3d_cnn_forward.28} parent=0 // pred_fallthru
    _

// kernel: d_res_3d_cnn_forward.29
$region0: #{d_res_3d_cnn_forward.29}
  #allocation0 [shape = 'u32[]', space=smem, size = 0x4, offset = 0x4, fixed_abs, tag = 'smem constant byte address 0x4 - core index']
  #allocation1 [shape = 'u32[144,128]{1,0:T(1,128)}', space=vmem, size = 0x12000, scoped, tag = 'internal scratch']
  %s0 = inlined_call_operand.vmem [shape: bf16[2,216], index: 0, kind: input, shape index: {}]
  %s1 = inlined_call_operand.vmem [shape: bf16[216,32], index: 1, kind: input, shape index: {}]
  %s2 = inlined_call_operand.hbm [shape: f32[2,32], index: 2, kind: output, shape index: {}]
  %s3 = sld [smem:[#allocation0]]
  $region18: #{d_res_3d_cnn_forward.29} parent=0
    _
  %s5 = ssub.s32 1, %s3
  %s6 = scalar_select 0, %s5, %s3
  $region1: #{d_res_3d_cnn_forward.29} parent=0
    #allocation2 [shape = 'u8[1024]{0}', space=vmem, size = 0x400, scoped, tag = 'output window, operand 0, single buffered']
    #allocation3 [shape = 's32[1]{0}', space=sflag, size = 0x4, scoped, tag = 'scoped memory for d_res_3d_cnn_forward.29']
    %7 = vsyncpa [#allocation3], 0
    // Predicated region
    $region2: #{d_res_3d_cnn_forward.29} parent=1 // pred_check
      _
    $region3: #{d_res_3d_cnn_forward.29} parent=1 // pred_check_branch
      %9 = sbr.rel (0) target = $region5
    $region4: #{d_res_3d_cnn_forward.29} parent=1 // pred_region
      _
    $region5: #{d_res_3d_cnn_forward.29} parent=1 // pred_fallthru
      _
    // Predicated region
    $region6: #{d_res_3d_cnn_forward.29} parent=1 // pred_check
      _
    $region7: #{d_res_3d_cnn_forward.29} parent=1 // pred_check_branch
      %11 = sbr.rel (0) target = $region9
    $region8: #{d_res_3d_cnn_forward.29} parent=1 // pred_region
      _
    $region9: #{d_res_3d_cnn_forward.29} parent=1 // pred_fallthru
      _
    %v13 = vld [vmem:[%s0] sm:$0x3]
    %v14 = vld [vmem:[%s1] sm:$0xf]
    %v15 = vld [vmem:[%s1 + $0x4] sm:$0xf]
    %v16 = vld [vmem:[%s1 + $0x8] sm:$0xf]
    %v17 = vld [vmem:[%s1 + $0xc] sm:$0xf]
    %v18 = vld [vmem:[%s1 + $0x10] sm:$0xf]
    %v19 = vld [vmem:[%s1 + $0x14] sm:$0xf]
    %v20 = vld [vmem:[%s1 + $0x18] sm:$0xf]
    %v21 = vld [vmem:[%s1 + $0x1c] sm:$0xf]
    %v22 = vld [vmem:[%s1 + $0x20] sm:$0xf]
    %v23 = vld [vmem:[%s1 + $0x24] sm:$0xf]
    %v24 = vld [vmem:[%s1 + $0x28] sm:$0xf]
    %v25 = vld [vmem:[%s1 + $0x2c] sm:$0xf]
    %v26 = vld [vmem:[%s1 + $0x30] sm:$0xf]
    %v27 = vld [vmem:[%s1 + $0x34] sm:$0xf]
    %v28 = vld [vmem:[%s1 + $0x38] sm:$0xf]
    %v29 = vld [vmem:[%s1 + $0x3c] sm:$0xf]
    %v30 = vld [vmem:[%s1 + $0x40] sm:$0xf]
    %v31 = vld [vmem:[%s1 + $0x44] sm:$0xf]
    %v32 = vld [vmem:[%s1 + $0x48] sm:$0xf]
    %v33 = vld [vmem:[%s1 + $0x4c] sm:$0xf]
    %v34 = vld [vmem:[%s1 + $0x50] sm:$0xf]
    %v35 = vld [vmem:[%s1 + $0x54] sm:$0xf]
    %v36 = vld [vmem:[%s1 + $0x58] sm:$0xf]
    %v37 = vld [vmem:[%s1 + $0x5c] sm:$0xf]
    %v38 = vld [vmem:[%s1 + $0x60] sm:$0xf]
    %v39 = vld [vmem:[%s1 + $0x64] sm:$0xf]
    %v40 = vld [vmem:[%s1 + $0x68] sm:$0xf]
    %v43 = vunpack.c.l.s4 1966171168
    %v44 = vunpack.c.0.s8 %v43
    %v45 = vlaneseq
    %v46 = vshrl.u32 %v45, 7
    %v47 = vsub.s32 %v44, %v46
    %v48 = vrot.slane %v13, %v47
    %v49 = vcombine.high %v48, %v48
    %v51 = vunpack.c.l.s4 1966171168
    %v52 = vunpack.c.0.s8 %v51
    %v53 = vlaneseq
    %v54 = vshrl.u32 %v53, 7
    %v55 = vsub.s32 %v52, %v54
    %v56 = vrot.slane %v48, %v55
    %v58 = vunpack.c.l.s4 1966171168
    %v59 = vunpack.c.0.s8 %v58
    %v60 = vlaneseq
    %v61 = vshrl.u32 %v60, 7
    %v62 = vsub.s32 %v59, %v61
    %v63 = vrot.slane %v49, %v62
    %v92 = vunpack.c.l.b16 %v14
    %v93 = vunpack.c.l.b16 %v15
    %v94 = vunpack.c.l.b16 %v16
    %v95 = vunpack.c.l.b16 %v17
    %v96 = vunpack.c.l.b16 %v18
    %v97 = vunpack.c.l.b16 %v19
    %v98 = vunpack.c.l.b16 %v20
    %v99 = vunpack.c.l.b16 %v21
    %v100 = vunpack.c.l.b16 %v22
    %v101 = vunpack.c.l.b16 %v23
    %v102 = vunpack.c.l.b16 %v24
    %v103 = vunpack.c.l.b16 %v25
    %v104 = vunpack.c.l.b16 %v26
    %v105 = vunpack.c.l.b16 %v27
    %v106 = vunpack.c.l.b16 %v28
    %v107 = vunpack.c.l.b16 %v29
    %v108 = vunpack.c.l.b16 %v30
    %v109 = vunpack.c.l.b16 %v31
    %v110 = vunpack.c.l.b16 %v32
    %v111 = vunpack.c.l.b16 %v33
    %v112 = vunpack.c.l.b16 %v34
    %v113 = vunpack.c.l.b16 %v35
    %v114 = vunpack.c.l.b16 %v36
    %v115 = vunpack.c.l.b16 %v37
    %v116 = vunpack.c.l.b16 %v38
    %v117 = vunpack.c.l.b16 %v39
    %v118 = vunpack.c.l.b16 %v40
    %v119 = vpack.c.b16 %v93, %v92
    %v120 = vpack.c.b16 %v95, %v94
    %v121 = vpack.c.b16 %v97, %v96
    %v122 = vpack.c.b16 %v99, %v98
    %v123 = vpack.c.b16 %v101, %v100
    %v124 = vpack.c.b16 %v103, %v102
    %v125 = vpack.c.b16 %v105, %v104
    %v126 = vpack.c.b16 %v107, %v106
    %v127 = vpack.c.b16 %v109, %v108
    %v128 = vpack.c.b16 %v111, %v110
    %v129 = vpack.c.b16 %v113, %v112
    %v130 = vpack.c.b16 %v115, %v114
    %v131 = vpack.c.b16 %v117, %v116
    %v132 = vpack.c.b16 %v118, %v118
    %vm146 = vcmask 719872
    %v148 = vsel %vm146, %v63, 0
    %vm150 = vcmask 1043456
    %v152 = vsel %vm150, %v132, 0
    %154 = vmatprep.subr.bf16.mxu0 0
    %155 = vmatpush1.bf16.msra.mxu0 %v126
    %156 = vmatprep.subr.bf16.mxu0 0
    %157 = vmatpush1.bf16.msra.mxu0 %v125
    %158 = vmatprep.subr.bf16.mxu0 0
    %159 = vmatpush1.bf16.msra.mxu0 %v124
    %160 = vmatprep.subr.bf16.mxu0 0
    %161 = vmatpush1.bf16.msra.mxu0 %v123
    %162 = vmatprep.subr.bf16.mxu0 0
    %163 = vmatpush1.bf16.msra.mxu0 %v122
    %164 = vmatprep.subr.bf16.mxu0 0
    %165 = vmatpush1.bf16.msra.mxu0 %v121
    %166 = vmatprep.subr.bf16.mxu0 0
    %167 = vmatpush1.bf16.msra.mxu0 %v120
    %168 = vmatprep.subr.bf16.mxu0 0
    %169 = vmatpush1.bf16.msra.mxu0 %v119
    %170 = vmatprep.subr.bf16.mxu0 0
    %171 = vmatpush2.bf16.msra.mxu0 0
    %172 = vmatprep.subr.bf16.mxu0 0
    %173 = vmatpush2.bf16.msra.mxu0 0
    %174 = vmatprep.subr.bf16.mxu0 0
    %175 = vmatpush2.bf16.msra.mxu0 %v152
    %176 = vmatprep.subr.bf16.mxu0 0
    %177 = vmatpush2.bf16.msra.mxu0 %v131
    %178 = vmatprep.subr.bf16.mxu0 0
    %179 = vmatpush2.bf16.msra.mxu0 %v130
    %180 = vmatprep.subr.bf16.mxu0 0
    %181 = vmatpush2.bf16.msra.mxu0 %v129
    %182 = vmatprep.subr.bf16.mxu0 0
    %183 = vmatpush2.bf16.msra.mxu0 %v128
    %184 = vmatprep.subr.bf16.mxu0 0
    %185 = vmatpush2.bf16.msra.mxu0 %v127
    %186 = vmatprep.mubr.bf16.mxu0 %v148
    %187 = vmatmul.mubr.bf16.gmra.mxu0 %v56
    %v188 = vpop.f32.mrf.mxu0
    %v189 = vadd.f32 0.0, %v188
    %v190 = vpop.f32.mrf.mxu0
    %v191 = vpop.f32.mrf.mxu0
    %v192 = vpop.f32.mrf.mxu0
    %193 = vdwg.mxu0
    %vm194 = vcmask 254976
    %195 = vst.msk [vmem:[#allocation2] sm:$0x3] %vm194, %v189
    // Predicated region
    $region10: #{d_res_3d_cnn_forward.29} parent=1 // pred_check
      _
    $region11: #{d_res_3d_cnn_forward.29} parent=1 // pred_check_branch
      %197 = sbr.rel (0) target = $region13
    $region12: #{d_res_3d_cnn_forward.29} parent=1 // pred_region
      %s199 = ssub.s32 32, 32
      %200 = vsyncadd [#allocation3], %s199
      %s202 = sshll.u32 [#allocation2], 4
      %s203 = int_to_ptr.vmem [resolvable:$true] %s202
      %205 = dma.vmem_to_hbm [thread:$0]  %s203, 32, %s2, [#allocation3]
    $region13: #{d_res_3d_cnn_forward.29} parent=1 // pred_fallthru
      _
    // Predicated region
    $region14: #{d_res_3d_cnn_forward.29} parent=1 // pred_check
      _
    $region15: #{d_res_3d_cnn_forward.29} parent=1 // pred_check_branch
      %207 = sbr.rel (0) target = $region17
    $region16: #{d_res_3d_cnn_forward.29} parent=1 // pred_region
      %208 = dma.done [#allocation3], 32
    $region17: #{d_res_3d_cnn_forward.29} parent=1 // pred_fallthru
      _
    %209 = vsyncpa [#allocation3], 1

</llo_original>
